<compile_context>
chip_gen: v7x
topology: tpu7x:2x2x1
jax: 0.10.0
libtpu: 0.0.40
codegen_flags: <defaults>
</compile_context>

<pallas_src>
import numpy as np
import jax
import jax.numpy as jnp
from jax.experimental import pallas as pl
from jax.experimental.pallas import tpu as pltpu


ROW_ALIGN = 8     # sublane alignment for node / edge row counts
FEAT_ALIGN = 8    # alignment for raw input feature widths (matches weight K pad)
LN_EPS = 1e-5


# -----------------------------------------------------------------------------
# Parameter packing: every weight / bias / LN tensor -> one contiguous
# (rows, width) f32 slab.  Single DMA; static ref-slice views inside the kernel.
# -----------------------------------------------------------------------------
def pack_params_to_slab(params, latent_size):
    all_mlps = [params["node_encoder"], params["mesh_encoder"],
                params["world_encoder"], params["decoder"]]
    for s in params["steps"]:
        all_mlps += [s["mesh_edge"], s["world_edge"], s["node"]]
    width = max(max(w.shape[1] for w in m["w"]) for m in all_mlps)

    chunks = []
    cursor = 0

    def add(arr):
        nonlocal cursor
        arr = jnp.asarray(arr, jnp.float32)
        r, c = arr.shape
        rp = -(-r // ROW_ALIGN) * ROW_ALIGN
        chunks.append(jnp.pad(arr, ((0, rp - r), (0, width - c))))
        off = cursor
        cursor += rp
        return off, rp

    def add_mlp(p, split_k=None):
        ws, bs, ln = p["w"], p["b"], p["ln"]
        if split_k is None:
            first = [add(ws[0])]
        else:
            # Split the (n_blk*latent, h) first layer into K-blocks so
            # concat([a,b,c]) @ W1 == a@W1a + b@W1b + c@W1c (exact).
            w0 = ws[0]
            n_blk = w0.shape[0] // split_k
            first = [add(w0[i * split_k:(i + 1) * split_k]) for i in range(n_blk)]
        b0_off, _ = add(bs[0])
        rest = []
        for w, b in zip(ws[1:], bs[1:]):
            w_off, w_rows = add(w)
            b_off, _ = add(b)
            rest.append((w_off, w_rows, b_off))
        ln_layout = None
        if ln is not None:
            g_off, _ = add(ln[0])
            bt_off, _ = add(ln[1])
            ln_layout = (g_off, bt_off)
        return {"first": first, "b0": b0_off, "rest": rest,
                "ln": ln_layout, "ln_dim": ws[-1].shape[1]}

    layouts = {
        "node_encoder": add_mlp(params["node_encoder"]),
        "mesh_encoder": add_mlp(params["mesh_encoder"]),
        "world_encoder": add_mlp(params["world_encoder"]),
        "decoder": add_mlp(params["decoder"]),
        "steps": [{"mesh_edge": add_mlp(s["mesh_edge"], split_k=latent_size),
                   "world_edge": add_mlp(s["world_edge"], split_k=latent_size),
                   "node": add_mlp(s["node"], split_k=latent_size)}
                  for s in params["steps"]],
    }
    slab = jnp.concatenate(chunks, axis=0)
    return slab, layouts


# -----------------------------------------------------------------------------
# Gather / scatter helpers (used both by the kernel and the support probe)
# -----------------------------------------------------------------------------
def _direct_gather(mat, idx_col):
    """Row gather mat[idx] via take_along_axis (lowers to tpu dynamic_gather)."""
    idx = jnp.broadcast_to(idx_col, (idx_col.shape[0], mat.shape[1]))
    return jnp.take_along_axis(mat, idx, axis=0)


def _onehot_gather(mat, idx_col):
    """Fallback: row gather as a one-hot matmul on the MXU."""
    e, n = idx_col.shape[0], mat.shape[0]
    onehot = (jax.lax.broadcasted_iota(jnp.int32, (e, n), 1) == idx_col
              ).astype(jnp.float32)
    return jnp.dot(onehot, mat, preferred_element_type=jnp.float32)


def _scatter_sum(edge_feats, dst_row, n_rows):
    """Segment-sum edge rows into n_rows node rows via a one-hot matmul."""
    e = dst_row.shape[1]
    onehot = (jax.lax.broadcasted_iota(jnp.int32, (n_rows, e), 0) == dst_row
              ).astype(jnp.float32)
    return jnp.dot(onehot, edge_feats, preferred_element_type=jnp.float32)


_GATHER_PROBE_CACHE = {}


def _gather_supported(n_src, n_idx, cols):
    """Compile + numerically verify the direct-gather pattern at exact shapes."""
    key = (int(n_src), int(n_idx), int(cols))
    if key in _GATHER_PROBE_CACHE:
        return _GATHER_PROBE_CACHE[key]

    def probe_kernel(x_ref, i_ref, o_ref):
        o_ref[...] = _direct_gather(x_ref[...], i_ref[...])

    ok = False
    try:
        x = jax.random.normal(jax.random.PRNGKey(1), (n_src, cols), jnp.float32)
        idx = (jnp.arange(n_idx, dtype=jnp.int32) * 131) % n_src
        out = pl.pallas_call(
            probe_kernel,
            out_shape=jax.ShapeDtypeStruct((n_idx, cols), jnp.float32),
        )(x, idx.reshape(n_idx, 1))
        out = np.asarray(jax.block_until_ready(out))
        ok = bool(np.allclose(out, np.asarray(x)[np.asarray(idx)],
                              rtol=1e-6, atol=1e-6))
    except Exception:
        ok = False
    _GATHER_PROBE_CACHE[key] = ok
    return ok


# -----------------------------------------------------------------------------
# Fused Pallas kernel: whole MeshGraphNet forward, everything VMEM-resident
# -----------------------------------------------------------------------------
def build_meshgraphnet_kernel(layouts, nf_pad, use_direct_gather):
    gather = _direct_gather if use_direct_gather else _onehot_gather
    steps = layouts["steps"]

    def apply_mlp(slab_ref, layout, xs):
        # First layer as a sum of K-blocks (replaces 3-way feature concat).
        acc = None
        for x, (w_off, w_rows) in zip(xs, layout["first"]):
            w = slab_ref[w_off:w_off + w_rows, :]
            d = jnp.dot(x, w, preferred_element_type=jnp.float32)
            acc = d if acc is None else acc + d
        b0 = layout["b0"]
        h = acc + slab_ref[b0:b0 + 1, :]
        n_rest = len(layout["rest"])
        if n_rest:
            h = jnp.maximum(h, 0.0)
        for i, (w_off, w_rows, b_off) in enumerate(layout["rest"]):
            w = slab_ref[w_off:w_off + w_rows, :]
            h = (jnp.dot(h, w, preferred_element_type=jnp.float32)
                 + slab_ref[b_off:b_off + 1, :])
            if i < n_rest - 1:
                h = jnp.maximum(h, 0.0)
        if layout["ln"] is not None:
            g_off, bt_off = layout["ln"]
            gamma = slab_ref[g_off:g_off + 1, :]
            beta = slab_ref[bt_off:bt_off + 1, :]
            d_real = layout["ln_dim"]
            hs = h if d_real == h.shape[-1] else h[:, :d_real]
            mean = jnp.mean(hs, axis=-1, keepdims=True)
            var = jnp.mean((hs - mean) ** 2, axis=-1, keepdims=True)
            # Padded lanes (if any) stay zero because gamma/beta pads are zero.
            h = (h - mean) * jax.lax.rsqrt(var + LN_EPS) * gamma + beta
        return h

    def kernel(comb_ref, mesh_ref, world_ref,
               m_src_ref, m_dst_ref, m_dstrow_ref,
               w_src_ref, w_dst_ref, w_dstrow_ref,
               slab_ref, out_ref):
        # ---------------- encode (fluid + env in ONE encoder matmul) --------
        comb_lat = apply_mlp(slab_ref, layouts["node_encoder"], [comb_ref[...]])
        fl = comb_lat[:nf_pad]
        ev = comb_lat[nf_pad:]
        me = apply_mlp(slab_ref, layouts["mesh_encoder"], [mesh_ref[...]])
        we = apply_mlp(slab_ref, layouts["world_encoder"], [world_ref[...]])

        m_src = m_src_ref[...]
        m_dst = m_dst_ref[...]
        m_dst_row = m_dstrow_ref[...]
        w_src = w_src_ref[...]
        w_dst = w_dst_ref[...]
        w_dst_row = w_dstrow_ref[...]

        # ---------------- process (unrolled at trace time) ------------------
        for s in steps:
            fl_src = gather(fl, m_src)
            fl_dst = gather(fl, m_dst)
            me = me + apply_mlp(slab_ref, s["mesh_edge"], [fl_src, fl_dst, me])

            ev_src = gather(ev, w_src)
            fl_wdst = gather(fl, w_dst)
            we = we + apply_mlp(slab_ref, s["world_edge"], [ev_src, fl_wdst, we])

            agg_m = _scatter_sum(me, m_dst_row, nf_pad)
            agg_w = _scatter_sum(we, w_dst_row, nf_pad)
            fl = fl + apply_mlp(slab_ref, s["node"], [fl, agg_m, agg_w])

        # ---------------- decode --------------------------------------------
        out_ref[...] = apply_mlp(slab_ref, layouts["decoder"], [fl]
                                 ).astype(out_ref.dtype)

    return kernel


# -----------------------------------------------------------------------------
# Wrapper
# -----------------------------------------------------------------------------
def _pad2(x, row_align, col_align):
    r, c = x.shape
    rp = -(-r // row_align) * row_align
    cp = -(-c // col_align) * col_align
    if rp == r and cp == c:
        return x
    return jnp.pad(x, ((0, rp - r), (0, cp - c)))


def _pad_gather_idx(idx, e_pad):
    idx = jnp.asarray(idx, jnp.int32)
    e = idx.shape[0]
    if e_pad > e:   # padded edges gather row 0 (valid; output never reaches nodes)
        idx = jnp.concatenate([idx, jnp.zeros((e_pad - e,), jnp.int32)])
    return idx


def _pad_scatter_idx(idx, e_pad):
    idx = jnp.asarray(idx, jnp.int32)
    e = idx.shape[0]
    if e_pad > e:   # sentinel -1 never matches a node row -> no contribution
        idx = jnp.concatenate([idx, jnp.full((e_pad - e,), -1, jnp.int32)])
    return idx


def pallas_meshgraphnet_forward(inputs, params, latent_size, output_size):
    assert latent_size % ROW_ALIGN == 0
    fluid_x = inputs["fluid_node_attr"]
    env_x = inputs["env_node_attr"]
    mesh_e = inputs["mesh_edge_attr"]
    world_e = inputs["world_edge_attr"]
    mesh_src, mesh_dst = inputs["mesh_edge_index"]
    world_src, world_dst = inputs["world_edge_index"]
    n_fluid = fluid_x.shape[0]

    slab, layouts = pack_params_to_slab(params, latent_size)

    fluid_p = _pad2(fluid_x, ROW_ALIGN, FEAT_ALIGN)
    env_p = _pad2(env_x, ROW_ALIGN, FEAT_ALIGN)
    comb = jnp.concatenate([fluid_p, env_p], axis=0)
    mesh_p = _pad2(mesh_e, ROW_ALIGN, FEAT_ALIGN)
    world_p = _pad2(world_e, ROW_ALIGN, FEAT_ALIGN)

    nf_pad, ne_pad = fluid_p.shape[0], env_p.shape[0]
    em_pad, ew_pad = mesh_p.shape[0], world_p.shape[0]

    m_src = _pad_gather_idx(mesh_src, em_pad).reshape(em_pad, 1)
    m_dst = _pad_gather_idx(mesh_dst, em_pad).reshape(em_pad, 1)
    m_dst_row = _pad_scatter_idx(mesh_dst, em_pad).reshape(1, em_pad)
    w_src = _pad_gather_idx(world_src, ew_pad).reshape(ew_pad, 1)
    w_dst = _pad_gather_idx(world_dst, ew_pad).reshape(ew_pad, 1)
    w_dst_row = _pad_scatter_idx(world_dst, ew_pad).reshape(1, ew_pad)

    gather_shapes = sorted({(nf_pad, em_pad), (nf_pad, ew_pad), (ne_pad, ew_pad)})
    use_gather = all(_gather_supported(ns, ni, latent_size)
                     for ns, ni in gather_shapes)

    args = (comb, mesh_p, world_p, m_src, m_dst, m_dst_row,
            w_src, w_dst, w_dst_row, slab)
    vmem_spec = pl.BlockSpec(memory_space=pltpu.MemorySpace.VMEM)
    width = slab.shape[1]

    def run(direct_gather_flag):
        kernel = build_meshgraphnet_kernel(layouts, nf_pad, direct_gather_flag)
        return pl.pallas_call(
            kernel,
            out_shape=jax.ShapeDtypeStruct((nf_pad, width), jnp.float32),
            in_specs=[vmem_spec] * len(args),
            out_specs=vmem_spec,
            compiler_params=pltpu.CompilerParams(
                vmem_limit_bytes=32 * 1024 * 1024),
        )(*args)

    try:
        out = jax.block_until_ready(run(use_gather))
    except Exception:
        if not use_gather:
            raise
        out = jax.block_until_ready(run(False))   # one-hot gather fallback
    return out[:n_fluid, :output_size]


# -----------------------------------------------------------------------------
# Pure-JAX reference (defines the semantics; used for the correctness check)
# -----------------------------------------------------------------------------
def ref_mlp(x, params):
    ws, bs, ln = params["w"], params["b"], params["ln"]
    h = x
    n = len(ws)
    for i, (w, b) in enumerate(zip(ws, bs)):
        h = h @ w + b
        if i < n - 1:
            h = jnp.maximum(h, 0.0)
    if ln is not None:
        gamma, beta = ln
        mean = jnp.mean(h, axis=-1, keepdims=True)
        var = jnp.mean((h - mean) ** 2, axis=-1, keepdims=True)
        h = (h - mean) * jax.lax.rsqrt(var + LN_EPS) * gamma + beta
    return h


def ref_segment_sum(edge_feats, receivers, n_nodes):
    return jax.ops.segment_sum(edge_feats, receivers, num_segments=n_nodes)


def ref_meshgraphnet_forward(inputs, params):
    fluid_x = inputs["fluid_node_attr"]
    env_x = inputs["env_node_attr"]
    mesh_e = inputs["mesh_edge_attr"]
    world_e = inputs["world_edge_attr"]
    mesh_src, mesh_dst = inputs["mesh_edge_index"]
    world_src, world_dst = inputs["world_edge_index"]
    n_fluid = fluid_x.shape[0]

    combined = jnp.concatenate([fluid_x, env_x], axis=0)
    combined_lat = ref_mlp(combined, params["node_encoder"])
    fl, ev = combined_lat[:n_fluid], combined_lat[n_fluid:]
    me = ref_mlp(mesh_e, params["mesh_encoder"])
    we = ref_mlp(world_e, params["world_encoder"])

    for step in params["steps"]:
        mesh_in = jnp.concatenate([fl[mesh_src], fl[mesh_dst], me], axis=-1)
        me = me + ref_mlp(mesh_in, step["mesh_edge"])
        world_in = jnp.concatenate([ev[world_src], fl[world_dst], we], axis=-1)
        we = we + ref_mlp(world_in, step["world_edge"])
        agg_mesh = ref_segment_sum(me, mesh_dst, n_fluid)
        agg_world = ref_segment_sum(we, world_dst, n_fluid)
        node_in = jnp.concatenate([fl, agg_mesh, agg_world], axis=-1)
        fl = fl + ref_mlp(node_in, step["node"])

    return ref_mlp(fl, params["decoder"])


# -----------------------------------------------------------------------------
# Parameter construction (deterministic, synthetic)
# -----------------------------------------------------------------------------
def init_mlp_params(key, widths, layer_norm):
    ws, bs = [], []
    for i in range(len(widths) - 1):
        key, kw, kb = jax.random.split(key, 3)
        fan_in = widths[i]
        ws.append(jax.random.normal(kw, (widths[i], widths[i + 1]), jnp.float32)
                  / np.sqrt(fan_in))
        bs.append(0.01 * jax.random.normal(kb, (1, widths[i + 1]), jnp.float32))
    ln = None
    if layer_norm:
        ln = (jnp.ones((1, widths[-1]), jnp.float32),
              jnp.zeros((1, widths[-1]), jnp.float32))
    return {"w": ws, "b": bs, "ln": ln}, key


def init_meshgraphnet_params(key, output_size, latent_size, num_layers,
                             n_nodefeat, n_edgefeat_mesh, n_edgefeat_world,
                             message_passing_steps):
    def widths(in_size, out_size):
        return [in_size] + [latent_size] * num_layers + [out_size]

    params = {}
    params["node_encoder"], key = init_mlp_params(key, widths(n_nodefeat, latent_size), True)
    params["mesh_encoder"], key = init_mlp_params(key, widths(n_edgefeat_mesh, latent_size), True)
    params["world_encoder"], key = init_mlp_params(key, widths(n_edgefeat_world, latent_size), True)
    params["decoder"], key = init_mlp_params(key, widths(latent_size, output_size), False)
    steps = []
    for _ in range(message_passing_steps):
        step = {}
        step["mesh_edge"], key = init_mlp_params(key, widths(3 * latent_size, latent_size), True)
        step["world_edge"], key = init_mlp_params(key, widths(3 * latent_size, latent_size), True)
        step["node"], key = init_mlp_params(key, widths(3 * latent_size, latent_size), True)
        steps.append(step)
    params["steps"] = steps
    return params, key


# -----------------------------------------------------------------------------
# Main
# -----------------------------------------------------------------------------
if __name__ == "__main__":
    OUTPUT_SIZE = 3
    LATENT_SIZE = 32
    NUM_LAYERS = 2
    N_NODEFEAT = 6
    N_EDGEFEAT_MESH = 7
    N_EDGEFEAT_WORLD = 4
    MP_STEPS = 2

    N_FLUID, N_ENV = 64, 16
    E_MESH, E_WORLD = 96, 48

    key = jax.random.PRNGKey(0)
    params, key = init_meshgraphnet_params(
        key, OUTPUT_SIZE, LATENT_SIZE, NUM_LAYERS,
        N_NODEFEAT, N_EDGEFEAT_MESH, N_EDGEFEAT_WORLD, MP_STEPS)

    key, k1, k2, k3, k4, k5, k6, k7, k8 = jax.random.split(key, 9)
    inputs = {
        "fluid_node_attr": jax.random.normal(k1, (N_FLUID, N_NODEFEAT), jnp.float32),
        "env_node_attr": jax.random.normal(k2, (N_ENV, N_NODEFEAT), jnp.float32),
        "mesh_edge_attr": jax.random.normal(k3, (E_MESH, N_EDGEFEAT_MESH), jnp.float32),
        "world_edge_attr": jax.random.normal(k4, (E_WORLD, N_EDGEFEAT_WORLD), jnp.float32),
        "mesh_edge_index": (
            jax.random.randint(k5, (E_MESH,), 0, N_FLUID, jnp.int32),
            jax.random.randint(k6, (E_MESH,), 0, N_FLUID, jnp.int32),
        ),
        "world_edge_index": (
            jax.random.randint(k7, (E_WORLD,), 0, N_ENV, jnp.int32),
            jax.random.randint(k8, (E_WORLD,), 0, N_FLUID, jnp.int32),
        ),
    }

    # Fused Pallas forward.
    out_pallas = pallas_meshgraphnet_forward(inputs, params,
                                             LATENT_SIZE, OUTPUT_SIZE)
    out_pallas = jax.block_until_ready(out_pallas)

    # Pure-JAX reference forward.
    out_ref = jax.block_until_ready(ref_meshgraphnet_forward(inputs, params))

    assert out_pallas.shape == (N_FLUID, OUTPUT_SIZE)
    assert jnp.allclose(out_pallas, out_ref, rtol=1e-3, atol=1e-3), (
        float(jnp.max(jnp.abs(out_pallas - out_ref))))

    print("KERNEL_OK")
</pallas_src>

<mosaic_0001>
module attributes {stable_mosaic.version = 11 : i64} {
  func.func @probe_kernel(%arg0: memref<16x32xf32, #tpu.memory_space<vmem>>, %arg1: memref<48x1xi32, #tpu.memory_space<vmem>>, %arg2: memref<48x32xf32, #tpu.memory_space<vmem>>) attributes {dimension_semantics = [], scalar_prefetch = 0 : i64, scratch_operands = 0 : i64, tpu.core_type = #tpu.core_type<tc>} {
    %c0 = arith.constant 0 : index
    %c0_0 = arith.constant 0 : index
    %0 = vector.load %arg0[%c0, %c0_0] : memref<16x32xf32, #tpu.memory_space<vmem>>, vector<16x32xf32>
    %c0_1 = arith.constant 0 : index
    %c0_2 = arith.constant 0 : index
    %1 = vector.load %arg1[%c0_1, %c0_2] : memref<48x1xi32, #tpu.memory_space<vmem>>, vector<48x1xi32>
    %2 = vector.shape_cast %1 : vector<48x1xi32> to vector<48x1xi32>
    %3 = vector.broadcast %2 : vector<48x1xi32> to vector<48x32xi32>
    %c0_i32 = arith.constant 0 : i32
    %4 = vector.broadcast %c0_i32 : i32 to vector<48x32xi32>
    %5 = arith.cmpi slt, %3, %4 : vector<48x32xi32>
    %c16_i32 = arith.constant 16 : i32
    %6 = vector.broadcast %c16_i32 : i32 to vector<48x32xi32>
    %7 = arith.addi %3, %6 : vector<48x32xi32>
    %8 = arith.select %5, %7, %3 : vector<48x32xi1>, vector<48x32xi32>
    %9 = vector.shape_cast %8 : vector<48x32xi32> to vector<48x32x1xi32>
    %10 = vector.shape_cast %9 : vector<48x32x1xi32> to vector<48x32xi32>
    %11 = tpu.dynamic_gather %0[%10] in [0] : vector<16x32xf32>, vector<48x32xi32> -> vector<48x32xf32>
    %c0_3 = arith.constant 0 : index
    %c0_4 = arith.constant 0 : index
    %12 = vector.load %arg2[%c0_3, %c0_4] : memref<48x32xf32, #tpu.memory_space<vmem>>, vector<48x32xf32>
    tpu.vector_store %arg2[%c0_3, %c0_4], %11 {strides = array<i32>} : memref<48x32xf32, #tpu.memory_space<vmem>>, vector<48x32xf32>,
    return
  }
}

module attributes {stable_mosaic.version = 11 : i64} {
  func.func @kernel(%arg0: memref<80x8xf32, #tpu.memory_space<vmem>>, %arg1: memref<96x8xf32, #tpu.memory_space<vmem>>, %arg2: memref<48x8xf32, #tpu.memory_space<vmem>>, %arg3: memref<96x1xi32, #tpu.memory_space<vmem>>, %arg4: memref<96x1xi32, #tpu.memory_space<vmem>>, %arg5: memref<1x96xi32, #tpu.memory_space<vmem>>, %arg6: memref<48x1xi32, #tpu.memory_space<vmem>>, %arg7: memref<48x1xi32, #tpu.memory_space<vmem>>, %arg8: memref<1x48xi32, #tpu.memory_space<vmem>>, %arg9: memref<1656x32xf32, #tpu.memory_space<vmem>>, %arg10: memref<64x32xf32, #tpu.memory_space<vmem>>) attributes {dimension_semantics = [], scalar_prefetch = 0 : i64, scratch_operands = 0 : i64, tpu.core_type = #tpu.core_type<tc>} {
    %c0 = arith.constant 0 : index
    %c0_0 = arith.constant 0 : index
    %0 = vector.load %arg0[%c0, %c0_0] : memref<80x8xf32, #tpu.memory_space<vmem>>, vector<80x8xf32>
    %c0_1 = arith.constant 0 : index
    %c0_2 = arith.constant 0 : index
    %1 = vector.load %arg9[%c0_1, %c0_2] : memref<1656x32xf32, #tpu.memory_space<vmem>>, vector<8x32xf32>
    %cst = arith.constant dense<0.000000e+00> : vector<80x32xf32>
    %2 = tpu.matmul %0, %1, %cst {dimension_numbers = #tpu.dot_dimension_numbers<[1], [0], [0], [1], [0, 0, 1, 1], [], []>} : vector<80x8xf32>, vector<8x32xf32>, vector<80x32xf32> -> vector<80x32xf32>
    %c8 = arith.constant 8 : index
    %c0_3 = arith.constant 0 : index
    %3 = vector.load %arg9[%c8, %c0_3] : memref<1656x32xf32, #tpu.memory_space<vmem>>, vector<1x32xf32>
    %4 = vector.broadcast %3 : vector<1x32xf32> to vector<80x32xf32>
    %5 = arith.addf %2, %4 : vector<80x32xf32>
    %cst_4 = arith.constant 0.000000e+00 : f32
    %6 = vector.broadcast %cst_4 : f32 to vector<80x32xf32>
    %7 = arith.maximumf %5, %6 : vector<80x32xf32>
    %c16 = arith.constant 16 : index
    %c0_5 = arith.constant 0 : index
    %8 = vector.load %arg9[%c16, %c0_5] : memref<1656x32xf32, #tpu.memory_space<vmem>>, vector<32x32xf32>
    %cst_6 = arith.constant dense<0.000000e+00> : vector<80x32xf32>
    %9 = tpu.matmul %7, %8, %cst_6 {dimension_numbers = #tpu.dot_dimension_numbers<[1], [0], [0], [1], [0, 0, 1, 1], [], []>} : vector<80x32xf32>, vector<32x32xf32>, vector<80x32xf32> -> vector<80x32xf32>
    %c48 = arith.constant 48 : index
    %c0_7 = arith.constant 0 : index
    %10 = vector.load %arg9[%c48, %c0_7] : memref<1656x32xf32, #tpu.memory_space<vmem>>, vector<1x32xf32>
    %11 = vector.broadcast %10 : vector<1x32xf32> to vector<80x32xf32>
    %12 = arith.addf %9, %11 : vector<80x32xf32>
    %cst_8 = arith.constant 0.000000e+00 : f32
    %13 = vector.broadcast %cst_8 : f32 to vector<80x32xf32>
    %14 = arith.maximumf %12, %13 : vector<80x32xf32>
    %c56 = arith.constant 56 : index
    %c0_9 = arith.constant 0 : index
    %15 = vector.load %arg9[%c56, %c0_9] : memref<1656x32xf32, #tpu.memory_space<vmem>>, vector<32x32xf32>
    %cst_10 = arith.constant dense<0.000000e+00> : vector<80x32xf32>
    %16 = tpu.matmul %14, %15, %cst_10 {dimension_numbers = #tpu.dot_dimension_numbers<[1], [0], [0], [1], [0, 0, 1, 1], [], []>} : vector<80x32xf32>, vector<32x32xf32>, vector<80x32xf32> -> vector<80x32xf32>
    %c88 = arith.constant 88 : index
    %c0_11 = arith.constant 0 : index
    %17 = vector.load %arg9[%c88, %c0_11] : memref<1656x32xf32, #tpu.memory_space<vmem>>, vector<1x32xf32>
    %18 = vector.broadcast %17 : vector<1x32xf32> to vector<80x32xf32>
    %19 = arith.addf %16, %18 : vector<80x32xf32>
    %c96 = arith.constant 96 : index
    %c0_12 = arith.constant 0 : index
    %20 = vector.load %arg9[%c96, %c0_12] : memref<1656x32xf32, #tpu.memory_space<vmem>>, vector<1x32xf32>
    %c104 = arith.constant 104 : index
    %c0_13 = arith.constant 0 : index
    %21 = vector.load %arg9[%c104, %c0_13] : memref<1656x32xf32, #tpu.memory_space<vmem>>, vector<1x32xf32>
    %cst_14 = arith.constant dense<0.000000e+00> : vector<80xf32>
    %22 = vector.multi_reduction <add>, %19, %cst_14 [1] : vector<80x32xf32> to vector<80xf32>
    %23 = vector.shape_cast %22 : vector<80xf32> to vector<80x1xf32>
    %cst_15 = arith.constant 3.200000e+01 : f32
    %24 = vector.broadcast %cst_15 : f32 to vector<80x1xf32>
    %25 = arith.divf %23, %24 : vector<80x1xf32>
    %26 = vector.broadcast %25 : vector<80x1xf32> to vector<80x32xf32>
    %27 = arith.subf %19, %26 : vector<80x32xf32>
    %28 = arith.mulf %27, %27 : vector<80x32xf32>
    %cst_16 = arith.constant dense<0.000000e+00> : vector<80xf32>
    %29 = vector.multi_reduction <add>, %28, %cst_16 [1] : vector<80x32xf32> to vector<80xf32>
    %30 = vector.shape_cast %29 : vector<80xf32> to vector<80x1xf32>
    %cst_17 = arith.constant 3.200000e+01 : f32
    %31 = vector.broadcast %cst_17 : f32 to vector<80x1xf32>
    %32 = arith.divf %30, %31 : vector<80x1xf32>
    %33 = vector.broadcast %25 : vector<80x1xf32> to vector<80x32xf32>
    %34 = arith.subf %19, %33 : vector<80x32xf32>
    %cst_18 = arith.constant 9.99999974E-6 : f32
    %35 = vector.broadcast %cst_18 : f32 to vector<80x1xf32>
    %36 = arith.addf %32, %35 : vector<80x1xf32>
    %37 = math.rsqrt %36 : vector<80x1xf32>
    %38 = vector.broadcast %37 : vector<80x1xf32> to vector<80x32xf32>
    %39 = arith.mulf %34, %38 : vector<80x32xf32>
    %40 = vector.broadcast %20 : vector<1x32xf32> to vector<80x32xf32>
    %41 = arith.mulf %39, %40 : vector<80x32xf32>
    %42 = vector.broadcast %21 : vector<1x32xf32> to vector<80x32xf32>
    %43 = arith.addf %41, %42 : vector<80x32xf32>
    %44 = vector.extract_strided_slice %43 {offsets = [0, 0], sizes = [64, 32], strides = [1, 1]} : vector<80x32xf32> to vector<64x32xf32>
    %45 = vector.extract_strided_slice %43 {offsets = [64, 0], sizes = [16, 32], strides = [1, 1]} : vector<80x32xf32> to vector<16x32xf32>
    %c0_19 = arith.constant 0 : index
    %c0_20 = arith.constant 0 : index
    %46 = vector.load %arg1[%c0_19, %c0_20] : memref<96x8xf32, #tpu.memory_space<vmem>>, vector<96x8xf32>
    %c112 = arith.constant 112 : index
    %c0_21 = arith.constant 0 : index
    %47 = vector.load %arg9[%c112, %c0_21] : memref<1656x32xf32, #tpu.memory_space<vmem>>, vector<8x32xf32>
    %cst_22 = arith.constant dense<0.000000e+00> : vector<96x32xf32>
    %48 = tpu.matmul %46, %47, %cst_22 {dimension_numbers = #tpu.dot_dimension_numbers<[1], [0], [0], [1], [0, 0, 1, 1], [], []>} : vector<96x8xf32>, vector<8x32xf32>, vector<96x32xf32> -> vector<96x32xf32>
    %c120 = arith.constant 120 : index
    %c0_23 = arith.constant 0 : index
    %49 = vector.load %arg9[%c120, %c0_23] : memref<1656x32xf32, #tpu.memory_space<vmem>>, vector<1x32xf32>
    %50 = vector.broadcast %49 : vector<1x32xf32> to vector<96x32xf32>
    %51 = arith.addf %48, %50 : vector<96x32xf32>
    %cst_24 = arith.constant 0.000000e+00 : f32
    %52 = vector.broadcast %cst_24 : f32 to vector<96x32xf32>
    %53 = arith.maximumf %51, %52 : vector<96x32xf32>
    %c128 = arith.constant 128 : index
    %c0_25 = arith.constant 0 : index
    %54 = vector.load %arg9[%c128, %c0_25] : memref<1656x32xf32, #tpu.memory_space<vmem>>, vector<32x32xf32>
    %cst_26 = arith.constant dense<0.000000e+00> : vector<96x32xf32>
    %55 = tpu.matmul %53, %54, %cst_26 {dimension_numbers = #tpu.dot_dimension_numbers<[1], [0], [0], [1], [0, 0, 1, 1], [], []>} : vector<96x32xf32>, vector<32x32xf32>, vector<96x32xf32> -> vector<96x32xf32>
    %c160 = arith.constant 160 : index
    %c0_27 = arith.constant 0 : index
    %56 = vector.load %arg9[%c160, %c0_27] : memref<1656x32xf32, #tpu.memory_space<vmem>>, vector<1x32xf32>
    %57 = vector.broadcast %56 : vector<1x32xf32> to vector<96x32xf32>
    %58 = arith.addf %55, %57 : vector<96x32xf32>
    %cst_28 = arith.constant 0.000000e+00 : f32
    %59 = vector.broadcast %cst_28 : f32 to vector<96x32xf32>
    %60 = arith.maximumf %58, %59 : vector<96x32xf32>
    %c168 = arith.constant 168 : index
    %c0_29 = arith.constant 0 : index
    %61 = vector.load %arg9[%c168, %c0_29] : memref<1656x32xf32, #tpu.memory_space<vmem>>, vector<32x32xf32>
    %cst_30 = arith.constant dense<0.000000e+00> : vector<96x32xf32>
    %62 = tpu.matmul %60, %61, %cst_30 {dimension_numbers = #tpu.dot_dimension_numbers<[1], [0], [0], [1], [0, 0, 1, 1], [], []>} : vector<96x32xf32>, vector<32x32xf32>, vector<96x32xf32> -> vector<96x32xf32>
    %c200 = arith.constant 200 : index
    %c0_31 = arith.constant 0 : index
    %63 = vector.load %arg9[%c200, %c0_31] : memref<1656x32xf32, #tpu.memory_space<vmem>>, vector<1x32xf32>
    %64 = vector.broadcast %63 : vector<1x32xf32> to vector<96x32xf32>
    %65 = arith.addf %62, %64 : vector<96x32xf32>
    %c208 = arith.constant 208 : index
    %c0_32 = arith.constant 0 : index
    %66 = vector.load %arg9[%c208, %c0_32] : memref<1656x32xf32, #tpu.memory_space<vmem>>, vector<1x32xf32>
    %c216 = arith.constant 216 : index
    %c0_33 = arith.constant 0 : index
    %67 = vector.load %arg9[%c216, %c0_33] : memref<1656x32xf32, #tpu.memory_space<vmem>>, vector<1x32xf32>
    %cst_34 = arith.constant dense<0.000000e+00> : vector<96xf32>
    %68 = vector.multi_reduction <add>, %65, %cst_34 [1] : vector<96x32xf32> to vector<96xf32>
    %69 = vector.shape_cast %68 : vector<96xf32> to vector<96x1xf32>
    %cst_35 = arith.constant 3.200000e+01 : f32
    %70 = vector.broadcast %cst_35 : f32 to vector<96x1xf32>
    %71 = arith.divf %69, %70 : vector<96x1xf32>
    %72 = vector.broadcast %71 : vector<96x1xf32> to vector<96x32xf32>
    %73 = arith.subf %65, %72 : vector<96x32xf32>
    %74 = arith.mulf %73, %73 : vector<96x32xf32>
    %cst_36 = arith.constant dense<0.000000e+00> : vector<96xf32>
    %75 = vector.multi_reduction <add>, %74, %cst_36 [1] : vector<96x32xf32> to vector<96xf32>
    %76 = vector.shape_cast %75 : vector<96xf32> to vector<96x1xf32>
    %cst_37 = arith.constant 3.200000e+01 : f32
    %77 = vector.broadcast %cst_37 : f32 to vector<96x1xf32>
    %78 = arith.divf %76, %77 : vector<96x1xf32>
    %79 = vector.broadcast %71 : vector<96x1xf32> to vector<96x32xf32>
    %80 = arith.subf %65, %79 : vector<96x32xf32>
    %cst_38 = arith.constant 9.99999974E-6 : f32
    %81 = vector.broadcast %cst_38 : f32 to vector<96x1xf32>
    %82 = arith.addf %78, %81 : vector<96x1xf32>
    %83 = math.rsqrt %82 : vector<96x1xf32>
    %84 = vector.broadcast %83 : vector<96x1xf32> to vector<96x32xf32>
    %85 = arith.mulf %80, %84 : vector<96x32xf32>
    %86 = vector.broadcast %66 : vector<1x32xf32> to vector<96x32xf32>
    %87 = arith.mulf %85, %86 : vector<96x32xf32>
    %88 = vector.broadcast %67 : vector<1x32xf32> to vector<96x32xf32>
    %89 = arith.addf %87, %88 : vector<96x32xf32>
    %c0_39 = arith.constant 0 : index
    %c0_40 = arith.constant 0 : index
    %90 = vector.load %arg2[%c0_39, %c0_40] : memref<48x8xf32, #tpu.memory_space<vmem>>, vector<48x8xf32>
    %c224 = arith.constant 224 : index
    %c0_41 = arith.constant 0 : index
    %91 = vector.load %arg9[%c224, %c0_41] : memref<1656x32xf32, #tpu.memory_space<vmem>>, vector<8x32xf32>
    %cst_42 = arith.constant dense<0.000000e+00> : vector<48x32xf32>
    %92 = tpu.matmul %90, %91, %cst_42 {dimension_numbers = #tpu.dot_dimension_numbers<[1], [0], [0], [1], [0, 0, 1, 1], [], []>} : vector<48x8xf32>, vector<8x32xf32>, vector<48x32xf32> -> vector<48x32xf32>
    %c232 = arith.constant 232 : index
    %c0_43 = arith.constant 0 : index
    %93 = vector.load %arg9[%c232, %c0_43] : memref<1656x32xf32, #tpu.memory_space<vmem>>, vector<1x32xf32>
    %94 = vector.broadcast %93 : vector<1x32xf32> to vector<48x32xf32>
    %95 = arith.addf %92, %94 : vector<48x32xf32>
    %cst_44 = arith.constant 0.000000e+00 : f32
    %96 = vector.broadcast %cst_44 : f32 to vector<48x32xf32>
    %97 = arith.maximumf %95, %96 : vector<48x32xf32>
    %c240 = arith.constant 240 : index
    %c0_45 = arith.constant 0 : index
    %98 = vector.load %arg9[%c240, %c0_45] : memref<1656x32xf32, #tpu.memory_space<vmem>>, vector<32x32xf32>
    %cst_46 = arith.constant dense<0.000000e+00> : vector<48x32xf32>
    %99 = tpu.matmul %97, %98, %cst_46 {dimension_numbers = #tpu.dot_dimension_numbers<[1], [0], [0], [1], [0, 0, 1, 1], [], []>} : vector<48x32xf32>, vector<32x32xf32>, vector<48x32xf32> -> vector<48x32xf32>
    %c272 = arith.constant 272 : index
    %c0_47 = arith.constant 0 : index
    %100 = vector.load %arg9[%c272, %c0_47] : memref<1656x32xf32, #tpu.memory_space<vmem>>, vector<1x32xf32>
    %101 = vector.broadcast %100 : vector<1x32xf32> to vector<48x32xf32>
    %102 = arith.addf %99, %101 : vector<48x32xf32>
    %cst_48 = arith.constant 0.000000e+00 : f32
    %103 = vector.broadcast %cst_48 : f32 to vector<48x32xf32>
    %104 = arith.maximumf %102, %103 : vector<48x32xf32>
    %c280 = arith.constant 280 : index
    %c0_49 = arith.constant 0 : index
    %105 = vector.load %arg9[%c280, %c0_49] : memref<1656x32xf32, #tpu.memory_space<vmem>>, vector<32x32xf32>
    %cst_50 = arith.constant dense<0.000000e+00> : vector<48x32xf32>
    %106 = tpu.matmul %104, %105, %cst_50 {dimension_numbers = #tpu.dot_dimension_numbers<[1], [0], [0], [1], [0, 0, 1, 1], [], []>} : vector<48x32xf32>, vector<32x32xf32>, vector<48x32xf32> -> vector<48x32xf32>
    %c312 = arith.constant 312 : index
    %c0_51 = arith.constant 0 : index
    %107 = vector.load %arg9[%c312, %c0_51] : memref<1656x32xf32, #tpu.memory_space<vmem>>, vector<1x32xf32>
    %108 = vector.broadcast %107 : vector<1x32xf32> to vector<48x32xf32>
    %109 = arith.addf %106, %108 : vector<48x32xf32>
    %c320 = arith.constant 320 : index
    %c0_52 = arith.constant 0 : index
    %110 = vector.load %arg9[%c320, %c0_52] : memref<1656x32xf32, #tpu.memory_space<vmem>>, vector<1x32xf32>
    %c328 = arith.constant 328 : index
    %c0_53 = arith.constant 0 : index
    %111 = vector.load %arg9[%c328, %c0_53] : memref<1656x32xf32, #tpu.memory_space<vmem>>, vector<1x32xf32>
    %cst_54 = arith.constant dense<0.000000e+00> : vector<48xf32>
    %112 = vector.multi_reduction <add>, %109, %cst_54 [1] : vector<48x32xf32> to vector<48xf32>
    %113 = vector.shape_cast %112 : vector<48xf32> to vector<48x1xf32>
    %cst_55 = arith.constant 3.200000e+01 : f32
    %114 = vector.broadcast %cst_55 : f32 to vector<48x1xf32>
    %115 = arith.divf %113, %114 : vector<48x1xf32>
    %116 = vector.broadcast %115 : vector<48x1xf32> to vector<48x32xf32>
    %117 = arith.subf %109, %116 : vector<48x32xf32>
    %118 = arith.mulf %117, %117 : vector<48x32xf32>
    %cst_56 = arith.constant dense<0.000000e+00> : vector<48xf32>
    %119 = vector.multi_reduction <add>, %118, %cst_56 [1] : vector<48x32xf32> to vector<48xf32>
    %120 = vector.shape_cast %119 : vector<48xf32> to vector<48x1xf32>
    %cst_57 = arith.constant 3.200000e+01 : f32
    %121 = vector.broadcast %cst_57 : f32 to vector<48x1xf32>
    %122 = arith.divf %120, %121 : vector<48x1xf32>
    %123 = vector.broadcast %115 : vector<48x1xf32> to vector<48x32xf32>
    %124 = arith.subf %109, %123 : vector<48x32xf32>
    %cst_58 = arith.constant 9.99999974E-6 : f32
    %125 = vector.broadcast %cst_58 : f32 to vector<48x1xf32>
    %126 = arith.addf %122, %125 : vector<48x1xf32>
    %127 = math.rsqrt %126 : vector<48x1xf32>
    %128 = vector.broadcast %127 : vector<48x1xf32> to vector<48x32xf32>
    %129 = arith.mulf %124, %128 : vector<48x32xf32>
    %130 = vector.broadcast %110 : vector<1x32xf32> to vector<48x32xf32>
    %131 = arith.mulf %129, %130 : vector<48x32xf32>
    %132 = vector.broadcast %111 : vector<1x32xf32> to vector<48x32xf32>
    %133 = arith.addf %131, %132 : vector<48x32xf32>
    %c0_59 = arith.constant 0 : index
    %c0_60 = arith.constant 0 : index
    %134 = vector.load %arg3[%c0_59, %c0_60] : memref<96x1xi32, #tpu.memory_space<vmem>>, vector<96x1xi32>
    %c0_61 = arith.constant 0 : index
    %c0_62 = arith.constant 0 : index
    %135 = vector.load %arg4[%c0_61, %c0_62] : memref<96x1xi32, #tpu.memory_space<vmem>>, vector<96x1xi32>
    %c0_63 = arith.constant 0 : index
    %c0_64 = arith.constant 0 : index
    %136 = vector.load %arg5[%c0_63, %c0_64] : memref<1x96xi32, #tpu.memory_space<vmem>>, vector<1x96xi32>
    %c0_65 = arith.constant 0 : index
    %c0_66 = arith.constant 0 : index
    %137 = vector.load %arg6[%c0_65, %c0_66] : memref<48x1xi32, #tpu.memory_space<vmem>>, vector<48x1xi32>
    %c0_67 = arith.constant 0 : index
    %c0_68 = arith.constant 0 : index
    %138 = vector.load %arg7[%c0_67, %c0_68] : memref<48x1xi32, #tpu.memory_space<vmem>>, vector<48x1xi32>
    %c0_69 = arith.constant 0 : index
    %c0_70 = arith.constant 0 : index
    %139 = vector.load %arg8[%c0_69, %c0_70] : memref<1x48xi32, #tpu.memory_space<vmem>>, vector<1x48xi32>
    %140 = tpu.iota {dimensions = array<i32: 1>} : vector<96x64xi32>
    %141 = vector.broadcast %134 : vector<96x1xi32> to vector<96x64xi32>
    %142 = arith.cmpi eq, %140, %141 : vector<96x64xi32>
    %143 = arith.extui %142 : vector<96x64xi1> to vector<96x64xi32>
    %144 = arith.sitofp %143 : vector<96x64xi32> to vector<96x64xf32>
    %cst_71 = arith.constant dense<0.000000e+00> : vector<96x32xf32>
    %145 = tpu.matmul %144, %44, %cst_71 {dimension_numbers = #tpu.dot_dimension_numbers<[1], [0], [0], [1], [0, 0, 1, 1], [], []>} : vector<96x64xf32>, vector<64x32xf32>, vector<96x32xf32> -> vector<96x32xf32>
    %146 = tpu.iota {dimensions = array<i32: 1>} : vector<96x64xi32>
    %147 = vector.broadcast %135 : vector<96x1xi32> to vector<96x64xi32>
    %148 = arith.cmpi eq, %146, %147 : vector<96x64xi32>
    %149 = arith.extui %148 : vector<96x64xi1> to vector<96x64xi32>
    %150 = arith.sitofp %149 : vector<96x64xi32> to vector<96x64xf32>
    %cst_72 = arith.constant dense<0.000000e+00> : vector<96x32xf32>
    %151 = tpu.matmul %150, %44, %cst_72 {dimension_numbers = #tpu.dot_dimension_numbers<[1], [0], [0], [1], [0, 0, 1, 1], [], []>} : vector<96x64xf32>, vector<64x32xf32>, vector<96x32xf32> -> vector<96x32xf32>
    %c456 = arith.constant 456 : index
    %c0_73 = arith.constant 0 : index
    %152 = vector.load %arg9[%c456, %c0_73] : memref<1656x32xf32, #tpu.memory_space<vmem>>, vector<32x32xf32>
    %cst_74 = arith.constant dense<0.000000e+00> : vector<96x32xf32>
    %153 = tpu.matmul %145, %152, %cst_74 {dimension_numbers = #tpu.dot_dimension_numbers<[1], [0], [0], [1], [0, 0, 1, 1], [], []>} : vector<96x32xf32>, vector<32x32xf32>, vector<96x32xf32> -> vector<96x32xf32>
    %c488 = arith.constant 488 : index
    %c0_75 = arith.constant 0 : index
    %154 = vector.load %arg9[%c488, %c0_75] : memref<1656x32xf32, #tpu.memory_space<vmem>>, vector<32x32xf32>
    %cst_76 = arith.constant dense<0.000000e+00> : vector<96x32xf32>
    %155 = tpu.matmul %151, %154, %cst_76 {dimension_numbers = #tpu.dot_dimension_numbers<[1], [0], [0], [1], [0, 0, 1, 1], [], []>} : vector<96x32xf32>, vector<32x32xf32>, vector<96x32xf32> -> vector<96x32xf32>
    %156 = arith.addf %153, %155 : vector<96x32xf32>
    %c520 = arith.constant 520 : index
    %c0_77 = arith.constant 0 : index
    %157 = vector.load %arg9[%c520, %c0_77] : memref<1656x32xf32, #tpu.memory_space<vmem>>, vector<32x32xf32>
    %cst_78 = arith.constant dense<0.000000e+00> : vector<96x32xf32>
    %158 = tpu.matmul %89, %157, %cst_78 {dimension_numbers = #tpu.dot_dimension_numbers<[1], [0], [0], [1], [0, 0, 1, 1], [], []>} : vector<96x32xf32>, vector<32x32xf32>, vector<96x32xf32> -> vector<96x32xf32>
    %159 = arith.addf %156, %158 : vector<96x32xf32>
    %c552 = arith.constant 552 : index
    %c0_79 = arith.constant 0 : index
    %160 = vector.load %arg9[%c552, %c0_79] : memref<1656x32xf32, #tpu.memory_space<vmem>>, vector<1x32xf32>
    %161 = vector.broadcast %160 : vector<1x32xf32> to vector<96x32xf32>
    %162 = arith.addf %159, %161 : vector<96x32xf32>
    %cst_80 = arith.constant 0.000000e+00 : f32
    %163 = vector.broadcast %cst_80 : f32 to vector<96x32xf32>
    %164 = arith.maximumf %162, %163 : vector<96x32xf32>
    %c560 = arith.constant 560 : index
    %c0_81 = arith.constant 0 : index
    %165 = vector.load %arg9[%c560, %c0_81] : memref<1656x32xf32, #tpu.memory_space<vmem>>, vector<32x32xf32>
    %cst_82 = arith.constant dense<0.000000e+00> : vector<96x32xf32>
    %166 = tpu.matmul %164, %165, %cst_82 {dimension_numbers = #tpu.dot_dimension_numbers<[1], [0], [0], [1], [0, 0, 1, 1], [], []>} : vector<96x32xf32>, vector<32x32xf32>, vector<96x32xf32> -> vector<96x32xf32>
    %c592 = arith.constant 592 : index
    %c0_83 = arith.constant 0 : index
    %167 = vector.load %arg9[%c592, %c0_83] : memref<1656x32xf32, #tpu.memory_space<vmem>>, vector<1x32xf32>
    %168 = vector.broadcast %167 : vector<1x32xf32> to vector<96x32xf32>
    %169 = arith.addf %166, %168 : vector<96x32xf32>
    %cst_84 = arith.constant 0.000000e+00 : f32
    %170 = vector.broadcast %cst_84 : f32 to vector<96x32xf32>
    %171 = arith.maximumf %169, %170 : vector<96x32xf32>
    %c600 = arith.constant 600 : index
    %c0_85 = arith.constant 0 : index
    %172 = vector.load %arg9[%c600, %c0_85] : memref<1656x32xf32, #tpu.memory_space<vmem>>, vector<32x32xf32>
    %cst_86 = arith.constant dense<0.000000e+00> : vector<96x32xf32>
    %173 = tpu.matmul %171, %172, %cst_86 {dimension_numbers = #tpu.dot_dimension_numbers<[1], [0], [0], [1], [0, 0, 1, 1], [], []>} : vector<96x32xf32>, vector<32x32xf32>, vector<96x32xf32> -> vector<96x32xf32>
    %c632 = arith.constant 632 : index
    %c0_87 = arith.constant 0 : index
    %174 = vector.load %arg9[%c632, %c0_87] : memref<1656x32xf32, #tpu.memory_space<vmem>>, vector<1x32xf32>
    %175 = vector.broadcast %174 : vector<1x32xf32> to vector<96x32xf32>
    %176 = arith.addf %173, %175 : vector<96x32xf32>
    %c640 = arith.constant 640 : index
    %c0_88 = arith.constant 0 : index
    %177 = vector.load %arg9[%c640, %c0_88] : memref<1656x32xf32, #tpu.memory_space<vmem>>, vector<1x32xf32>
    %c648 = arith.constant 648 : index
    %c0_89 = arith.constant 0 : index
    %178 = vector.load %arg9[%c648, %c0_89] : memref<1656x32xf32, #tpu.memory_space<vmem>>, vector<1x32xf32>
    %cst_90 = arith.constant dense<0.000000e+00> : vector<96xf32>
    %179 = vector.multi_reduction <add>, %176, %cst_90 [1] : vector<96x32xf32> to vector<96xf32>
    %180 = vector.shape_cast %179 : vector<96xf32> to vector<96x1xf32>
    %cst_91 = arith.constant 3.200000e+01 : f32
    %181 = vector.broadcast %cst_91 : f32 to vector<96x1xf32>
    %182 = arith.divf %180, %181 : vector<96x1xf32>
    %183 = vector.broadcast %182 : vector<96x1xf32> to vector<96x32xf32>
    %184 = arith.subf %176, %183 : vector<96x32xf32>
    %185 = arith.mulf %184, %184 : vector<96x32xf32>
    %cst_92 = arith.constant dense<0.000000e+00> : vector<96xf32>
    %186 = vector.multi_reduction <add>, %185, %cst_92 [1] : vector<96x32xf32> to vector<96xf32>
    %187 = vector.shape_cast %186 : vector<96xf32> to vector<96x1xf32>
    %cst_93 = arith.constant 3.200000e+01 : f32
    %188 = vector.broadcast %cst_93 : f32 to vector<96x1xf32>
    %189 = arith.divf %187, %188 : vector<96x1xf32>
    %190 = vector.broadcast %182 : vector<96x1xf32> to vector<96x32xf32>
    %191 = arith.subf %176, %190 : vector<96x32xf32>
    %cst_94 = arith.constant 9.99999974E-6 : f32
    %192 = vector.broadcast %cst_94 : f32 to vector<96x1xf32>
    %193 = arith.addf %189, %192 : vector<96x1xf32>
    %194 = math.rsqrt %193 : vector<96x1xf32>
    %195 = vector.broadcast %194 : vector<96x1xf32> to vector<96x32xf32>
    %196 = arith.mulf %191, %195 : vector<96x32xf32>
    %197 = vector.broadcast %177 : vector<1x32xf32> to vector<96x32xf32>
    %198 = arith.mulf %196, %197 : vector<96x32xf32>
    %199 = vector.broadcast %178 : vector<1x32xf32> to vector<96x32xf32>
    %200 = arith.addf %198, %199 : vector<96x32xf32>
    %201 = arith.addf %89, %200 : vector<96x32xf32>
    %202 = tpu.iota {dimensions = array<i32: 1>} : vector<48x16xi32>
    %203 = vector.broadcast %137 : vector<48x1xi32> to vector<48x16xi32>
    %204 = arith.cmpi eq, %202, %203 : vector<48x16xi32>
    %205 = arith.extui %204 : vector<48x16xi1> to vector<48x16xi32>
    %206 = arith.sitofp %205 : vector<48x16xi32> to vector<48x16xf32>
    %cst_95 = arith.constant dense<0.000000e+00> : vector<48x32xf32>
    %207 = tpu.matmul %206, %45, %cst_95 {dimension_numbers = #tpu.dot_dimension_numbers<[1], [0], [0], [1], [0, 0, 1, 1], [], []>} : vector<48x16xf32>, vector<16x32xf32>, vector<48x32xf32> -> vector<48x32xf32>
    %208 = tpu.iota {dimensions = array<i32: 1>} : vector<48x64xi32>
    %209 = vector.broadcast %138 : vector<48x1xi32> to vector<48x64xi32>
    %210 = arith.cmpi eq, %208, %209 : vector<48x64xi32>
    %211 = arith.extui %210 : vector<48x64xi1> to vector<48x64xi32>
    %212 = arith.sitofp %211 : vector<48x64xi32> to vector<48x64xf32>
    %cst_96 = arith.constant dense<0.000000e+00> : vector<48x32xf32>
    %213 = tpu.matmul %212, %44, %cst_96 {dimension_numbers = #tpu.dot_dimension_numbers<[1], [0], [0], [1], [0, 0, 1, 1], [], []>} : vector<48x64xf32>, vector<64x32xf32>, vector<48x32xf32> -> vector<48x32xf32>
    %c656 = arith.constant 656 : index
    %c0_97 = arith.constant 0 : index
    %214 = vector.load %arg9[%c656, %c0_97] : memref<1656x32xf32, #tpu.memory_space<vmem>>, vector<32x32xf32>
    %cst_98 = arith.constant dense<0.000000e+00> : vector<48x32xf32>
    %215 = tpu.matmul %207, %214, %cst_98 {dimension_numbers = #tpu.dot_dimension_numbers<[1], [0], [0], [1], [0, 0, 1, 1], [], []>} : vector<48x32xf32>, vector<32x32xf32>, vector<48x32xf32> -> vector<48x32xf32>
    %c688 = arith.constant 688 : index
    %c0_99 = arith.constant 0 : index
    %216 = vector.load %arg9[%c688, %c0_99] : memref<1656x32xf32, #tpu.memory_space<vmem>>, vector<32x32xf32>
    %cst_100 = arith.constant dense<0.000000e+00> : vector<48x32xf32>
    %217 = tpu.matmul %213, %216, %cst_100 {dimension_numbers = #tpu.dot_dimension_numbers<[1], [0], [0], [1], [0, 0, 1, 1], [], []>} : vector<48x32xf32>, vector<32x32xf32>, vector<48x32xf32> -> vector<48x32xf32>
    %218 = arith.addf %215, %217 : vector<48x32xf32>
    %c720 = arith.constant 720 : index
    %c0_101 = arith.constant 0 : index
    %219 = vector.load %arg9[%c720, %c0_101] : memref<1656x32xf32, #tpu.memory_space<vmem>>, vector<32x32xf32>
    %cst_102 = arith.constant dense<0.000000e+00> : vector<48x32xf32>
    %220 = tpu.matmul %133, %219, %cst_102 {dimension_numbers = #tpu.dot_dimension_numbers<[1], [0], [0], [1], [0, 0, 1, 1], [], []>} : vector<48x32xf32>, vector<32x32xf32>, vector<48x32xf32> -> vector<48x32xf32>
    %221 = arith.addf %218, %220 : vector<48x32xf32>
    %c752 = arith.constant 752 : index
    %c0_103 = arith.constant 0 : index
    %222 = vector.load %arg9[%c752, %c0_103] : memref<1656x32xf32, #tpu.memory_space<vmem>>, vector<1x32xf32>
    %223 = vector.broadcast %222 : vector<1x32xf32> to vector<48x32xf32>
    %224 = arith.addf %221, %223 : vector<48x32xf32>
    %cst_104 = arith.constant 0.000000e+00 : f32
    %225 = vector.broadcast %cst_104 : f32 to vector<48x32xf32>
    %226 = arith.maximumf %224, %225 : vector<48x32xf32>
    %c760 = arith.constant 760 : index
    %c0_105 = arith.constant 0 : index
    %227 = vector.load %arg9[%c760, %c0_105] : memref<1656x32xf32, #tpu.memory_space<vmem>>, vector<32x32xf32>
    %cst_106 = arith.constant dense<0.000000e+00> : vector<48x32xf32>
    %228 = tpu.matmul %226, %227, %cst_106 {dimension_numbers = #tpu.dot_dimension_numbers<[1], [0], [0], [1], [0, 0, 1, 1], [], []>} : vector<48x32xf32>, vector<32x32xf32>, vector<48x32xf32> -> vector<48x32xf32>
    %c792 = arith.constant 792 : index
    %c0_107 = arith.constant 0 : index
    %229 = vector.load %arg9[%c792, %c0_107] : memref<1656x32xf32, #tpu.memory_space<vmem>>, vector<1x32xf32>
    %230 = vector.broadcast %229 : vector<1x32xf32> to vector<48x32xf32>
    %231 = arith.addf %228, %230 : vector<48x32xf32>
    %cst_108 = arith.constant 0.000000e+00 : f32
    %232 = vector.broadcast %cst_108 : f32 to vector<48x32xf32>
    %233 = arith.maximumf %231, %232 : vector<48x32xf32>
    %c800 = arith.constant 800 : index
    %c0_109 = arith.constant 0 : index
    %234 = vector.load %arg9[%c800, %c0_109] : memref<1656x32xf32, #tpu.memory_space<vmem>>, vector<32x32xf32>
    %cst_110 = arith.constant dense<0.000000e+00> : vector<48x32xf32>
    %235 = tpu.matmul %233, %234, %cst_110 {dimension_numbers = #tpu.dot_dimension_numbers<[1], [0], [0], [1], [0, 0, 1, 1], [], []>} : vector<48x32xf32>, vector<32x32xf32>, vector<48x32xf32> -> vector<48x32xf32>
    %c832 = arith.constant 832 : index
    %c0_111 = arith.constant 0 : index
    %236 = vector.load %arg9[%c832, %c0_111] : memref<1656x32xf32, #tpu.memory_space<vmem>>, vector<1x32xf32>
    %237 = vector.broadcast %236 : vector<1x32xf32> to vector<48x32xf32>
    %238 = arith.addf %235, %237 : vector<48x32xf32>
    %c840 = arith.constant 840 : index
    %c0_112 = arith.constant 0 : index
    %239 = vector.load %arg9[%c840, %c0_112] : memref<1656x32xf32, #tpu.memory_space<vmem>>, vector<1x32xf32>
    %c848 = arith.constant 848 : index
    %c0_113 = arith.constant 0 : index
    %240 = vector.load %arg9[%c848, %c0_113] : memref<1656x32xf32, #tpu.memory_space<vmem>>, vector<1x32xf32>
    %cst_114 = arith.constant dense<0.000000e+00> : vector<48xf32>
    %241 = vector.multi_reduction <add>, %238, %cst_114 [1] : vector<48x32xf32> to vector<48xf32>
    %242 = vector.shape_cast %241 : vector<48xf32> to vector<48x1xf32>
    %cst_115 = arith.constant 3.200000e+01 : f32
    %243 = vector.broadcast %cst_115 : f32 to vector<48x1xf32>
    %244 = arith.divf %242, %243 : vector<48x1xf32>
    %245 = vector.broadcast %244 : vector<48x1xf32> to vector<48x32xf32>
    %246 = arith.subf %238, %245 : vector<48x32xf32>
    %247 = arith.mulf %246, %246 : vector<48x32xf32>
    %cst_116 = arith.constant dense<0.000000e+00> : vector<48xf32>
    %248 = vector.multi_reduction <add>, %247, %cst_116 [1] : vector<48x32xf32> to vector<48xf32>
    %249 = vector.shape_cast %248 : vector<48xf32> to vector<48x1xf32>
    %cst_117 = arith.constant 3.200000e+01 : f32
    %250 = vector.broadcast %cst_117 : f32 to vector<48x1xf32>
    %251 = arith.divf %249, %250 : vector<48x1xf32>
    %252 = vector.broadcast %244 : vector<48x1xf32> to vector<48x32xf32>
    %253 = arith.subf %238, %252 : vector<48x32xf32>
    %cst_118 = arith.constant 9.99999974E-6 : f32
    %254 = vector.broadcast %cst_118 : f32 to vector<48x1xf32>
    %255 = arith.addf %251, %254 : vector<48x1xf32>
    %256 = math.rsqrt %255 : vector<48x1xf32>
    %257 = vector.broadcast %256 : vector<48x1xf32> to vector<48x32xf32>
    %258 = arith.mulf %253, %257 : vector<48x32xf32>
    %259 = vector.broadcast %239 : vector<1x32xf32> to vector<48x32xf32>
    %260 = arith.mulf %258, %259 : vector<48x32xf32>
    %261 = vector.broadcast %240 : vector<1x32xf32> to vector<48x32xf32>
    %262 = arith.addf %260, %261 : vector<48x32xf32>
    %263 = arith.addf %133, %262 : vector<48x32xf32>
    %264 = tpu.iota {dimensions = array<i32: 0>} : vector<64x96xi32>
    %265 = vector.broadcast %136 : vector<1x96xi32> to vector<64x96xi32>
    %266 = arith.cmpi eq, %264, %265 : vector<64x96xi32>
    %267 = arith.extui %266 : vector<64x96xi1> to vector<64x96xi32>
    %268 = arith.sitofp %267 : vector<64x96xi32> to vector<64x96xf32>
    %cst_119 = arith.constant dense<0.000000e+00> : vector<64x32xf32>
    %269 = tpu.matmul %268, %201, %cst_119 {dimension_numbers = #tpu.dot_dimension_numbers<[1], [0], [0], [1], [0, 0, 1, 1], [], []>} : vector<64x96xf32>, vector<96x32xf32>, vector<64x32xf32> -> vector<64x32xf32>
    %270 = tpu.iota {dimensions = array<i32: 0>} : vector<64x48xi32>
    %271 = vector.broadcast %139 : vector<1x48xi32> to vector<64x48xi32>
    %272 = arith.cmpi eq, %270, %271 : vector<64x48xi32>
    %273 = arith.extui %272 : vector<64x48xi1> to vector<64x48xi32>
    %274 = arith.sitofp %273 : vector<64x48xi32> to vector<64x48xf32>
    %cst_120 = arith.constant dense<0.000000e+00> : vector<64x32xf32>
    %275 = tpu.matmul %274, %263, %cst_120 {dimension_numbers = #tpu.dot_dimension_numbers<[1], [0], [0], [1], [0, 0, 1, 1], [], []>} : vector<64x48xf32>, vector<48x32xf32>, vector<64x32xf32> -> vector<64x32xf32>
    %c856 = arith.constant 856 : index
    %c0_121 = arith.constant 0 : index
    %276 = vector.load %arg9[%c856, %c0_121] : memref<1656x32xf32, #tpu.memory_space<vmem>>, vector<32x32xf32>
    %cst_122 = arith.constant dense<0.000000e+00> : vector<64x32xf32>
    %277 = tpu.matmul %44, %276, %cst_122 {dimension_numbers = #tpu.dot_dimension_numbers<[1], [0], [0], [1], [0, 0, 1, 1], [], []>} : vector<64x32xf32>, vector<32x32xf32>, vector<64x32xf32> -> vector<64x32xf32>
    %c888 = arith.constant 888 : index
    %c0_123 = arith.constant 0 : index
    %278 = vector.load %arg9[%c888, %c0_123] : memref<1656x32xf32, #tpu.memory_space<vmem>>, vector<32x32xf32>
    %cst_124 = arith.constant dense<0.000000e+00> : vector<64x32xf32>
    %279 = tpu.matmul %269, %278, %cst_124 {dimension_numbers = #tpu.dot_dimension_numbers<[1], [0], [0], [1], [0, 0, 1, 1], [], []>} : vector<64x32xf32>, vector<32x32xf32>, vector<64x32xf32> -> vector<64x32xf32>
    %280 = arith.addf %277, %279 : vector<64x32xf32>
    %c920 = arith.constant 920 : index
    %c0_125 = arith.constant 0 : index
    %281 = vector.load %arg9[%c920, %c0_125] : memref<1656x32xf32, #tpu.memory_space<vmem>>, vector<32x32xf32>
    %cst_126 = arith.constant dense<0.000000e+00> : vector<64x32xf32>
    %282 = tpu.matmul %275, %281, %cst_126 {dimension_numbers = #tpu.dot_dimension_numbers<[1], [0], [0], [1], [0, 0, 1, 1], [], []>} : vector<64x32xf32>, vector<32x32xf32>, vector<64x32xf32> -> vector<64x32xf32>
    %283 = arith.addf %280, %282 : vector<64x32xf32>
    %c952 = arith.constant 952 : index
    %c0_127 = arith.constant 0 : index
    %284 = vector.load %arg9[%c952, %c0_127] : memref<1656x32xf32, #tpu.memory_space<vmem>>, vector<1x32xf32>
    %285 = vector.broadcast %284 : vector<1x32xf32> to vector<64x32xf32>
    %286 = arith.addf %283, %285 : vector<64x32xf32>
    %cst_128 = arith.constant 0.000000e+00 : f32
    %287 = vector.broadcast %cst_128 : f32 to vector<64x32xf32>
    %288 = arith.maximumf %286, %287 : vector<64x32xf32>
    %c960 = arith.constant 960 : index
    %c0_129 = arith.constant 0 : index
    %289 = vector.load %arg9[%c960, %c0_129] : memref<1656x32xf32, #tpu.memory_space<vmem>>, vector<32x32xf32>
    %cst_130 = arith.constant dense<0.000000e+00> : vector<64x32xf32>
    %290 = tpu.matmul %288, %289, %cst_130 {dimension_numbers = #tpu.dot_dimension_numbers<[1], [0], [0], [1], [0, 0, 1, 1], [], []>} : vector<64x32xf32>, vector<32x32xf32>, vector<64x32xf32> -> vector<64x32xf32>
    %c992 = arith.constant 992 : index
    %c0_131 = arith.constant 0 : index
    %291 = vector.load %arg9[%c992, %c0_131] : memref<1656x32xf32, #tpu.memory_space<vmem>>, vector<1x32xf32>
    %292 = vector.broadcast %291 : vector<1x32xf32> to vector<64x32xf32>
    %293 = arith.addf %290, %292 : vector<64x32xf32>
    %cst_132 = arith.constant 0.000000e+00 : f32
    %294 = vector.broadcast %cst_132 : f32 to vector<64x32xf32>
    %295 = arith.maximumf %293, %294 : vector<64x32xf32>
    %c1000 = arith.constant 1000 : index
    %c0_133 = arith.constant 0 : index
    %296 = vector.load %arg9[%c1000, %c0_133] : memref<1656x32xf32, #tpu.memory_space<vmem>>, vector<32x32xf32>
    %cst_134 = arith.constant dense<0.000000e+00> : vector<64x32xf32>
    %297 = tpu.matmul %295, %296, %cst_134 {dimension_numbers = #tpu.dot_dimension_numbers<[1], [0], [0], [1], [0, 0, 1, 1], [], []>} : vector<64x32xf32>, vector<32x32xf32>, vector<64x32xf32> -> vector<64x32xf32>
    %c1032 = arith.constant 1032 : index
    %c0_135 = arith.constant 0 : index
    %298 = vector.load %arg9[%c1032, %c0_135] : memref<1656x32xf32, #tpu.memory_space<vmem>>, vector<1x32xf32>
    %299 = vector.broadcast %298 : vector<1x32xf32> to vector<64x32xf32>
    %300 = arith.addf %297, %299 : vector<64x32xf32>
    %c1040 = arith.constant 1040 : index
    %c0_136 = arith.constant 0 : index
    %301 = vector.load %arg9[%c1040, %c0_136] : memref<1656x32xf32, #tpu.memory_space<vmem>>, vector<1x32xf32>
    %c1048 = arith.constant 1048 : index
    %c0_137 = arith.constant 0 : index
    %302 = vector.load %arg9[%c1048, %c0_137] : memref<1656x32xf32, #tpu.memory_space<vmem>>, vector<1x32xf32>
    %cst_138 = arith.constant dense<0.000000e+00> : vector<64xf32>
    %303 = vector.multi_reduction <add>, %300, %cst_138 [1] : vector<64x32xf32> to vector<64xf32>
    %304 = vector.shape_cast %303 : vector<64xf32> to vector<64x1xf32>
    %cst_139 = arith.constant 3.200000e+01 : f32
    %305 = vector.broadcast %cst_139 : f32 to vector<64x1xf32>
    %306 = arith.divf %304, %305 : vector<64x1xf32>
    %307 = vector.broadcast %306 : vector<64x1xf32> to vector<64x32xf32>
    %308 = arith.subf %300, %307 : vector<64x32xf32>
    %309 = arith.mulf %308, %308 : vector<64x32xf32>
    %cst_140 = arith.constant dense<0.000000e+00> : vector<64xf32>
    %310 = vector.multi_reduction <add>, %309, %cst_140 [1] : vector<64x32xf32> to vector<64xf32>
    %311 = vector.shape_cast %310 : vector<64xf32> to vector<64x1xf32>
    %cst_141 = arith.constant 3.200000e+01 : f32
    %312 = vector.broadcast %cst_141 : f32 to vector<64x1xf32>
    %313 = arith.divf %311, %312 : vector<64x1xf32>
    %314 = vector.broadcast %306 : vector<64x1xf32> to vector<64x32xf32>
    %315 = arith.subf %300, %314 : vector<64x32xf32>
    %cst_142 = arith.constant 9.99999974E-6 : f32
    %316 = vector.broadcast %cst_142 : f32 to vector<64x1xf32>
    %317 = arith.addf %313, %316 : vector<64x1xf32>
    %318 = math.rsqrt %317 : vector<64x1xf32>
    %319 = vector.broadcast %318 : vector<64x1xf32> to vector<64x32xf32>
    %320 = arith.mulf %315, %319 : vector<64x32xf32>
    %321 = vector.broadcast %301 : vector<1x32xf32> to vector<64x32xf32>
    %322 = arith.mulf %320, %321 : vector<64x32xf32>
    %323 = vector.broadcast %302 : vector<1x32xf32> to vector<64x32xf32>
    %324 = arith.addf %322, %323 : vector<64x32xf32>
    %325 = arith.addf %44, %324 : vector<64x32xf32>
    %326 = tpu.iota {dimensions = array<i32: 1>} : vector<96x64xi32>
    %327 = vector.broadcast %134 : vector<96x1xi32> to vector<96x64xi32>
    %328 = arith.cmpi eq, %326, %327 : vector<96x64xi32>
    %329 = arith.extui %328 : vector<96x64xi1> to vector<96x64xi32>
    %330 = arith.sitofp %329 : vector<96x64xi32> to vector<96x64xf32>
    %cst_143 = arith.constant dense<0.000000e+00> : vector<96x32xf32>
    %331 = tpu.matmul %330, %325, %cst_143 {dimension_numbers = #tpu.dot_dimension_numbers<[1], [0], [0], [1], [0, 0, 1, 1], [], []>} : vector<96x64xf32>, vector<64x32xf32>, vector<96x32xf32> -> vector<96x32xf32>
    %332 = tpu.iota {dimensions = array<i32: 1>} : vector<96x64xi32>
    %333 = vector.broadcast %135 : vector<96x1xi32> to vector<96x64xi32>
    %334 = arith.cmpi eq, %332, %333 : vector<96x64xi32>
    %335 = arith.extui %334 : vector<96x64xi1> to vector<96x64xi32>
    %336 = arith.sitofp %335 : vector<96x64xi32> to vector<96x64xf32>
    %cst_144 = arith.constant dense<0.000000e+00> : vector<96x32xf32>
    %337 = tpu.matmul %336, %325, %cst_144 {dimension_numbers = #tpu.dot_dimension_numbers<[1], [0], [0], [1], [0, 0, 1, 1], [], []>} : vector<96x64xf32>, vector<64x32xf32>, vector<96x32xf32> -> vector<96x32xf32>
    %c1056 = arith.constant 1056 : index
    %c0_145 = arith.constant 0 : index
    %338 = vector.load %arg9[%c1056, %c0_145] : memref<1656x32xf32, #tpu.memory_space<vmem>>, vector<32x32xf32>
    %cst_146 = arith.constant dense<0.000000e+00> : vector<96x32xf32>
    %339 = tpu.matmul %331, %338, %cst_146 {dimension_numbers = #tpu.dot_dimension_numbers<[1], [0], [0], [1], [0, 0, 1, 1], [], []>} : vector<96x32xf32>, vector<32x32xf32>, vector<96x32xf32> -> vector<96x32xf32>
    %c1088 = arith.constant 1088 : index
    %c0_147 = arith.constant 0 : index
    %340 = vector.load %arg9[%c1088, %c0_147] : memref<1656x32xf32, #tpu.memory_space<vmem>>, vector<32x32xf32>
    %cst_148 = arith.constant dense<0.000000e+00> : vector<96x32xf32>
    %341 = tpu.matmul %337, %340, %cst_148 {dimension_numbers = #tpu.dot_dimension_numbers<[1], [0], [0], [1], [0, 0, 1, 1], [], []>} : vector<96x32xf32>, vector<32x32xf32>, vector<96x32xf32> -> vector<96x32xf32>
    %342 = arith.addf %339, %341 : vector<96x32xf32>
    %c1120 = arith.constant 1120 : index
    %c0_149 = arith.constant 0 : index
    %343 = vector.load %arg9[%c1120, %c0_149] : memref<1656x32xf32, #tpu.memory_space<vmem>>, vector<32x32xf32>
    %cst_150 = arith.constant dense<0.000000e+00> : vector<96x32xf32>
    %344 = tpu.matmul %201, %343, %cst_150 {dimension_numbers = #tpu.dot_dimension_numbers<[1], [0], [0], [1], [0, 0, 1, 1], [], []>} : vector<96x32xf32>, vector<32x32xf32>, vector<96x32xf32> -> vector<96x32xf32>
    %345 = arith.addf %342, %344 : vector<96x32xf32>
    %c1152 = arith.constant 1152 : index
    %c0_151 = arith.constant 0 : index
    %346 = vector.load %arg9[%c1152, %c0_151] : memref<1656x32xf32, #tpu.memory_space<vmem>>, vector<1x32xf32>
    %347 = vector.broadcast %346 : vector<1x32xf32> to vector<96x32xf32>
    %348 = arith.addf %345, %347 : vector<96x32xf32>
    %cst_152 = arith.constant 0.000000e+00 : f32
    %349 = vector.broadcast %cst_152 : f32 to vector<96x32xf32>
    %350 = arith.maximumf %348, %349 : vector<96x32xf32>
    %c1160 = arith.constant 1160 : index
    %c0_153 = arith.constant 0 : index
    %351 = vector.load %arg9[%c1160, %c0_153] : memref<1656x32xf32, #tpu.memory_space<vmem>>, vector<32x32xf32>
    %cst_154 = arith.constant dense<0.000000e+00> : vector<96x32xf32>
    %352 = tpu.matmul %350, %351, %cst_154 {dimension_numbers = #tpu.dot_dimension_numbers<[1], [0], [0], [1], [0, 0, 1, 1], [], []>} : vector<96x32xf32>, vector<32x32xf32>, vector<96x32xf32> -> vector<96x32xf32>
    %c1192 = arith.constant 1192 : index
    %c0_155 = arith.constant 0 : index
    %353 = vector.load %arg9[%c1192, %c0_155] : memref<1656x32xf32, #tpu.memory_space<vmem>>, vector<1x32xf32>
    %354 = vector.broadcast %353 : vector<1x32xf32> to vector<96x32xf32>
    %355 = arith.addf %352, %354 : vector<96x32xf32>
    %cst_156 = arith.constant 0.000000e+00 : f32
    %356 = vector.broadcast %cst_156 : f32 to vector<96x32xf32>
    %357 = arith.maximumf %355, %356 : vector<96x32xf32>
    %c1200 = arith.constant 1200 : index
    %c0_157 = arith.constant 0 : index
    %358 = vector.load %arg9[%c1200, %c0_157] : memref<1656x32xf32, #tpu.memory_space<vmem>>, vector<32x32xf32>
    %cst_158 = arith.constant dense<0.000000e+00> : vector<96x32xf32>
    %359 = tpu.matmul %357, %358, %cst_158 {dimension_numbers = #tpu.dot_dimension_numbers<[1], [0], [0], [1], [0, 0, 1, 1], [], []>} : vector<96x32xf32>, vector<32x32xf32>, vector<96x32xf32> -> vector<96x32xf32>
    %c1232 = arith.constant 1232 : index
    %c0_159 = arith.constant 0 : index
    %360 = vector.load %arg9[%c1232, %c0_159] : memref<1656x32xf32, #tpu.memory_space<vmem>>, vector<1x32xf32>
    %361 = vector.broadcast %360 : vector<1x32xf32> to vector<96x32xf32>
    %362 = arith.addf %359, %361 : vector<96x32xf32>
    %c1240 = arith.constant 1240 : index
    %c0_160 = arith.constant 0 : index
    %363 = vector.load %arg9[%c1240, %c0_160] : memref<1656x32xf32, #tpu.memory_space<vmem>>, vector<1x32xf32>
    %c1248 = arith.constant 1248 : index
    %c0_161 = arith.constant 0 : index
    %364 = vector.load %arg9[%c1248, %c0_161] : memref<1656x32xf32, #tpu.memory_space<vmem>>, vector<1x32xf32>
    %cst_162 = arith.constant dense<0.000000e+00> : vector<96xf32>
    %365 = vector.multi_reduction <add>, %362, %cst_162 [1] : vector<96x32xf32> to vector<96xf32>
    %366 = vector.shape_cast %365 : vector<96xf32> to vector<96x1xf32>
    %cst_163 = arith.constant 3.200000e+01 : f32
    %367 = vector.broadcast %cst_163 : f32 to vector<96x1xf32>
    %368 = arith.divf %366, %367 : vector<96x1xf32>
    %369 = vector.broadcast %368 : vector<96x1xf32> to vector<96x32xf32>
    %370 = arith.subf %362, %369 : vector<96x32xf32>
    %371 = arith.mulf %370, %370 : vector<96x32xf32>
    %cst_164 = arith.constant dense<0.000000e+00> : vector<96xf32>
    %372 = vector.multi_reduction <add>, %371, %cst_164 [1] : vector<96x32xf32> to vector<96xf32>
    %373 = vector.shape_cast %372 : vector<96xf32> to vector<96x1xf32>
    %cst_165 = arith.constant 3.200000e+01 : f32
    %374 = vector.broadcast %cst_165 : f32 to vector<96x1xf32>
    %375 = arith.divf %373, %374 : vector<96x1xf32>
    %376 = vector.broadcast %368 : vector<96x1xf32> to vector<96x32xf32>
    %377 = arith.subf %362, %376 : vector<96x32xf32>
    %cst_166 = arith.constant 9.99999974E-6 : f32
    %378 = vector.broadcast %cst_166 : f32 to vector<96x1xf32>
    %379 = arith.addf %375, %378 : vector<96x1xf32>
    %380 = math.rsqrt %379 : vector<96x1xf32>
    %381 = vector.broadcast %380 : vector<96x1xf32> to vector<96x32xf32>
    %382 = arith.mulf %377, %381 : vector<96x32xf32>
    %383 = vector.broadcast %363 : vector<1x32xf32> to vector<96x32xf32>
    %384 = arith.mulf %382, %383 : vector<96x32xf32>
    %385 = vector.broadcast %364 : vector<1x32xf32> to vector<96x32xf32>
    %386 = arith.addf %384, %385 : vector<96x32xf32>
    %387 = arith.addf %201, %386 : vector<96x32xf32>
    %388 = tpu.iota {dimensions = array<i32: 1>} : vector<48x16xi32>
    %389 = vector.broadcast %137 : vector<48x1xi32> to vector<48x16xi32>
    %390 = arith.cmpi eq, %388, %389 : vector<48x16xi32>
    %391 = arith.extui %390 : vector<48x16xi1> to vector<48x16xi32>
    %392 = arith.sitofp %391 : vector<48x16xi32> to vector<48x16xf32>
    %cst_167 = arith.constant dense<0.000000e+00> : vector<48x32xf32>
    %393 = tpu.matmul %392, %45, %cst_167 {dimension_numbers = #tpu.dot_dimension_numbers<[1], [0], [0], [1], [0, 0, 1, 1], [], []>} : vector<48x16xf32>, vector<16x32xf32>, vector<48x32xf32> -> vector<48x32xf32>
    %394 = tpu.iota {dimensions = array<i32: 1>} : vector<48x64xi32>
    %395 = vector.broadcast %138 : vector<48x1xi32> to vector<48x64xi32>
    %396 = arith.cmpi eq, %394, %395 : vector<48x64xi32>
    %397 = arith.extui %396 : vector<48x64xi1> to vector<48x64xi32>
    %398 = arith.sitofp %397 : vector<48x64xi32> to vector<48x64xf32>
    %cst_168 = arith.constant dense<0.000000e+00> : vector<48x32xf32>
    %399 = tpu.matmul %398, %325, %cst_168 {dimension_numbers = #tpu.dot_dimension_numbers<[1], [0], [0], [1], [0, 0, 1, 1], [], []>} : vector<48x64xf32>, vector<64x32xf32>, vector<48x32xf32> -> vector<48x32xf32>
    %c1256 = arith.constant 1256 : index
    %c0_169 = arith.constant 0 : index
    %400 = vector.load %arg9[%c1256, %c0_169] : memref<1656x32xf32, #tpu.memory_space<vmem>>, vector<32x32xf32>
    %cst_170 = arith.constant dense<0.000000e+00> : vector<48x32xf32>
    %401 = tpu.matmul %393, %400, %cst_170 {dimension_numbers = #tpu.dot_dimension_numbers<[1], [0], [0], [1], [0, 0, 1, 1], [], []>} : vector<48x32xf32>, vector<32x32xf32>, vector<48x32xf32> -> vector<48x32xf32>
    %c1288 = arith.constant 1288 : index
    %c0_171 = arith.constant 0 : index
    %402 = vector.load %arg9[%c1288, %c0_171] : memref<1656x32xf32, #tpu.memory_space<vmem>>, vector<32x32xf32>
    %cst_172 = arith.constant dense<0.000000e+00> : vector<48x32xf32>
    %403 = tpu.matmul %399, %402, %cst_172 {dimension_numbers = #tpu.dot_dimension_numbers<[1], [0], [0], [1], [0, 0, 1, 1], [], []>} : vector<48x32xf32>, vector<32x32xf32>, vector<48x32xf32> -> vector<48x32xf32>
    %404 = arith.addf %401, %403 : vector<48x32xf32>
    %c1320 = arith.constant 1320 : index
    %c0_173 = arith.constant 0 : index
    %405 = vector.load %arg9[%c1320, %c0_173] : memref<1656x32xf32, #tpu.memory_space<vmem>>, vector<32x32xf32>
    %cst_174 = arith.constant dense<0.000000e+00> : vector<48x32xf32>
    %406 = tpu.matmul %263, %405, %cst_174 {dimension_numbers = #tpu.dot_dimension_numbers<[1], [0], [0], [1], [0, 0, 1, 1], [], []>} : vector<48x32xf32>, vector<32x32xf32>, vector<48x32xf32> -> vector<48x32xf32>
    %407 = arith.addf %404, %406 : vector<48x32xf32>
    %c1352 = arith.constant 1352 : index
    %c0_175 = arith.constant 0 : index
    %408 = vector.load %arg9[%c1352, %c0_175] : memref<1656x32xf32, #tpu.memory_space<vmem>>, vector<1x32xf32>
    %409 = vector.broadcast %408 : vector<1x32xf32> to vector<48x32xf32>
    %410 = arith.addf %407, %409 : vector<48x32xf32>
    %cst_176 = arith.constant 0.000000e+00 : f32
    %411 = vector.broadcast %cst_176 : f32 to vector<48x32xf32>
    %412 = arith.maximumf %410, %411 : vector<48x32xf32>
    %c1360 = arith.constant 1360 : index
    %c0_177 = arith.constant 0 : index
    %413 = vector.load %arg9[%c1360, %c0_177] : memref<1656x32xf32, #tpu.memory_space<vmem>>, vector<32x32xf32>
    %cst_178 = arith.constant dense<0.000000e+00> : vector<48x32xf32>
    %414 = tpu.matmul %412, %413, %cst_178 {dimension_numbers = #tpu.dot_dimension_numbers<[1], [0], [0], [1], [0, 0, 1, 1], [], []>} : vector<48x32xf32>, vector<32x32xf32>, vector<48x32xf32> -> vector<48x32xf32>
    %c1392 = arith.constant 1392 : index
    %c0_179 = arith.constant 0 : index
    %415 = vector.load %arg9[%c1392, %c0_179] : memref<1656x32xf32, #tpu.memory_space<vmem>>, vector<1x32xf32>
    %416 = vector.broadcast %415 : vector<1x32xf32> to vector<48x32xf32>
    %417 = arith.addf %414, %416 : vector<48x32xf32>
    %cst_180 = arith.constant 0.000000e+00 : f32
    %418 = vector.broadcast %cst_180 : f32 to vector<48x32xf32>
    %419 = arith.maximumf %417, %418 : vector<48x32xf32>
    %c1400 = arith.constant 1400 : index
    %c0_181 = arith.constant 0 : index
    %420 = vector.load %arg9[%c1400, %c0_181] : memref<1656x32xf32, #tpu.memory_space<vmem>>, vector<32x32xf32>
    %cst_182 = arith.constant dense<0.000000e+00> : vector<48x32xf32>
    %421 = tpu.matmul %419, %420, %cst_182 {dimension_numbers = #tpu.dot_dimension_numbers<[1], [0], [0], [1], [0, 0, 1, 1], [], []>} : vector<48x32xf32>, vector<32x32xf32>, vector<48x32xf32> -> vector<48x32xf32>
    %c1432 = arith.constant 1432 : index
    %c0_183 = arith.constant 0 : index
    %422 = vector.load %arg9[%c1432, %c0_183] : memref<1656x32xf32, #tpu.memory_space<vmem>>, vector<1x32xf32>
    %423 = vector.broadcast %422 : vector<1x32xf32> to vector<48x32xf32>
    %424 = arith.addf %421, %423 : vector<48x32xf32>
    %c1440 = arith.constant 1440 : index
    %c0_184 = arith.constant 0 : index
    %425 = vector.load %arg9[%c1440, %c0_184] : memref<1656x32xf32, #tpu.memory_space<vmem>>, vector<1x32xf32>
    %c1448 = arith.constant 1448 : index
    %c0_185 = arith.constant 0 : index
    %426 = vector.load %arg9[%c1448, %c0_185] : memref<1656x32xf32, #tpu.memory_space<vmem>>, vector<1x32xf32>
    %cst_186 = arith.constant dense<0.000000e+00> : vector<48xf32>
    %427 = vector.multi_reduction <add>, %424, %cst_186 [1] : vector<48x32xf32> to vector<48xf32>
    %428 = vector.shape_cast %427 : vector<48xf32> to vector<48x1xf32>
    %cst_187 = arith.constant 3.200000e+01 : f32
    %429 = vector.broadcast %cst_187 : f32 to vector<48x1xf32>
    %430 = arith.divf %428, %429 : vector<48x1xf32>
    %431 = vector.broadcast %430 : vector<48x1xf32> to vector<48x32xf32>
    %432 = arith.subf %424, %431 : vector<48x32xf32>
    %433 = arith.mulf %432, %432 : vector<48x32xf32>
    %cst_188 = arith.constant dense<0.000000e+00> : vector<48xf32>
    %434 = vector.multi_reduction <add>, %433, %cst_188 [1] : vector<48x32xf32> to vector<48xf32>
    %435 = vector.shape_cast %434 : vector<48xf32> to vector<48x1xf32>
    %cst_189 = arith.constant 3.200000e+01 : f32
    %436 = vector.broadcast %cst_189 : f32 to vector<48x1xf32>
    %437 = arith.divf %435, %436 : vector<48x1xf32>
    %438 = vector.broadcast %430 : vector<48x1xf32> to vector<48x32xf32>
    %439 = arith.subf %424, %438 : vector<48x32xf32>
    %cst_190 = arith.constant 9.99999974E-6 : f32
    %440 = vector.broadcast %cst_190 : f32 to vector<48x1xf32>
    %441 = arith.addf %437, %440 : vector<48x1xf32>
    %442 = math.rsqrt %441 : vector<48x1xf32>
    %443 = vector.broadcast %442 : vector<48x1xf32> to vector<48x32xf32>
    %444 = arith.mulf %439, %443 : vector<48x32xf32>
    %445 = vector.broadcast %425 : vector<1x32xf32> to vector<48x32xf32>
    %446 = arith.mulf %444, %445 : vector<48x32xf32>
    %447 = vector.broadcast %426 : vector<1x32xf32> to vector<48x32xf32>
    %448 = arith.addf %446, %447 : vector<48x32xf32>
    %449 = arith.addf %263, %448 : vector<48x32xf32>
    %450 = tpu.iota {dimensions = array<i32: 0>} : vector<64x96xi32>
    %451 = vector.broadcast %136 : vector<1x96xi32> to vector<64x96xi32>
    %452 = arith.cmpi eq, %450, %451 : vector<64x96xi32>
    %453 = arith.extui %452 : vector<64x96xi1> to vector<64x96xi32>
    %454 = arith.sitofp %453 : vector<64x96xi32> to vector<64x96xf32>
    %cst_191 = arith.constant dense<0.000000e+00> : vector<64x32xf32>
    %455 = tpu.matmul %454, %387, %cst_191 {dimension_numbers = #tpu.dot_dimension_numbers<[1], [0], [0], [1], [0, 0, 1, 1], [], []>} : vector<64x96xf32>, vector<96x32xf32>, vector<64x32xf32> -> vector<64x32xf32>
    %456 = tpu.iota {dimensions = array<i32: 0>} : vector<64x48xi32>
    %457 = vector.broadcast %139 : vector<1x48xi32> to vector<64x48xi32>
    %458 = arith.cmpi eq, %456, %457 : vector<64x48xi32>
    %459 = arith.extui %458 : vector<64x48xi1> to vector<64x48xi32>
    %460 = arith.sitofp %459 : vector<64x48xi32> to vector<64x48xf32>
    %cst_192 = arith.constant dense<0.000000e+00> : vector<64x32xf32>
    %461 = tpu.matmul %460, %449, %cst_192 {dimension_numbers = #tpu.dot_dimension_numbers<[1], [0], [0], [1], [0, 0, 1, 1], [], []>} : vector<64x48xf32>, vector<48x32xf32>, vector<64x32xf32> -> vector<64x32xf32>
    %c1456 = arith.constant 1456 : index
    %c0_193 = arith.constant 0 : index
    %462 = vector.load %arg9[%c1456, %c0_193] : memref<1656x32xf32, #tpu.memory_space<vmem>>, vector<32x32xf32>
    %cst_194 = arith.constant dense<0.000000e+00> : vector<64x32xf32>
    %463 = tpu.matmul %325, %462, %cst_194 {dimension_numbers = #tpu.dot_dimension_numbers<[1], [0], [0], [1], [0, 0, 1, 1], [], []>} : vector<64x32xf32>, vector<32x32xf32>, vector<64x32xf32> -> vector<64x32xf32>
    %c1488 = arith.constant 1488 : index
    %c0_195 = arith.constant 0 : index
    %464 = vector.load %arg9[%c1488, %c0_195] : memref<1656x32xf32, #tpu.memory_space<vmem>>, vector<32x32xf32>
    %cst_196 = arith.constant dense<0.000000e+00> : vector<64x32xf32>
    %465 = tpu.matmul %455, %464, %cst_196 {dimension_numbers = #tpu.dot_dimension_numbers<[1], [0], [0], [1], [0, 0, 1, 1], [], []>} : vector<64x32xf32>, vector<32x32xf32>, vector<64x32xf32> -> vector<64x32xf32>
    %466 = arith.addf %463, %465 : vector<64x32xf32>
    %c1520 = arith.constant 1520 : index
    %c0_197 = arith.constant 0 : index
    %467 = vector.load %arg9[%c1520, %c0_197] : memref<1656x32xf32, #tpu.memory_space<vmem>>, vector<32x32xf32>
    %cst_198 = arith.constant dense<0.000000e+00> : vector<64x32xf32>
    %468 = tpu.matmul %461, %467, %cst_198 {dimension_numbers = #tpu.dot_dimension_numbers<[1], [0], [0], [1], [0, 0, 1, 1], [], []>} : vector<64x32xf32>, vector<32x32xf32>, vector<64x32xf32> -> vector<64x32xf32>
    %469 = arith.addf %466, %468 : vector<64x32xf32>
    %c1552 = arith.constant 1552 : index
    %c0_199 = arith.constant 0 : index
    %470 = vector.load %arg9[%c1552, %c0_199] : memref<1656x32xf32, #tpu.memory_space<vmem>>, vector<1x32xf32>
    %471 = vector.broadcast %470 : vector<1x32xf32> to vector<64x32xf32>
    %472 = arith.addf %469, %471 : vector<64x32xf32>
    %cst_200 = arith.constant 0.000000e+00 : f32
    %473 = vector.broadcast %cst_200 : f32 to vector<64x32xf32>
    %474 = arith.maximumf %472, %473 : vector<64x32xf32>
    %c1560 = arith.constant 1560 : index
    %c0_201 = arith.constant 0 : index
    %475 = vector.load %arg9[%c1560, %c0_201] : memref<1656x32xf32, #tpu.memory_space<vmem>>, vector<32x32xf32>
    %cst_202 = arith.constant dense<0.000000e+00> : vector<64x32xf32>
    %476 = tpu.matmul %474, %475, %cst_202 {dimension_numbers = #tpu.dot_dimension_numbers<[1], [0], [0], [1], [0, 0, 1, 1], [], []>} : vector<64x32xf32>, vector<32x32xf32>, vector<64x32xf32> -> vector<64x32xf32>
    %c1592 = arith.constant 1592 : index
    %c0_203 = arith.constant 0 : index
    %477 = vector.load %arg9[%c1592, %c0_203] : memref<1656x32xf32, #tpu.memory_space<vmem>>, vector<1x32xf32>
    %478 = vector.broadcast %477 : vector<1x32xf32> to vector<64x32xf32>
    %479 = arith.addf %476, %478 : vector<64x32xf32>
    %cst_204 = arith.constant 0.000000e+00 : f32
    %480 = vector.broadcast %cst_204 : f32 to vector<64x32xf32>
    %481 = arith.maximumf %479, %480 : vector<64x32xf32>
    %c1600 = arith.constant 1600 : index
    %c0_205 = arith.constant 0 : index
    %482 = vector.load %arg9[%c1600, %c0_205] : memref<1656x32xf32, #tpu.memory_space<vmem>>, vector<32x32xf32>
    %cst_206 = arith.constant dense<0.000000e+00> : vector<64x32xf32>
    %483 = tpu.matmul %481, %482, %cst_206 {dimension_numbers = #tpu.dot_dimension_numbers<[1], [0], [0], [1], [0, 0, 1, 1], [], []>} : vector<64x32xf32>, vector<32x32xf32>, vector<64x32xf32> -> vector<64x32xf32>
    %c1632 = arith.constant 1632 : index
    %c0_207 = arith.constant 0 : index
    %484 = vector.load %arg9[%c1632, %c0_207] : memref<1656x32xf32, #tpu.memory_space<vmem>>, vector<1x32xf32>
    %485 = vector.broadcast %484 : vector<1x32xf32> to vector<64x32xf32>
    %486 = arith.addf %483, %485 : vector<64x32xf32>
    %c1640 = arith.constant 1640 : index
    %c0_208 = arith.constant 0 : index
    %487 = vector.load %arg9[%c1640, %c0_208] : memref<1656x32xf32, #tpu.memory_space<vmem>>, vector<1x32xf32>
    %c1648 = arith.constant 1648 : index
    %c0_209 = arith.constant 0 : index
    %488 = vector.load %arg9[%c1648, %c0_209] : memref<1656x32xf32, #tpu.memory_space<vmem>>, vector<1x32xf32>
    %cst_210 = arith.constant dense<0.000000e+00> : vector<64xf32>
    %489 = vector.multi_reduction <add>, %486, %cst_210 [1] : vector<64x32xf32> to vector<64xf32>
    %490 = vector.shape_cast %489 : vector<64xf32> to vector<64x1xf32>
    %cst_211 = arith.constant 3.200000e+01 : f32
    %491 = vector.broadcast %cst_211 : f32 to vector<64x1xf32>
    %492 = arith.divf %490, %491 : vector<64x1xf32>
    %493 = vector.broadcast %492 : vector<64x1xf32> to vector<64x32xf32>
    %494 = arith.subf %486, %493 : vector<64x32xf32>
    %495 = arith.mulf %494, %494 : vector<64x32xf32>
    %cst_212 = arith.constant dense<0.000000e+00> : vector<64xf32>
    %496 = vector.multi_reduction <add>, %495, %cst_212 [1] : vector<64x32xf32> to vector<64xf32>
    %497 = vector.shape_cast %496 : vector<64xf32> to vector<64x1xf32>
    %cst_213 = arith.constant 3.200000e+01 : f32
    %498 = vector.broadcast %cst_213 : f32 to vector<64x1xf32>
    %499 = arith.divf %497, %498 : vector<64x1xf32>
    %500 = vector.broadcast %492 : vector<64x1xf32> to vector<64x32xf32>
    %501 = arith.subf %486, %500 : vector<64x32xf32>
    %cst_214 = arith.constant 9.99999974E-6 : f32
    %502 = vector.broadcast %cst_214 : f32 to vector<64x1xf32>
    %503 = arith.addf %499, %502 : vector<64x1xf32>
    %504 = math.rsqrt %503 : vector<64x1xf32>
    %505 = vector.broadcast %504 : vector<64x1xf32> to vector<64x32xf32>
    %506 = arith.mulf %501, %505 : vector<64x32xf32>
    %507 = vector.broadcast %487 : vector<1x32xf32> to vector<64x32xf32>
    %508 = arith.mulf %506, %507 : vector<64x32xf32>
    %509 = vector.broadcast %488 : vector<1x32xf32> to vector<64x32xf32>
    %510 = arith.addf %508, %509 : vector<64x32xf32>
    %511 = arith.addf %325, %510 : vector<64x32xf32>
    %c336 = arith.constant 336 : index
    %c0_215 = arith.constant 0 : index
    %512 = vector.load %arg9[%c336, %c0_215] : memref<1656x32xf32, #tpu.memory_space<vmem>>, vector<32x32xf32>
    %cst_216 = arith.constant dense<0.000000e+00> : vector<64x32xf32>
    %513 = tpu.matmul %511, %512, %cst_216 {dimension_numbers = #tpu.dot_dimension_numbers<[1], [0], [0], [1], [0, 0, 1, 1], [], []>} : vector<64x32xf32>, vector<32x32xf32>, vector<64x32xf32> -> vector<64x32xf32>
    %c368 = arith.constant 368 : index
    %c0_217 = arith.constant 0 : index
    %514 = vector.load %arg9[%c368, %c0_217] : memref<1656x32xf32, #tpu.memory_space<vmem>>, vector<1x32xf32>
    %515 = vector.broadcast %514 : vector<1x32xf32> to vector<64x32xf32>
    %516 = arith.addf %513, %515 : vector<64x32xf32>
    %cst_218 = arith.constant 0.000000e+00 : f32
    %517 = vector.broadcast %cst_218 : f32 to vector<64x32xf32>
    %518 = arith.maximumf %516, %517 : vector<64x32xf32>
    %c376 = arith.constant 376 : index
    %c0_219 = arith.constant 0 : index
    %519 = vector.load %arg9[%c376, %c0_219] : memref<1656x32xf32, #tpu.memory_space<vmem>>, vector<32x32xf32>
    %cst_220 = arith.constant dense<0.000000e+00> : vector<64x32xf32>
    %520 = tpu.matmul %518, %519, %cst_220 {dimension_numbers = #tpu.dot_dimension_numbers<[1], [0], [0], [1], [0, 0, 1, 1], [], []>} : vector<64x32xf32>, vector<32x32xf32>, vector<64x32xf32> -> vector<64x32xf32>
    %c408 = arith.constant 408 : index
    %c0_221 = arith.constant 0 : index
    %521 = vector.load %arg9[%c408, %c0_221] : memref<1656x32xf32, #tpu.memory_space<vmem>>, vector<1x32xf32>
    %522 = vector.broadcast %521 : vector<1x32xf32> to vector<64x32xf32>
    %523 = arith.addf %520, %522 : vector<64x32xf32>
    %cst_222 = arith.constant 0.000000e+00 : f32
    %524 = vector.broadcast %cst_222 : f32 to vector<64x32xf32>
    %525 = arith.maximumf %523, %524 : vector<64x32xf32>
    %c416 = arith.constant 416 : index
    %c0_223 = arith.constant 0 : index
    %526 = vector.load %arg9[%c416, %c0_223] : memref<1656x32xf32, #tpu.memory_space<vmem>>, vector<32x32xf32>
    %cst_224 = arith.constant dense<0.000000e+00> : vector<64x32xf32>
    %527 = tpu.matmul %525, %526, %cst_224 {dimension_numbers = #tpu.dot_dimension_numbers<[1], [0], [0], [1], [0, 0, 1, 1], [], []>} : vector<64x32xf32>, vector<32x32xf32>, vector<64x32xf32> -> vector<64x32xf32>
    %c448 = arith.constant 448 : index
    %c0_225 = arith.constant 0 : index
    %528 = vector.load %arg9[%c448, %c0_225] : memref<1656x32xf32, #tpu.memory_space<vmem>>, vector<1x32xf32>
    %529 = vector.broadcast %528 : vector<1x32xf32> to vector<64x32xf32>
    %530 = arith.addf %527, %529 : vector<64x32xf32>
    %c0_226 = arith.constant 0 : index
    %c0_227 = arith.constant 0 : index
    %531 = vector.load %arg10[%c0_226, %c0_227] : memref<64x32xf32, #tpu.memory_space<vmem>>, vector<64x32xf32>
    tpu.vector_store %arg10[%c0_226, %c0_227], %530 {strides = array<i32>} : memref<64x32xf32, #tpu.memory_space<vmem>>, vector<64x32xf32>,
    return
  }
}

</mosaic_0001>

<llo_original>
// kernel: tpu_custom_call.1
$region0: #{tpu_custom_call.1}
  #allocation0 [shape = 'u32[]', space=smem, size = 0x4, offset = 0x4, fixed_abs, tag = 'smem constant byte address 0x4 - core index']
  #allocation1 [shape = 'u32[144,128]{1,0:T(1,128)}', space=vmem, size = 0x12000, scoped, tag = 'internal scratch']
  %s0 = inlined_call_operand.vmem [shape: f32[80,8], index: 0, kind: input, shape index: {}]
  %s1 = inlined_call_operand.vmem [shape: f32[96,8], index: 1, kind: input, shape index: {}]
  %s2 = inlined_call_operand.vmem [shape: f32[48,8], index: 2, kind: input, shape index: {}]
  %s3 = inlined_call_operand.vmem [shape: s32[96,1], index: 3, kind: input, shape index: {}]
  %s4 = inlined_call_operand.vmem [shape: s32[96,1], index: 4, kind: input, shape index: {}]
  %s5 = inlined_call_operand.vmem [shape: s32[1,96], index: 5, kind: input, shape index: {}]
  %s6 = inlined_call_operand.vmem [shape: s32[48,1], index: 6, kind: input, shape index: {}]
  %s7 = inlined_call_operand.vmem [shape: s32[48,1], index: 7, kind: input, shape index: {}]
  %s8 = inlined_call_operand.vmem [shape: s32[1,48], index: 8, kind: input, shape index: {}]
  %s9 = inlined_call_operand.vmem [shape: f32[1656,32], index: 9, kind: input, shape index: {}]
  %s10 = inlined_call_operand.vmem [shape: f32[64,32], index: 10, kind: output, shape index: {}]
  %s11 = sld [smem:[#allocation0]]
  $region50: #{tpu_custom_call.1} parent=0
    _
  %s13 = ssub.s32 1, %s11
  %s14 = scalar_select 0, %s13, %s11
  // Predicated region
  $region2: #{tpu_custom_call.1} parent=0 // pred_check
    _
  $region3: #{tpu_custom_call.1} parent=0 // pred_check_branch
    %16 = sbr.rel (0) target = $region5
  $region4: #{tpu_custom_call.1} parent=0 // pred_region
    _
  $region5: #{tpu_custom_call.1} parent=0 // pred_fallthru
    _
  // Predicated region
  $region6: #{tpu_custom_call.1} parent=0 // pred_check
    _
  $region7: #{tpu_custom_call.1} parent=0 // pred_check_branch
    %18 = sbr.rel (0) target = $region9
  $region8: #{tpu_custom_call.1} parent=0 // pred_region
    _
  $region9: #{tpu_custom_call.1} parent=0 // pred_fallthru
    _
  // Predicated region
  $region10: #{tpu_custom_call.1} parent=0 // pred_check
    _
  $region11: #{tpu_custom_call.1} parent=0 // pred_check_branch
    %20 = sbr.rel (0) target = $region13
  $region12: #{tpu_custom_call.1} parent=0 // pred_region
    _
  $region13: #{tpu_custom_call.1} parent=0 // pred_fallthru
    _
  // Predicated region
  $region14: #{tpu_custom_call.1} parent=0 // pred_check
    _
  $region15: #{tpu_custom_call.1} parent=0 // pred_check_branch
    %22 = sbr.rel (0) target = $region17
  $region16: #{tpu_custom_call.1} parent=0 // pred_region
    _
  $region17: #{tpu_custom_call.1} parent=0 // pred_fallthru
    _
  // Predicated region
  $region18: #{tpu_custom_call.1} parent=0 // pred_check
    _
  $region19: #{tpu_custom_call.1} parent=0 // pred_check_branch
    %24 = sbr.rel (0) target = $region21
  $region20: #{tpu_custom_call.1} parent=0 // pred_region
    _
  $region21: #{tpu_custom_call.1} parent=0 // pred_fallthru
    _
  // Predicated region
  $region22: #{tpu_custom_call.1} parent=0 // pred_check
    _
  $region23: #{tpu_custom_call.1} parent=0 // pred_check_branch
    %26 = sbr.rel (0) target = $region25
  $region24: #{tpu_custom_call.1} parent=0 // pred_region
    _
  $region25: #{tpu_custom_call.1} parent=0 // pred_fallthru
    _
  // Predicated region
  $region26: #{tpu_custom_call.1} parent=0 // pred_check
    _
  $region27: #{tpu_custom_call.1} parent=0 // pred_check_branch
    %28 = sbr.rel (0) target = $region29
  $region28: #{tpu_custom_call.1} parent=0 // pred_region
    _
  $region29: #{tpu_custom_call.1} parent=0 // pred_fallthru
    _
  // Predicated region
  $region30: #{tpu_custom_call.1} parent=0 // pred_check
    _
  $region31: #{tpu_custom_call.1} parent=0 // pred_check_branch
    %30 = sbr.rel (0) target = $region33
  $region32: #{tpu_custom_call.1} parent=0 // pred_region
    _
  $region33: #{tpu_custom_call.1} parent=0 // pred_fallthru
    _
  // Predicated region
  $region34: #{tpu_custom_call.1} parent=0 // pred_check
    _
  $region35: #{tpu_custom_call.1} parent=0 // pred_check_branch
    %32 = sbr.rel (0) target = $region37
  $region36: #{tpu_custom_call.1} parent=0 // pred_region
    _
  $region37: #{tpu_custom_call.1} parent=0 // pred_fallthru
    _
  // Predicated region
  $region38: #{tpu_custom_call.1} parent=0 // pred_check
    _
  $region39: #{tpu_custom_call.1} parent=0 // pred_check_branch
    %34 = sbr.rel (0) target = $region41
  $region40: #{tpu_custom_call.1} parent=0 // pred_region
    _
  $region41: #{tpu_custom_call.1} parent=0 // pred_fallthru
    _
  %v35 = vld [vmem:[%s0] sm:$0xff]
  %v36 = vld [vmem:[%s0 + $0x8] sm:$0xff]
  %v37 = vld [vmem:[%s0 + $0x10] sm:$0xff]
  %v38 = vld [vmem:[%s0 + $0x18] sm:$0xff]
  %v39 = vld [vmem:[%s0 + $0x20] sm:$0xff]
  %v40 = vld [vmem:[%s0 + $0x28] sm:$0xff]
  %v41 = vld [vmem:[%s0 + $0x30] sm:$0xff]
  %v42 = vld [vmem:[%s0 + $0x38] sm:$0xff]
  %v43 = vld [vmem:[%s0 + $0x40] sm:$0xff]
  %v44 = vld [vmem:[%s0 + $0x48] sm:$0xff]
  %v45 = vld [vmem:[%s9] sm:$0xff]
  %v46 = vld [vmem:[%s9 + $0x8] sm:$0x1]
  %v47 = vlaneseq
  %v48 = vshrl.u32 %v47, 7
  %v49 = vsub.s32 0, %v48
  %v50 = vrot.slane %v46, %v49
  %vm51 = vcmask 64512
  %v53 = vsel %vm51, %v35, 0
  %v56 = vsel %vm51, %v36, 0
  %v59 = vsel %vm51, %v37, 0
  %v62 = vsel %vm51, %v38, 0
  %v65 = vsel %vm51, %v39, 0
  %v68 = vsel %vm51, %v40, 0
  %v71 = vsel %vm51, %v41, 0
  %v74 = vsel %vm51, %v42, 0
  %v77 = vsel %vm51, %v43, 0
  %v80 = vsel %vm51, %v44, 0
  %82 = vmatprep.subr.mxu0 0.0
  %83 = vmatpush1.msra.mxu0 %v45
  %84 = vmatprep.subr.mxu0 0.0
  %85 = vmatpush1.msra.mxu0 0.0
  %86 = vmatprep.subr.mxu0 0.0
  %87 = vmatpush1.msra.mxu0 0.0
  %88 = vmatprep.subr.mxu0 0.0
  %89 = vmatpush1.msra.mxu0 0.0
  %90 = vmatprep.subr.mxu0 0.0
  %91 = vmatpush1.msra.mxu0 0.0
  %92 = vmatprep.subr.mxu0 0.0
  %93 = vmatpush1.msra.mxu0 0.0
  %94 = vmatprep.subr.mxu0 0.0
  %95 = vmatpush1.msra.mxu0 0.0
  %96 = vmatprep.subr.mxu0 0.0
  %97 = vmatpush1.msra.mxu0 0.0
  %98 = vmatprep.subr.mxu0 0.0
  %99 = vmatpush1.msra.mxu0 0.0
  %100 = vmatprep.subr.mxu0 0.0
  %101 = vmatpush1.msra.mxu0 0.0
  %102 = vmatprep.subr.mxu0 0.0
  %103 = vmatpush1.msra.mxu0 0.0
  %104 = vmatprep.subr.mxu0 0.0
  %105 = vmatpush1.msra.mxu0 0.0
  %106 = vmatprep.subr.mxu0 0.0
  %107 = vmatpush1.msra.mxu0 0.0
  %108 = vmatprep.subr.mxu0 0.0
  %109 = vmatpush1.msra.mxu0 0.0
  %110 = vmatprep.subr.mxu0 0.0
  %111 = vmatpush1.msra.mxu0 0.0
  %112 = vmatprep.subr.mxu0 0.0
  %113 = vmatpush1.msra.mxu0 0.0
  %114 = vmatprep.subr.mxu0 0.0
  %115 = vmatpush1.msra.mxu0 0.0
  %116 = vmatprep.subr.mxu0 0.0
  %117 = vmatpush1.msra.mxu0 0.0
  %118 = vmatprep.subr.mxu0 0.0
  %119 = vmatpush1.msra.mxu0 0.0
  %120 = vmatprep.subr.mxu0 0.0
  %121 = vmatpush1.msra.mxu0 0.0
  %122 = vmatprep.subr.mxu0 0.0
  %123 = vmatpush1.msra.mxu0 0.0
  %124 = vmatprep.subr.mxu0 0.0
  %125 = vmatpush1.msra.mxu0 0.0
  %126 = vmatprep.subr.mxu0 0.0
  %127 = vmatpush1.msra.mxu0 0.0
  %128 = vmatprep.subr.mxu0 0.0
  %129 = vmatpush1.msra.mxu0 0.0
  %130 = vmatprep.subr.mxu0 0.0
  %131 = vmatpush1.msra.mxu0 0.0
  %132 = vmatprep.subr.mxu0 0.0
  %133 = vmatpush1.msra.mxu0 0.0
  %134 = vmatprep.subr.mxu0 0.0
  %135 = vmatpush1.msra.mxu0 0.0
  %136 = vmatprep.subr.mxu0 0.0
  %137 = vmatpush1.msra.mxu0 0.0
  %138 = vmatprep.subr.mxu0 0.0
  %139 = vmatpush1.msra.mxu0 0.0
  %140 = vmatprep.subr.mxu0 0.0
  %141 = vmatpush1.msra.mxu0 0.0
  %142 = vmatprep.subr.mxu0 0.0
  %143 = vmatpush1.msra.mxu0 0.0
  %144 = vmatprep.subr.mxu0 0.0
  %145 = vmatpush1.msra.mxu0 0.0
  %146 = vmatprep.mubr.f32.mxu0 0.0
  %147 = vmatmul.mubr.f32.gmra.mrb[0].mxu0 %v53
  %v148 = vpop.f32.mrb[0].mxu0
  %v149 = vadd.f32 %v50, %v148
  %v150 = vpop.f32.mrb[0].mxu0
  %151 = vmatprep.mubr.f32.mxu0 0.0
  %152 = vmatmul.mubr.f32.gmra.mrb[0].mxu0 %v56
  %v153 = vpop.f32.mrb[0].mxu0
  %v154 = vadd.f32 %v50, %v153
  %v155 = vpop.f32.mrb[0].mxu0
  %156 = vmatprep.mubr.f32.mxu0 0.0
  %157 = vmatmul.mubr.f32.gmra.mrb[0].mxu0 %v59
  %v158 = vpop.f32.mrb[0].mxu0
  %v159 = vadd.f32 %v50, %v158
  %v160 = vpop.f32.mrb[0].mxu0
  %161 = vmatprep.mubr.f32.mxu0 0.0
  %162 = vmatmul.mubr.f32.gmra.mrb[0].mxu0 %v62
  %v163 = vpop.f32.mrb[0].mxu0
  %v164 = vadd.f32 %v50, %v163
  %v165 = vpop.f32.mrb[0].mxu0
  %166 = vmatprep.mubr.f32.mxu0 0.0
  %167 = vmatmul.mubr.f32.gmra.mrb[0].mxu0 %v65
  %v168 = vpop.f32.mrb[0].mxu0
  %v169 = vadd.f32 %v50, %v168
  %v170 = vpop.f32.mrb[0].mxu0
  %171 = vmatprep.mubr.f32.mxu0 0.0
  %172 = vmatmul.mubr.f32.gmra.mrb[0].mxu0 %v68
  %v173 = vpop.f32.mrb[0].mxu0
  %v174 = vadd.f32 %v50, %v173
  %v175 = vpop.f32.mrb[0].mxu0
  %176 = vmatprep.mubr.f32.mxu0 0.0
  %177 = vmatmul.mubr.f32.gmra.mrb[0].mxu0 %v71
  %v178 = vpop.f32.mrb[0].mxu0
  %v179 = vadd.f32 %v50, %v178
  %v180 = vpop.f32.mrb[0].mxu0
  %181 = vmatprep.mubr.f32.mxu0 0.0
  %182 = vmatmul.mubr.f32.gmra.mrb[0].mxu0 %v74
  %v183 = vpop.f32.mrb[0].mxu0
  %v184 = vadd.f32 %v50, %v183
  %v185 = vpop.f32.mrb[0].mxu0
  %186 = vmatprep.mubr.f32.mxu0 0.0
  %187 = vmatmul.mubr.f32.gmra.mrb[0].mxu0 %v77
  %v188 = vpop.f32.mrb[0].mxu0
  %v189 = vadd.f32 %v50, %v188
  %v190 = vpop.f32.mrb[0].mxu0
  %191 = vmatprep.mubr.f32.mxu0 0.0
  %192 = vmatmul.mubr.f32.gmra.mrb[0].mxu0 %v80
  %v193 = vpop.f32.mrb[0].mxu0
  %v194 = vadd.f32 %v50, %v193
  %v195 = vpop.f32.mrb[0].mxu0
  %196 = vdwg.mxu0
  %v197 = vmax.f32 %v149, 0.0
  %v198 = vmax.f32 %v154, 0.0
  %v199 = vmax.f32 %v159, 0.0
  %v200 = vmax.f32 %v164, 0.0
  %v201 = vmax.f32 %v169, 0.0
  %v202 = vmax.f32 %v174, 0.0
  %v203 = vmax.f32 %v179, 0.0
  %v204 = vmax.f32 %v184, 0.0
  %v205 = vmax.f32 %v189, 0.0
  %v206 = vmax.f32 %v194, 0.0
  %v207 = vld [vmem:[%s9 + $0x10] sm:$0xff]
  %v208 = vld [vmem:[%s9 + $0x18] sm:$0xff]
  %v209 = vld [vmem:[%s9 + $0x20] sm:$0xff]
  %v210 = vld [vmem:[%s9 + $0x28] sm:$0xff]
  %v211 = vld [vmem:[%s9 + $0x30] sm:$0x1]
  %v212 = vlaneseq
  %v213 = vshrl.u32 %v212, 7
  %v214 = vsub.s32 0, %v213
  %v215 = vrot.slane %v211, %v214
  %vm216 = vcmask 261120
  %v218 = vsel %vm216, %v197, 0
  %v221 = vsel %vm216, %v198, 0
  %v224 = vsel %vm216, %v199, 0
  %v227 = vsel %vm216, %v200, 0
  %v230 = vsel %vm216, %v201, 0
  %v233 = vsel %vm216, %v202, 0
  %v236 = vsel %vm216, %v203, 0
  %v239 = vsel %vm216, %v204, 0
  %v242 = vsel %vm216, %v205, 0
  %v245 = vsel %vm216, %v206, 0
  %247 = vmatprep.subr.mxu0 0.0
  %248 = vmatpush1.msra.mxu0 %v207
  %249 = vmatprep.subr.mxu0 0.0
  %250 = vmatpush1.msra.mxu0 %v208
  %251 = vmatprep.subr.mxu0 0.0
  %252 = vmatpush1.msra.mxu0 %v209
  %253 = vmatprep.subr.mxu0 0.0
  %254 = vmatpush1.msra.mxu0 %v210
  %255 = vmatprep.subr.mxu0 0.0
  %256 = vmatpush1.msra.mxu0 0.0
  %257 = vmatprep.subr.mxu0 0.0
  %258 = vmatpush1.msra.mxu0 0.0
  %259 = vmatprep.subr.mxu0 0.0
  %260 = vmatpush1.msra.mxu0 0.0
  %261 = vmatprep.subr.mxu0 0.0
  %262 = vmatpush1.msra.mxu0 0.0
  %263 = vmatprep.subr.mxu0 0.0
  %264 = vmatpush1.msra.mxu0 0.0
  %265 = vmatprep.subr.mxu0 0.0
  %266 = vmatpush1.msra.mxu0 0.0
  %267 = vmatprep.subr.mxu0 0.0
  %268 = vmatpush1.msra.mxu0 0.0
  %269 = vmatprep.subr.mxu0 0.0
  %270 = vmatpush1.msra.mxu0 0.0
  %271 = vmatprep.subr.mxu0 0.0
  %272 = vmatpush1.msra.mxu0 0.0
  %273 = vmatprep.subr.mxu0 0.0
  %274 = vmatpush1.msra.mxu0 0.0
  %275 = vmatprep.subr.mxu0 0.0
  %276 = vmatpush1.msra.mxu0 0.0
  %277 = vmatprep.subr.mxu0 0.0
  %278 = vmatpush1.msra.mxu0 0.0
  %279 = vmatprep.subr.mxu0 0.0
  %280 = vmatpush1.msra.mxu0 0.0
  %281 = vmatprep.subr.mxu0 0.0
  %282 = vmatpush1.msra.mxu0 0.0
  %283 = vmatprep.subr.mxu0 0.0
  %284 = vmatpush1.msra.mxu0 0.0
  %285 = vmatprep.subr.mxu0 0.0
  %286 = vmatpush1.msra.mxu0 0.0
  %287 = vmatprep.subr.mxu0 0.0
  %288 = vmatpush1.msra.mxu0 0.0
  %289 = vmatprep.subr.mxu0 0.0
  %290 = vmatpush1.msra.mxu0 0.0
  %291 = vmatprep.subr.mxu0 0.0
  %292 = vmatpush1.msra.mxu0 0.0
  %293 = vmatprep.subr.mxu0 0.0
  %294 = vmatpush1.msra.mxu0 0.0
  %295 = vmatprep.subr.mxu0 0.0
  %296 = vmatpush1.msra.mxu0 0.0
  %297 = vmatprep.subr.mxu0 0.0
  %298 = vmatpush1.msra.mxu0 0.0
  %299 = vmatprep.subr.mxu0 0.0
  %300 = vmatpush1.msra.mxu0 0.0
  %301 = vmatprep.subr.mxu0 0.0
  %302 = vmatpush1.msra.mxu0 0.0
  %303 = vmatprep.subr.mxu0 0.0
  %304 = vmatpush1.msra.mxu0 0.0
  %305 = vmatprep.subr.mxu0 0.0
  %306 = vmatpush1.msra.mxu0 0.0
  %307 = vmatprep.subr.mxu0 0.0
  %308 = vmatpush1.msra.mxu0 0.0
  %309 = vmatprep.subr.mxu0 0.0
  %310 = vmatpush1.msra.mxu0 0.0
  %311 = vmatprep.mubr.f32.mxu0 0.0
  %312 = vmatmul.mubr.f32.gmra.mrb[0].mxu0 %v218
  %v313 = vpop.f32.mrb[0].mxu0
  %v314 = vadd.f32 %v215, %v313
  %v315 = vpop.f32.mrb[0].mxu0
  %316 = vmatprep.mubr.f32.mxu0 0.0
  %317 = vmatmul.mubr.f32.gmra.mrb[0].mxu0 %v221
  %v318 = vpop.f32.mrb[0].mxu0
  %v319 = vadd.f32 %v215, %v318
  %v320 = vpop.f32.mrb[0].mxu0
  %321 = vmatprep.mubr.f32.mxu0 0.0
  %322 = vmatmul.mubr.f32.gmra.mrb[0].mxu0 %v224
  %v323 = vpop.f32.mrb[0].mxu0
  %v324 = vadd.f32 %v215, %v323
  %v325 = vpop.f32.mrb[0].mxu0
  %326 = vmatprep.mubr.f32.mxu0 0.0
  %327 = vmatmul.mubr.f32.gmra.mrb[0].mxu0 %v227
  %v328 = vpop.f32.mrb[0].mxu0
  %v329 = vadd.f32 %v215, %v328
  %v330 = vpop.f32.mrb[0].mxu0
  %331 = vmatprep.mubr.f32.mxu0 0.0
  %332 = vmatmul.mubr.f32.gmra.mrb[0].mxu0 %v230
  %v333 = vpop.f32.mrb[0].mxu0
  %v334 = vadd.f32 %v215, %v333
  %v335 = vpop.f32.mrb[0].mxu0
  %336 = vmatprep.mubr.f32.mxu0 0.0
  %337 = vmatmul.mubr.f32.gmra.mrb[0].mxu0 %v233
  %v338 = vpop.f32.mrb[0].mxu0
  %v339 = vadd.f32 %v215, %v338
  %v340 = vpop.f32.mrb[0].mxu0
  %341 = vmatprep.mubr.f32.mxu0 0.0
  %342 = vmatmul.mubr.f32.gmra.mrb[0].mxu0 %v236
  %v343 = vpop.f32.mrb[0].mxu0
  %v344 = vadd.f32 %v215, %v343
  %v345 = vpop.f32.mrb[0].mxu0
  %346 = vmatprep.mubr.f32.mxu0 0.0
  %347 = vmatmul.mubr.f32.gmra.mrb[0].mxu0 %v239
  %v348 = vpop.f32.mrb[0].mxu0
  %v349 = vadd.f32 %v215, %v348
  %v350 = vpop.f32.mrb[0].mxu0
  %351 = vmatprep.mubr.f32.mxu0 0.0
  %352 = vmatmul.mubr.f32.gmra.mrb[0].mxu0 %v242
  %v353 = vpop.f32.mrb[0].mxu0
  %v354 = vadd.f32 %v215, %v353
  %v355 = vpop.f32.mrb[0].mxu0
  %356 = vmatprep.mubr.f32.mxu0 0.0
  %357 = vmatmul.mubr.f32.gmra.mrb[0].mxu0 %v245
  %v358 = vpop.f32.mrb[0].mxu0
  %v359 = vadd.f32 %v215, %v358
  %v360 = vpop.f32.mrb[0].mxu0
  %361 = vdwg.mxu0
  %v362 = vmax.f32 %v314, 0.0
  %v363 = vmax.f32 %v319, 0.0
  %v364 = vmax.f32 %v324, 0.0
  %v365 = vmax.f32 %v329, 0.0
  %v366 = vmax.f32 %v334, 0.0
  %v367 = vmax.f32 %v339, 0.0
  %v368 = vmax.f32 %v344, 0.0
  %v369 = vmax.f32 %v349, 0.0
  %v370 = vmax.f32 %v354, 0.0
  %v371 = vmax.f32 %v359, 0.0
  %v372 = vld [vmem:[%s9 + $0x38] sm:$0xff]
  %v373 = vld [vmem:[%s9 + $0x40] sm:$0xff]
  %v374 = vld [vmem:[%s9 + $0x48] sm:$0xff]
  %v375 = vld [vmem:[%s9 + $0x50] sm:$0xff]
  %v376 = vld [vmem:[%s9 + $0x58] sm:$0x1]
  %v377 = vlaneseq
  %v378 = vshrl.u32 %v377, 7
  %v379 = vsub.s32 0, %v378
  %v380 = vrot.slane %v376, %v379
  %v382 = vsel %vm216, %v362, 0
  %v385 = vsel %vm216, %v363, 0
  %v388 = vsel %vm216, %v364, 0
  %v391 = vsel %vm216, %v365, 0
  %v394 = vsel %vm216, %v366, 0
  %v397 = vsel %vm216, %v367, 0
  %v400 = vsel %vm216, %v368, 0
  %v403 = vsel %vm216, %v369, 0
  %v406 = vsel %vm216, %v370, 0
  %v409 = vsel %vm216, %v371, 0
  %411 = vmatprep.subr.mxu0 0.0
  %412 = vmatpush1.msra.mxu0 %v372
  %413 = vmatprep.subr.mxu0 0.0
  %414 = vmatpush1.msra.mxu0 %v373
  %415 = vmatprep.subr.mxu0 0.0
  %416 = vmatpush1.msra.mxu0 %v374
  %417 = vmatprep.subr.mxu0 0.0
  %418 = vmatpush1.msra.mxu0 %v375
  %419 = vmatprep.subr.mxu0 0.0
  %420 = vmatpush1.msra.mxu0 0.0
  %421 = vmatprep.subr.mxu0 0.0
  %422 = vmatpush1.msra.mxu0 0.0
  %423 = vmatprep.subr.mxu0 0.0
  %424 = vmatpush1.msra.mxu0 0.0
  %425 = vmatprep.subr.mxu0 0.0
  %426 = vmatpush1.msra.mxu0 0.0
  %427 = vmatprep.subr.mxu0 0.0
  %428 = vmatpush1.msra.mxu0 0.0
  %429 = vmatprep.subr.mxu0 0.0
  %430 = vmatpush1.msra.mxu0 0.0
  %431 = vmatprep.subr.mxu0 0.0
  %432 = vmatpush1.msra.mxu0 0.0
  %433 = vmatprep.subr.mxu0 0.0
  %434 = vmatpush1.msra.mxu0 0.0
  %435 = vmatprep.subr.mxu0 0.0
  %436 = vmatpush1.msra.mxu0 0.0
  %437 = vmatprep.subr.mxu0 0.0
  %438 = vmatpush1.msra.mxu0 0.0
  %439 = vmatprep.subr.mxu0 0.0
  %440 = vmatpush1.msra.mxu0 0.0
  %441 = vmatprep.subr.mxu0 0.0
  %442 = vmatpush1.msra.mxu0 0.0
  %443 = vmatprep.subr.mxu0 0.0
  %444 = vmatpush1.msra.mxu0 0.0
  %445 = vmatprep.subr.mxu0 0.0
  %446 = vmatpush1.msra.mxu0 0.0
  %447 = vmatprep.subr.mxu0 0.0
  %448 = vmatpush1.msra.mxu0 0.0
  %449 = vmatprep.subr.mxu0 0.0
  %450 = vmatpush1.msra.mxu0 0.0
  %451 = vmatprep.subr.mxu0 0.0
  %452 = vmatpush1.msra.mxu0 0.0
  %453 = vmatprep.subr.mxu0 0.0
  %454 = vmatpush1.msra.mxu0 0.0
  %455 = vmatprep.subr.mxu0 0.0
  %456 = vmatpush1.msra.mxu0 0.0
  %457 = vmatprep.subr.mxu0 0.0
  %458 = vmatpush1.msra.mxu0 0.0
  %459 = vmatprep.subr.mxu0 0.0
  %460 = vmatpush1.msra.mxu0 0.0
  %461 = vmatprep.subr.mxu0 0.0
  %462 = vmatpush1.msra.mxu0 0.0
  %463 = vmatprep.subr.mxu0 0.0
  %464 = vmatpush1.msra.mxu0 0.0
  %465 = vmatprep.subr.mxu0 0.0
  %466 = vmatpush1.msra.mxu0 0.0
  %467 = vmatprep.subr.mxu0 0.0
  %468 = vmatpush1.msra.mxu0 0.0
  %469 = vmatprep.subr.mxu0 0.0
  %470 = vmatpush1.msra.mxu0 0.0
  %471 = vmatprep.subr.mxu0 0.0
  %472 = vmatpush1.msra.mxu0 0.0
  %473 = vmatprep.subr.mxu0 0.0
  %474 = vmatpush1.msra.mxu0 0.0
  %475 = vmatprep.mubr.f32.mxu0 0.0
  %476 = vmatmul.mubr.f32.gmra.mrb[0].mxu0 %v382
  %v477 = vpop.f32.mrb[0].mxu0
  %v478 = vadd.f32 %v380, %v477
  %v479 = vpop.f32.mrb[0].mxu0
  %480 = vmatprep.mubr.f32.mxu0 0.0
  %481 = vmatmul.mubr.f32.gmra.mrb[0].mxu0 %v385
  %v482 = vpop.f32.mrb[0].mxu0
  %v483 = vadd.f32 %v380, %v482
  %v484 = vpop.f32.mrb[0].mxu0
  %485 = vmatprep.mubr.f32.mxu0 0.0
  %486 = vmatmul.mubr.f32.gmra.mrb[0].mxu0 %v388
  %v487 = vpop.f32.mrb[0].mxu0
  %v488 = vadd.f32 %v380, %v487
  %v489 = vpop.f32.mrb[0].mxu0
  %490 = vmatprep.mubr.f32.mxu0 0.0
  %491 = vmatmul.mubr.f32.gmra.mrb[0].mxu0 %v391
  %v492 = vpop.f32.mrb[0].mxu0
  %v493 = vadd.f32 %v380, %v492
  %v494 = vpop.f32.mrb[0].mxu0
  %495 = vmatprep.mubr.f32.mxu0 0.0
  %496 = vmatmul.mubr.f32.gmra.mrb[0].mxu0 %v394
  %v497 = vpop.f32.mrb[0].mxu0
  %v498 = vadd.f32 %v380, %v497
  %v499 = vpop.f32.mrb[0].mxu0
  %500 = vmatprep.mubr.f32.mxu0 0.0
  %501 = vmatmul.mubr.f32.gmra.mrb[0].mxu0 %v397
  %v502 = vpop.f32.mrb[0].mxu0
  %v503 = vadd.f32 %v380, %v502
  %v504 = vpop.f32.mrb[0].mxu0
  %505 = vmatprep.mubr.f32.mxu0 0.0
  %506 = vmatmul.mubr.f32.gmra.mrb[0].mxu0 %v400
  %v507 = vpop.f32.mrb[0].mxu0
  %v508 = vadd.f32 %v380, %v507
  %v509 = vpop.f32.mrb[0].mxu0
  %510 = vmatprep.mubr.f32.mxu0 0.0
  %511 = vmatmul.mubr.f32.gmra.mrb[0].mxu0 %v403
  %v512 = vpop.f32.mrb[0].mxu0
  %v513 = vadd.f32 %v380, %v512
  %v514 = vpop.f32.mrb[0].mxu0
  %515 = vmatprep.mubr.f32.mxu0 0.0
  %516 = vmatmul.mubr.f32.gmra.mrb[0].mxu0 %v406
  %v517 = vpop.f32.mrb[0].mxu0
  %v518 = vadd.f32 %v380, %v517
  %v519 = vpop.f32.mrb[0].mxu0
  %520 = vmatprep.mubr.f32.mxu0 0.0
  %521 = vmatmul.mubr.f32.gmra.mrb[0].mxu0 %v409
  %v522 = vpop.f32.mrb[0].mxu0
  %v523 = vadd.f32 %v380, %v522
  %v524 = vpop.f32.mrb[0].mxu0
  %525 = vdwg.mxu0
  %v526 = vld [vmem:[%s9 + $0x60] sm:$0x1]
  %v527 = vld [vmem:[%s9 + $0x68] sm:$0x1]
  %v528 = vsel %vm216, %v478, 0.0
  %529 = vadd.xlane.f32.xlu0 %v528
  %v530 = vpop.xlane.xlu0 %529
  %v531 = vsel %vm216, %v483, 0.0
  %532 = vadd.xlane.f32.xlu0 %v531
  %v533 = vpop.xlane.xlu0 %532
  %v534 = vsel %vm216, %v488, 0.0
  %535 = vadd.xlane.f32.xlu0 %v534
  %v536 = vpop.xlane.xlu0 %535
  %v537 = vsel %vm216, %v493, 0.0
  %538 = vadd.xlane.f32.xlu0 %v537
  %v539 = vpop.xlane.xlu0 %538
  %v540 = vsel %vm216, %v498, 0.0
  %541 = vadd.xlane.f32.xlu0 %v540
  %v542 = vpop.xlane.xlu0 %541
  %v543 = vsel %vm216, %v503, 0.0
  %544 = vadd.xlane.f32.xlu0 %v543
  %v545 = vpop.xlane.xlu0 %544
  %v546 = vsel %vm216, %v508, 0.0
  %547 = vadd.xlane.f32.xlu0 %v546
  %v548 = vpop.xlane.xlu0 %547
  %v549 = vsel %vm216, %v513, 0.0
  %550 = vadd.xlane.f32.xlu0 %v549
  %v551 = vpop.xlane.xlu0 %550
  %v552 = vsel %vm216, %v518, 0.0
  %553 = vadd.xlane.f32.xlu0 %v552
  %v554 = vpop.xlane.xlu0 %553
  %v555 = vsel %vm216, %v523, 0.0
  %556 = vadd.xlane.f32.xlu0 %v555
  %v557 = vpop.xlane.xlu0 %556
  %v558 = vrcp.pop 32.0
  %v559 = vmul.f32 %v530, %v558
  %v560 = vmul.f32 %v533, %v558
  %v561 = vmul.f32 %v536, %v558
  %v562 = vmul.f32 %v539, %v558
  %v563 = vmul.f32 %v542, %v558
  %v564 = vmul.f32 %v545, %v558
  %v565 = vmul.f32 %v548, %v558
  %v566 = vmul.f32 %v551, %v558
  %v567 = vmul.f32 %v554, %v558
  %v568 = vmul.f32 %v557, %v558
  %v569 = vsub.f32 %v478, %v559
  %v570 = vsub.f32 %v483, %v560
  %v571 = vsub.f32 %v488, %v561
  %v572 = vsub.f32 %v493, %v562
  %v573 = vsub.f32 %v498, %v563
  %v574 = vsub.f32 %v503, %v564
  %v575 = vsub.f32 %v508, %v565
  %v576 = vsub.f32 %v513, %v566
  %v577 = vsub.f32 %v518, %v567
  %v578 = vsub.f32 %v523, %v568
  %v579 = vmul.f32 %v569, %v569
  %v580 = vmul.f32 %v570, %v570
  %v581 = vmul.f32 %v571, %v571
  %v582 = vmul.f32 %v572, %v572
  %v583 = vmul.f32 %v573, %v573
  %v584 = vmul.f32 %v574, %v574
  %v585 = vmul.f32 %v575, %v575
  %v586 = vmul.f32 %v576, %v576
  %v587 = vmul.f32 %v577, %v577
  %v588 = vmul.f32 %v578, %v578
  %v589 = vsel %vm216, %v579, 0.0
  %590 = vadd.xlane.f32.xlu0 %v589
  %v591 = vpop.xlane.xlu0 %590
  %v592 = vsel %vm216, %v580, 0.0
  %593 = vadd.xlane.f32.xlu0 %v592
  %v594 = vpop.xlane.xlu0 %593
  %v595 = vsel %vm216, %v581, 0.0
  %596 = vadd.xlane.f32.xlu0 %v595
  %v597 = vpop.xlane.xlu0 %596
  %v598 = vsel %vm216, %v582, 0.0
  %599 = vadd.xlane.f32.xlu0 %v598
  %v600 = vpop.xlane.xlu0 %599
  %v601 = vsel %vm216, %v583, 0.0
  %602 = vadd.xlane.f32.xlu0 %v601
  %v603 = vpop.xlane.xlu0 %602
  %v604 = vsel %vm216, %v584, 0.0
  %605 = vadd.xlane.f32.xlu0 %v604
  %v606 = vpop.xlane.xlu0 %605
  %v607 = vsel %vm216, %v585, 0.0
  %608 = vadd.xlane.f32.xlu0 %v607
  %v609 = vpop.xlane.xlu0 %608
  %v610 = vsel %vm216, %v586, 0.0
  %611 = vadd.xlane.f32.xlu0 %v610
  %v612 = vpop.xlane.xlu0 %611
  %v613 = vsel %vm216, %v587, 0.0
  %614 = vadd.xlane.f32.xlu0 %v613
  %v615 = vpop.xlane.xlu0 %614
  %v616 = vsel %vm216, %v588, 0.0
  %617 = vadd.xlane.f32.xlu0 %v616
  %v618 = vpop.xlane.xlu0 %617
  %v619 = vmul.f32 %v591, %v558
  %v620 = vmul.f32 %v594, %v558
  %v621 = vmul.f32 %v597, %v558
  %v622 = vmul.f32 %v600, %v558
  %v623 = vmul.f32 %v603, %v558
  %v624 = vmul.f32 %v606, %v558
  %v625 = vmul.f32 %v609, %v558
  %v626 = vmul.f32 %v612, %v558
  %v627 = vmul.f32 %v615, %v558
  %v628 = vmul.f32 %v618, %v558
  %v629 = vadd.f32 %v619, 1e-05
  %v630 = vadd.f32 %v620, 1e-05
  %v631 = vadd.f32 %v621, 1e-05
  %v632 = vadd.f32 %v622, 1e-05
  %v633 = vadd.f32 %v623, 1e-05
  %v634 = vadd.f32 %v624, 1e-05
  %v635 = vadd.f32 %v625, 1e-05
  %v636 = vadd.f32 %v626, 1e-05
  %v637 = vadd.f32 %v627, 1e-05
  %v638 = vadd.f32 %v628, 1e-05
  %v639 = vrsqrt.pop %v629
  %v640 = vrsqrt.pop %v630
  %v641 = vrsqrt.pop %v631
  %v642 = vrsqrt.pop %v632
  %v643 = vrsqrt.pop %v633
  %v644 = vrsqrt.pop %v634
  %v645 = vrsqrt.pop %v635
  %v646 = vrsqrt.pop %v636
  %v647 = vrsqrt.pop %v637
  %v648 = vrsqrt.pop %v638
  %v649 = vmul.f32 %v569, %v639
  %v650 = vmul.f32 %v570, %v640
  %v651 = vmul.f32 %v571, %v641
  %v652 = vmul.f32 %v572, %v642
  %v653 = vmul.f32 %v573, %v643
  %v654 = vmul.f32 %v574, %v644
  %v655 = vmul.f32 %v575, %v645
  %v656 = vmul.f32 %v576, %v646
  %v657 = vmul.f32 %v577, %v647
  %v658 = vmul.f32 %v578, %v648
  %v659 = vlaneseq
  %v660 = vshrl.u32 %v659, 7
  %v661 = vsub.s32 0, %v660
  %v662 = vrot.slane %v526, %v661
  %v663 = vmul.f32 %v649, %v662
  %v664 = vmul.f32 %v650, %v662
  %v665 = vmul.f32 %v651, %v662
  %v666 = vmul.f32 %v652, %v662
  %v667 = vmul.f32 %v653, %v662
  %v668 = vmul.f32 %v654, %v662
  %v669 = vmul.f32 %v655, %v662
  %v670 = vmul.f32 %v656, %v662
  %v671 = vmul.f32 %v657, %v662
  %v672 = vmul.f32 %v658, %v662
  %v673 = vlaneseq
  %v674 = vshrl.u32 %v673, 7
  %v675 = vsub.s32 0, %v674
  %v676 = vrot.slane %v527, %v675
  %v677 = vadd.f32 %v663, %v676
  %v678 = vadd.f32 %v664, %v676
  %v679 = vadd.f32 %v665, %v676
  %v680 = vadd.f32 %v666, %v676
  %v681 = vadd.f32 %v667, %v676
  %v682 = vadd.f32 %v668, %v676
  %v683 = vadd.f32 %v669, %v676
  %v684 = vadd.f32 %v670, %v676
  %v685 = vadd.f32 %v671, %v676
  %v686 = vadd.f32 %v672, %v676
  %v687 = vld [vmem:[%s1] sm:$0xff]
  %v688 = vld [vmem:[%s1 + $0x8] sm:$0xff]
  %v689 = vld [vmem:[%s1 + $0x10] sm:$0xff]
  %v690 = vld [vmem:[%s1 + $0x18] sm:$0xff]
  %v691 = vld [vmem:[%s1 + $0x20] sm:$0xff]
  %v692 = vld [vmem:[%s1 + $0x28] sm:$0xff]
  %v693 = vld [vmem:[%s1 + $0x30] sm:$0xff]
  %v694 = vld [vmem:[%s1 + $0x38] sm:$0xff]
  %v695 = vld [vmem:[%s1 + $0x40] sm:$0xff]
  %v696 = vld [vmem:[%s1 + $0x48] sm:$0xff]
  %v697 = vld [vmem:[%s1 + $0x50] sm:$0xff]
  %v698 = vld [vmem:[%s1 + $0x58] sm:$0xff]
  %v699 = vld [vmem:[%s9 + $0x70] sm:$0xff]
  %v700 = vld [vmem:[%s9 + $0x78] sm:$0x1]
  %v701 = vlaneseq
  %v702 = vshrl.u32 %v701, 7
  %v703 = vsub.s32 0, %v702
  %v704 = vrot.slane %v700, %v703
  %v706 = vsel %vm51, %v687, 0
  %v709 = vsel %vm51, %v688, 0
  %v712 = vsel %vm51, %v689, 0
  %v715 = vsel %vm51, %v690, 0
  %v718 = vsel %vm51, %v691, 0
  %v721 = vsel %vm51, %v692, 0
  %v724 = vsel %vm51, %v693, 0
  %v727 = vsel %vm51, %v694, 0
  %v730 = vsel %vm51, %v695, 0
  %v733 = vsel %vm51, %v696, 0
  %v736 = vsel %vm51, %v697, 0
  %v739 = vsel %vm51, %v698, 0
  %741 = vmatprep.subr.mxu0 0.0
  %742 = vmatpush1.msra.mxu0 %v699
  %743 = vmatprep.subr.mxu0 0.0
  %744 = vmatpush1.msra.mxu0 0.0
  %745 = vmatprep.subr.mxu0 0.0
  %746 = vmatpush1.msra.mxu0 0.0
  %747 = vmatprep.subr.mxu0 0.0
  %748 = vmatpush1.msra.mxu0 0.0
  %749 = vmatprep.subr.mxu0 0.0
  %750 = vmatpush1.msra.mxu0 0.0
  %751 = vmatprep.subr.mxu0 0.0
  %752 = vmatpush1.msra.mxu0 0.0
  %753 = vmatprep.subr.mxu0 0.0
  %754 = vmatpush1.msra.mxu0 0.0
  %755 = vmatprep.subr.mxu0 0.0
  %756 = vmatpush1.msra.mxu0 0.0
  %757 = vmatprep.subr.mxu0 0.0
  %758 = vmatpush1.msra.mxu0 0.0
  %759 = vmatprep.subr.mxu0 0.0
  %760 = vmatpush1.msra.mxu0 0.0
  %761 = vmatprep.subr.mxu0 0.0
  %762 = vmatpush1.msra.mxu0 0.0
  %763 = vmatprep.subr.mxu0 0.0
  %764 = vmatpush1.msra.mxu0 0.0
  %765 = vmatprep.subr.mxu0 0.0
  %766 = vmatpush1.msra.mxu0 0.0
  %767 = vmatprep.subr.mxu0 0.0
  %768 = vmatpush1.msra.mxu0 0.0
  %769 = vmatprep.subr.mxu0 0.0
  %770 = vmatpush1.msra.mxu0 0.0
  %771 = vmatprep.subr.mxu0 0.0
  %772 = vmatpush1.msra.mxu0 0.0
  %773 = vmatprep.subr.mxu0 0.0
  %774 = vmatpush1.msra.mxu0 0.0
  %775 = vmatprep.subr.mxu0 0.0
  %776 = vmatpush1.msra.mxu0 0.0
  %777 = vmatprep.subr.mxu0 0.0
  %778 = vmatpush1.msra.mxu0 0.0
  %779 = vmatprep.subr.mxu0 0.0
  %780 = vmatpush1.msra.mxu0 0.0
  %781 = vmatprep.subr.mxu0 0.0
  %782 = vmatpush1.msra.mxu0 0.0
  %783 = vmatprep.subr.mxu0 0.0
  %784 = vmatpush1.msra.mxu0 0.0
  %785 = vmatprep.subr.mxu0 0.0
  %786 = vmatpush1.msra.mxu0 0.0
  %787 = vmatprep.subr.mxu0 0.0
  %788 = vmatpush1.msra.mxu0 0.0
  %789 = vmatprep.subr.mxu0 0.0
  %790 = vmatpush1.msra.mxu0 0.0
  %791 = vmatprep.subr.mxu0 0.0
  %792 = vmatpush1.msra.mxu0 0.0
  %793 = vmatprep.subr.mxu0 0.0
  %794 = vmatpush1.msra.mxu0 0.0
  %795 = vmatprep.subr.mxu0 0.0
  %796 = vmatpush1.msra.mxu0 0.0
  %797 = vmatprep.subr.mxu0 0.0
  %798 = vmatpush1.msra.mxu0 0.0
  %799 = vmatprep.subr.mxu0 0.0
  %800 = vmatpush1.msra.mxu0 0.0
  %801 = vmatprep.subr.mxu0 0.0
  %802 = vmatpush1.msra.mxu0 0.0
  %803 = vmatprep.subr.mxu0 0.0
  %804 = vmatpush1.msra.mxu0 0.0
  %805 = vmatprep.mubr.f32.mxu0 0.0
  %806 = vmatmul.mubr.f32.gmra.mrb[0].mxu0 %v706
  %v807 = vpop.f32.mrb[0].mxu0
  %v808 = vadd.f32 %v704, %v807
  %v809 = vpop.f32.mrb[0].mxu0
  %810 = vmatprep.mubr.f32.mxu0 0.0
  %811 = vmatmul.mubr.f32.gmra.mrb[0].mxu0 %v709
  %v812 = vpop.f32.mrb[0].mxu0
  %v813 = vadd.f32 %v704, %v812
  %v814 = vpop.f32.mrb[0].mxu0
  %815 = vmatprep.mubr.f32.mxu0 0.0
  %816 = vmatmul.mubr.f32.gmra.mrb[0].mxu0 %v712
  %v817 = vpop.f32.mrb[0].mxu0
  %v818 = vadd.f32 %v704, %v817
  %v819 = vpop.f32.mrb[0].mxu0
  %820 = vmatprep.mubr.f32.mxu0 0.0
  %821 = vmatmul.mubr.f32.gmra.mrb[0].mxu0 %v715
  %v822 = vpop.f32.mrb[0].mxu0
  %v823 = vadd.f32 %v704, %v822
  %v824 = vpop.f32.mrb[0].mxu0
  %825 = vmatprep.mubr.f32.mxu0 0.0
  %826 = vmatmul.mubr.f32.gmra.mrb[0].mxu0 %v718
  %v827 = vpop.f32.mrb[0].mxu0
  %v828 = vadd.f32 %v704, %v827
  %v829 = vpop.f32.mrb[0].mxu0
  %830 = vmatprep.mubr.f32.mxu0 0.0
  %831 = vmatmul.mubr.f32.gmra.mrb[0].mxu0 %v721
  %v832 = vpop.f32.mrb[0].mxu0
  %v833 = vadd.f32 %v704, %v832
  %v834 = vpop.f32.mrb[0].mxu0
  %835 = vmatprep.mubr.f32.mxu0 0.0
  %836 = vmatmul.mubr.f32.gmra.mrb[0].mxu0 %v724
  %v837 = vpop.f32.mrb[0].mxu0
  %v838 = vadd.f32 %v704, %v837
  %v839 = vpop.f32.mrb[0].mxu0
  %840 = vmatprep.mubr.f32.mxu0 0.0
  %841 = vmatmul.mubr.f32.gmra.mrb[0].mxu0 %v727
  %v842 = vpop.f32.mrb[0].mxu0
  %v843 = vadd.f32 %v704, %v842
  %v844 = vpop.f32.mrb[0].mxu0
  %845 = vmatprep.mubr.f32.mxu0 0.0
  %846 = vmatmul.mubr.f32.gmra.mrb[0].mxu0 %v730
  %v847 = vpop.f32.mrb[0].mxu0
  %v848 = vadd.f32 %v704, %v847
  %v849 = vpop.f32.mrb[0].mxu0
  %850 = vmatprep.mubr.f32.mxu0 0.0
  %851 = vmatmul.mubr.f32.gmra.mrb[0].mxu0 %v733
  %v852 = vpop.f32.mrb[0].mxu0
  %v853 = vadd.f32 %v704, %v852
  %v854 = vpop.f32.mrb[0].mxu0
  %855 = vmatprep.mubr.f32.mxu0 0.0
  %856 = vmatmul.mubr.f32.gmra.mrb[0].mxu0 %v736
  %v857 = vpop.f32.mrb[0].mxu0
  %v858 = vadd.f32 %v704, %v857
  %v859 = vpop.f32.mrb[0].mxu0
  %860 = vmatprep.mubr.f32.mxu0 0.0
  %861 = vmatmul.mubr.f32.gmra.mrb[0].mxu0 %v739
  %v862 = vpop.f32.mrb[0].mxu0
  %v863 = vadd.f32 %v704, %v862
  %v864 = vpop.f32.mrb[0].mxu0
  %865 = vdwg.mxu0
  %v866 = vmax.f32 %v808, 0.0
  %v867 = vmax.f32 %v813, 0.0
  %v868 = vmax.f32 %v818, 0.0
  %v869 = vmax.f32 %v823, 0.0
  %v870 = vmax.f32 %v828, 0.0
  %v871 = vmax.f32 %v833, 0.0
  %v872 = vmax.f32 %v838, 0.0
  %v873 = vmax.f32 %v843, 0.0
  %v874 = vmax.f32 %v848, 0.0
  %v875 = vmax.f32 %v853, 0.0
  %v876 = vmax.f32 %v858, 0.0
  %v877 = vmax.f32 %v863, 0.0
  %v878 = vld [vmem:[%s9 + $0x80] sm:$0xff]
  %v879 = vld [vmem:[%s9 + $0x88] sm:$0xff]
  %v880 = vld [vmem:[%s9 + $0x90] sm:$0xff]
  %v881 = vld [vmem:[%s9 + $0x98] sm:$0xff]
  %v882 = vld [vmem:[%s9 + $0xa0] sm:$0x1]
  %v883 = vlaneseq
  %v884 = vshrl.u32 %v883, 7
  %v885 = vsub.s32 0, %v884
  %v886 = vrot.slane %v882, %v885
  %v888 = vsel %vm216, %v866, 0
  %v891 = vsel %vm216, %v867, 0
  %v894 = vsel %vm216, %v868, 0
  %v897 = vsel %vm216, %v869, 0
  %v900 = vsel %vm216, %v870, 0
  %v903 = vsel %vm216, %v871, 0
  %v906 = vsel %vm216, %v872, 0
  %v909 = vsel %vm216, %v873, 0
  %v912 = vsel %vm216, %v874, 0
  %v915 = vsel %vm216, %v875, 0
  %v918 = vsel %vm216, %v876, 0
  %v921 = vsel %vm216, %v877, 0
  %923 = vmatprep.subr.mxu0 0.0
  %924 = vmatpush1.msra.mxu0 %v878
  %925 = vmatprep.subr.mxu0 0.0
  %926 = vmatpush1.msra.mxu0 %v879
  %927 = vmatprep.subr.mxu0 0.0
  %928 = vmatpush1.msra.mxu0 %v880
  %929 = vmatprep.subr.mxu0 0.0
  %930 = vmatpush1.msra.mxu0 %v881
  %931 = vmatprep.subr.mxu0 0.0
  %932 = vmatpush1.msra.mxu0 0.0
  %933 = vmatprep.subr.mxu0 0.0
  %934 = vmatpush1.msra.mxu0 0.0
  %935 = vmatprep.subr.mxu0 0.0
  %936 = vmatpush1.msra.mxu0 0.0
  %937 = vmatprep.subr.mxu0 0.0
  %938 = vmatpush1.msra.mxu0 0.0
  %939 = vmatprep.subr.mxu0 0.0
  %940 = vmatpush1.msra.mxu0 0.0
  %941 = vmatprep.subr.mxu0 0.0
  %942 = vmatpush1.msra.mxu0 0.0
  %943 = vmatprep.subr.mxu0 0.0
  %944 = vmatpush1.msra.mxu0 0.0
  %945 = vmatprep.subr.mxu0 0.0
  %946 = vmatpush1.msra.mxu0 0.0
  %947 = vmatprep.subr.mxu0 0.0
  %948 = vmatpush1.msra.mxu0 0.0
  %949 = vmatprep.subr.mxu0 0.0
  %950 = vmatpush1.msra.mxu0 0.0
  %951 = vmatprep.subr.mxu0 0.0
  %952 = vmatpush1.msra.mxu0 0.0
  %953 = vmatprep.subr.mxu0 0.0
  %954 = vmatpush1.msra.mxu0 0.0
  %955 = vmatprep.subr.mxu0 0.0
  %956 = vmatpush1.msra.mxu0 0.0
  %957 = vmatprep.subr.mxu0 0.0
  %958 = vmatpush1.msra.mxu0 0.0
  %959 = vmatprep.subr.mxu0 0.0
  %960 = vmatpush1.msra.mxu0 0.0
  %961 = vmatprep.subr.mxu0 0.0
  %962 = vmatpush1.msra.mxu0 0.0
  %963 = vmatprep.subr.mxu0 0.0
  %964 = vmatpush1.msra.mxu0 0.0
  %965 = vmatprep.subr.mxu0 0.0
  %966 = vmatpush1.msra.mxu0 0.0
  %967 = vmatprep.subr.mxu0 0.0
  %968 = vmatpush1.msra.mxu0 0.0
  %969 = vmatprep.subr.mxu0 0.0
  %970 = vmatpush1.msra.mxu0 0.0
  %971 = vmatprep.subr.mxu0 0.0
  %972 = vmatpush1.msra.mxu0 0.0
  %973 = vmatprep.subr.mxu0 0.0
  %974 = vmatpush1.msra.mxu0 0.0
  %975 = vmatprep.subr.mxu0 0.0
  %976 = vmatpush1.msra.mxu0 0.0
  %977 = vmatprep.subr.mxu0 0.0
  %978 = vmatpush1.msra.mxu0 0.0
  %979 = vmatprep.subr.mxu0 0.0
  %980 = vmatpush1.msra.mxu0 0.0
  %981 = vmatprep.subr.mxu0 0.0
  %982 = vmatpush1.msra.mxu0 0.0
  %983 = vmatprep.subr.mxu0 0.0
  %984 = vmatpush1.msra.mxu0 0.0
  %985 = vmatprep.subr.mxu0 0.0
  %986 = vmatpush1.msra.mxu0 0.0
  %987 = vmatprep.mubr.f32.mxu0 0.0
  %988 = vmatmul.mubr.f32.gmra.mrb[0].mxu0 %v888
  %v989 = vpop.f32.mrb[0].mxu0
  %v990 = vadd.f32 %v886, %v989
  %v991 = vpop.f32.mrb[0].mxu0
  %992 = vmatprep.mubr.f32.mxu0 0.0
  %993 = vmatmul.mubr.f32.gmra.mrb[0].mxu0 %v891
  %v994 = vpop.f32.mrb[0].mxu0
  %v995 = vadd.f32 %v886, %v994
  %v996 = vpop.f32.mrb[0].mxu0
  %997 = vmatprep.mubr.f32.mxu0 0.0
  %998 = vmatmul.mubr.f32.gmra.mrb[0].mxu0 %v894
  %v999 = vpop.f32.mrb[0].mxu0
  %v1000 = vadd.f32 %v886, %v999
  %v1001 = vpop.f32.mrb[0].mxu0
  %1002 = vmatprep.mubr.f32.mxu0 0.0
  %1003 = vmatmul.mubr.f32.gmra.mrb[0].mxu0 %v897
  %v1004 = vpop.f32.mrb[0].mxu0
  %v1005 = vadd.f32 %v886, %v1004
  %v1006 = vpop.f32.mrb[0].mxu0
  %1007 = vmatprep.mubr.f32.mxu0 0.0
  %1008 = vmatmul.mubr.f32.gmra.mrb[0].mxu0 %v900
  %v1009 = vpop.f32.mrb[0].mxu0
  %v1010 = vadd.f32 %v886, %v1009
  %v1011 = vpop.f32.mrb[0].mxu0
  %1012 = vmatprep.mubr.f32.mxu0 0.0
  %1013 = vmatmul.mubr.f32.gmra.mrb[0].mxu0 %v903
  %v1014 = vpop.f32.mrb[0].mxu0
  %v1015 = vadd.f32 %v886, %v1014
  %v1016 = vpop.f32.mrb[0].mxu0
  %1017 = vmatprep.mubr.f32.mxu0 0.0
  %1018 = vmatmul.mubr.f32.gmra.mrb[0].mxu0 %v906
  %v1019 = vpop.f32.mrb[0].mxu0
  %v1020 = vadd.f32 %v886, %v1019
  %v1021 = vpop.f32.mrb[0].mxu0
  %1022 = vmatprep.mubr.f32.mxu0 0.0
  %1023 = vmatmul.mubr.f32.gmra.mrb[0].mxu0 %v909
  %v1024 = vpop.f32.mrb[0].mxu0
  %v1025 = vadd.f32 %v886, %v1024
  %v1026 = vpop.f32.mrb[0].mxu0
  %1027 = vmatprep.mubr.f32.mxu0 0.0
  %1028 = vmatmul.mubr.f32.gmra.mrb[0].mxu0 %v912
  %v1029 = vpop.f32.mrb[0].mxu0
  %v1030 = vadd.f32 %v886, %v1029
  %v1031 = vpop.f32.mrb[0].mxu0
  %1032 = vmatprep.mubr.f32.mxu0 0.0
  %1033 = vmatmul.mubr.f32.gmra.mrb[0].mxu0 %v915
  %v1034 = vpop.f32.mrb[0].mxu0
  %v1035 = vadd.f32 %v886, %v1034
  %v1036 = vpop.f32.mrb[0].mxu0
  %1037 = vmatprep.mubr.f32.mxu0 0.0
  %1038 = vmatmul.mubr.f32.gmra.mrb[0].mxu0 %v918
  %v1039 = vpop.f32.mrb[0].mxu0
  %v1040 = vadd.f32 %v886, %v1039
  %v1041 = vpop.f32.mrb[0].mxu0
  %1042 = vmatprep.mubr.f32.mxu0 0.0
  %1043 = vmatmul.mubr.f32.gmra.mrb[0].mxu0 %v921
  %v1044 = vpop.f32.mrb[0].mxu0
  %v1045 = vadd.f32 %v886, %v1044
  %v1046 = vpop.f32.mrb[0].mxu0
  %1047 = vdwg.mxu0
  %v1048 = vmax.f32 %v990, 0.0
  %v1049 = vmax.f32 %v995, 0.0
  %v1050 = vmax.f32 %v1000, 0.0
  %v1051 = vmax.f32 %v1005, 0.0
  %v1052 = vmax.f32 %v1010, 0.0
  %v1053 = vmax.f32 %v1015, 0.0
  %v1054 = vmax.f32 %v1020, 0.0
  %v1055 = vmax.f32 %v1025, 0.0
  %v1056 = vmax.f32 %v1030, 0.0
  %v1057 = vmax.f32 %v1035, 0.0
  %v1058 = vmax.f32 %v1040, 0.0
  %v1059 = vmax.f32 %v1045, 0.0
  %v1060 = vld [vmem:[%s9 + $0xa8] sm:$0xff]
  %v1061 = vld [vmem:[%s9 + $0xb0] sm:$0xff]
  %v1062 = vld [vmem:[%s9 + $0xb8] sm:$0xff]
  %v1063 = vld [vmem:[%s9 + $0xc0] sm:$0xff]
  %v1064 = vld [vmem:[%s9 + $0xc8] sm:$0x1]
  %v1065 = vlaneseq
  %v1066 = vshrl.u32 %v1065, 7
  %v1067 = vsub.s32 0, %v1066
  %v1068 = vrot.slane %v1064, %v1067
  %v1070 = vsel %vm216, %v1048, 0
  %v1073 = vsel %vm216, %v1049, 0
  %v1076 = vsel %vm216, %v1050, 0
  %v1079 = vsel %vm216, %v1051, 0
  %v1082 = vsel %vm216, %v1052, 0
  %v1085 = vsel %vm216, %v1053, 0
  %v1088 = vsel %vm216, %v1054, 0
  %v1091 = vsel %vm216, %v1055, 0
  %v1094 = vsel %vm216, %v1056, 0
  %v1097 = vsel %vm216, %v1057, 0
  %v1100 = vsel %vm216, %v1058, 0
  %v1103 = vsel %vm216, %v1059, 0
  %1105 = vmatprep.subr.mxu0 0.0
  %1106 = vmatpush1.msra.mxu0 %v1060
  %1107 = vmatprep.subr.mxu0 0.0
  %1108 = vmatpush1.msra.mxu0 %v1061
  %1109 = vmatprep.subr.mxu0 0.0
  %1110 = vmatpush1.msra.mxu0 %v1062
  %1111 = vmatprep.subr.mxu0 0.0
  %1112 = vmatpush1.msra.mxu0 %v1063
  %1113 = vmatprep.subr.mxu0 0.0
  %1114 = vmatpush1.msra.mxu0 0.0
  %1115 = vmatprep.subr.mxu0 0.0
  %1116 = vmatpush1.msra.mxu0 0.0
  %1117 = vmatprep.subr.mxu0 0.0
  %1118 = vmatpush1.msra.mxu0 0.0
  %1119 = vmatprep.subr.mxu0 0.0
  %1120 = vmatpush1.msra.mxu0 0.0
  %1121 = vmatprep.subr.mxu0 0.0
  %1122 = vmatpush1.msra.mxu0 0.0
  %1123 = vmatprep.subr.mxu0 0.0
  %1124 = vmatpush1.msra.mxu0 0.0
  %1125 = vmatprep.subr.mxu0 0.0
  %1126 = vmatpush1.msra.mxu0 0.0
  %1127 = vmatprep.subr.mxu0 0.0
  %1128 = vmatpush1.msra.mxu0 0.0
  %1129 = vmatprep.subr.mxu0 0.0
  %1130 = vmatpush1.msra.mxu0 0.0
  %1131 = vmatprep.subr.mxu0 0.0
  %1132 = vmatpush1.msra.mxu0 0.0
  %1133 = vmatprep.subr.mxu0 0.0
  %1134 = vmatpush1.msra.mxu0 0.0
  %1135 = vmatprep.subr.mxu0 0.0
  %1136 = vmatpush1.msra.mxu0 0.0
  %1137 = vmatprep.subr.mxu0 0.0
  %1138 = vmatpush1.msra.mxu0 0.0
  %1139 = vmatprep.subr.mxu0 0.0
  %1140 = vmatpush1.msra.mxu0 0.0
  %1141 = vmatprep.subr.mxu0 0.0
  %1142 = vmatpush1.msra.mxu0 0.0
  %1143 = vmatprep.subr.mxu0 0.0
  %1144 = vmatpush1.msra.mxu0 0.0
  %1145 = vmatprep.subr.mxu0 0.0
  %1146 = vmatpush1.msra.mxu0 0.0
  %1147 = vmatprep.subr.mxu0 0.0
  %1148 = vmatpush1.msra.mxu0 0.0
  %1149 = vmatprep.subr.mxu0 0.0
  %1150 = vmatpush1.msra.mxu0 0.0
  %1151 = vmatprep.subr.mxu0 0.0
  %1152 = vmatpush1.msra.mxu0 0.0
  %1153 = vmatprep.subr.mxu0 0.0
  %1154 = vmatpush1.msra.mxu0 0.0
  %1155 = vmatprep.subr.mxu0 0.0
  %1156 = vmatpush1.msra.mxu0 0.0
  %1157 = vmatprep.subr.mxu0 0.0
  %1158 = vmatpush1.msra.mxu0 0.0
  %1159 = vmatprep.subr.mxu0 0.0
  %1160 = vmatpush1.msra.mxu0 0.0
  %1161 = vmatprep.subr.mxu0 0.0
  %1162 = vmatpush1.msra.mxu0 0.0
  %1163 = vmatprep.subr.mxu0 0.0
  %1164 = vmatpush1.msra.mxu0 0.0
  %1165 = vmatprep.subr.mxu0 0.0
  %1166 = vmatpush1.msra.mxu0 0.0
  %1167 = vmatprep.subr.mxu0 0.0
  %1168 = vmatpush1.msra.mxu0 0.0
  %1169 = vmatprep.mubr.f32.mxu0 0.0
  %1170 = vmatmul.mubr.f32.gmra.mrb[0].mxu0 %v1070
  %v1171 = vpop.f32.mrb[0].mxu0
  %v1172 = vadd.f32 %v1068, %v1171
  %v1173 = vpop.f32.mrb[0].mxu0
  %1174 = vmatprep.mubr.f32.mxu0 0.0
  %1175 = vmatmul.mubr.f32.gmra.mrb[0].mxu0 %v1073
  %v1176 = vpop.f32.mrb[0].mxu0
  %v1177 = vadd.f32 %v1068, %v1176
  %v1178 = vpop.f32.mrb[0].mxu0
  %1179 = vmatprep.mubr.f32.mxu0 0.0
  %1180 = vmatmul.mubr.f32.gmra.mrb[0].mxu0 %v1076
  %v1181 = vpop.f32.mrb[0].mxu0
  %v1182 = vadd.f32 %v1068, %v1181
  %v1183 = vpop.f32.mrb[0].mxu0
  %1184 = vmatprep.mubr.f32.mxu0 0.0
  %1185 = vmatmul.mubr.f32.gmra.mrb[0].mxu0 %v1079
  %v1186 = vpop.f32.mrb[0].mxu0
  %v1187 = vadd.f32 %v1068, %v1186
  %v1188 = vpop.f32.mrb[0].mxu0
  %1189 = vmatprep.mubr.f32.mxu0 0.0
  %1190 = vmatmul.mubr.f32.gmra.mrb[0].mxu0 %v1082
  %v1191 = vpop.f32.mrb[0].mxu0
  %v1192 = vadd.f32 %v1068, %v1191
  %v1193 = vpop.f32.mrb[0].mxu0
  %1194 = vmatprep.mubr.f32.mxu0 0.0
  %1195 = vmatmul.mubr.f32.gmra.mrb[0].mxu0 %v1085
  %v1196 = vpop.f32.mrb[0].mxu0
  %v1197 = vadd.f32 %v1068, %v1196
  %v1198 = vpop.f32.mrb[0].mxu0
  %1199 = vmatprep.mubr.f32.mxu0 0.0
  %1200 = vmatmul.mubr.f32.gmra.mrb[0].mxu0 %v1088
  %v1201 = vpop.f32.mrb[0].mxu0
  %v1202 = vadd.f32 %v1068, %v1201
  %v1203 = vpop.f32.mrb[0].mxu0
  %1204 = vmatprep.mubr.f32.mxu0 0.0
  %1205 = vmatmul.mubr.f32.gmra.mrb[0].mxu0 %v1091
  %v1206 = vpop.f32.mrb[0].mxu0
  %v1207 = vadd.f32 %v1068, %v1206
  %v1208 = vpop.f32.mrb[0].mxu0
  %1209 = vmatprep.mubr.f32.mxu0 0.0
  %1210 = vmatmul.mubr.f32.gmra.mrb[0].mxu0 %v1094
  %v1211 = vpop.f32.mrb[0].mxu0
  %v1212 = vadd.f32 %v1068, %v1211
  %v1213 = vpop.f32.mrb[0].mxu0
  %1214 = vmatprep.mubr.f32.mxu0 0.0
  %1215 = vmatmul.mubr.f32.gmra.mrb[0].mxu0 %v1097
  %v1216 = vpop.f32.mrb[0].mxu0
  %v1217 = vadd.f32 %v1068, %v1216
  %v1218 = vpop.f32.mrb[0].mxu0
  %1219 = vmatprep.mubr.f32.mxu0 0.0
  %1220 = vmatmul.mubr.f32.gmra.mrb[0].mxu0 %v1100
  %v1221 = vpop.f32.mrb[0].mxu0
  %v1222 = vadd.f32 %v1068, %v1221
  %v1223 = vpop.f32.mrb[0].mxu0
  %1224 = vmatprep.mubr.f32.mxu0 0.0
  %1225 = vmatmul.mubr.f32.gmra.mrb[0].mxu0 %v1103
  %v1226 = vpop.f32.mrb[0].mxu0
  %v1227 = vadd.f32 %v1068, %v1226
  %v1228 = vpop.f32.mrb[0].mxu0
  %1229 = vdwg.mxu0
  %v1230 = vld [vmem:[%s9 + $0xd0] sm:$0x1]
  %v1231 = vld [vmem:[%s9 + $0xd8] sm:$0x1]
  %v1232 = vsel %vm216, %v1172, 0.0
  %1233 = vadd.xlane.f32.xlu0 %v1232
  %v1234 = vpop.xlane.xlu0 %1233
  %v1235 = vsel %vm216, %v1177, 0.0
  %1236 = vadd.xlane.f32.xlu0 %v1235
  %v1237 = vpop.xlane.xlu0 %1236
  %v1238 = vsel %vm216, %v1182, 0.0
  %1239 = vadd.xlane.f32.xlu0 %v1238
  %v1240 = vpop.xlane.xlu0 %1239
  %v1241 = vsel %vm216, %v1187, 0.0
  %1242 = vadd.xlane.f32.xlu0 %v1241
  %v1243 = vpop.xlane.xlu0 %1242
  %v1244 = vsel %vm216, %v1192, 0.0
  %1245 = vadd.xlane.f32.xlu0 %v1244
  %v1246 = vpop.xlane.xlu0 %1245
  %v1247 = vsel %vm216, %v1197, 0.0
  %1248 = vadd.xlane.f32.xlu0 %v1247
  %v1249 = vpop.xlane.xlu0 %1248
  %v1250 = vsel %vm216, %v1202, 0.0
  %1251 = vadd.xlane.f32.xlu0 %v1250
  %v1252 = vpop.xlane.xlu0 %1251
  %v1253 = vsel %vm216, %v1207, 0.0
  %1254 = vadd.xlane.f32.xlu0 %v1253
  %v1255 = vpop.xlane.xlu0 %1254
  %v1256 = vsel %vm216, %v1212, 0.0
  %1257 = vadd.xlane.f32.xlu0 %v1256
  %v1258 = vpop.xlane.xlu0 %1257
  %v1259 = vsel %vm216, %v1217, 0.0
  %1260 = vadd.xlane.f32.xlu0 %v1259
  %v1261 = vpop.xlane.xlu0 %1260
  %v1262 = vsel %vm216, %v1222, 0.0
  %1263 = vadd.xlane.f32.xlu0 %v1262
  %v1264 = vpop.xlane.xlu0 %1263
  %v1265 = vsel %vm216, %v1227, 0.0
  %1266 = vadd.xlane.f32.xlu0 %v1265
  %v1267 = vpop.xlane.xlu0 %1266
  %v1268 = vmul.f32 %v1234, %v558
  %v1269 = vmul.f32 %v1237, %v558
  %v1270 = vmul.f32 %v1240, %v558
  %v1271 = vmul.f32 %v1243, %v558
  %v1272 = vmul.f32 %v1246, %v558
  %v1273 = vmul.f32 %v1249, %v558
  %v1274 = vmul.f32 %v1252, %v558
  %v1275 = vmul.f32 %v1255, %v558
  %v1276 = vmul.f32 %v1258, %v558
  %v1277 = vmul.f32 %v1261, %v558
  %v1278 = vmul.f32 %v1264, %v558
  %v1279 = vmul.f32 %v1267, %v558
  %v1280 = vsub.f32 %v1172, %v1268
  %v1281 = vsub.f32 %v1177, %v1269
  %v1282 = vsub.f32 %v1182, %v1270
  %v1283 = vsub.f32 %v1187, %v1271
  %v1284 = vsub.f32 %v1192, %v1272
  %v1285 = vsub.f32 %v1197, %v1273
  %v1286 = vsub.f32 %v1202, %v1274
  %v1287 = vsub.f32 %v1207, %v1275
  %v1288 = vsub.f32 %v1212, %v1276
  %v1289 = vsub.f32 %v1217, %v1277
  %v1290 = vsub.f32 %v1222, %v1278
  %v1291 = vsub.f32 %v1227, %v1279
  %v1292 = vmul.f32 %v1280, %v1280
  %v1293 = vmul.f32 %v1281, %v1281
  %v1294 = vmul.f32 %v1282, %v1282
  %v1295 = vmul.f32 %v1283, %v1283
  %v1296 = vmul.f32 %v1284, %v1284
  %v1297 = vmul.f32 %v1285, %v1285
  %v1298 = vmul.f32 %v1286, %v1286
  %v1299 = vmul.f32 %v1287, %v1287
  %v1300 = vmul.f32 %v1288, %v1288
  %v1301 = vmul.f32 %v1289, %v1289
  %v1302 = vmul.f32 %v1290, %v1290
  %v1303 = vmul.f32 %v1291, %v1291
  %v1304 = vsel %vm216, %v1292, 0.0
  %1305 = vadd.xlane.f32.xlu0 %v1304
  %v1306 = vpop.xlane.xlu0 %1305
  %v1307 = vsel %vm216, %v1293, 0.0
  %1308 = vadd.xlane.f32.xlu0 %v1307
  %v1309 = vpop.xlane.xlu0 %1308
  %v1310 = vsel %vm216, %v1294, 0.0
  %1311 = vadd.xlane.f32.xlu0 %v1310
  %v1312 = vpop.xlane.xlu0 %1311
  %v1313 = vsel %vm216, %v1295, 0.0
  %1314 = vadd.xlane.f32.xlu0 %v1313
  %v1315 = vpop.xlane.xlu0 %1314
  %v1316 = vsel %vm216, %v1296, 0.0
  %1317 = vadd.xlane.f32.xlu0 %v1316
  %v1318 = vpop.xlane.xlu0 %1317
  %v1319 = vsel %vm216, %v1297, 0.0
  %1320 = vadd.xlane.f32.xlu0 %v1319
  %v1321 = vpop.xlane.xlu0 %1320
  %v1322 = vsel %vm216, %v1298, 0.0
  %1323 = vadd.xlane.f32.xlu0 %v1322
  %v1324 = vpop.xlane.xlu0 %1323
  %v1325 = vsel %vm216, %v1299, 0.0
  %1326 = vadd.xlane.f32.xlu0 %v1325
  %v1327 = vpop.xlane.xlu0 %1326
  %v1328 = vsel %vm216, %v1300, 0.0
  %1329 = vadd.xlane.f32.xlu0 %v1328
  %v1330 = vpop.xlane.xlu0 %1329
  %v1331 = vsel %vm216, %v1301, 0.0
  %1332 = vadd.xlane.f32.xlu0 %v1331
  %v1333 = vpop.xlane.xlu0 %1332
  %v1334 = vsel %vm216, %v1302, 0.0
  %1335 = vadd.xlane.f32.xlu0 %v1334
  %v1336 = vpop.xlane.xlu0 %1335
  %v1337 = vsel %vm216, %v1303, 0.0
  %1338 = vadd.xlane.f32.xlu0 %v1337
  %v1339 = vpop.xlane.xlu0 %1338
  %v1340 = vmul.f32 %v1306, %v558
  %v1341 = vmul.f32 %v1309, %v558
  %v1342 = vmul.f32 %v1312, %v558
  %v1343 = vmul.f32 %v1315, %v558
  %v1344 = vmul.f32 %v1318, %v558
  %v1345 = vmul.f32 %v1321, %v558
  %v1346 = vmul.f32 %v1324, %v558
  %v1347 = vmul.f32 %v1327, %v558
  %v1348 = vmul.f32 %v1330, %v558
  %v1349 = vmul.f32 %v1333, %v558
  %v1350 = vmul.f32 %v1336, %v558
  %v1351 = vmul.f32 %v1339, %v558
  %v1352 = vadd.f32 %v1340, 1e-05
  %v1353 = vadd.f32 %v1341, 1e-05
  %v1354 = vadd.f32 %v1342, 1e-05
  %v1355 = vadd.f32 %v1343, 1e-05
  %v1356 = vadd.f32 %v1344, 1e-05
  %v1357 = vadd.f32 %v1345, 1e-05
  %v1358 = vadd.f32 %v1346, 1e-05
  %v1359 = vadd.f32 %v1347, 1e-05
  %v1360 = vadd.f32 %v1348, 1e-05
  %v1361 = vadd.f32 %v1349, 1e-05
  %v1362 = vadd.f32 %v1350, 1e-05
  %v1363 = vadd.f32 %v1351, 1e-05
  %v1364 = vrsqrt.pop %v1352
  %v1365 = vrsqrt.pop %v1353
  %v1366 = vrsqrt.pop %v1354
  %v1367 = vrsqrt.pop %v1355
  %v1368 = vrsqrt.pop %v1356
  %v1369 = vrsqrt.pop %v1357
  %v1370 = vrsqrt.pop %v1358
  %v1371 = vrsqrt.pop %v1359
  %v1372 = vrsqrt.pop %v1360
  %v1373 = vrsqrt.pop %v1361
  %v1374 = vrsqrt.pop %v1362
  %v1375 = vrsqrt.pop %v1363
  %v1376 = vmul.f32 %v1280, %v1364
  %v1377 = vmul.f32 %v1281, %v1365
  %v1378 = vmul.f32 %v1282, %v1366
  %v1379 = vmul.f32 %v1283, %v1367
  %v1380 = vmul.f32 %v1284, %v1368
  %v1381 = vmul.f32 %v1285, %v1369
  %v1382 = vmul.f32 %v1286, %v1370
  %v1383 = vmul.f32 %v1287, %v1371
  %v1384 = vmul.f32 %v1288, %v1372
  %v1385 = vmul.f32 %v1289, %v1373
  %v1386 = vmul.f32 %v1290, %v1374
  %v1387 = vmul.f32 %v1291, %v1375
  %v1388 = vlaneseq
  %v1389 = vshrl.u32 %v1388, 7
  %v1390 = vsub.s32 0, %v1389
  %v1391 = vrot.slane %v1230, %v1390
  %v1392 = vmul.f32 %v1376, %v1391
  %v1393 = vmul.f32 %v1377, %v1391
  %v1394 = vmul.f32 %v1378, %v1391
  %v1395 = vmul.f32 %v1379, %v1391
  %v1396 = vmul.f32 %v1380, %v1391
  %v1397 = vmul.f32 %v1381, %v1391
  %v1398 = vmul.f32 %v1382, %v1391
  %v1399 = vmul.f32 %v1383, %v1391
  %v1400 = vmul.f32 %v1384, %v1391
  %v1401 = vmul.f32 %v1385, %v1391
  %v1402 = vmul.f32 %v1386, %v1391
  %v1403 = vmul.f32 %v1387, %v1391
  %v1404 = vlaneseq
  %v1405 = vshrl.u32 %v1404, 7
  %v1406 = vsub.s32 0, %v1405
  %v1407 = vrot.slane %v1231, %v1406
  %v1408 = vadd.f32 %v1392, %v1407
  %v1409 = vadd.f32 %v1393, %v1407
  %v1410 = vadd.f32 %v1394, %v1407
  %v1411 = vadd.f32 %v1395, %v1407
  %v1412 = vadd.f32 %v1396, %v1407
  %v1413 = vadd.f32 %v1397, %v1407
  %v1414 = vadd.f32 %v1398, %v1407
  %v1415 = vadd.f32 %v1399, %v1407
  %v1416 = vadd.f32 %v1400, %v1407
  %v1417 = vadd.f32 %v1401, %v1407
  %v1418 = vadd.f32 %v1402, %v1407
  %v1419 = vadd.f32 %v1403, %v1407
  %v1420 = vld [vmem:[%s2] sm:$0xff]
  %v1421 = vld [vmem:[%s2 + $0x8] sm:$0xff]
  %v1422 = vld [vmem:[%s2 + $0x10] sm:$0xff]
  %v1423 = vld [vmem:[%s2 + $0x18] sm:$0xff]
  %v1424 = vld [vmem:[%s2 + $0x20] sm:$0xff]
  %v1425 = vld [vmem:[%s2 + $0x28] sm:$0xff]
  %v1426 = vld [vmem:[%s9 + $0xe0] sm:$0xff]
  %v1427 = vld [vmem:[%s9 + $0xe8] sm:$0x1]
  %v1428 = vlaneseq
  %v1429 = vshrl.u32 %v1428, 7
  %v1430 = vsub.s32 0, %v1429
  %v1431 = vrot.slane %v1427, %v1430
  %v1433 = vsel %vm51, %v1420, 0
  %v1436 = vsel %vm51, %v1421, 0
  %v1439 = vsel %vm51, %v1422, 0
  %v1442 = vsel %vm51, %v1423, 0
  %v1445 = vsel %vm51, %v1424, 0
  %v1448 = vsel %vm51, %v1425, 0
  %1450 = vmatprep.subr.mxu0 0.0
  %1451 = vmatpush1.msra.mxu0 %v1426
  %1452 = vmatprep.subr.mxu0 0.0
  %1453 = vmatpush1.msra.mxu0 0.0
  %1454 = vmatprep.subr.mxu0 0.0
  %1455 = vmatpush1.msra.mxu0 0.0
  %1456 = vmatprep.subr.mxu0 0.0
  %1457 = vmatpush1.msra.mxu0 0.0
  %1458 = vmatprep.subr.mxu0 0.0
  %1459 = vmatpush1.msra.mxu0 0.0
  %1460 = vmatprep.subr.mxu0 0.0
  %1461 = vmatpush1.msra.mxu0 0.0
  %1462 = vmatprep.subr.mxu0 0.0
  %1463 = vmatpush1.msra.mxu0 0.0
  %1464 = vmatprep.subr.mxu0 0.0
  %1465 = vmatpush1.msra.mxu0 0.0
  %1466 = vmatprep.subr.mxu0 0.0
  %1467 = vmatpush1.msra.mxu0 0.0
  %1468 = vmatprep.subr.mxu0 0.0
  %1469 = vmatpush1.msra.mxu0 0.0
  %1470 = vmatprep.subr.mxu0 0.0
  %1471 = vmatpush1.msra.mxu0 0.0
  %1472 = vmatprep.subr.mxu0 0.0
  %1473 = vmatpush1.msra.mxu0 0.0
  %1474 = vmatprep.subr.mxu0 0.0
  %1475 = vmatpush1.msra.mxu0 0.0
  %1476 = vmatprep.subr.mxu0 0.0
  %1477 = vmatpush1.msra.mxu0 0.0
  %1478 = vmatprep.subr.mxu0 0.0
  %1479 = vmatpush1.msra.mxu0 0.0
  %1480 = vmatprep.subr.mxu0 0.0
  %1481 = vmatpush1.msra.mxu0 0.0
  %1482 = vmatprep.subr.mxu0 0.0
  %1483 = vmatpush1.msra.mxu0 0.0
  %1484 = vmatprep.subr.mxu0 0.0
  %1485 = vmatpush1.msra.mxu0 0.0
  %1486 = vmatprep.subr.mxu0 0.0
  %1487 = vmatpush1.msra.mxu0 0.0
  %1488 = vmatprep.subr.mxu0 0.0
  %1489 = vmatpush1.msra.mxu0 0.0
  %1490 = vmatprep.subr.mxu0 0.0
  %1491 = vmatpush1.msra.mxu0 0.0
  %1492 = vmatprep.subr.mxu0 0.0
  %1493 = vmatpush1.msra.mxu0 0.0
  %1494 = vmatprep.subr.mxu0 0.0
  %1495 = vmatpush1.msra.mxu0 0.0
  %1496 = vmatprep.subr.mxu0 0.0
  %1497 = vmatpush1.msra.mxu0 0.0
  %1498 = vmatprep.subr.mxu0 0.0
  %1499 = vmatpush1.msra.mxu0 0.0
  %1500 = vmatprep.subr.mxu0 0.0
  %1501 = vmatpush1.msra.mxu0 0.0
  %1502 = vmatprep.subr.mxu0 0.0
  %1503 = vmatpush1.msra.mxu0 0.0
  %1504 = vmatprep.subr.mxu0 0.0
  %1505 = vmatpush1.msra.mxu0 0.0
  %1506 = vmatprep.subr.mxu0 0.0
  %1507 = vmatpush1.msra.mxu0 0.0
  %1508 = vmatprep.subr.mxu0 0.0
  %1509 = vmatpush1.msra.mxu0 0.0
  %1510 = vmatprep.subr.mxu0 0.0
  %1511 = vmatpush1.msra.mxu0 0.0
  %1512 = vmatprep.subr.mxu0 0.0
  %1513 = vmatpush1.msra.mxu0 0.0
  %1514 = vmatprep.mubr.f32.mxu0 0.0
  %1515 = vmatmul.mubr.f32.gmra.mrb[0].mxu0 %v1433
  %v1516 = vpop.f32.mrb[0].mxu0
  %v1517 = vadd.f32 %v1431, %v1516
  %v1518 = vpop.f32.mrb[0].mxu0
  %1519 = vmatprep.mubr.f32.mxu0 0.0
  %1520 = vmatmul.mubr.f32.gmra.mrb[0].mxu0 %v1436
  %v1521 = vpop.f32.mrb[0].mxu0
  %v1522 = vadd.f32 %v1431, %v1521
  %v1523 = vpop.f32.mrb[0].mxu0
  %1524 = vmatprep.mubr.f32.mxu0 0.0
  %1525 = vmatmul.mubr.f32.gmra.mrb[0].mxu0 %v1439
  %v1526 = vpop.f32.mrb[0].mxu0
  %v1527 = vadd.f32 %v1431, %v1526
  %v1528 = vpop.f32.mrb[0].mxu0
  %1529 = vmatprep.mubr.f32.mxu0 0.0
  %1530 = vmatmul.mubr.f32.gmra.mrb[0].mxu0 %v1442
  %v1531 = vpop.f32.mrb[0].mxu0
  %v1532 = vadd.f32 %v1431, %v1531
  %v1533 = vpop.f32.mrb[0].mxu0
  %1534 = vmatprep.mubr.f32.mxu0 0.0
  %1535 = vmatmul.mubr.f32.gmra.mrb[0].mxu0 %v1445
  %v1536 = vpop.f32.mrb[0].mxu0
  %v1537 = vadd.f32 %v1431, %v1536
  %v1538 = vpop.f32.mrb[0].mxu0
  %1539 = vmatprep.mubr.f32.mxu0 0.0
  %1540 = vmatmul.mubr.f32.gmra.mrb[0].mxu0 %v1448
  %v1541 = vpop.f32.mrb[0].mxu0
  %v1542 = vadd.f32 %v1431, %v1541
  %v1543 = vpop.f32.mrb[0].mxu0
  %1544 = vdwg.mxu0
  %v1545 = vmax.f32 %v1517, 0.0
  %v1546 = vmax.f32 %v1522, 0.0
  %v1547 = vmax.f32 %v1527, 0.0
  %v1548 = vmax.f32 %v1532, 0.0
  %v1549 = vmax.f32 %v1537, 0.0
  %v1550 = vmax.f32 %v1542, 0.0
  %v1551 = vld [vmem:[%s9 + $0xf0] sm:$0xff]
  %v1552 = vld [vmem:[%s9 + $0xf8] sm:$0xff]
  %v1553 = vld [vmem:[%s9 + $0x100] sm:$0xff]
  %v1554 = vld [vmem:[%s9 + $0x108] sm:$0xff]
  %v1555 = vld [vmem:[%s9 + $0x110] sm:$0x1]
  %v1556 = vlaneseq
  %v1557 = vshrl.u32 %v1556, 7
  %v1558 = vsub.s32 0, %v1557
  %v1559 = vrot.slane %v1555, %v1558
  %v1561 = vsel %vm216, %v1545, 0
  %v1564 = vsel %vm216, %v1546, 0
  %v1567 = vsel %vm216, %v1547, 0
  %v1570 = vsel %vm216, %v1548, 0
  %v1573 = vsel %vm216, %v1549, 0
  %v1576 = vsel %vm216, %v1550, 0
  %1578 = vmatprep.subr.mxu0 0.0
  %1579 = vmatpush1.msra.mxu0 %v1551
  %1580 = vmatprep.subr.mxu0 0.0
  %1581 = vmatpush1.msra.mxu0 %v1552
  %1582 = vmatprep.subr.mxu0 0.0
  %1583 = vmatpush1.msra.mxu0 %v1553
  %1584 = vmatprep.subr.mxu0 0.0
  %1585 = vmatpush1.msra.mxu0 %v1554
  %1586 = vmatprep.subr.mxu0 0.0
  %1587 = vmatpush1.msra.mxu0 0.0
  %1588 = vmatprep.subr.mxu0 0.0
  %1589 = vmatpush1.msra.mxu0 0.0
  %1590 = vmatprep.subr.mxu0 0.0
  %1591 = vmatpush1.msra.mxu0 0.0
  %1592 = vmatprep.subr.mxu0 0.0
  %1593 = vmatpush1.msra.mxu0 0.0
  %1594 = vmatprep.subr.mxu0 0.0
  %1595 = vmatpush1.msra.mxu0 0.0
  %1596 = vmatprep.subr.mxu0 0.0
  %1597 = vmatpush1.msra.mxu0 0.0
  %1598 = vmatprep.subr.mxu0 0.0
  %1599 = vmatpush1.msra.mxu0 0.0
  %1600 = vmatprep.subr.mxu0 0.0
  %1601 = vmatpush1.msra.mxu0 0.0
  %1602 = vmatprep.subr.mxu0 0.0
  %1603 = vmatpush1.msra.mxu0 0.0
  %1604 = vmatprep.subr.mxu0 0.0
  %1605 = vmatpush1.msra.mxu0 0.0
  %1606 = vmatprep.subr.mxu0 0.0
  %1607 = vmatpush1.msra.mxu0 0.0
  %1608 = vmatprep.subr.mxu0 0.0
  %1609 = vmatpush1.msra.mxu0 0.0
  %1610 = vmatprep.subr.mxu0 0.0
  %1611 = vmatpush1.msra.mxu0 0.0
  %1612 = vmatprep.subr.mxu0 0.0
  %1613 = vmatpush1.msra.mxu0 0.0
  %1614 = vmatprep.subr.mxu0 0.0
  %1615 = vmatpush1.msra.mxu0 0.0
  %1616 = vmatprep.subr.mxu0 0.0
  %1617 = vmatpush1.msra.mxu0 0.0
  %1618 = vmatprep.subr.mxu0 0.0
  %1619 = vmatpush1.msra.mxu0 0.0
  %1620 = vmatprep.subr.mxu0 0.0
  %1621 = vmatpush1.msra.mxu0 0.0
  %1622 = vmatprep.subr.mxu0 0.0
  %1623 = vmatpush1.msra.mxu0 0.0
  %1624 = vmatprep.subr.mxu0 0.0
  %1625 = vmatpush1.msra.mxu0 0.0
  %1626 = vmatprep.subr.mxu0 0.0
  %1627 = vmatpush1.msra.mxu0 0.0
  %1628 = vmatprep.subr.mxu0 0.0
  %1629 = vmatpush1.msra.mxu0 0.0
  %1630 = vmatprep.subr.mxu0 0.0
  %1631 = vmatpush1.msra.mxu0 0.0
  %1632 = vmatprep.subr.mxu0 0.0
  %1633 = vmatpush1.msra.mxu0 0.0
  %1634 = vmatprep.subr.mxu0 0.0
  %1635 = vmatpush1.msra.mxu0 0.0
  %1636 = vmatprep.subr.mxu0 0.0
  %1637 = vmatpush1.msra.mxu0 0.0
  %1638 = vmatprep.subr.mxu0 0.0
  %1639 = vmatpush1.msra.mxu0 0.0
  %1640 = vmatprep.subr.mxu0 0.0
  %1641 = vmatpush1.msra.mxu0 0.0
  %1642 = vmatprep.mubr.f32.mxu0 0.0
  %1643 = vmatmul.mubr.f32.gmra.mrb[0].mxu0 %v1561
  %v1644 = vpop.f32.mrb[0].mxu0
  %v1645 = vadd.f32 %v1559, %v1644
  %v1646 = vpop.f32.mrb[0].mxu0
  %1647 = vmatprep.mubr.f32.mxu0 0.0
  %1648 = vmatmul.mubr.f32.gmra.mrb[0].mxu0 %v1564
  %v1649 = vpop.f32.mrb[0].mxu0
  %v1650 = vadd.f32 %v1559, %v1649
  %v1651 = vpop.f32.mrb[0].mxu0
  %1652 = vmatprep.mubr.f32.mxu0 0.0
  %1653 = vmatmul.mubr.f32.gmra.mrb[0].mxu0 %v1567
  %v1654 = vpop.f32.mrb[0].mxu0
  %v1655 = vadd.f32 %v1559, %v1654
  %v1656 = vpop.f32.mrb[0].mxu0
  %1657 = vmatprep.mubr.f32.mxu0 0.0
  %1658 = vmatmul.mubr.f32.gmra.mrb[0].mxu0 %v1570
  %v1659 = vpop.f32.mrb[0].mxu0
  %v1660 = vadd.f32 %v1559, %v1659
  %v1661 = vpop.f32.mrb[0].mxu0
  %1662 = vmatprep.mubr.f32.mxu0 0.0
  %1663 = vmatmul.mubr.f32.gmra.mrb[0].mxu0 %v1573
  %v1664 = vpop.f32.mrb[0].mxu0
  %v1665 = vadd.f32 %v1559, %v1664
  %v1666 = vpop.f32.mrb[0].mxu0
  %1667 = vmatprep.mubr.f32.mxu0 0.0
  %1668 = vmatmul.mubr.f32.gmra.mrb[0].mxu0 %v1576
  %v1669 = vpop.f32.mrb[0].mxu0
  %v1670 = vadd.f32 %v1559, %v1669
  %v1671 = vpop.f32.mrb[0].mxu0
  %1672 = vdwg.mxu0
  %v1673 = vmax.f32 %v1645, 0.0
  %v1674 = vmax.f32 %v1650, 0.0
  %v1675 = vmax.f32 %v1655, 0.0
  %v1676 = vmax.f32 %v1660, 0.0
  %v1677 = vmax.f32 %v1665, 0.0
  %v1678 = vmax.f32 %v1670, 0.0
  %v1679 = vld [vmem:[%s9 + $0x118] sm:$0xff]
  %v1680 = vld [vmem:[%s9 + $0x120] sm:$0xff]
  %v1681 = vld [vmem:[%s9 + $0x128] sm:$0xff]
  %v1682 = vld [vmem:[%s9 + $0x130] sm:$0xff]
  %v1683 = vld [vmem:[%s9 + $0x138] sm:$0x1]
  %v1684 = vlaneseq
  %v1685 = vshrl.u32 %v1684, 7
  %v1686 = vsub.s32 0, %v1685
  %v1687 = vrot.slane %v1683, %v1686
  %v1689 = vsel %vm216, %v1673, 0
  %v1692 = vsel %vm216, %v1674, 0
  %v1695 = vsel %vm216, %v1675, 0
  %v1698 = vsel %vm216, %v1676, 0
  %v1701 = vsel %vm216, %v1677, 0
  %v1704 = vsel %vm216, %v1678, 0
  %1706 = vmatprep.subr.mxu0 0.0
  %1707 = vmatpush1.msra.mxu0 %v1679
  %1708 = vmatprep.subr.mxu0 0.0
  %1709 = vmatpush1.msra.mxu0 %v1680
  %1710 = vmatprep.subr.mxu0 0.0
  %1711 = vmatpush1.msra.mxu0 %v1681
  %1712 = vmatprep.subr.mxu0 0.0
  %1713 = vmatpush1.msra.mxu0 %v1682
  %1714 = vmatprep.subr.mxu0 0.0
  %1715 = vmatpush1.msra.mxu0 0.0
  %1716 = vmatprep.subr.mxu0 0.0
  %1717 = vmatpush1.msra.mxu0 0.0
  %1718 = vmatprep.subr.mxu0 0.0
  %1719 = vmatpush1.msra.mxu0 0.0
  %1720 = vmatprep.subr.mxu0 0.0
  %1721 = vmatpush1.msra.mxu0 0.0
  %1722 = vmatprep.subr.mxu0 0.0
  %1723 = vmatpush1.msra.mxu0 0.0
  %1724 = vmatprep.subr.mxu0 0.0
  %1725 = vmatpush1.msra.mxu0 0.0
  %1726 = vmatprep.subr.mxu0 0.0
  %1727 = vmatpush1.msra.mxu0 0.0
  %1728 = vmatprep.subr.mxu0 0.0
  %1729 = vmatpush1.msra.mxu0 0.0
  %1730 = vmatprep.subr.mxu0 0.0
  %1731 = vmatpush1.msra.mxu0 0.0
  %1732 = vmatprep.subr.mxu0 0.0
  %1733 = vmatpush1.msra.mxu0 0.0
  %1734 = vmatprep.subr.mxu0 0.0
  %1735 = vmatpush1.msra.mxu0 0.0
  %1736 = vmatprep.subr.mxu0 0.0
  %1737 = vmatpush1.msra.mxu0 0.0
  %1738 = vmatprep.subr.mxu0 0.0
  %1739 = vmatpush1.msra.mxu0 0.0
  %1740 = vmatprep.subr.mxu0 0.0
  %1741 = vmatpush1.msra.mxu0 0.0
  %1742 = vmatprep.subr.mxu0 0.0
  %1743 = vmatpush1.msra.mxu0 0.0
  %1744 = vmatprep.subr.mxu0 0.0
  %1745 = vmatpush1.msra.mxu0 0.0
  %1746 = vmatprep.subr.mxu0 0.0
  %1747 = vmatpush1.msra.mxu0 0.0
  %1748 = vmatprep.subr.mxu0 0.0
  %1749 = vmatpush1.msra.mxu0 0.0
  %1750 = vmatprep.subr.mxu0 0.0
  %1751 = vmatpush1.msra.mxu0 0.0
  %1752 = vmatprep.subr.mxu0 0.0
  %1753 = vmatpush1.msra.mxu0 0.0
  %1754 = vmatprep.subr.mxu0 0.0
  %1755 = vmatpush1.msra.mxu0 0.0
  %1756 = vmatprep.subr.mxu0 0.0
  %1757 = vmatpush1.msra.mxu0 0.0
  %1758 = vmatprep.subr.mxu0 0.0
  %1759 = vmatpush1.msra.mxu0 0.0
  %1760 = vmatprep.subr.mxu0 0.0
  %1761 = vmatpush1.msra.mxu0 0.0
  %1762 = vmatprep.subr.mxu0 0.0
  %1763 = vmatpush1.msra.mxu0 0.0
  %1764 = vmatprep.subr.mxu0 0.0
  %1765 = vmatpush1.msra.mxu0 0.0
  %1766 = vmatprep.subr.mxu0 0.0
  %1767 = vmatpush1.msra.mxu0 0.0
  %1768 = vmatprep.subr.mxu0 0.0
  %1769 = vmatpush1.msra.mxu0 0.0
  %1770 = vmatprep.mubr.f32.mxu0 0.0
  %1771 = vmatmul.mubr.f32.gmra.mrb[0].mxu0 %v1689
  %v1772 = vpop.f32.mrb[0].mxu0
  %v1773 = vadd.f32 %v1687, %v1772
  %v1774 = vpop.f32.mrb[0].mxu0
  %1775 = vmatprep.mubr.f32.mxu0 0.0
  %1776 = vmatmul.mubr.f32.gmra.mrb[0].mxu0 %v1692
  %v1777 = vpop.f32.mrb[0].mxu0
  %v1778 = vadd.f32 %v1687, %v1777
  %v1779 = vpop.f32.mrb[0].mxu0
  %1780 = vmatprep.mubr.f32.mxu0 0.0
  %1781 = vmatmul.mubr.f32.gmra.mrb[0].mxu0 %v1695
  %v1782 = vpop.f32.mrb[0].mxu0
  %v1783 = vadd.f32 %v1687, %v1782
  %v1784 = vpop.f32.mrb[0].mxu0
  %1785 = vmatprep.mubr.f32.mxu0 0.0
  %1786 = vmatmul.mubr.f32.gmra.mrb[0].mxu0 %v1698
  %v1787 = vpop.f32.mrb[0].mxu0
  %v1788 = vadd.f32 %v1687, %v1787
  %v1789 = vpop.f32.mrb[0].mxu0
  %1790 = vmatprep.mubr.f32.mxu0 0.0
  %1791 = vmatmul.mubr.f32.gmra.mrb[0].mxu0 %v1701
  %v1792 = vpop.f32.mrb[0].mxu0
  %v1793 = vadd.f32 %v1687, %v1792
  %v1794 = vpop.f32.mrb[0].mxu0
  %1795 = vmatprep.mubr.f32.mxu0 0.0
  %1796 = vmatmul.mubr.f32.gmra.mrb[0].mxu0 %v1704
  %v1797 = vpop.f32.mrb[0].mxu0
  %v1798 = vadd.f32 %v1687, %v1797
  %v1799 = vpop.f32.mrb[0].mxu0
  %1800 = vdwg.mxu0
  %v1801 = vld [vmem:[%s9 + $0x140] sm:$0x1]
  %v1802 = vld [vmem:[%s9 + $0x148] sm:$0x1]
  %v1803 = vsel %vm216, %v1773, 0.0
  %1804 = vadd.xlane.f32.xlu0 %v1803
  %v1805 = vpop.xlane.xlu0 %1804
  %v1806 = vsel %vm216, %v1778, 0.0
  %1807 = vadd.xlane.f32.xlu0 %v1806
  %v1808 = vpop.xlane.xlu0 %1807
  %v1809 = vsel %vm216, %v1783, 0.0
  %1810 = vadd.xlane.f32.xlu0 %v1809
  %v1811 = vpop.xlane.xlu0 %1810
  %v1812 = vsel %vm216, %v1788, 0.0
  %1813 = vadd.xlane.f32.xlu0 %v1812
  %v1814 = vpop.xlane.xlu0 %1813
  %v1815 = vsel %vm216, %v1793, 0.0
  %1816 = vadd.xlane.f32.xlu0 %v1815
  %v1817 = vpop.xlane.xlu0 %1816
  %v1818 = vsel %vm216, %v1798, 0.0
  %1819 = vadd.xlane.f32.xlu0 %v1818
  %v1820 = vpop.xlane.xlu0 %1819
  %v1821 = vmul.f32 %v1805, %v558
  %v1822 = vmul.f32 %v1808, %v558
  %v1823 = vmul.f32 %v1811, %v558
  %v1824 = vmul.f32 %v1814, %v558
  %v1825 = vmul.f32 %v1817, %v558
  %v1826 = vmul.f32 %v1820, %v558
  %v1827 = vsub.f32 %v1773, %v1821
  %v1828 = vsub.f32 %v1778, %v1822
  %v1829 = vsub.f32 %v1783, %v1823
  %v1830 = vsub.f32 %v1788, %v1824
  %v1831 = vsub.f32 %v1793, %v1825
  %v1832 = vsub.f32 %v1798, %v1826
  %v1833 = vmul.f32 %v1827, %v1827
  %v1834 = vmul.f32 %v1828, %v1828
  %v1835 = vmul.f32 %v1829, %v1829
  %v1836 = vmul.f32 %v1830, %v1830
  %v1837 = vmul.f32 %v1831, %v1831
  %v1838 = vmul.f32 %v1832, %v1832
  %v1839 = vsel %vm216, %v1833, 0.0
  %1840 = vadd.xlane.f32.xlu0 %v1839
  %v1841 = vpop.xlane.xlu0 %1840
  %v1842 = vsel %vm216, %v1834, 0.0
  %1843 = vadd.xlane.f32.xlu0 %v1842
  %v1844 = vpop.xlane.xlu0 %1843
  %v1845 = vsel %vm216, %v1835, 0.0
  %1846 = vadd.xlane.f32.xlu0 %v1845
  %v1847 = vpop.xlane.xlu0 %1846
  %v1848 = vsel %vm216, %v1836, 0.0
  %1849 = vadd.xlane.f32.xlu0 %v1848
  %v1850 = vpop.xlane.xlu0 %1849
  %v1851 = vsel %vm216, %v1837, 0.0
  %1852 = vadd.xlane.f32.xlu0 %v1851
  %v1853 = vpop.xlane.xlu0 %1852
  %v1854 = vsel %vm216, %v1838, 0.0
  %1855 = vadd.xlane.f32.xlu0 %v1854
  %v1856 = vpop.xlane.xlu0 %1855
  %v1857 = vmul.f32 %v1841, %v558
  %v1858 = vmul.f32 %v1844, %v558
  %v1859 = vmul.f32 %v1847, %v558
  %v1860 = vmul.f32 %v1850, %v558
  %v1861 = vmul.f32 %v1853, %v558
  %v1862 = vmul.f32 %v1856, %v558
  %v1863 = vadd.f32 %v1857, 1e-05
  %v1864 = vadd.f32 %v1858, 1e-05
  %v1865 = vadd.f32 %v1859, 1e-05
  %v1866 = vadd.f32 %v1860, 1e-05
  %v1867 = vadd.f32 %v1861, 1e-05
  %v1868 = vadd.f32 %v1862, 1e-05
  %v1869 = vrsqrt.pop %v1863
  %v1870 = vrsqrt.pop %v1864
  %v1871 = vrsqrt.pop %v1865
  %v1872 = vrsqrt.pop %v1866
  %v1873 = vrsqrt.pop %v1867
  %v1874 = vrsqrt.pop %v1868
  %v1875 = vmul.f32 %v1827, %v1869
  %v1876 = vmul.f32 %v1828, %v1870
  %v1877 = vmul.f32 %v1829, %v1871
  %v1878 = vmul.f32 %v1830, %v1872
  %v1879 = vmul.f32 %v1831, %v1873
  %v1880 = vmul.f32 %v1832, %v1874
  %v1881 = vlaneseq
  %v1882 = vshrl.u32 %v1881, 7
  %v1883 = vsub.s32 0, %v1882
  %v1884 = vrot.slane %v1801, %v1883
  %v1885 = vmul.f32 %v1875, %v1884
  %v1886 = vmul.f32 %v1876, %v1884
  %v1887 = vmul.f32 %v1877, %v1884
  %v1888 = vmul.f32 %v1878, %v1884
  %v1889 = vmul.f32 %v1879, %v1884
  %v1890 = vmul.f32 %v1880, %v1884
  %v1891 = vlaneseq
  %v1892 = vshrl.u32 %v1891, 7
  %v1893 = vsub.s32 0, %v1892
  %v1894 = vrot.slane %v1802, %v1893
  %v1895 = vadd.f32 %v1885, %v1894
  %v1896 = vadd.f32 %v1886, %v1894
  %v1897 = vadd.f32 %v1887, %v1894
  %v1898 = vadd.f32 %v1888, %v1894
  %v1899 = vadd.f32 %v1889, %v1894
  %v1900 = vadd.f32 %v1890, %v1894
  %v1901 = vld [vmem:[%s3] sm:$0xff]
  %v1902 = vld [vmem:[%s3 + $0x8] sm:$0xff]
  %v1903 = vld [vmem:[%s3 + $0x10] sm:$0xff]
  %v1904 = vld [vmem:[%s3 + $0x18] sm:$0xff]
  %v1905 = vld [vmem:[%s3 + $0x20] sm:$0xff]
  %v1906 = vld [vmem:[%s3 + $0x28] sm:$0xff]
  %v1907 = vld [vmem:[%s3 + $0x30] sm:$0xff]
  %v1908 = vld [vmem:[%s3 + $0x38] sm:$0xff]
  %v1909 = vld [vmem:[%s3 + $0x40] sm:$0xff]
  %v1910 = vld [vmem:[%s3 + $0x48] sm:$0xff]
  %v1911 = vld [vmem:[%s3 + $0x50] sm:$0xff]
  %v1912 = vld [vmem:[%s3 + $0x58] sm:$0xff]
  %v1913 = vld [vmem:[%s4] sm:$0xff]
  %v1914 = vld [vmem:[%s4 + $0x8] sm:$0xff]
  %v1915 = vld [vmem:[%s4 + $0x10] sm:$0xff]
  %v1916 = vld [vmem:[%s4 + $0x18] sm:$0xff]
  %v1917 = vld [vmem:[%s4 + $0x20] sm:$0xff]
  %v1918 = vld [vmem:[%s4 + $0x28] sm:$0xff]
  %v1919 = vld [vmem:[%s4 + $0x30] sm:$0xff]
  %v1920 = vld [vmem:[%s4 + $0x38] sm:$0xff]
  %v1921 = vld [vmem:[%s4 + $0x40] sm:$0xff]
  %v1922 = vld [vmem:[%s4 + $0x48] sm:$0xff]
  %v1923 = vld [vmem:[%s4 + $0x50] sm:$0xff]
  %v1924 = vld [vmem:[%s4 + $0x58] sm:$0xff]
  %v1925 = vld [vmem:[%s5] sm:$0x1]
  %v1926 = vld [vmem:[%s6] sm:$0xff]
  %v1927 = vld [vmem:[%s6 + $0x8] sm:$0xff]
  %v1928 = vld [vmem:[%s6 + $0x10] sm:$0xff]
  %v1929 = vld [vmem:[%s6 + $0x18] sm:$0xff]
  %v1930 = vld [vmem:[%s6 + $0x20] sm:$0xff]
  %v1931 = vld [vmem:[%s6 + $0x28] sm:$0xff]
  %v1932 = vld [vmem:[%s7] sm:$0xff]
  %v1933 = vld [vmem:[%s7 + $0x8] sm:$0xff]
  %v1934 = vld [vmem:[%s7 + $0x10] sm:$0xff]
  %v1935 = vld [vmem:[%s7 + $0x18] sm:$0xff]
  %v1936 = vld [vmem:[%s7 + $0x20] sm:$0xff]
  %v1937 = vld [vmem:[%s7 + $0x28] sm:$0xff]
  %v1938 = vld [vmem:[%s8] sm:$0x1]
  %v1939 = vlaneseq
  %v1940 = vand.u32 %v1939, 127
  %1941 = vset.pattern.permute.xlu0 0
  %1942 = vperm.xlu0 %1941, %v1901
  %v1943 = vpop.permute.xlu0 %1942
  %1944 = vset.pattern.permute.xlu0 0
  %1945 = vperm.xlu0 %1944, %v1902
  %v1946 = vpop.permute.xlu0 %1945
  %1947 = vset.pattern.permute.xlu0 0
  %1948 = vperm.xlu0 %1947, %v1903
  %v1949 = vpop.permute.xlu0 %1948
  %1950 = vset.pattern.permute.xlu0 0
  %1951 = vperm.xlu0 %1950, %v1904
  %v1952 = vpop.permute.xlu0 %1951
  %1953 = vset.pattern.permute.xlu0 0
  %1954 = vperm.xlu0 %1953, %v1905
  %v1955 = vpop.permute.xlu0 %1954
  %1956 = vset.pattern.permute.xlu0 0
  %1957 = vperm.xlu0 %1956, %v1906
  %v1958 = vpop.permute.xlu0 %1957
  %1959 = vset.pattern.permute.xlu0 0
  %1960 = vperm.xlu0 %1959, %v1907
  %v1961 = vpop.permute.xlu0 %1960
  %1962 = vset.pattern.permute.xlu0 0
  %1963 = vperm.xlu0 %1962, %v1908
  %v1964 = vpop.permute.xlu0 %1963
  %1965 = vset.pattern.permute.xlu0 0
  %1966 = vperm.xlu0 %1965, %v1909
  %v1967 = vpop.permute.xlu0 %1966
  %1968 = vset.pattern.permute.xlu0 0
  %1969 = vperm.xlu0 %1968, %v1910
  %v1970 = vpop.permute.xlu0 %1969
  %1971 = vset.pattern.permute.xlu0 0
  %1972 = vperm.xlu0 %1971, %v1911
  %v1973 = vpop.permute.xlu0 %1972
  %1974 = vset.pattern.permute.xlu0 0
  %1975 = vperm.xlu0 %1974, %v1912
  %v1976 = vpop.permute.xlu0 %1975
  %vm1977 = vcmp.eq.s32.totalorder %v1940, %v1943
  %vm1978 = vcmp.eq.s32.totalorder %v1940, %v1946
  %vm1979 = vcmp.eq.s32.totalorder %v1940, %v1949
  %vm1980 = vcmp.eq.s32.totalorder %v1940, %v1952
  %vm1981 = vcmp.eq.s32.totalorder %v1940, %v1955
  %vm1982 = vcmp.eq.s32.totalorder %v1940, %v1958
  %vm1983 = vcmp.eq.s32.totalorder %v1940, %v1961
  %vm1984 = vcmp.eq.s32.totalorder %v1940, %v1964
  %vm1985 = vcmp.eq.s32.totalorder %v1940, %v1967
  %vm1986 = vcmp.eq.s32.totalorder %v1940, %v1970
  %vm1987 = vcmp.eq.s32.totalorder %v1940, %v1973
  %vm1988 = vcmp.eq.s32.totalorder %v1940, %v1976
  %v1989 = vsel %vm1977, 1, 0
  %v1990 = vsel %vm1978, 1, 0
  %v1991 = vsel %vm1979, 1, 0
  %v1992 = vsel %vm1980, 1, 0
  %v1993 = vsel %vm1981, 1, 0
  %v1994 = vsel %vm1982, 1, 0
  %v1995 = vsel %vm1983, 1, 0
  %v1996 = vsel %vm1984, 1, 0
  %v1997 = vsel %vm1985, 1, 0
  %v1998 = vsel %vm1986, 1, 0
  %v1999 = vsel %vm1987, 1, 0
  %v2000 = vsel %vm1988, 1, 0
  %v2001 = vcvt.s32.f32 %v1989
  %v2002 = vcvt.s32.f32 %v1990
  %v2003 = vcvt.s32.f32 %v1991
  %v2004 = vcvt.s32.f32 %v1992
  %v2005 = vcvt.s32.f32 %v1993
  %v2006 = vcvt.s32.f32 %v1994
  %v2007 = vcvt.s32.f32 %v1995
  %v2008 = vcvt.s32.f32 %v1996
  %v2009 = vcvt.s32.f32 %v1997
  %v2010 = vcvt.s32.f32 %v1998
  %v2011 = vcvt.s32.f32 %v1999
  %v2012 = vcvt.s32.f32 %v2000
  %vm2013 = vcmask 523264
  %v2015 = vsel %vm2013, %v2001, 0
  %v2018 = vsel %vm2013, %v2002, 0
  %v2021 = vsel %vm2013, %v2003, 0
  %v2024 = vsel %vm2013, %v2004, 0
  %v2027 = vsel %vm2013, %v2005, 0
  %v2030 = vsel %vm2013, %v2006, 0
  %v2033 = vsel %vm2013, %v2007, 0
  %v2036 = vsel %vm2013, %v2008, 0
  %v2039 = vsel %vm2013, %v2009, 0
  %v2042 = vsel %vm2013, %v2010, 0
  %v2045 = vsel %vm2013, %v2011, 0
  %v2048 = vsel %vm2013, %v2012, 0
  %2050 = vmatprep.subr.mxu0 0.0
  %2051 = vmatpush1.msra.mxu0 %v677
  %2052 = vmatprep.subr.mxu0 0.0
  %2053 = vmatpush1.msra.mxu0 %v678
  %2054 = vmatprep.subr.mxu0 0.0
  %2055 = vmatpush1.msra.mxu0 %v679
  %2056 = vmatprep.subr.mxu0 0.0
  %2057 = vmatpush1.msra.mxu0 %v680
  %2058 = vmatprep.subr.mxu0 0.0
  %2059 = vmatpush1.msra.mxu0 %v681
  %2060 = vmatprep.subr.mxu0 0.0
  %2061 = vmatpush1.msra.mxu0 %v682
  %2062 = vmatprep.subr.mxu0 0.0
  %2063 = vmatpush1.msra.mxu0 %v683
  %2064 = vmatprep.subr.mxu0 0.0
  %2065 = vmatpush1.msra.mxu0 %v684
  %2066 = vmatprep.subr.mxu0 0.0
  %2067 = vmatpush1.msra.mxu0 0.0
  %2068 = vmatprep.subr.mxu0 0.0
  %2069 = vmatpush1.msra.mxu0 0.0
  %2070 = vmatprep.subr.mxu0 0.0
  %2071 = vmatpush1.msra.mxu0 0.0
  %2072 = vmatprep.subr.mxu0 0.0
  %2073 = vmatpush1.msra.mxu0 0.0
  %2074 = vmatprep.subr.mxu0 0.0
  %2075 = vmatpush1.msra.mxu0 0.0
  %2076 = vmatprep.subr.mxu0 0.0
  %2077 = vmatpush1.msra.mxu0 0.0
  %2078 = vmatprep.subr.mxu0 0.0
  %2079 = vmatpush1.msra.mxu0 0.0
  %2080 = vmatprep.subr.mxu0 0.0
  %2081 = vmatpush1.msra.mxu0 0.0
  %2082 = vmatprep.subr.mxu0 0.0
  %2083 = vmatpush1.msra.mxu0 0.0
  %2084 = vmatprep.subr.mxu0 0.0
  %2085 = vmatpush1.msra.mxu0 0.0
  %2086 = vmatprep.subr.mxu0 0.0
  %2087 = vmatpush1.msra.mxu0 0.0
  %2088 = vmatprep.subr.mxu0 0.0
  %2089 = vmatpush1.msra.mxu0 0.0
  %2090 = vmatprep.subr.mxu0 0.0
  %2091 = vmatpush1.msra.mxu0 0.0
  %2092 = vmatprep.subr.mxu0 0.0
  %2093 = vmatpush1.msra.mxu0 0.0
  %2094 = vmatprep.subr.mxu0 0.0
  %2095 = vmatpush1.msra.mxu0 0.0
  %2096 = vmatprep.subr.mxu0 0.0
  %2097 = vmatpush1.msra.mxu0 0.0
  %2098 = vmatprep.subr.mxu0 0.0
  %2099 = vmatpush1.msra.mxu0 0.0
  %2100 = vmatprep.subr.mxu0 0.0
  %2101 = vmatpush1.msra.mxu0 0.0
  %2102 = vmatprep.subr.mxu0 0.0
  %2103 = vmatpush1.msra.mxu0 0.0
  %2104 = vmatprep.subr.mxu0 0.0
  %2105 = vmatpush1.msra.mxu0 0.0
  %2106 = vmatprep.subr.mxu0 0.0
  %2107 = vmatpush1.msra.mxu0 0.0
  %2108 = vmatprep.subr.mxu0 0.0
  %2109 = vmatpush1.msra.mxu0 0.0
  %2110 = vmatprep.subr.mxu0 0.0
  %2111 = vmatpush1.msra.mxu0 0.0
  %2112 = vmatprep.subr.mxu0 0.0
  %2113 = vmatpush1.msra.mxu0 0.0
  %2114 = vmatprep.mubr.f32.mxu0 0.0
  %2115 = vmatmul.mubr.f32.gmra.mrb[0].mxu0 %v2015
  %v2116 = vpop.f32.mrb[0].mxu0
  %v2117 = vadd.f32 0.0, %v2116
  %v2118 = vpop.f32.mrb[0].mxu0
  %2119 = vmatprep.mubr.f32.mxu0 0.0
  %2120 = vmatmul.mubr.f32.gmra.mrb[0].mxu0 %v2018
  %v2121 = vpop.f32.mrb[0].mxu0
  %v2122 = vadd.f32 0.0, %v2121
  %v2123 = vpop.f32.mrb[0].mxu0
  %2124 = vmatprep.mubr.f32.mxu0 0.0
  %2125 = vmatmul.mubr.f32.gmra.mrb[0].mxu0 %v2021
  %v2126 = vpop.f32.mrb[0].mxu0
  %v2127 = vadd.f32 0.0, %v2126
  %v2128 = vpop.f32.mrb[0].mxu0
  %2129 = vmatprep.mubr.f32.mxu0 0.0
  %2130 = vmatmul.mubr.f32.gmra.mrb[0].mxu0 %v2024
  %v2131 = vpop.f32.mrb[0].mxu0
  %v2132 = vadd.f32 0.0, %v2131
  %v2133 = vpop.f32.mrb[0].mxu0
  %2134 = vmatprep.mubr.f32.mxu0 0.0
  %2135 = vmatmul.mubr.f32.gmra.mrb[0].mxu0 %v2027
  %v2136 = vpop.f32.mrb[0].mxu0
  %v2137 = vadd.f32 0.0, %v2136
  %v2138 = vpop.f32.mrb[0].mxu0
  %2139 = vmatprep.mubr.f32.mxu0 0.0
  %2140 = vmatmul.mubr.f32.gmra.mrb[0].mxu0 %v2030
  %v2141 = vpop.f32.mrb[0].mxu0
  %v2142 = vadd.f32 0.0, %v2141
  %v2143 = vpop.f32.mrb[0].mxu0
  %2144 = vmatprep.mubr.f32.mxu0 0.0
  %2145 = vmatmul.mubr.f32.gmra.mrb[0].mxu0 %v2033
  %v2146 = vpop.f32.mrb[0].mxu0
  %v2147 = vadd.f32 0.0, %v2146
  %v2148 = vpop.f32.mrb[0].mxu0
  %2149 = vmatprep.mubr.f32.mxu0 0.0
  %2150 = vmatmul.mubr.f32.gmra.mrb[0].mxu0 %v2036
  %v2151 = vpop.f32.mrb[0].mxu0
  %v2152 = vadd.f32 0.0, %v2151
  %v2153 = vpop.f32.mrb[0].mxu0
  %2154 = vmatprep.mubr.f32.mxu0 0.0
  %2155 = vmatmul.mubr.f32.gmra.mrb[0].mxu0 %v2039
  %v2156 = vpop.f32.mrb[0].mxu0
  %v2157 = vadd.f32 0.0, %v2156
  %v2158 = vpop.f32.mrb[0].mxu0
  %2159 = vmatprep.mubr.f32.mxu0 0.0
  %2160 = vmatmul.mubr.f32.gmra.mrb[0].mxu0 %v2042
  %v2161 = vpop.f32.mrb[0].mxu0
  %v2162 = vadd.f32 0.0, %v2161
  %v2163 = vpop.f32.mrb[0].mxu0
  %2164 = vmatprep.mubr.f32.mxu0 0.0
  %2165 = vmatmul.mubr.f32.gmra.mrb[0].mxu0 %v2045
  %v2166 = vpop.f32.mrb[0].mxu0
  %v2167 = vadd.f32 0.0, %v2166
  %v2168 = vpop.f32.mrb[0].mxu0
  %2169 = vmatprep.mubr.f32.mxu0 0.0
  %2170 = vmatmul.mubr.f32.gmra.mrb[0].mxu0 %v2048
  %v2171 = vpop.f32.mrb[0].mxu0
  %v2172 = vadd.f32 0.0, %v2171
  %v2173 = vpop.f32.mrb[0].mxu0
  %2174 = vdwg.mxu0
  %2175 = vset.pattern.permute.xlu0 0
  %2176 = vperm.xlu0 %2175, %v1913
  %v2177 = vpop.permute.xlu0 %2176
  %2178 = vset.pattern.permute.xlu0 0
  %2179 = vperm.xlu0 %2178, %v1914
  %v2180 = vpop.permute.xlu0 %2179
  %2181 = vset.pattern.permute.xlu0 0
  %2182 = vperm.xlu0 %2181, %v1915
  %v2183 = vpop.permute.xlu0 %2182
  %2184 = vset.pattern.permute.xlu0 0
  %2185 = vperm.xlu0 %2184, %v1916
  %v2186 = vpop.permute.xlu0 %2185
  %2187 = vset.pattern.permute.xlu0 0
  %2188 = vperm.xlu0 %2187, %v1917
  %v2189 = vpop.permute.xlu0 %2188
  %2190 = vset.pattern.permute.xlu0 0
  %2191 = vperm.xlu0 %2190, %v1918
  %v2192 = vpop.permute.xlu0 %2191
  %2193 = vset.pattern.permute.xlu0 0
  %2194 = vperm.xlu0 %2193, %v1919
  %v2195 = vpop.permute.xlu0 %2194
  %2196 = vset.pattern.permute.xlu0 0
  %2197 = vperm.xlu0 %2196, %v1920
  %v2198 = vpop.permute.xlu0 %2197
  %2199 = vset.pattern.permute.xlu0 0
  %2200 = vperm.xlu0 %2199, %v1921
  %v2201 = vpop.permute.xlu0 %2200
  %2202 = vset.pattern.permute.xlu0 0
  %2203 = vperm.xlu0 %2202, %v1922
  %v2204 = vpop.permute.xlu0 %2203
  %2205 = vset.pattern.permute.xlu0 0
  %2206 = vperm.xlu0 %2205, %v1923
  %v2207 = vpop.permute.xlu0 %2206
  %2208 = vset.pattern.permute.xlu0 0
  %2209 = vperm.xlu0 %2208, %v1924
  %v2210 = vpop.permute.xlu0 %2209
  %vm2211 = vcmp.eq.s32.totalorder %v1940, %v2177
  %vm2212 = vcmp.eq.s32.totalorder %v1940, %v2180
  %vm2213 = vcmp.eq.s32.totalorder %v1940, %v2183
  %vm2214 = vcmp.eq.s32.totalorder %v1940, %v2186
  %vm2215 = vcmp.eq.s32.totalorder %v1940, %v2189
  %vm2216 = vcmp.eq.s32.totalorder %v1940, %v2192
  %vm2217 = vcmp.eq.s32.totalorder %v1940, %v2195
  %vm2218 = vcmp.eq.s32.totalorder %v1940, %v2198
  %vm2219 = vcmp.eq.s32.totalorder %v1940, %v2201
  %vm2220 = vcmp.eq.s32.totalorder %v1940, %v2204
  %vm2221 = vcmp.eq.s32.totalorder %v1940, %v2207
  %vm2222 = vcmp.eq.s32.totalorder %v1940, %v2210
  %v2223 = vsel %vm2211, 1, 0
  %v2224 = vsel %vm2212, 1, 0
  %v2225 = vsel %vm2213, 1, 0
  %v2226 = vsel %vm2214, 1, 0
  %v2227 = vsel %vm2215, 1, 0
  %v2228 = vsel %vm2216, 1, 0
  %v2229 = vsel %vm2217, 1, 0
  %v2230 = vsel %vm2218, 1, 0
  %v2231 = vsel %vm2219, 1, 0
  %v2232 = vsel %vm2220, 1, 0
  %v2233 = vsel %vm2221, 1, 0
  %v2234 = vsel %vm2222, 1, 0
  %v2235 = vcvt.s32.f32 %v2223
  %v2236 = vcvt.s32.f32 %v2224
  %v2237 = vcvt.s32.f32 %v2225
  %v2238 = vcvt.s32.f32 %v2226
  %v2239 = vcvt.s32.f32 %v2227
  %v2240 = vcvt.s32.f32 %v2228
  %v2241 = vcvt.s32.f32 %v2229
  %v2242 = vcvt.s32.f32 %v2230
  %v2243 = vcvt.s32.f32 %v2231
  %v2244 = vcvt.s32.f32 %v2232
  %v2245 = vcvt.s32.f32 %v2233
  %v2246 = vcvt.s32.f32 %v2234
  %v2248 = vsel %vm2013, %v2235, 0
  %v2251 = vsel %vm2013, %v2236, 0
  %v2254 = vsel %vm2013, %v2237, 0
  %v2257 = vsel %vm2013, %v2238, 0
  %v2260 = vsel %vm2013, %v2239, 0
  %v2263 = vsel %vm2013, %v2240, 0
  %v2266 = vsel %vm2013, %v2241, 0
  %v2269 = vsel %vm2013, %v2242, 0
  %v2272 = vsel %vm2013, %v2243, 0
  %v2275 = vsel %vm2013, %v2244, 0
  %v2278 = vsel %vm2013, %v2245, 0
  %v2281 = vsel %vm2013, %v2246, 0
  %2283 = vmatprep.subr.mxu0 0.0
  %2284 = vmatpush1.msra.mxu0 %v677
  %2285 = vmatprep.subr.mxu0 0.0
  %2286 = vmatpush1.msra.mxu0 %v678
  %2287 = vmatprep.subr.mxu0 0.0
  %2288 = vmatpush1.msra.mxu0 %v679
  %2289 = vmatprep.subr.mxu0 0.0
  %2290 = vmatpush1.msra.mxu0 %v680
  %2291 = vmatprep.subr.mxu0 0.0
  %2292 = vmatpush1.msra.mxu0 %v681
  %2293 = vmatprep.subr.mxu0 0.0
  %2294 = vmatpush1.msra.mxu0 %v682
  %2295 = vmatprep.subr.mxu0 0.0
  %2296 = vmatpush1.msra.mxu0 %v683
  %2297 = vmatprep.subr.mxu0 0.0
  %2298 = vmatpush1.msra.mxu0 %v684
  %2299 = vmatprep.subr.mxu0 0.0
  %2300 = vmatpush1.msra.mxu0 0.0
  %2301 = vmatprep.subr.mxu0 0.0
  %2302 = vmatpush1.msra.mxu0 0.0
  %2303 = vmatprep.subr.mxu0 0.0
  %2304 = vmatpush1.msra.mxu0 0.0
  %2305 = vmatprep.subr.mxu0 0.0
  %2306 = vmatpush1.msra.mxu0 0.0
  %2307 = vmatprep.subr.mxu0 0.0
  %2308 = vmatpush1.msra.mxu0 0.0
  %2309 = vmatprep.subr.mxu0 0.0
  %2310 = vmatpush1.msra.mxu0 0.0
  %2311 = vmatprep.subr.mxu0 0.0
  %2312 = vmatpush1.msra.mxu0 0.0
  %2313 = vmatprep.subr.mxu0 0.0
  %2314 = vmatpush1.msra.mxu0 0.0
  %2315 = vmatprep.subr.mxu0 0.0
  %2316 = vmatpush1.msra.mxu0 0.0
  %2317 = vmatprep.subr.mxu0 0.0
  %2318 = vmatpush1.msra.mxu0 0.0
  %2319 = vmatprep.subr.mxu0 0.0
  %2320 = vmatpush1.msra.mxu0 0.0
  %2321 = vmatprep.subr.mxu0 0.0
  %2322 = vmatpush1.msra.mxu0 0.0
  %2323 = vmatprep.subr.mxu0 0.0
  %2324 = vmatpush1.msra.mxu0 0.0
  %2325 = vmatprep.subr.mxu0 0.0
  %2326 = vmatpush1.msra.mxu0 0.0
  %2327 = vmatprep.subr.mxu0 0.0
  %2328 = vmatpush1.msra.mxu0 0.0
  %2329 = vmatprep.subr.mxu0 0.0
  %2330 = vmatpush1.msra.mxu0 0.0
  %2331 = vmatprep.subr.mxu0 0.0
  %2332 = vmatpush1.msra.mxu0 0.0
  %2333 = vmatprep.subr.mxu0 0.0
  %2334 = vmatpush1.msra.mxu0 0.0
  %2335 = vmatprep.subr.mxu0 0.0
  %2336 = vmatpush1.msra.mxu0 0.0
  %2337 = vmatprep.subr.mxu0 0.0
  %2338 = vmatpush1.msra.mxu0 0.0
  %2339 = vmatprep.subr.mxu0 0.0
  %2340 = vmatpush1.msra.mxu0 0.0
  %2341 = vmatprep.subr.mxu0 0.0
  %2342 = vmatpush1.msra.mxu0 0.0
  %2343 = vmatprep.subr.mxu0 0.0
  %2344 = vmatpush1.msra.mxu0 0.0
  %2345 = vmatprep.subr.mxu0 0.0
  %2346 = vmatpush1.msra.mxu0 0.0
  %2347 = vmatprep.mubr.f32.mxu0 0.0
  %2348 = vmatmul.mubr.f32.gmra.mrb[0].mxu0 %v2248
  %v2349 = vpop.f32.mrb[0].mxu0
  %v2350 = vadd.f32 0.0, %v2349
  %v2351 = vpop.f32.mrb[0].mxu0
  %2352 = vmatprep.mubr.f32.mxu0 0.0
  %2353 = vmatmul.mubr.f32.gmra.mrb[0].mxu0 %v2251
  %v2354 = vpop.f32.mrb[0].mxu0
  %v2355 = vadd.f32 0.0, %v2354
  %v2356 = vpop.f32.mrb[0].mxu0
  %2357 = vmatprep.mubr.f32.mxu0 0.0
  %2358 = vmatmul.mubr.f32.gmra.mrb[0].mxu0 %v2254
  %v2359 = vpop.f32.mrb[0].mxu0
  %v2360 = vadd.f32 0.0, %v2359
  %v2361 = vpop.f32.mrb[0].mxu0
  %2362 = vmatprep.mubr.f32.mxu0 0.0
  %2363 = vmatmul.mubr.f32.gmra.mrb[0].mxu0 %v2257
  %v2364 = vpop.f32.mrb[0].mxu0
  %v2365 = vadd.f32 0.0, %v2364
  %v2366 = vpop.f32.mrb[0].mxu0
  %2367 = vmatprep.mubr.f32.mxu0 0.0
  %2368 = vmatmul.mubr.f32.gmra.mrb[0].mxu0 %v2260
  %v2369 = vpop.f32.mrb[0].mxu0
  %v2370 = vadd.f32 0.0, %v2369
  %v2371 = vpop.f32.mrb[0].mxu0
  %2372 = vmatprep.mubr.f32.mxu0 0.0
  %2373 = vmatmul.mubr.f32.gmra.mrb[0].mxu0 %v2263
  %v2374 = vpop.f32.mrb[0].mxu0
  %v2375 = vadd.f32 0.0, %v2374
  %v2376 = vpop.f32.mrb[0].mxu0
  %2377 = vmatprep.mubr.f32.mxu0 0.0
  %2378 = vmatmul.mubr.f32.gmra.mrb[0].mxu0 %v2266
  %v2379 = vpop.f32.mrb[0].mxu0
  %v2380 = vadd.f32 0.0, %v2379
  %v2381 = vpop.f32.mrb[0].mxu0
  %2382 = vmatprep.mubr.f32.mxu0 0.0
  %2383 = vmatmul.mubr.f32.gmra.mrb[0].mxu0 %v2269
  %v2384 = vpop.f32.mrb[0].mxu0
  %v2385 = vadd.f32 0.0, %v2384
  %v2386 = vpop.f32.mrb[0].mxu0
  %2387 = vmatprep.mubr.f32.mxu0 0.0
  %2388 = vmatmul.mubr.f32.gmra.mrb[0].mxu0 %v2272
  %v2389 = vpop.f32.mrb[0].mxu0
  %v2390 = vadd.f32 0.0, %v2389
  %v2391 = vpop.f32.mrb[0].mxu0
  %2392 = vmatprep.mubr.f32.mxu0 0.0
  %2393 = vmatmul.mubr.f32.gmra.mrb[0].mxu0 %v2275
  %v2394 = vpop.f32.mrb[0].mxu0
  %v2395 = vadd.f32 0.0, %v2394
  %v2396 = vpop.f32.mrb[0].mxu0
  %2397 = vmatprep.mubr.f32.mxu0 0.0
  %2398 = vmatmul.mubr.f32.gmra.mrb[0].mxu0 %v2278
  %v2399 = vpop.f32.mrb[0].mxu0
  %v2400 = vadd.f32 0.0, %v2399
  %v2401 = vpop.f32.mrb[0].mxu0
  %2402 = vmatprep.mubr.f32.mxu0 0.0
  %2403 = vmatmul.mubr.f32.gmra.mrb[0].mxu0 %v2281
  %v2404 = vpop.f32.mrb[0].mxu0
  %v2405 = vadd.f32 0.0, %v2404
  %v2406 = vpop.f32.mrb[0].mxu0
  %2407 = vdwg.mxu0
  %v2408 = vld [vmem:[%s9 + $0x1c8] sm:$0xff]
  %v2409 = vld [vmem:[%s9 + $0x1d0] sm:$0xff]
  %v2410 = vld [vmem:[%s9 + $0x1d8] sm:$0xff]
  %v2411 = vld [vmem:[%s9 + $0x1e0] sm:$0xff]
  %v2412 = vld [vmem:[%s9 + $0x1e8] sm:$0xff]
  %v2413 = vld [vmem:[%s9 + $0x1f0] sm:$0xff]
  %v2414 = vld [vmem:[%s9 + $0x1f8] sm:$0xff]
  %v2415 = vld [vmem:[%s9 + $0x200] sm:$0xff]
  %v2417 = vsel %vm216, %v2350, 0
  %v2420 = vsel %vm216, %v2355, 0
  %v2423 = vsel %vm216, %v2360, 0
  %v2426 = vsel %vm216, %v2365, 0
  %v2429 = vsel %vm216, %v2370, 0
  %v2432 = vsel %vm216, %v2375, 0
  %v2435 = vsel %vm216, %v2380, 0
  %v2438 = vsel %vm216, %v2385, 0
  %v2441 = vsel %vm216, %v2390, 0
  %v2444 = vsel %vm216, %v2395, 0
  %v2447 = vsel %vm216, %v2400, 0
  %v2450 = vsel %vm216, %v2405, 0
  %2452 = vmatprep.subr.mxu0 0.0
  %2453 = vmatpush1.msra.mxu0 %v2412
  %2454 = vmatprep.subr.mxu0 0.0
  %2455 = vmatpush1.msra.mxu0 %v2413
  %2456 = vmatprep.subr.mxu0 0.0
  %2457 = vmatpush1.msra.mxu0 %v2414
  %2458 = vmatprep.subr.mxu0 0.0
  %2459 = vmatpush1.msra.mxu0 %v2415
  %2460 = vmatprep.subr.mxu0 0.0
  %2461 = vmatpush1.msra.mxu0 0.0
  %2462 = vmatprep.subr.mxu0 0.0
  %2463 = vmatpush1.msra.mxu0 0.0
  %2464 = vmatprep.subr.mxu0 0.0
  %2465 = vmatpush1.msra.mxu0 0.0
  %2466 = vmatprep.subr.mxu0 0.0
  %2467 = vmatpush1.msra.mxu0 0.0
  %2468 = vmatprep.subr.mxu0 0.0
  %2469 = vmatpush1.msra.mxu0 0.0
  %2470 = vmatprep.subr.mxu0 0.0
  %2471 = vmatpush1.msra.mxu0 0.0
  %2472 = vmatprep.subr.mxu0 0.0
  %2473 = vmatpush1.msra.mxu0 0.0
  %2474 = vmatprep.subr.mxu0 0.0
  %2475 = vmatpush1.msra.mxu0 0.0
  %2476 = vmatprep.subr.mxu0 0.0
  %2477 = vmatpush1.msra.mxu0 0.0
  %2478 = vmatprep.subr.mxu0 0.0
  %2479 = vmatpush1.msra.mxu0 0.0
  %2480 = vmatprep.subr.mxu0 0.0
  %2481 = vmatpush1.msra.mxu0 0.0
  %2482 = vmatprep.subr.mxu0 0.0
  %2483 = vmatpush1.msra.mxu0 0.0
  %2484 = vmatprep.subr.mxu0 0.0
  %2485 = vmatpush1.msra.mxu0 0.0
  %2486 = vmatprep.subr.mxu0 0.0
  %2487 = vmatpush1.msra.mxu0 0.0
  %2488 = vmatprep.subr.mxu0 0.0
  %2489 = vmatpush1.msra.mxu0 0.0
  %2490 = vmatprep.subr.mxu0 0.0
  %2491 = vmatpush1.msra.mxu0 0.0
  %2492 = vmatprep.subr.mxu0 0.0
  %2493 = vmatpush1.msra.mxu0 0.0
  %2494 = vmatprep.subr.mxu0 0.0
  %2495 = vmatpush1.msra.mxu0 0.0
  %2496 = vmatprep.subr.mxu0 0.0
  %2497 = vmatpush1.msra.mxu0 0.0
  %2498 = vmatprep.subr.mxu0 0.0
  %2499 = vmatpush1.msra.mxu0 0.0
  %2500 = vmatprep.subr.mxu0 0.0
  %2501 = vmatpush1.msra.mxu0 0.0
  %2502 = vmatprep.subr.mxu0 0.0
  %2503 = vmatpush1.msra.mxu0 0.0
  %2504 = vmatprep.subr.mxu0 0.0
  %2505 = vmatpush1.msra.mxu0 0.0
  %2506 = vmatprep.subr.mxu0 0.0
  %2507 = vmatpush1.msra.mxu0 0.0
  %2508 = vmatprep.subr.mxu0 0.0
  %2509 = vmatpush1.msra.mxu0 0.0
  %2510 = vmatprep.subr.mxu0 0.0
  %2511 = vmatpush1.msra.mxu0 0.0
  %2512 = vmatprep.subr.mxu0 0.0
  %2513 = vmatpush1.msra.mxu0 0.0
  %2514 = vmatprep.subr.mxu0 0.0
  %2515 = vmatpush1.msra.mxu0 0.0
  %2516 = vmatprep.mubr.f32.mxu0 0.0
  %2517 = vmatmul.mubr.f32.gmra.mrb[0].mxu0 %v2417
  %v2518 = vpop.f32.mrb[0].mxu0
  %v2519 = vadd.f32 0.0, %v2518
  %v2520 = vpop.f32.mrb[0].mxu0
  %2521 = vmatprep.mubr.f32.mxu0 0.0
  %2522 = vmatmul.mubr.f32.gmra.mrb[0].mxu0 %v2420
  %v2523 = vpop.f32.mrb[0].mxu0
  %v2524 = vadd.f32 0.0, %v2523
  %v2525 = vpop.f32.mrb[0].mxu0
  %2526 = vmatprep.mubr.f32.mxu0 0.0
  %2527 = vmatmul.mubr.f32.gmra.mrb[0].mxu0 %v2423
  %v2528 = vpop.f32.mrb[0].mxu0
  %v2529 = vadd.f32 0.0, %v2528
  %v2530 = vpop.f32.mrb[0].mxu0
  %2531 = vmatprep.mubr.f32.mxu0 0.0
  %2532 = vmatmul.mubr.f32.gmra.mrb[0].mxu0 %v2426
  %v2533 = vpop.f32.mrb[0].mxu0
  %v2534 = vadd.f32 0.0, %v2533
  %v2535 = vpop.f32.mrb[0].mxu0
  %2536 = vmatprep.mubr.f32.mxu0 0.0
  %2537 = vmatmul.mubr.f32.gmra.mrb[0].mxu0 %v2429
  %v2538 = vpop.f32.mrb[0].mxu0
  %v2539 = vadd.f32 0.0, %v2538
  %v2540 = vpop.f32.mrb[0].mxu0
  %2541 = vmatprep.mubr.f32.mxu0 0.0
  %2542 = vmatmul.mubr.f32.gmra.mrb[0].mxu0 %v2432
  %v2543 = vpop.f32.mrb[0].mxu0
  %v2544 = vadd.f32 0.0, %v2543
  %v2545 = vpop.f32.mrb[0].mxu0
  %2546 = vmatprep.mubr.f32.mxu0 0.0
  %2547 = vmatmul.mubr.f32.gmra.mrb[0].mxu0 %v2435
  %v2548 = vpop.f32.mrb[0].mxu0
  %v2549 = vadd.f32 0.0, %v2548
  %v2550 = vpop.f32.mrb[0].mxu0
  %2551 = vmatprep.mubr.f32.mxu0 0.0
  %2552 = vmatmul.mubr.f32.gmra.mrb[0].mxu0 %v2438
  %v2553 = vpop.f32.mrb[0].mxu0
  %v2554 = vadd.f32 0.0, %v2553
  %v2555 = vpop.f32.mrb[0].mxu0
  %2556 = vmatprep.mubr.f32.mxu0 0.0
  %2557 = vmatmul.mubr.f32.gmra.mrb[0].mxu0 %v2441
  %v2558 = vpop.f32.mrb[0].mxu0
  %v2559 = vadd.f32 0.0, %v2558
  %v2560 = vpop.f32.mrb[0].mxu0
  %2561 = vmatprep.mubr.f32.mxu0 0.0
  %2562 = vmatmul.mubr.f32.gmra.mrb[0].mxu0 %v2444
  %v2563 = vpop.f32.mrb[0].mxu0
  %v2564 = vadd.f32 0.0, %v2563
  %v2565 = vpop.f32.mrb[0].mxu0
  %2566 = vmatprep.mubr.f32.mxu0 0.0
  %2567 = vmatmul.mubr.f32.gmra.mrb[0].mxu0 %v2447
  %v2568 = vpop.f32.mrb[0].mxu0
  %v2569 = vadd.f32 0.0, %v2568
  %v2570 = vpop.f32.mrb[0].mxu0
  %2571 = vmatprep.mubr.f32.mxu0 0.0
  %2572 = vmatmul.mubr.f32.gmra.mrb[0].mxu0 %v2450
  %v2573 = vpop.f32.mrb[0].mxu0
  %v2574 = vadd.f32 0.0, %v2573
  %v2575 = vpop.f32.mrb[0].mxu0
  %2576 = vdwg.mxu0
  %v2578 = vsel %vm216, %v2117, 0
  %v2581 = vsel %vm216, %v2122, 0
  %v2584 = vsel %vm216, %v2127, 0
  %v2587 = vsel %vm216, %v2132, 0
  %v2590 = vsel %vm216, %v2137, 0
  %v2593 = vsel %vm216, %v2142, 0
  %v2596 = vsel %vm216, %v2147, 0
  %v2599 = vsel %vm216, %v2152, 0
  %v2602 = vsel %vm216, %v2157, 0
  %v2605 = vsel %vm216, %v2162, 0
  %v2608 = vsel %vm216, %v2167, 0
  %v2611 = vsel %vm216, %v2172, 0
  %2613 = vmatprep.subr.mxu0 0.0
  %2614 = vmatpush1.msra.mxu0 %v2408
  %2615 = vmatprep.subr.mxu0 0.0
  %2616 = vmatpush1.msra.mxu0 %v2409
  %2617 = vmatprep.subr.mxu0 0.0
  %2618 = vmatpush1.msra.mxu0 %v2410
  %2619 = vmatprep.subr.mxu0 0.0
  %2620 = vmatpush1.msra.mxu0 %v2411
  %2621 = vmatprep.subr.mxu0 0.0
  %2622 = vmatpush1.msra.mxu0 0.0
  %2623 = vmatprep.subr.mxu0 0.0
  %2624 = vmatpush1.msra.mxu0 0.0
  %2625 = vmatprep.subr.mxu0 0.0
  %2626 = vmatpush1.msra.mxu0 0.0
  %2627 = vmatprep.subr.mxu0 0.0
  %2628 = vmatpush1.msra.mxu0 0.0
  %2629 = vmatprep.subr.mxu0 0.0
  %2630 = vmatpush1.msra.mxu0 0.0
  %2631 = vmatprep.subr.mxu0 0.0
  %2632 = vmatpush1.msra.mxu0 0.0
  %2633 = vmatprep.subr.mxu0 0.0
  %2634 = vmatpush1.msra.mxu0 0.0
  %2635 = vmatprep.subr.mxu0 0.0
  %2636 = vmatpush1.msra.mxu0 0.0
  %2637 = vmatprep.subr.mxu0 0.0
  %2638 = vmatpush1.msra.mxu0 0.0
  %2639 = vmatprep.subr.mxu0 0.0
  %2640 = vmatpush1.msra.mxu0 0.0
  %2641 = vmatprep.subr.mxu0 0.0
  %2642 = vmatpush1.msra.mxu0 0.0
  %2643 = vmatprep.subr.mxu0 0.0
  %2644 = vmatpush1.msra.mxu0 0.0
  %2645 = vmatprep.subr.mxu0 0.0
  %2646 = vmatpush1.msra.mxu0 0.0
  %2647 = vmatprep.subr.mxu0 0.0
  %2648 = vmatpush1.msra.mxu0 0.0
  %2649 = vmatprep.subr.mxu0 0.0
  %2650 = vmatpush1.msra.mxu0 0.0
  %2651 = vmatprep.subr.mxu0 0.0
  %2652 = vmatpush1.msra.mxu0 0.0
  %2653 = vmatprep.subr.mxu0 0.0
  %2654 = vmatpush1.msra.mxu0 0.0
  %2655 = vmatprep.subr.mxu0 0.0
  %2656 = vmatpush1.msra.mxu0 0.0
  %2657 = vmatprep.subr.mxu0 0.0
  %2658 = vmatpush1.msra.mxu0 0.0
  %2659 = vmatprep.subr.mxu0 0.0
  %2660 = vmatpush1.msra.mxu0 0.0
  %2661 = vmatprep.subr.mxu0 0.0
  %2662 = vmatpush1.msra.mxu0 0.0
  %2663 = vmatprep.subr.mxu0 0.0
  %2664 = vmatpush1.msra.mxu0 0.0
  %2665 = vmatprep.subr.mxu0 0.0
  %2666 = vmatpush1.msra.mxu0 0.0
  %2667 = vmatprep.subr.mxu0 0.0
  %2668 = vmatpush1.msra.mxu0 0.0
  %2669 = vmatprep.subr.mxu0 0.0
  %2670 = vmatpush1.msra.mxu0 0.0
  %2671 = vmatprep.subr.mxu0 0.0
  %2672 = vmatpush1.msra.mxu0 0.0
  %2673 = vmatprep.subr.mxu0 0.0
  %2674 = vmatpush1.msra.mxu0 0.0
  %2675 = vmatprep.subr.mxu0 0.0
  %2676 = vmatpush1.msra.mxu0 0.0
  %2677 = vmatprep.mubr.f32.mxu0 0.0
  %2678 = vmatmul.mubr.f32.gmra.mrb[0].mxu0 %v2578
  %v2679 = vpop.f32.mrb[0].mxu0
  %v2680 = vadd.f32 %v2519, %v2679
  %v2681 = vpop.f32.mrb[0].mxu0
  %2682 = vmatprep.mubr.f32.mxu0 0.0
  %2683 = vmatmul.mubr.f32.gmra.mrb[0].mxu0 %v2581
  %v2684 = vpop.f32.mrb[0].mxu0
  %v2685 = vadd.f32 %v2524, %v2684
  %v2686 = vpop.f32.mrb[0].mxu0
  %2687 = vmatprep.mubr.f32.mxu0 0.0
  %2688 = vmatmul.mubr.f32.gmra.mrb[0].mxu0 %v2584
  %v2689 = vpop.f32.mrb[0].mxu0
  %v2690 = vadd.f32 %v2529, %v2689
  %v2691 = vpop.f32.mrb[0].mxu0
  %2692 = vmatprep.mubr.f32.mxu0 0.0
  %2693 = vmatmul.mubr.f32.gmra.mrb[0].mxu0 %v2587
  %v2694 = vpop.f32.mrb[0].mxu0
  %v2695 = vadd.f32 %v2534, %v2694
  %v2696 = vpop.f32.mrb[0].mxu0
  %2697 = vmatprep.mubr.f32.mxu0 0.0
  %2698 = vmatmul.mubr.f32.gmra.mrb[0].mxu0 %v2590
  %v2699 = vpop.f32.mrb[0].mxu0
  %v2700 = vadd.f32 %v2539, %v2699
  %v2701 = vpop.f32.mrb[0].mxu0
  %2702 = vmatprep.mubr.f32.mxu0 0.0
  %2703 = vmatmul.mubr.f32.gmra.mrb[0].mxu0 %v2593
  %v2704 = vpop.f32.mrb[0].mxu0
  %v2705 = vadd.f32 %v2544, %v2704
  %v2706 = vpop.f32.mrb[0].mxu0
  %2707 = vmatprep.mubr.f32.mxu0 0.0
  %2708 = vmatmul.mubr.f32.gmra.mrb[0].mxu0 %v2596
  %v2709 = vpop.f32.mrb[0].mxu0
  %v2710 = vadd.f32 %v2549, %v2709
  %v2711 = vpop.f32.mrb[0].mxu0
  %2712 = vmatprep.mubr.f32.mxu0 0.0
  %2713 = vmatmul.mubr.f32.gmra.mrb[0].mxu0 %v2599
  %v2714 = vpop.f32.mrb[0].mxu0
  %v2715 = vadd.f32 %v2554, %v2714
  %v2716 = vpop.f32.mrb[0].mxu0
  %2717 = vmatprep.mubr.f32.mxu0 0.0
  %2718 = vmatmul.mubr.f32.gmra.mrb[0].mxu0 %v2602
  %v2719 = vpop.f32.mrb[0].mxu0
  %v2720 = vadd.f32 %v2559, %v2719
  %v2721 = vpop.f32.mrb[0].mxu0
  %2722 = vmatprep.mubr.f32.mxu0 0.0
  %2723 = vmatmul.mubr.f32.gmra.mrb[0].mxu0 %v2605
  %v2724 = vpop.f32.mrb[0].mxu0
  %v2725 = vadd.f32 %v2564, %v2724
  %v2726 = vpop.f32.mrb[0].mxu0
  %2727 = vmatprep.mubr.f32.mxu0 0.0
  %2728 = vmatmul.mubr.f32.gmra.mrb[0].mxu0 %v2608
  %v2729 = vpop.f32.mrb[0].mxu0
  %v2730 = vadd.f32 %v2569, %v2729
  %v2731 = vpop.f32.mrb[0].mxu0
  %2732 = vmatprep.mubr.f32.mxu0 0.0
  %2733 = vmatmul.mubr.f32.gmra.mrb[0].mxu0 %v2611
  %v2734 = vpop.f32.mrb[0].mxu0
  %v2735 = vadd.f32 %v2574, %v2734
  %v2736 = vpop.f32.mrb[0].mxu0
  %2737 = vdwg.mxu0
  %v2738 = vld [vmem:[%s9 + $0x208] sm:$0xff]
  %v2739 = vld [vmem:[%s9 + $0x210] sm:$0xff]
  %v2740 = vld [vmem:[%s9 + $0x218] sm:$0xff]
  %v2741 = vld [vmem:[%s9 + $0x220] sm:$0xff]
  %v2743 = vsel %vm216, %v1408, 0
  %v2746 = vsel %vm216, %v1409, 0
  %v2749 = vsel %vm216, %v1410, 0
  %v2752 = vsel %vm216, %v1411, 0
  %v2755 = vsel %vm216, %v1412, 0
  %v2758 = vsel %vm216, %v1413, 0
  %v2761 = vsel %vm216, %v1414, 0
  %v2764 = vsel %vm216, %v1415, 0
  %v2767 = vsel %vm216, %v1416, 0
  %v2770 = vsel %vm216, %v1417, 0
  %v2773 = vsel %vm216, %v1418, 0
  %v2776 = vsel %vm216, %v1419, 0
  %2778 = vmatprep.subr.mxu0 0.0
  %2779 = vmatpush1.msra.mxu0 %v2738
  %2780 = vmatprep.subr.mxu0 0.0
  %2781 = vmatpush1.msra.mxu0 %v2739
  %2782 = vmatprep.subr.mxu0 0.0
  %2783 = vmatpush1.msra.mxu0 %v2740
  %2784 = vmatprep.subr.mxu0 0.0
  %2785 = vmatpush1.msra.mxu0 %v2741
  %2786 = vmatprep.subr.mxu0 0.0
  %2787 = vmatpush1.msra.mxu0 0.0
  %2788 = vmatprep.subr.mxu0 0.0
  %2789 = vmatpush1.msra.mxu0 0.0
  %2790 = vmatprep.subr.mxu0 0.0
  %2791 = vmatpush1.msra.mxu0 0.0
  %2792 = vmatprep.subr.mxu0 0.0
  %2793 = vmatpush1.msra.mxu0 0.0
  %2794 = vmatprep.subr.mxu0 0.0
  %2795 = vmatpush1.msra.mxu0 0.0
  %2796 = vmatprep.subr.mxu0 0.0
  %2797 = vmatpush1.msra.mxu0 0.0
  %2798 = vmatprep.subr.mxu0 0.0
  %2799 = vmatpush1.msra.mxu0 0.0
  %2800 = vmatprep.subr.mxu0 0.0
  %2801 = vmatpush1.msra.mxu0 0.0
  %2802 = vmatprep.subr.mxu0 0.0
  %2803 = vmatpush1.msra.mxu0 0.0
  %2804 = vmatprep.subr.mxu0 0.0
  %2805 = vmatpush1.msra.mxu0 0.0
  %2806 = vmatprep.subr.mxu0 0.0
  %2807 = vmatpush1.msra.mxu0 0.0
  %2808 = vmatprep.subr.mxu0 0.0
  %2809 = vmatpush1.msra.mxu0 0.0
  %2810 = vmatprep.subr.mxu0 0.0
  %2811 = vmatpush1.msra.mxu0 0.0
  %2812 = vmatprep.subr.mxu0 0.0
  %2813 = vmatpush1.msra.mxu0 0.0
  %2814 = vmatprep.subr.mxu0 0.0
  %2815 = vmatpush1.msra.mxu0 0.0
  %2816 = vmatprep.subr.mxu0 0.0
  %2817 = vmatpush1.msra.mxu0 0.0
  %2818 = vmatprep.subr.mxu0 0.0
  %2819 = vmatpush1.msra.mxu0 0.0
  %2820 = vmatprep.subr.mxu0 0.0
  %2821 = vmatpush1.msra.mxu0 0.0
  %2822 = vmatprep.subr.mxu0 0.0
  %2823 = vmatpush1.msra.mxu0 0.0
  %2824 = vmatprep.subr.mxu0 0.0
  %2825 = vmatpush1.msra.mxu0 0.0
  %2826 = vmatprep.subr.mxu0 0.0
  %2827 = vmatpush1.msra.mxu0 0.0
  %2828 = vmatprep.subr.mxu0 0.0
  %2829 = vmatpush1.msra.mxu0 0.0
  %2830 = vmatprep.subr.mxu0 0.0
  %2831 = vmatpush1.msra.mxu0 0.0
  %2832 = vmatprep.subr.mxu0 0.0
  %2833 = vmatpush1.msra.mxu0 0.0
  %2834 = vmatprep.subr.mxu0 0.0
  %2835 = vmatpush1.msra.mxu0 0.0
  %2836 = vmatprep.subr.mxu0 0.0
  %2837 = vmatpush1.msra.mxu0 0.0
  %2838 = vmatprep.subr.mxu0 0.0
  %2839 = vmatpush1.msra.mxu0 0.0
  %2840 = vmatprep.subr.mxu0 0.0
  %2841 = vmatpush1.msra.mxu0 0.0
  %2842 = vmatprep.mubr.f32.mxu0 0.0
  %2843 = vmatmul.mubr.f32.gmra.mrb[0].mxu0 %v2743
  %v2844 = vpop.f32.mrb[0].mxu0
  %v2845 = vadd.f32 0.0, %v2844
  %v2846 = vpop.f32.mrb[0].mxu0
  %2847 = vmatprep.mubr.f32.mxu0 0.0
  %2848 = vmatmul.mubr.f32.gmra.mrb[0].mxu0 %v2746
  %v2849 = vpop.f32.mrb[0].mxu0
  %v2850 = vadd.f32 0.0, %v2849
  %v2851 = vpop.f32.mrb[0].mxu0
  %2852 = vmatprep.mubr.f32.mxu0 0.0
  %2853 = vmatmul.mubr.f32.gmra.mrb[0].mxu0 %v2749
  %v2854 = vpop.f32.mrb[0].mxu0
  %v2855 = vadd.f32 0.0, %v2854
  %v2856 = vpop.f32.mrb[0].mxu0
  %2857 = vmatprep.mubr.f32.mxu0 0.0
  %2858 = vmatmul.mubr.f32.gmra.mrb[0].mxu0 %v2752
  %v2859 = vpop.f32.mrb[0].mxu0
  %v2860 = vadd.f32 0.0, %v2859
  %v2861 = vpop.f32.mrb[0].mxu0
  %2862 = vmatprep.mubr.f32.mxu0 0.0
  %2863 = vmatmul.mubr.f32.gmra.mrb[0].mxu0 %v2755
  %v2864 = vpop.f32.mrb[0].mxu0
  %v2865 = vadd.f32 0.0, %v2864
  %v2866 = vpop.f32.mrb[0].mxu0
  %2867 = vmatprep.mubr.f32.mxu0 0.0
  %2868 = vmatmul.mubr.f32.gmra.mrb[0].mxu0 %v2758
  %v2869 = vpop.f32.mrb[0].mxu0
  %v2870 = vadd.f32 0.0, %v2869
  %v2871 = vpop.f32.mrb[0].mxu0
  %2872 = vmatprep.mubr.f32.mxu0 0.0
  %2873 = vmatmul.mubr.f32.gmra.mrb[0].mxu0 %v2761
  %v2874 = vpop.f32.mrb[0].mxu0
  %v2875 = vadd.f32 0.0, %v2874
  %v2876 = vpop.f32.mrb[0].mxu0
  %2877 = vmatprep.mubr.f32.mxu0 0.0
  %2878 = vmatmul.mubr.f32.gmra.mrb[0].mxu0 %v2764
  %v2879 = vpop.f32.mrb[0].mxu0
  %v2880 = vadd.f32 0.0, %v2879
  %v2881 = vpop.f32.mrb[0].mxu0
  %2882 = vmatprep.mubr.f32.mxu0 0.0
  %2883 = vmatmul.mubr.f32.gmra.mrb[0].mxu0 %v2767
  %v2884 = vpop.f32.mrb[0].mxu0
  %v2885 = vadd.f32 0.0, %v2884
  %v2886 = vpop.f32.mrb[0].mxu0
  %2887 = vmatprep.mubr.f32.mxu0 0.0
  %2888 = vmatmul.mubr.f32.gmra.mrb[0].mxu0 %v2770
  %v2889 = vpop.f32.mrb[0].mxu0
  %v2890 = vadd.f32 0.0, %v2889
  %v2891 = vpop.f32.mrb[0].mxu0
  %2892 = vmatprep.mubr.f32.mxu0 0.0
  %2893 = vmatmul.mubr.f32.gmra.mrb[0].mxu0 %v2773
  %v2894 = vpop.f32.mrb[0].mxu0
  %v2895 = vadd.f32 0.0, %v2894
  %v2896 = vpop.f32.mrb[0].mxu0
  %2897 = vmatprep.mubr.f32.mxu0 0.0
  %2898 = vmatmul.mubr.f32.gmra.mrb[0].mxu0 %v2776
  %v2899 = vpop.f32.mrb[0].mxu0
  %v2900 = vadd.f32 0.0, %v2899
  %v2901 = vpop.f32.mrb[0].mxu0
  %2902 = vdwg.mxu0
  %v2903 = vadd.f32 %v2680, %v2845
  %v2904 = vadd.f32 %v2685, %v2850
  %v2905 = vadd.f32 %v2690, %v2855
  %v2906 = vadd.f32 %v2695, %v2860
  %v2907 = vadd.f32 %v2700, %v2865
  %v2908 = vadd.f32 %v2705, %v2870
  %v2909 = vadd.f32 %v2710, %v2875
  %v2910 = vadd.f32 %v2715, %v2880
  %v2911 = vadd.f32 %v2720, %v2885
  %v2912 = vadd.f32 %v2725, %v2890
  %v2913 = vadd.f32 %v2730, %v2895
  %v2914 = vadd.f32 %v2735, %v2900
  %v2915 = vld [vmem:[%s9 + $0x228] sm:$0x1]
  %v2916 = vlaneseq
  %v2917 = vshrl.u32 %v2916, 7
  %v2918 = vsub.s32 0, %v2917
  %v2919 = vrot.slane %v2915, %v2918
  %v2920 = vadd.f32 %v2903, %v2919
  %v2921 = vadd.f32 %v2904, %v2919
  %v2922 = vadd.f32 %v2905, %v2919
  %v2923 = vadd.f32 %v2906, %v2919
  %v2924 = vadd.f32 %v2907, %v2919
  %v2925 = vadd.f32 %v2908, %v2919
  %v2926 = vadd.f32 %v2909, %v2919
  %v2927 = vadd.f32 %v2910, %v2919
  %v2928 = vadd.f32 %v2911, %v2919
  %v2929 = vadd.f32 %v2912, %v2919
  %v2930 = vadd.f32 %v2913, %v2919
  %v2931 = vadd.f32 %v2914, %v2919
  %v2932 = vmax.f32 %v2920, 0.0
  %v2933 = vmax.f32 %v2921, 0.0
  %v2934 = vmax.f32 %v2922, 0.0
  %v2935 = vmax.f32 %v2923, 0.0
  %v2936 = vmax.f32 %v2924, 0.0
  %v2937 = vmax.f32 %v2925, 0.0
  %v2938 = vmax.f32 %v2926, 0.0
  %v2939 = vmax.f32 %v2927, 0.0
  %v2940 = vmax.f32 %v2928, 0.0
  %v2941 = vmax.f32 %v2929, 0.0
  %v2942 = vmax.f32 %v2930, 0.0
  %v2943 = vmax.f32 %v2931, 0.0
  %v2944 = vld [vmem:[%s9 + $0x230] sm:$0xff]
  %v2945 = vld [vmem:[%s9 + $0x238] sm:$0xff]
  %v2946 = vld [vmem:[%s9 + $0x240] sm:$0xff]
  %v2947 = vld [vmem:[%s9 + $0x248] sm:$0xff]
  %v2948 = vld [vmem:[%s9 + $0x250] sm:$0x1]
  %v2949 = vlaneseq
  %v2950 = vshrl.u32 %v2949, 7
  %v2951 = vsub.s32 0, %v2950
  %v2952 = vrot.slane %v2948, %v2951
  %v2954 = vsel %vm216, %v2932, 0
  %v2957 = vsel %vm216, %v2933, 0
  %v2960 = vsel %vm216, %v2934, 0
  %v2963 = vsel %vm216, %v2935, 0
  %v2966 = vsel %vm216, %v2936, 0
  %v2969 = vsel %vm216, %v2937, 0
  %v2972 = vsel %vm216, %v2938, 0
  %v2975 = vsel %vm216, %v2939, 0
  %v2978 = vsel %vm216, %v2940, 0
  %v2981 = vsel %vm216, %v2941, 0
  %v2984 = vsel %vm216, %v2942, 0
  %v2987 = vsel %vm216, %v2943, 0
  %2989 = vmatprep.subr.mxu0 0.0
  %2990 = vmatpush1.msra.mxu0 %v2944
  %2991 = vmatprep.subr.mxu0 0.0
  %2992 = vmatpush1.msra.mxu0 %v2945
  %2993 = vmatprep.subr.mxu0 0.0
  %2994 = vmatpush1.msra.mxu0 %v2946
  %2995 = vmatprep.subr.mxu0 0.0
  %2996 = vmatpush1.msra.mxu0 %v2947
  %2997 = vmatprep.subr.mxu0 0.0
  %2998 = vmatpush1.msra.mxu0 0.0
  %2999 = vmatprep.subr.mxu0 0.0
  %3000 = vmatpush1.msra.mxu0 0.0
  %3001 = vmatprep.subr.mxu0 0.0
  %3002 = vmatpush1.msra.mxu0 0.0
  %3003 = vmatprep.subr.mxu0 0.0
  %3004 = vmatpush1.msra.mxu0 0.0
  %3005 = vmatprep.subr.mxu0 0.0
  %3006 = vmatpush1.msra.mxu0 0.0
  %3007 = vmatprep.subr.mxu0 0.0
  %3008 = vmatpush1.msra.mxu0 0.0
  %3009 = vmatprep.subr.mxu0 0.0
  %3010 = vmatpush1.msra.mxu0 0.0
  %3011 = vmatprep.subr.mxu0 0.0
  %3012 = vmatpush1.msra.mxu0 0.0
  %3013 = vmatprep.subr.mxu0 0.0
  %3014 = vmatpush1.msra.mxu0 0.0
  %3015 = vmatprep.subr.mxu0 0.0
  %3016 = vmatpush1.msra.mxu0 0.0
  %3017 = vmatprep.subr.mxu0 0.0
  %3018 = vmatpush1.msra.mxu0 0.0
  %3019 = vmatprep.subr.mxu0 0.0
  %3020 = vmatpush1.msra.mxu0 0.0
  %3021 = vmatprep.subr.mxu0 0.0
  %3022 = vmatpush1.msra.mxu0 0.0
  %3023 = vmatprep.subr.mxu0 0.0
  %3024 = vmatpush1.msra.mxu0 0.0
  %3025 = vmatprep.subr.mxu0 0.0
  %3026 = vmatpush1.msra.mxu0 0.0
  %3027 = vmatprep.subr.mxu0 0.0
  %3028 = vmatpush1.msra.mxu0 0.0
  %3029 = vmatprep.subr.mxu0 0.0
  %3030 = vmatpush1.msra.mxu0 0.0
  %3031 = vmatprep.subr.mxu0 0.0
  %3032 = vmatpush1.msra.mxu0 0.0
  %3033 = vmatprep.subr.mxu0 0.0
  %3034 = vmatpush1.msra.mxu0 0.0
  %3035 = vmatprep.subr.mxu0 0.0
  %3036 = vmatpush1.msra.mxu0 0.0
  %3037 = vmatprep.subr.mxu0 0.0
  %3038 = vmatpush1.msra.mxu0 0.0
  %3039 = vmatprep.subr.mxu0 0.0
  %3040 = vmatpush1.msra.mxu0 0.0
  %3041 = vmatprep.subr.mxu0 0.0
  %3042 = vmatpush1.msra.mxu0 0.0
  %3043 = vmatprep.subr.mxu0 0.0
  %3044 = vmatpush1.msra.mxu0 0.0
  %3045 = vmatprep.subr.mxu0 0.0
  %3046 = vmatpush1.msra.mxu0 0.0
  %3047 = vmatprep.subr.mxu0 0.0
  %3048 = vmatpush1.msra.mxu0 0.0
  %3049 = vmatprep.subr.mxu0 0.0
  %3050 = vmatpush1.msra.mxu0 0.0
  %3051 = vmatprep.subr.mxu0 0.0
  %3052 = vmatpush1.msra.mxu0 0.0
  %3053 = vmatprep.mubr.f32.mxu0 0.0
  %3054 = vmatmul.mubr.f32.gmra.mrb[0].mxu0 %v2954
  %v3055 = vpop.f32.mrb[0].mxu0
  %v3056 = vadd.f32 %v2952, %v3055
  %v3057 = vpop.f32.mrb[0].mxu0
  %3058 = vmatprep.mubr.f32.mxu0 0.0
  %3059 = vmatmul.mubr.f32.gmra.mrb[0].mxu0 %v2957
  %v3060 = vpop.f32.mrb[0].mxu0
  %v3061 = vadd.f32 %v2952, %v3060
  %v3062 = vpop.f32.mrb[0].mxu0
  %3063 = vmatprep.mubr.f32.mxu0 0.0
  %3064 = vmatmul.mubr.f32.gmra.mrb[0].mxu0 %v2960
  %v3065 = vpop.f32.mrb[0].mxu0
  %v3066 = vadd.f32 %v2952, %v3065
  %v3067 = vpop.f32.mrb[0].mxu0
  %3068 = vmatprep.mubr.f32.mxu0 0.0
  %3069 = vmatmul.mubr.f32.gmra.mrb[0].mxu0 %v2963
  %v3070 = vpop.f32.mrb[0].mxu0
  %v3071 = vadd.f32 %v2952, %v3070
  %v3072 = vpop.f32.mrb[0].mxu0
  %3073 = vmatprep.mubr.f32.mxu0 0.0
  %3074 = vmatmul.mubr.f32.gmra.mrb[0].mxu0 %v2966
  %v3075 = vpop.f32.mrb[0].mxu0
  %v3076 = vadd.f32 %v2952, %v3075
  %v3077 = vpop.f32.mrb[0].mxu0
  %3078 = vmatprep.mubr.f32.mxu0 0.0
  %3079 = vmatmul.mubr.f32.gmra.mrb[0].mxu0 %v2969
  %v3080 = vpop.f32.mrb[0].mxu0
  %v3081 = vadd.f32 %v2952, %v3080
  %v3082 = vpop.f32.mrb[0].mxu0
  %3083 = vmatprep.mubr.f32.mxu0 0.0
  %3084 = vmatmul.mubr.f32.gmra.mrb[0].mxu0 %v2972
  %v3085 = vpop.f32.mrb[0].mxu0
  %v3086 = vadd.f32 %v2952, %v3085
  %v3087 = vpop.f32.mrb[0].mxu0
  %3088 = vmatprep.mubr.f32.mxu0 0.0
  %3089 = vmatmul.mubr.f32.gmra.mrb[0].mxu0 %v2975
  %v3090 = vpop.f32.mrb[0].mxu0
  %v3091 = vadd.f32 %v2952, %v3090
  %v3092 = vpop.f32.mrb[0].mxu0
  %3093 = vmatprep.mubr.f32.mxu0 0.0
  %3094 = vmatmul.mubr.f32.gmra.mrb[0].mxu0 %v2978
  %v3095 = vpop.f32.mrb[0].mxu0
  %v3096 = vadd.f32 %v2952, %v3095
  %v3097 = vpop.f32.mrb[0].mxu0
  %3098 = vmatprep.mubr.f32.mxu0 0.0
  %3099 = vmatmul.mubr.f32.gmra.mrb[0].mxu0 %v2981
  %v3100 = vpop.f32.mrb[0].mxu0
  %v3101 = vadd.f32 %v2952, %v3100
  %v3102 = vpop.f32.mrb[0].mxu0
  %3103 = vmatprep.mubr.f32.mxu0 0.0
  %3104 = vmatmul.mubr.f32.gmra.mrb[0].mxu0 %v2984
  %v3105 = vpop.f32.mrb[0].mxu0
  %v3106 = vadd.f32 %v2952, %v3105
  %v3107 = vpop.f32.mrb[0].mxu0
  %3108 = vmatprep.mubr.f32.mxu0 0.0
  %3109 = vmatmul.mubr.f32.gmra.mrb[0].mxu0 %v2987
  %v3110 = vpop.f32.mrb[0].mxu0
  %v3111 = vadd.f32 %v2952, %v3110
  %v3112 = vpop.f32.mrb[0].mxu0
  %3113 = vdwg.mxu0
  %v3114 = vmax.f32 %v3056, 0.0
  %v3115 = vmax.f32 %v3061, 0.0
  %v3116 = vmax.f32 %v3066, 0.0
  %v3117 = vmax.f32 %v3071, 0.0
  %v3118 = vmax.f32 %v3076, 0.0
  %v3119 = vmax.f32 %v3081, 0.0
  %v3120 = vmax.f32 %v3086, 0.0
  %v3121 = vmax.f32 %v3091, 0.0
  %v3122 = vmax.f32 %v3096, 0.0
  %v3123 = vmax.f32 %v3101, 0.0
  %v3124 = vmax.f32 %v3106, 0.0
  %v3125 = vmax.f32 %v3111, 0.0
  %v3126 = vld [vmem:[%s9 + $0x258] sm:$0xff]
  %v3127 = vld [vmem:[%s9 + $0x260] sm:$0xff]
  %v3128 = vld [vmem:[%s9 + $0x268] sm:$0xff]
  %v3129 = vld [vmem:[%s9 + $0x270] sm:$0xff]
  %v3130 = vld [vmem:[%s9 + $0x278] sm:$0x1]
  %v3131 = vlaneseq
  %v3132 = vshrl.u32 %v3131, 7
  %v3133 = vsub.s32 0, %v3132
  %v3134 = vrot.slane %v3130, %v3133
  %v3136 = vsel %vm216, %v3114, 0
  %v3139 = vsel %vm216, %v3115, 0
  %v3142 = vsel %vm216, %v3116, 0
  %v3145 = vsel %vm216, %v3117, 0
  %v3148 = vsel %vm216, %v3118, 0
  %v3151 = vsel %vm216, %v3119, 0
  %v3154 = vsel %vm216, %v3120, 0
  %v3157 = vsel %vm216, %v3121, 0
  %v3160 = vsel %vm216, %v3122, 0
  %v3163 = vsel %vm216, %v3123, 0
  %v3166 = vsel %vm216, %v3124, 0
  %v3169 = vsel %vm216, %v3125, 0
  %3171 = vmatprep.subr.mxu0 0.0
  %3172 = vmatpush1.msra.mxu0 %v3126
  %3173 = vmatprep.subr.mxu0 0.0
  %3174 = vmatpush1.msra.mxu0 %v3127
  %3175 = vmatprep.subr.mxu0 0.0
  %3176 = vmatpush1.msra.mxu0 %v3128
  %3177 = vmatprep.subr.mxu0 0.0
  %3178 = vmatpush1.msra.mxu0 %v3129
  %3179 = vmatprep.subr.mxu0 0.0
  %3180 = vmatpush1.msra.mxu0 0.0
  %3181 = vmatprep.subr.mxu0 0.0
  %3182 = vmatpush1.msra.mxu0 0.0
  %3183 = vmatprep.subr.mxu0 0.0
  %3184 = vmatpush1.msra.mxu0 0.0
  %3185 = vmatprep.subr.mxu0 0.0
  %3186 = vmatpush1.msra.mxu0 0.0
  %3187 = vmatprep.subr.mxu0 0.0
  %3188 = vmatpush1.msra.mxu0 0.0
  %3189 = vmatprep.subr.mxu0 0.0
  %3190 = vmatpush1.msra.mxu0 0.0
  %3191 = vmatprep.subr.mxu0 0.0
  %3192 = vmatpush1.msra.mxu0 0.0
  %3193 = vmatprep.subr.mxu0 0.0
  %3194 = vmatpush1.msra.mxu0 0.0
  %3195 = vmatprep.subr.mxu0 0.0
  %3196 = vmatpush1.msra.mxu0 0.0
  %3197 = vmatprep.subr.mxu0 0.0
  %3198 = vmatpush1.msra.mxu0 0.0
  %3199 = vmatprep.subr.mxu0 0.0
  %3200 = vmatpush1.msra.mxu0 0.0
  %3201 = vmatprep.subr.mxu0 0.0
  %3202 = vmatpush1.msra.mxu0 0.0
  %3203 = vmatprep.subr.mxu0 0.0
  %3204 = vmatpush1.msra.mxu0 0.0
  %3205 = vmatprep.subr.mxu0 0.0
  %3206 = vmatpush1.msra.mxu0 0.0
  %3207 = vmatprep.subr.mxu0 0.0
  %3208 = vmatpush1.msra.mxu0 0.0
  %3209 = vmatprep.subr.mxu0 0.0
  %3210 = vmatpush1.msra.mxu0 0.0
  %3211 = vmatprep.subr.mxu0 0.0
  %3212 = vmatpush1.msra.mxu0 0.0
  %3213 = vmatprep.subr.mxu0 0.0
  %3214 = vmatpush1.msra.mxu0 0.0
  %3215 = vmatprep.subr.mxu0 0.0
  %3216 = vmatpush1.msra.mxu0 0.0
  %3217 = vmatprep.subr.mxu0 0.0
  %3218 = vmatpush1.msra.mxu0 0.0
  %3219 = vmatprep.subr.mxu0 0.0
  %3220 = vmatpush1.msra.mxu0 0.0
  %3221 = vmatprep.subr.mxu0 0.0
  %3222 = vmatpush1.msra.mxu0 0.0
  %3223 = vmatprep.subr.mxu0 0.0
  %3224 = vmatpush1.msra.mxu0 0.0
  %3225 = vmatprep.subr.mxu0 0.0
  %3226 = vmatpush1.msra.mxu0 0.0
  %3227 = vmatprep.subr.mxu0 0.0
  %3228 = vmatpush1.msra.mxu0 0.0
  %3229 = vmatprep.subr.mxu0 0.0
  %3230 = vmatpush1.msra.mxu0 0.0
  %3231 = vmatprep.subr.mxu0 0.0
  %3232 = vmatpush1.msra.mxu0 0.0
  %3233 = vmatprep.subr.mxu0 0.0
  %3234 = vmatpush1.msra.mxu0 0.0
  %3235 = vmatprep.mubr.f32.mxu0 0.0
  %3236 = vmatmul.mubr.f32.gmra.mrb[0].mxu0 %v3136
  %v3237 = vpop.f32.mrb[0].mxu0
  %v3238 = vadd.f32 %v3134, %v3237
  %v3239 = vpop.f32.mrb[0].mxu0
  %3240 = vmatprep.mubr.f32.mxu0 0.0
  %3241 = vmatmul.mubr.f32.gmra.mrb[0].mxu0 %v3139
  %v3242 = vpop.f32.mrb[0].mxu0
  %v3243 = vadd.f32 %v3134, %v3242
  %v3244 = vpop.f32.mrb[0].mxu0
  %3245 = vmatprep.mubr.f32.mxu0 0.0
  %3246 = vmatmul.mubr.f32.gmra.mrb[0].mxu0 %v3142
  %v3247 = vpop.f32.mrb[0].mxu0
  %v3248 = vadd.f32 %v3134, %v3247
  %v3249 = vpop.f32.mrb[0].mxu0
  %3250 = vmatprep.mubr.f32.mxu0 0.0
  %3251 = vmatmul.mubr.f32.gmra.mrb[0].mxu0 %v3145
  %v3252 = vpop.f32.mrb[0].mxu0
  %v3253 = vadd.f32 %v3134, %v3252
  %v3254 = vpop.f32.mrb[0].mxu0
  %3255 = vmatprep.mubr.f32.mxu0 0.0
  %3256 = vmatmul.mubr.f32.gmra.mrb[0].mxu0 %v3148
  %v3257 = vpop.f32.mrb[0].mxu0
  %v3258 = vadd.f32 %v3134, %v3257
  %v3259 = vpop.f32.mrb[0].mxu0
  %3260 = vmatprep.mubr.f32.mxu0 0.0
  %3261 = vmatmul.mubr.f32.gmra.mrb[0].mxu0 %v3151
  %v3262 = vpop.f32.mrb[0].mxu0
  %v3263 = vadd.f32 %v3134, %v3262
  %v3264 = vpop.f32.mrb[0].mxu0
  %3265 = vmatprep.mubr.f32.mxu0 0.0
  %3266 = vmatmul.mubr.f32.gmra.mrb[0].mxu0 %v3154
  %v3267 = vpop.f32.mrb[0].mxu0
  %v3268 = vadd.f32 %v3134, %v3267
  %v3269 = vpop.f32.mrb[0].mxu0
  %3270 = vmatprep.mubr.f32.mxu0 0.0
  %3271 = vmatmul.mubr.f32.gmra.mrb[0].mxu0 %v3157
  %v3272 = vpop.f32.mrb[0].mxu0
  %v3273 = vadd.f32 %v3134, %v3272
  %v3274 = vpop.f32.mrb[0].mxu0
  %3275 = vmatprep.mubr.f32.mxu0 0.0
  %3276 = vmatmul.mubr.f32.gmra.mrb[0].mxu0 %v3160
  %v3277 = vpop.f32.mrb[0].mxu0
  %v3278 = vadd.f32 %v3134, %v3277
  %v3279 = vpop.f32.mrb[0].mxu0
  %3280 = vmatprep.mubr.f32.mxu0 0.0
  %3281 = vmatmul.mubr.f32.gmra.mrb[0].mxu0 %v3163
  %v3282 = vpop.f32.mrb[0].mxu0
  %v3283 = vadd.f32 %v3134, %v3282
  %v3284 = vpop.f32.mrb[0].mxu0
  %3285 = vmatprep.mubr.f32.mxu0 0.0
  %3286 = vmatmul.mubr.f32.gmra.mrb[0].mxu0 %v3166
  %v3287 = vpop.f32.mrb[0].mxu0
  %v3288 = vadd.f32 %v3134, %v3287
  %v3289 = vpop.f32.mrb[0].mxu0
  %3290 = vmatprep.mubr.f32.mxu0 0.0
  %3291 = vmatmul.mubr.f32.gmra.mrb[0].mxu0 %v3169
  %v3292 = vpop.f32.mrb[0].mxu0
  %v3293 = vadd.f32 %v3134, %v3292
  %v3294 = vpop.f32.mrb[0].mxu0
  %3295 = vdwg.mxu0
  %v3296 = vld [vmem:[%s9 + $0x280] sm:$0x1]
  %v3297 = vld [vmem:[%s9 + $0x288] sm:$0x1]
  %v3298 = vsel %vm216, %v3238, 0.0
  %3299 = vadd.xlane.f32.xlu0 %v3298
  %v3300 = vpop.xlane.xlu0 %3299
  %v3301 = vsel %vm216, %v3243, 0.0
  %3302 = vadd.xlane.f32.xlu0 %v3301
  %v3303 = vpop.xlane.xlu0 %3302
  %v3304 = vsel %vm216, %v3248, 0.0
  %3305 = vadd.xlane.f32.xlu0 %v3304
  %v3306 = vpop.xlane.xlu0 %3305
  %v3307 = vsel %vm216, %v3253, 0.0
  %3308 = vadd.xlane.f32.xlu0 %v3307
  %v3309 = vpop.xlane.xlu0 %3308
  %v3310 = vsel %vm216, %v3258, 0.0
  %3311 = vadd.xlane.f32.xlu0 %v3310
  %v3312 = vpop.xlane.xlu0 %3311
  %v3313 = vsel %vm216, %v3263, 0.0
  %3314 = vadd.xlane.f32.xlu0 %v3313
  %v3315 = vpop.xlane.xlu0 %3314
  %v3316 = vsel %vm216, %v3268, 0.0
  %3317 = vadd.xlane.f32.xlu0 %v3316
  %v3318 = vpop.xlane.xlu0 %3317
  %v3319 = vsel %vm216, %v3273, 0.0
  %3320 = vadd.xlane.f32.xlu0 %v3319
  %v3321 = vpop.xlane.xlu0 %3320
  %v3322 = vsel %vm216, %v3278, 0.0
  %3323 = vadd.xlane.f32.xlu0 %v3322
  %v3324 = vpop.xlane.xlu0 %3323
  %v3325 = vsel %vm216, %v3283, 0.0
  %3326 = vadd.xlane.f32.xlu0 %v3325
  %v3327 = vpop.xlane.xlu0 %3326
  %v3328 = vsel %vm216, %v3288, 0.0
  %3329 = vadd.xlane.f32.xlu0 %v3328
  %v3330 = vpop.xlane.xlu0 %3329
  %v3331 = vsel %vm216, %v3293, 0.0
  %3332 = vadd.xlane.f32.xlu0 %v3331
  %v3333 = vpop.xlane.xlu0 %3332
  %v3334 = vmul.f32 %v3300, %v558
  %v3335 = vmul.f32 %v3303, %v558
  %v3336 = vmul.f32 %v3306, %v558
  %v3337 = vmul.f32 %v3309, %v558
  %v3338 = vmul.f32 %v3312, %v558
  %v3339 = vmul.f32 %v3315, %v558
  %v3340 = vmul.f32 %v3318, %v558
  %v3341 = vmul.f32 %v3321, %v558
  %v3342 = vmul.f32 %v3324, %v558
  %v3343 = vmul.f32 %v3327, %v558
  %v3344 = vmul.f32 %v3330, %v558
  %v3345 = vmul.f32 %v3333, %v558
  %v3346 = vsub.f32 %v3238, %v3334
  %v3347 = vsub.f32 %v3243, %v3335
  %v3348 = vsub.f32 %v3248, %v3336
  %v3349 = vsub.f32 %v3253, %v3337
  %v3350 = vsub.f32 %v3258, %v3338
  %v3351 = vsub.f32 %v3263, %v3339
  %v3352 = vsub.f32 %v3268, %v3340
  %v3353 = vsub.f32 %v3273, %v3341
  %v3354 = vsub.f32 %v3278, %v3342
  %v3355 = vsub.f32 %v3283, %v3343
  %v3356 = vsub.f32 %v3288, %v3344
  %v3357 = vsub.f32 %v3293, %v3345
  %v3358 = vmul.f32 %v3346, %v3346
  %v3359 = vmul.f32 %v3347, %v3347
  %v3360 = vmul.f32 %v3348, %v3348
  %v3361 = vmul.f32 %v3349, %v3349
  %v3362 = vmul.f32 %v3350, %v3350
  %v3363 = vmul.f32 %v3351, %v3351
  %v3364 = vmul.f32 %v3352, %v3352
  %v3365 = vmul.f32 %v3353, %v3353
  %v3366 = vmul.f32 %v3354, %v3354
  %v3367 = vmul.f32 %v3355, %v3355
  %v3368 = vmul.f32 %v3356, %v3356
  %v3369 = vmul.f32 %v3357, %v3357
  %v3370 = vsel %vm216, %v3358, 0.0
  %3371 = vadd.xlane.f32.xlu0 %v3370
  %v3372 = vpop.xlane.xlu0 %3371
  %v3373 = vsel %vm216, %v3359, 0.0
  %3374 = vadd.xlane.f32.xlu0 %v3373
  %v3375 = vpop.xlane.xlu0 %3374
  %v3376 = vsel %vm216, %v3360, 0.0
  %3377 = vadd.xlane.f32.xlu0 %v3376
  %v3378 = vpop.xlane.xlu0 %3377
  %v3379 = vsel %vm216, %v3361, 0.0
  %3380 = vadd.xlane.f32.xlu0 %v3379
  %v3381 = vpop.xlane.xlu0 %3380
  %v3382 = vsel %vm216, %v3362, 0.0
  %3383 = vadd.xlane.f32.xlu0 %v3382
  %v3384 = vpop.xlane.xlu0 %3383
  %v3385 = vsel %vm216, %v3363, 0.0
  %3386 = vadd.xlane.f32.xlu0 %v3385
  %v3387 = vpop.xlane.xlu0 %3386
  %v3388 = vsel %vm216, %v3364, 0.0
  %3389 = vadd.xlane.f32.xlu0 %v3388
  %v3390 = vpop.xlane.xlu0 %3389
  %v3391 = vsel %vm216, %v3365, 0.0
  %3392 = vadd.xlane.f32.xlu0 %v3391
  %v3393 = vpop.xlane.xlu0 %3392
  %v3394 = vsel %vm216, %v3366, 0.0
  %3395 = vadd.xlane.f32.xlu0 %v3394
  %v3396 = vpop.xlane.xlu0 %3395
  %v3397 = vsel %vm216, %v3367, 0.0
  %3398 = vadd.xlane.f32.xlu0 %v3397
  %v3399 = vpop.xlane.xlu0 %3398
  %v3400 = vsel %vm216, %v3368, 0.0
  %3401 = vadd.xlane.f32.xlu0 %v3400
  %v3402 = vpop.xlane.xlu0 %3401
  %v3403 = vsel %vm216, %v3369, 0.0
  %3404 = vadd.xlane.f32.xlu0 %v3403
  %v3405 = vpop.xlane.xlu0 %3404
  %v3406 = vmul.f32 %v3372, %v558
  %v3407 = vmul.f32 %v3375, %v558
  %v3408 = vmul.f32 %v3378, %v558
  %v3409 = vmul.f32 %v3381, %v558
  %v3410 = vmul.f32 %v3384, %v558
  %v3411 = vmul.f32 %v3387, %v558
  %v3412 = vmul.f32 %v3390, %v558
  %v3413 = vmul.f32 %v3393, %v558
  %v3414 = vmul.f32 %v3396, %v558
  %v3415 = vmul.f32 %v3399, %v558
  %v3416 = vmul.f32 %v3402, %v558
  %v3417 = vmul.f32 %v3405, %v558
  %v3418 = vadd.f32 %v3406, 1e-05
  %v3419 = vadd.f32 %v3407, 1e-05
  %v3420 = vadd.f32 %v3408, 1e-05
  %v3421 = vadd.f32 %v3409, 1e-05
  %v3422 = vadd.f32 %v3410, 1e-05
  %v3423 = vadd.f32 %v3411, 1e-05
  %v3424 = vadd.f32 %v3412, 1e-05
  %v3425 = vadd.f32 %v3413, 1e-05
  %v3426 = vadd.f32 %v3414, 1e-05
  %v3427 = vadd.f32 %v3415, 1e-05
  %v3428 = vadd.f32 %v3416, 1e-05
  %v3429 = vadd.f32 %v3417, 1e-05
  %v3430 = vrsqrt.pop %v3418
  %v3431 = vrsqrt.pop %v3419
  %v3432 = vrsqrt.pop %v3420
  %v3433 = vrsqrt.pop %v3421
  %v3434 = vrsqrt.pop %v3422
  %v3435 = vrsqrt.pop %v3423
  %v3436 = vrsqrt.pop %v3424
  %v3437 = vrsqrt.pop %v3425
  %v3438 = vrsqrt.pop %v3426
  %v3439 = vrsqrt.pop %v3427
  %v3440 = vrsqrt.pop %v3428
  %v3441 = vrsqrt.pop %v3429
  %v3442 = vmul.f32 %v3346, %v3430
  %v3443 = vmul.f32 %v3347, %v3431
  %v3444 = vmul.f32 %v3348, %v3432
  %v3445 = vmul.f32 %v3349, %v3433
  %v3446 = vmul.f32 %v3350, %v3434
  %v3447 = vmul.f32 %v3351, %v3435
  %v3448 = vmul.f32 %v3352, %v3436
  %v3449 = vmul.f32 %v3353, %v3437
  %v3450 = vmul.f32 %v3354, %v3438
  %v3451 = vmul.f32 %v3355, %v3439
  %v3452 = vmul.f32 %v3356, %v3440
  %v3453 = vmul.f32 %v3357, %v3441
  %v3454 = vlaneseq
  %v3455 = vshrl.u32 %v3454, 7
  %v3456 = vsub.s32 0, %v3455
  %v3457 = vrot.slane %v3296, %v3456
  %v3458 = vmul.f32 %v3442, %v3457
  %v3459 = vmul.f32 %v3443, %v3457
  %v3460 = vmul.f32 %v3444, %v3457
  %v3461 = vmul.f32 %v3445, %v3457
  %v3462 = vmul.f32 %v3446, %v3457
  %v3463 = vmul.f32 %v3447, %v3457
  %v3464 = vmul.f32 %v3448, %v3457
  %v3465 = vmul.f32 %v3449, %v3457
  %v3466 = vmul.f32 %v3450, %v3457
  %v3467 = vmul.f32 %v3451, %v3457
  %v3468 = vmul.f32 %v3452, %v3457
  %v3469 = vmul.f32 %v3453, %v3457
  %v3470 = vlaneseq
  %v3471 = vshrl.u32 %v3470, 7
  %v3472 = vsub.s32 0, %v3471
  %v3473 = vrot.slane %v3297, %v3472
  %v3474 = vadd.f32 %v3458, %v3473
  %v3475 = vadd.f32 %v3459, %v3473
  %v3476 = vadd.f32 %v3460, %v3473
  %v3477 = vadd.f32 %v3461, %v3473
  %v3478 = vadd.f32 %v3462, %v3473
  %v3479 = vadd.f32 %v3463, %v3473
  %v3480 = vadd.f32 %v3464, %v3473
  %v3481 = vadd.f32 %v3465, %v3473
  %v3482 = vadd.f32 %v3466, %v3473
  %v3483 = vadd.f32 %v3467, %v3473
  %v3484 = vadd.f32 %v3468, %v3473
  %v3485 = vadd.f32 %v3469, %v3473
  %v3486 = vadd.f32 %v1408, %v3474
  %v3487 = vadd.f32 %v1409, %v3475
  %v3488 = vadd.f32 %v1410, %v3476
  %v3489 = vadd.f32 %v1411, %v3477
  %v3490 = vadd.f32 %v1412, %v3478
  %v3491 = vadd.f32 %v1413, %v3479
  %v3492 = vadd.f32 %v1414, %v3480
  %v3493 = vadd.f32 %v1415, %v3481
  %v3494 = vadd.f32 %v1416, %v3482
  %v3495 = vadd.f32 %v1417, %v3483
  %v3496 = vadd.f32 %v1418, %v3484
  %v3497 = vadd.f32 %v1419, %v3485
  %3498 = vset.pattern.permute.xlu0 0
  %3499 = vperm.xlu0 %3498, %v1926
  %v3500 = vpop.permute.xlu0 %3499
  %3501 = vset.pattern.permute.xlu0 0
  %3502 = vperm.xlu0 %3501, %v1927
  %v3503 = vpop.permute.xlu0 %3502
  %3504 = vset.pattern.permute.xlu0 0
  %3505 = vperm.xlu0 %3504, %v1928
  %v3506 = vpop.permute.xlu0 %3505
  %3507 = vset.pattern.permute.xlu0 0
  %3508 = vperm.xlu0 %3507, %v1929
  %v3509 = vpop.permute.xlu0 %3508
  %3510 = vset.pattern.permute.xlu0 0
  %3511 = vperm.xlu0 %3510, %v1930
  %v3512 = vpop.permute.xlu0 %3511
  %3513 = vset.pattern.permute.xlu0 0
  %3514 = vperm.xlu0 %3513, %v1931
  %v3515 = vpop.permute.xlu0 %3514
  %vm3516 = vcmp.eq.s32.totalorder %v1940, %v3500
  %vm3517 = vcmp.eq.s32.totalorder %v1940, %v3503
  %vm3518 = vcmp.eq.s32.totalorder %v1940, %v3506
  %vm3519 = vcmp.eq.s32.totalorder %v1940, %v3509
  %vm3520 = vcmp.eq.s32.totalorder %v1940, %v3512
  %vm3521 = vcmp.eq.s32.totalorder %v1940, %v3515
  %v3522 = vsel %vm3516, 1, 0
  %v3523 = vsel %vm3517, 1, 0
  %v3524 = vsel %vm3518, 1, 0
  %v3525 = vsel %vm3519, 1, 0
  %v3526 = vsel %vm3520, 1, 0
  %v3527 = vsel %vm3521, 1, 0
  %v3528 = vcvt.s32.f32 %v3522
  %v3529 = vcvt.s32.f32 %v3523
  %v3530 = vcvt.s32.f32 %v3524
  %v3531 = vcvt.s32.f32 %v3525
  %v3532 = vcvt.s32.f32 %v3526
  %v3533 = vcvt.s32.f32 %v3527
  %vm3534 = vcmask 130048
  %v3536 = vsel %vm3534, %v3528, 0
  %v3539 = vsel %vm3534, %v3529, 0
  %v3542 = vsel %vm3534, %v3530, 0
  %v3545 = vsel %vm3534, %v3531, 0
  %v3548 = vsel %vm3534, %v3532, 0
  %v3551 = vsel %vm3534, %v3533, 0
  %3553 = vmatprep.subr.mxu0 0.0
  %3554 = vmatpush1.msra.mxu0 %v685
  %3555 = vmatprep.subr.mxu0 0.0
  %3556 = vmatpush1.msra.mxu0 %v686
  %3557 = vmatprep.subr.mxu0 0.0
  %3558 = vmatpush1.msra.mxu0 0.0
  %3559 = vmatprep.subr.mxu0 0.0
  %3560 = vmatpush1.msra.mxu0 0.0
  %3561 = vmatprep.subr.mxu0 0.0
  %3562 = vmatpush1.msra.mxu0 0.0
  %3563 = vmatprep.subr.mxu0 0.0
  %3564 = vmatpush1.msra.mxu0 0.0
  %3565 = vmatprep.subr.mxu0 0.0
  %3566 = vmatpush1.msra.mxu0 0.0
  %3567 = vmatprep.subr.mxu0 0.0
  %3568 = vmatpush1.msra.mxu0 0.0
  %3569 = vmatprep.subr.mxu0 0.0
  %3570 = vmatpush1.msra.mxu0 0.0
  %3571 = vmatprep.subr.mxu0 0.0
  %3572 = vmatpush1.msra.mxu0 0.0
  %3573 = vmatprep.subr.mxu0 0.0
  %3574 = vmatpush1.msra.mxu0 0.0
  %3575 = vmatprep.subr.mxu0 0.0
  %3576 = vmatpush1.msra.mxu0 0.0
  %3577 = vmatprep.subr.mxu0 0.0
  %3578 = vmatpush1.msra.mxu0 0.0
  %3579 = vmatprep.subr.mxu0 0.0
  %3580 = vmatpush1.msra.mxu0 0.0
  %3581 = vmatprep.subr.mxu0 0.0
  %3582 = vmatpush1.msra.mxu0 0.0
  %3583 = vmatprep.subr.mxu0 0.0
  %3584 = vmatpush1.msra.mxu0 0.0
  %3585 = vmatprep.subr.mxu0 0.0
  %3586 = vmatpush1.msra.mxu0 0.0
  %3587 = vmatprep.subr.mxu0 0.0
  %3588 = vmatpush1.msra.mxu0 0.0
  %3589 = vmatprep.subr.mxu0 0.0
  %3590 = vmatpush1.msra.mxu0 0.0
  %3591 = vmatprep.subr.mxu0 0.0
  %3592 = vmatpush1.msra.mxu0 0.0
  %3593 = vmatprep.subr.mxu0 0.0
  %3594 = vmatpush1.msra.mxu0 0.0
  %3595 = vmatprep.subr.mxu0 0.0
  %3596 = vmatpush1.msra.mxu0 0.0
  %3597 = vmatprep.subr.mxu0 0.0
  %3598 = vmatpush1.msra.mxu0 0.0
  %3599 = vmatprep.subr.mxu0 0.0
  %3600 = vmatpush1.msra.mxu0 0.0
  %3601 = vmatprep.subr.mxu0 0.0
  %3602 = vmatpush1.msra.mxu0 0.0
  %3603 = vmatprep.subr.mxu0 0.0
  %3604 = vmatpush1.msra.mxu0 0.0
  %3605 = vmatprep.subr.mxu0 0.0
  %3606 = vmatpush1.msra.mxu0 0.0
  %3607 = vmatprep.subr.mxu0 0.0
  %3608 = vmatpush1.msra.mxu0 0.0
  %3609 = vmatprep.subr.mxu0 0.0
  %3610 = vmatpush1.msra.mxu0 0.0
  %3611 = vmatprep.subr.mxu0 0.0
  %3612 = vmatpush1.msra.mxu0 0.0
  %3613 = vmatprep.subr.mxu0 0.0
  %3614 = vmatpush1.msra.mxu0 0.0
  %3615 = vmatprep.subr.mxu0 0.0
  %3616 = vmatpush1.msra.mxu0 0.0
  %3617 = vmatprep.mubr.f32.mxu0 0.0
  %3618 = vmatmul.mubr.f32.gmra.mrb[0].mxu0 %v3536
  %v3619 = vpop.f32.mrb[0].mxu0
  %v3620 = vadd.f32 0.0, %v3619
  %v3621 = vpop.f32.mrb[0].mxu0
  %3622 = vmatprep.mubr.f32.mxu0 0.0
  %3623 = vmatmul.mubr.f32.gmra.mrb[0].mxu0 %v3539
  %v3624 = vpop.f32.mrb[0].mxu0
  %v3625 = vadd.f32 0.0, %v3624
  %v3626 = vpop.f32.mrb[0].mxu0
  %3627 = vmatprep.mubr.f32.mxu0 0.0
  %3628 = vmatmul.mubr.f32.gmra.mrb[0].mxu0 %v3542
  %v3629 = vpop.f32.mrb[0].mxu0
  %v3630 = vadd.f32 0.0, %v3629
  %v3631 = vpop.f32.mrb[0].mxu0
  %3632 = vmatprep.mubr.f32.mxu0 0.0
  %3633 = vmatmul.mubr.f32.gmra.mrb[0].mxu0 %v3545
  %v3634 = vpop.f32.mrb[0].mxu0
  %v3635 = vadd.f32 0.0, %v3634
  %v3636 = vpop.f32.mrb[0].mxu0
  %3637 = vmatprep.mubr.f32.mxu0 0.0
  %3638 = vmatmul.mubr.f32.gmra.mrb[0].mxu0 %v3548
  %v3639 = vpop.f32.mrb[0].mxu0
  %v3640 = vadd.f32 0.0, %v3639
  %v3641 = vpop.f32.mrb[0].mxu0
  %3642 = vmatprep.mubr.f32.mxu0 0.0
  %3643 = vmatmul.mubr.f32.gmra.mrb[0].mxu0 %v3551
  %v3644 = vpop.f32.mrb[0].mxu0
  %v3645 = vadd.f32 0.0, %v3644
  %v3646 = vpop.f32.mrb[0].mxu0
  %3647 = vdwg.mxu0
  %3648 = vset.pattern.permute.xlu0 0
  %3649 = vperm.xlu0 %3648, %v1932
  %v3650 = vpop.permute.xlu0 %3649
  %3651 = vset.pattern.permute.xlu0 0
  %3652 = vperm.xlu0 %3651, %v1933
  %v3653 = vpop.permute.xlu0 %3652
  %3654 = vset.pattern.permute.xlu0 0
  %3655 = vperm.xlu0 %3654, %v1934
  %v3656 = vpop.permute.xlu0 %3655
  %3657 = vset.pattern.permute.xlu0 0
  %3658 = vperm.xlu0 %3657, %v1935
  %v3659 = vpop.permute.xlu0 %3658
  %3660 = vset.pattern.permute.xlu0 0
  %3661 = vperm.xlu0 %3660, %v1936
  %v3662 = vpop.permute.xlu0 %3661
  %3663 = vset.pattern.permute.xlu0 0
  %3664 = vperm.xlu0 %3663, %v1937
  %v3665 = vpop.permute.xlu0 %3664
  %vm3666 = vcmp.eq.s32.totalorder %v1940, %v3650
  %vm3667 = vcmp.eq.s32.totalorder %v1940, %v3653
  %vm3668 = vcmp.eq.s32.totalorder %v1940, %v3656
  %vm3669 = vcmp.eq.s32.totalorder %v1940, %v3659
  %vm3670 = vcmp.eq.s32.totalorder %v1940, %v3662
  %vm3671 = vcmp.eq.s32.totalorder %v1940, %v3665
  %v3672 = vsel %vm3666, 1, 0
  %v3673 = vsel %vm3667, 1, 0
  %v3674 = vsel %vm3668, 1, 0
  %v3675 = vsel %vm3669, 1, 0
  %v3676 = vsel %vm3670, 1, 0
  %v3677 = vsel %vm3671, 1, 0
  %v3678 = vcvt.s32.f32 %v3672
  %v3679 = vcvt.s32.f32 %v3673
  %v3680 = vcvt.s32.f32 %v3674
  %v3681 = vcvt.s32.f32 %v3675
  %v3682 = vcvt.s32.f32 %v3676
  %v3683 = vcvt.s32.f32 %v3677
  %v3685 = vsel %vm2013, %v3678, 0
  %v3688 = vsel %vm2013, %v3679, 0
  %v3691 = vsel %vm2013, %v3680, 0
  %v3694 = vsel %vm2013, %v3681, 0
  %v3697 = vsel %vm2013, %v3682, 0
  %v3700 = vsel %vm2013, %v3683, 0
  %3702 = vmatprep.subr.mxu0 0.0
  %3703 = vmatpush1.msra.mxu0 %v677
  %3704 = vmatprep.subr.mxu0 0.0
  %3705 = vmatpush1.msra.mxu0 %v678
  %3706 = vmatprep.subr.mxu0 0.0
  %3707 = vmatpush1.msra.mxu0 %v679
  %3708 = vmatprep.subr.mxu0 0.0
  %3709 = vmatpush1.msra.mxu0 %v680
  %3710 = vmatprep.subr.mxu0 0.0
  %3711 = vmatpush1.msra.mxu0 %v681
  %3712 = vmatprep.subr.mxu0 0.0
  %3713 = vmatpush1.msra.mxu0 %v682
  %3714 = vmatprep.subr.mxu0 0.0
  %3715 = vmatpush1.msra.mxu0 %v683
  %3716 = vmatprep.subr.mxu0 0.0
  %3717 = vmatpush1.msra.mxu0 %v684
  %3718 = vmatprep.subr.mxu0 0.0
  %3719 = vmatpush1.msra.mxu0 0.0
  %3720 = vmatprep.subr.mxu0 0.0
  %3721 = vmatpush1.msra.mxu0 0.0
  %3722 = vmatprep.subr.mxu0 0.0
  %3723 = vmatpush1.msra.mxu0 0.0
  %3724 = vmatprep.subr.mxu0 0.0
  %3725 = vmatpush1.msra.mxu0 0.0
  %3726 = vmatprep.subr.mxu0 0.0
  %3727 = vmatpush1.msra.mxu0 0.0
  %3728 = vmatprep.subr.mxu0 0.0
  %3729 = vmatpush1.msra.mxu0 0.0
  %3730 = vmatprep.subr.mxu0 0.0
  %3731 = vmatpush1.msra.mxu0 0.0
  %3732 = vmatprep.subr.mxu0 0.0
  %3733 = vmatpush1.msra.mxu0 0.0
  %3734 = vmatprep.subr.mxu0 0.0
  %3735 = vmatpush1.msra.mxu0 0.0
  %3736 = vmatprep.subr.mxu0 0.0
  %3737 = vmatpush1.msra.mxu0 0.0
  %3738 = vmatprep.subr.mxu0 0.0
  %3739 = vmatpush1.msra.mxu0 0.0
  %3740 = vmatprep.subr.mxu0 0.0
  %3741 = vmatpush1.msra.mxu0 0.0
  %3742 = vmatprep.subr.mxu0 0.0
  %3743 = vmatpush1.msra.mxu0 0.0
  %3744 = vmatprep.subr.mxu0 0.0
  %3745 = vmatpush1.msra.mxu0 0.0
  %3746 = vmatprep.subr.mxu0 0.0
  %3747 = vmatpush1.msra.mxu0 0.0
  %3748 = vmatprep.subr.mxu0 0.0
  %3749 = vmatpush1.msra.mxu0 0.0
  %3750 = vmatprep.subr.mxu0 0.0
  %3751 = vmatpush1.msra.mxu0 0.0
  %3752 = vmatprep.subr.mxu0 0.0
  %3753 = vmatpush1.msra.mxu0 0.0
  %3754 = vmatprep.subr.mxu0 0.0
  %3755 = vmatpush1.msra.mxu0 0.0
  %3756 = vmatprep.subr.mxu0 0.0
  %3757 = vmatpush1.msra.mxu0 0.0
  %3758 = vmatprep.subr.mxu0 0.0
  %3759 = vmatpush1.msra.mxu0 0.0
  %3760 = vmatprep.subr.mxu0 0.0
  %3761 = vmatpush1.msra.mxu0 0.0
  %3762 = vmatprep.subr.mxu0 0.0
  %3763 = vmatpush1.msra.mxu0 0.0
  %3764 = vmatprep.subr.mxu0 0.0
  %3765 = vmatpush1.msra.mxu0 0.0
  %3766 = vmatprep.mubr.f32.mxu0 0.0
  %3767 = vmatmul.mubr.f32.gmra.mrb[0].mxu0 %v3685
  %v3768 = vpop.f32.mrb[0].mxu0
  %v3769 = vadd.f32 0.0, %v3768
  %v3770 = vpop.f32.mrb[0].mxu0
  %3771 = vmatprep.mubr.f32.mxu0 0.0
  %3772 = vmatmul.mubr.f32.gmra.mrb[0].mxu0 %v3688
  %v3773 = vpop.f32.mrb[0].mxu0
  %v3774 = vadd.f32 0.0, %v3773
  %v3775 = vpop.f32.mrb[0].mxu0
  %3776 = vmatprep.mubr.f32.mxu0 0.0
  %3777 = vmatmul.mubr.f32.gmra.mrb[0].mxu0 %v3691
  %v3778 = vpop.f32.mrb[0].mxu0
  %v3779 = vadd.f32 0.0, %v3778
  %v3780 = vpop.f32.mrb[0].mxu0
  %3781 = vmatprep.mubr.f32.mxu0 0.0
  %3782 = vmatmul.mubr.f32.gmra.mrb[0].mxu0 %v3694
  %v3783 = vpop.f32.mrb[0].mxu0
  %v3784 = vadd.f32 0.0, %v3783
  %v3785 = vpop.f32.mrb[0].mxu0
  %3786 = vmatprep.mubr.f32.mxu0 0.0
  %3787 = vmatmul.mubr.f32.gmra.mrb[0].mxu0 %v3697
  %v3788 = vpop.f32.mrb[0].mxu0
  %v3789 = vadd.f32 0.0, %v3788
  %v3790 = vpop.f32.mrb[0].mxu0
  %3791 = vmatprep.mubr.f32.mxu0 0.0
  %3792 = vmatmul.mubr.f32.gmra.mrb[0].mxu0 %v3700
  %v3793 = vpop.f32.mrb[0].mxu0
  %v3794 = vadd.f32 0.0, %v3793
  %v3795 = vpop.f32.mrb[0].mxu0
  %3796 = vdwg.mxu0
  %v3797 = vld [vmem:[%s9 + $0x290] sm:$0xff]
  %v3798 = vld [vmem:[%s9 + $0x298] sm:$0xff]
  %v3799 = vld [vmem:[%s9 + $0x2a0] sm:$0xff]
  %v3800 = vld [vmem:[%s9 + $0x2a8] sm:$0xff]
  %v3801 = vld [vmem:[%s9 + $0x2b0] sm:$0xff]
  %v3802 = vld [vmem:[%s9 + $0x2b8] sm:$0xff]
  %v3803 = vld [vmem:[%s9 + $0x2c0] sm:$0xff]
  %v3804 = vld [vmem:[%s9 + $0x2c8] sm:$0xff]
  %v3806 = vsel %vm216, %v3769, 0
  %v3809 = vsel %vm216, %v3774, 0
  %v3812 = vsel %vm216, %v3779, 0
  %v3815 = vsel %vm216, %v3784, 0
  %v3818 = vsel %vm216, %v3789, 0
  %v3821 = vsel %vm216, %v3794, 0
  %3823 = vmatprep.subr.mxu0 0.0
  %3824 = vmatpush1.msra.mxu0 %v3801
  %3825 = vmatprep.subr.mxu0 0.0
  %3826 = vmatpush1.msra.mxu0 %v3802
  %3827 = vmatprep.subr.mxu0 0.0
  %3828 = vmatpush1.msra.mxu0 %v3803
  %3829 = vmatprep.subr.mxu0 0.0
  %3830 = vmatpush1.msra.mxu0 %v3804
  %3831 = vmatprep.subr.mxu0 0.0
  %3832 = vmatpush1.msra.mxu0 0.0
  %3833 = vmatprep.subr.mxu0 0.0
  %3834 = vmatpush1.msra.mxu0 0.0
  %3835 = vmatprep.subr.mxu0 0.0
  %3836 = vmatpush1.msra.mxu0 0.0
  %3837 = vmatprep.subr.mxu0 0.0
  %3838 = vmatpush1.msra.mxu0 0.0
  %3839 = vmatprep.subr.mxu0 0.0
  %3840 = vmatpush1.msra.mxu0 0.0
  %3841 = vmatprep.subr.mxu0 0.0
  %3842 = vmatpush1.msra.mxu0 0.0
  %3843 = vmatprep.subr.mxu0 0.0
  %3844 = vmatpush1.msra.mxu0 0.0
  %3845 = vmatprep.subr.mxu0 0.0
  %3846 = vmatpush1.msra.mxu0 0.0
  %3847 = vmatprep.subr.mxu0 0.0
  %3848 = vmatpush1.msra.mxu0 0.0
  %3849 = vmatprep.subr.mxu0 0.0
  %3850 = vmatpush1.msra.mxu0 0.0
  %3851 = vmatprep.subr.mxu0 0.0
  %3852 = vmatpush1.msra.mxu0 0.0
  %3853 = vmatprep.subr.mxu0 0.0
  %3854 = vmatpush1.msra.mxu0 0.0
  %3855 = vmatprep.subr.mxu0 0.0
  %3856 = vmatpush1.msra.mxu0 0.0
  %3857 = vmatprep.subr.mxu0 0.0
  %3858 = vmatpush1.msra.mxu0 0.0
  %3859 = vmatprep.subr.mxu0 0.0
  %3860 = vmatpush1.msra.mxu0 0.0
  %3861 = vmatprep.subr.mxu0 0.0
  %3862 = vmatpush1.msra.mxu0 0.0
  %3863 = vmatprep.subr.mxu0 0.0
  %3864 = vmatpush1.msra.mxu0 0.0
  %3865 = vmatprep.subr.mxu0 0.0
  %3866 = vmatpush1.msra.mxu0 0.0
  %3867 = vmatprep.subr.mxu0 0.0
  %3868 = vmatpush1.msra.mxu0 0.0
  %3869 = vmatprep.subr.mxu0 0.0
  %3870 = vmatpush1.msra.mxu0 0.0
  %3871 = vmatprep.subr.mxu0 0.0
  %3872 = vmatpush1.msra.mxu0 0.0
  %3873 = vmatprep.subr.mxu0 0.0
  %3874 = vmatpush1.msra.mxu0 0.0
  %3875 = vmatprep.subr.mxu0 0.0
  %3876 = vmatpush1.msra.mxu0 0.0
  %3877 = vmatprep.subr.mxu0 0.0
  %3878 = vmatpush1.msra.mxu0 0.0
  %3879 = vmatprep.subr.mxu0 0.0
  %3880 = vmatpush1.msra.mxu0 0.0
  %3881 = vmatprep.subr.mxu0 0.0
  %3882 = vmatpush1.msra.mxu0 0.0
  %3883 = vmatprep.subr.mxu0 0.0
  %3884 = vmatpush1.msra.mxu0 0.0
  %3885 = vmatprep.subr.mxu0 0.0
  %3886 = vmatpush1.msra.mxu0 0.0
  %3887 = vmatprep.mubr.f32.mxu0 0.0
  %3888 = vmatmul.mubr.f32.gmra.mrb[0].mxu0 %v3806
  %v3889 = vpop.f32.mrb[0].mxu0
  %v3890 = vadd.f32 0.0, %v3889
  %v3891 = vpop.f32.mrb[0].mxu0
  %3892 = vmatprep.mubr.f32.mxu0 0.0
  %3893 = vmatmul.mubr.f32.gmra.mrb[0].mxu0 %v3809
  %v3894 = vpop.f32.mrb[0].mxu0
  %v3895 = vadd.f32 0.0, %v3894
  %v3896 = vpop.f32.mrb[0].mxu0
  %3897 = vmatprep.mubr.f32.mxu0 0.0
  %3898 = vmatmul.mubr.f32.gmra.mrb[0].mxu0 %v3812
  %v3899 = vpop.f32.mrb[0].mxu0
  %v3900 = vadd.f32 0.0, %v3899
  %v3901 = vpop.f32.mrb[0].mxu0
  %3902 = vmatprep.mubr.f32.mxu0 0.0
  %3903 = vmatmul.mubr.f32.gmra.mrb[0].mxu0 %v3815
  %v3904 = vpop.f32.mrb[0].mxu0
  %v3905 = vadd.f32 0.0, %v3904
  %v3906 = vpop.f32.mrb[0].mxu0
  %3907 = vmatprep.mubr.f32.mxu0 0.0
  %3908 = vmatmul.mubr.f32.gmra.mrb[0].mxu0 %v3818
  %v3909 = vpop.f32.mrb[0].mxu0
  %v3910 = vadd.f32 0.0, %v3909
  %v3911 = vpop.f32.mrb[0].mxu0
  %3912 = vmatprep.mubr.f32.mxu0 0.0
  %3913 = vmatmul.mubr.f32.gmra.mrb[0].mxu0 %v3821
  %v3914 = vpop.f32.mrb[0].mxu0
  %v3915 = vadd.f32 0.0, %v3914
  %v3916 = vpop.f32.mrb[0].mxu0
  %3917 = vdwg.mxu0
  %v3919 = vsel %vm216, %v3620, 0
  %v3922 = vsel %vm216, %v3625, 0
  %v3925 = vsel %vm216, %v3630, 0
  %v3928 = vsel %vm216, %v3635, 0
  %v3931 = vsel %vm216, %v3640, 0
  %v3934 = vsel %vm216, %v3645, 0
  %3936 = vmatprep.subr.mxu0 0.0
  %3937 = vmatpush1.msra.mxu0 %v3797
  %3938 = vmatprep.subr.mxu0 0.0
  %3939 = vmatpush1.msra.mxu0 %v3798
  %3940 = vmatprep.subr.mxu0 0.0
  %3941 = vmatpush1.msra.mxu0 %v3799
  %3942 = vmatprep.subr.mxu0 0.0
  %3943 = vmatpush1.msra.mxu0 %v3800
  %3944 = vmatprep.subr.mxu0 0.0
  %3945 = vmatpush1.msra.mxu0 0.0
  %3946 = vmatprep.subr.mxu0 0.0
  %3947 = vmatpush1.msra.mxu0 0.0
  %3948 = vmatprep.subr.mxu0 0.0
  %3949 = vmatpush1.msra.mxu0 0.0
  %3950 = vmatprep.subr.mxu0 0.0
  %3951 = vmatpush1.msra.mxu0 0.0
  %3952 = vmatprep.subr.mxu0 0.0
  %3953 = vmatpush1.msra.mxu0 0.0
  %3954 = vmatprep.subr.mxu0 0.0
  %3955 = vmatpush1.msra.mxu0 0.0
  %3956 = vmatprep.subr.mxu0 0.0
  %3957 = vmatpush1.msra.mxu0 0.0
  %3958 = vmatprep.subr.mxu0 0.0
  %3959 = vmatpush1.msra.mxu0 0.0
  %3960 = vmatprep.subr.mxu0 0.0
  %3961 = vmatpush1.msra.mxu0 0.0
  %3962 = vmatprep.subr.mxu0 0.0
  %3963 = vmatpush1.msra.mxu0 0.0
  %3964 = vmatprep.subr.mxu0 0.0
  %3965 = vmatpush1.msra.mxu0 0.0
  %3966 = vmatprep.subr.mxu0 0.0
  %3967 = vmatpush1.msra.mxu0 0.0
  %3968 = vmatprep.subr.mxu0 0.0
  %3969 = vmatpush1.msra.mxu0 0.0
  %3970 = vmatprep.subr.mxu0 0.0
  %3971 = vmatpush1.msra.mxu0 0.0
  %3972 = vmatprep.subr.mxu0 0.0
  %3973 = vmatpush1.msra.mxu0 0.0
  %3974 = vmatprep.subr.mxu0 0.0
  %3975 = vmatpush1.msra.mxu0 0.0
  %3976 = vmatprep.subr.mxu0 0.0
  %3977 = vmatpush1.msra.mxu0 0.0
  %3978 = vmatprep.subr.mxu0 0.0
  %3979 = vmatpush1.msra.mxu0 0.0
  %3980 = vmatprep.subr.mxu0 0.0
  %3981 = vmatpush1.msra.mxu0 0.0
  %3982 = vmatprep.subr.mxu0 0.0
  %3983 = vmatpush1.msra.mxu0 0.0
  %3984 = vmatprep.subr.mxu0 0.0
  %3985 = vmatpush1.msra.mxu0 0.0
  %3986 = vmatprep.subr.mxu0 0.0
  %3987 = vmatpush1.msra.mxu0 0.0
  %3988 = vmatprep.subr.mxu0 0.0
  %3989 = vmatpush1.msra.mxu0 0.0
  %3990 = vmatprep.subr.mxu0 0.0
  %3991 = vmatpush1.msra.mxu0 0.0
  %3992 = vmatprep.subr.mxu0 0.0
  %3993 = vmatpush1.msra.mxu0 0.0
  %3994 = vmatprep.subr.mxu0 0.0
  %3995 = vmatpush1.msra.mxu0 0.0
  %3996 = vmatprep.subr.mxu0 0.0
  %3997 = vmatpush1.msra.mxu0 0.0
  %3998 = vmatprep.subr.mxu0 0.0
  %3999 = vmatpush1.msra.mxu0 0.0
  %4000 = vmatprep.mubr.f32.mxu0 0.0
  %4001 = vmatmul.mubr.f32.gmra.mrb[0].mxu0 %v3919
  %v4002 = vpop.f32.mrb[0].mxu0
  %v4003 = vadd.f32 %v3890, %v4002
  %v4004 = vpop.f32.mrb[0].mxu0
  %4005 = vmatprep.mubr.f32.mxu0 0.0
  %4006 = vmatmul.mubr.f32.gmra.mrb[0].mxu0 %v3922
  %v4007 = vpop.f32.mrb[0].mxu0
  %v4008 = vadd.f32 %v3895, %v4007
  %v4009 = vpop.f32.mrb[0].mxu0
  %4010 = vmatprep.mubr.f32.mxu0 0.0
  %4011 = vmatmul.mubr.f32.gmra.mrb[0].mxu0 %v3925
  %v4012 = vpop.f32.mrb[0].mxu0
  %v4013 = vadd.f32 %v3900, %v4012
  %v4014 = vpop.f32.mrb[0].mxu0
  %4015 = vmatprep.mubr.f32.mxu0 0.0
  %4016 = vmatmul.mubr.f32.gmra.mrb[0].mxu0 %v3928
  %v4017 = vpop.f32.mrb[0].mxu0
  %v4018 = vadd.f32 %v3905, %v4017
  %v4019 = vpop.f32.mrb[0].mxu0
  %4020 = vmatprep.mubr.f32.mxu0 0.0
  %4021 = vmatmul.mubr.f32.gmra.mrb[0].mxu0 %v3931
  %v4022 = vpop.f32.mrb[0].mxu0
  %v4023 = vadd.f32 %v3910, %v4022
  %v4024 = vpop.f32.mrb[0].mxu0
  %4025 = vmatprep.mubr.f32.mxu0 0.0
  %4026 = vmatmul.mubr.f32.gmra.mrb[0].mxu0 %v3934
  %v4027 = vpop.f32.mrb[0].mxu0
  %v4028 = vadd.f32 %v3915, %v4027
  %v4029 = vpop.f32.mrb[0].mxu0
  %4030 = vdwg.mxu0
  %v4031 = vld [vmem:[%s9 + $0x2d0] sm:$0xff]
  %v4032 = vld [vmem:[%s9 + $0x2d8] sm:$0xff]
  %v4033 = vld [vmem:[%s9 + $0x2e0] sm:$0xff]
  %v4034 = vld [vmem:[%s9 + $0x2e8] sm:$0xff]
  %v4036 = vsel %vm216, %v1895, 0
  %v4039 = vsel %vm216, %v1896, 0
  %v4042 = vsel %vm216, %v1897, 0
  %v4045 = vsel %vm216, %v1898, 0
  %v4048 = vsel %vm216, %v1899, 0
  %v4051 = vsel %vm216, %v1900, 0
  %4053 = vmatprep.subr.mxu0 0.0
  %4054 = vmatpush1.msra.mxu0 %v4031
  %4055 = vmatprep.subr.mxu0 0.0
  %4056 = vmatpush1.msra.mxu0 %v4032
  %4057 = vmatprep.subr.mxu0 0.0
  %4058 = vmatpush1.msra.mxu0 %v4033
  %4059 = vmatprep.subr.mxu0 0.0
  %4060 = vmatpush1.msra.mxu0 %v4034
  %4061 = vmatprep.subr.mxu0 0.0
  %4062 = vmatpush1.msra.mxu0 0.0
  %4063 = vmatprep.subr.mxu0 0.0
  %4064 = vmatpush1.msra.mxu0 0.0
  %4065 = vmatprep.subr.mxu0 0.0
  %4066 = vmatpush1.msra.mxu0 0.0
  %4067 = vmatprep.subr.mxu0 0.0
  %4068 = vmatpush1.msra.mxu0 0.0
  %4069 = vmatprep.subr.mxu0 0.0
  %4070 = vmatpush1.msra.mxu0 0.0
  %4071 = vmatprep.subr.mxu0 0.0
  %4072 = vmatpush1.msra.mxu0 0.0
  %4073 = vmatprep.subr.mxu0 0.0
  %4074 = vmatpush1.msra.mxu0 0.0
  %4075 = vmatprep.subr.mxu0 0.0
  %4076 = vmatpush1.msra.mxu0 0.0
  %4077 = vmatprep.subr.mxu0 0.0
  %4078 = vmatpush1.msra.mxu0 0.0
  %4079 = vmatprep.subr.mxu0 0.0
  %4080 = vmatpush1.msra.mxu0 0.0
  %4081 = vmatprep.subr.mxu0 0.0
  %4082 = vmatpush1.msra.mxu0 0.0
  %4083 = vmatprep.subr.mxu0 0.0
  %4084 = vmatpush1.msra.mxu0 0.0
  %4085 = vmatprep.subr.mxu0 0.0
  %4086 = vmatpush1.msra.mxu0 0.0
  %4087 = vmatprep.subr.mxu0 0.0
  %4088 = vmatpush1.msra.mxu0 0.0
  %4089 = vmatprep.subr.mxu0 0.0
  %4090 = vmatpush1.msra.mxu0 0.0
  %4091 = vmatprep.subr.mxu0 0.0
  %4092 = vmatpush1.msra.mxu0 0.0
  %4093 = vmatprep.subr.mxu0 0.0
  %4094 = vmatpush1.msra.mxu0 0.0
  %4095 = vmatprep.subr.mxu0 0.0
  %4096 = vmatpush1.msra.mxu0 0.0
  %4097 = vmatprep.subr.mxu0 0.0
  %4098 = vmatpush1.msra.mxu0 0.0
  %4099 = vmatprep.subr.mxu0 0.0
  %4100 = vmatpush1.msra.mxu0 0.0
  %4101 = vmatprep.subr.mxu0 0.0
  %4102 = vmatpush1.msra.mxu0 0.0
  %4103 = vmatprep.subr.mxu0 0.0
  %4104 = vmatpush1.msra.mxu0 0.0
  %4105 = vmatprep.subr.mxu0 0.0
  %4106 = vmatpush1.msra.mxu0 0.0
  %4107 = vmatprep.subr.mxu0 0.0
  %4108 = vmatpush1.msra.mxu0 0.0
  %4109 = vmatprep.subr.mxu0 0.0
  %4110 = vmatpush1.msra.mxu0 0.0
  %4111 = vmatprep.subr.mxu0 0.0
  %4112 = vmatpush1.msra.mxu0 0.0
  %4113 = vmatprep.subr.mxu0 0.0
  %4114 = vmatpush1.msra.mxu0 0.0
  %4115 = vmatprep.subr.mxu0 0.0
  %4116 = vmatpush1.msra.mxu0 0.0
  %4117 = vmatprep.mubr.f32.mxu0 0.0
  %4118 = vmatmul.mubr.f32.gmra.mrb[0].mxu0 %v4036
  %v4119 = vpop.f32.mrb[0].mxu0
  %v4120 = vadd.f32 0.0, %v4119
  %v4121 = vpop.f32.mrb[0].mxu0
  %4122 = vmatprep.mubr.f32.mxu0 0.0
  %4123 = vmatmul.mubr.f32.gmra.mrb[0].mxu0 %v4039
  %v4124 = vpop.f32.mrb[0].mxu0
  %v4125 = vadd.f32 0.0, %v4124
  %v4126 = vpop.f32.mrb[0].mxu0
  %4127 = vmatprep.mubr.f32.mxu0 0.0
  %4128 = vmatmul.mubr.f32.gmra.mrb[0].mxu0 %v4042
  %v4129 = vpop.f32.mrb[0].mxu0
  %v4130 = vadd.f32 0.0, %v4129
  %v4131 = vpop.f32.mrb[0].mxu0
  %4132 = vmatprep.mubr.f32.mxu0 0.0
  %4133 = vmatmul.mubr.f32.gmra.mrb[0].mxu0 %v4045
  %v4134 = vpop.f32.mrb[0].mxu0
  %v4135 = vadd.f32 0.0, %v4134
  %v4136 = vpop.f32.mrb[0].mxu0
  %4137 = vmatprep.mubr.f32.mxu0 0.0
  %4138 = vmatmul.mubr.f32.gmra.mrb[0].mxu0 %v4048
  %v4139 = vpop.f32.mrb[0].mxu0
  %v4140 = vadd.f32 0.0, %v4139
  %v4141 = vpop.f32.mrb[0].mxu0
  %4142 = vmatprep.mubr.f32.mxu0 0.0
  %4143 = vmatmul.mubr.f32.gmra.mrb[0].mxu0 %v4051
  %v4144 = vpop.f32.mrb[0].mxu0
  %v4145 = vadd.f32 0.0, %v4144
  %v4146 = vpop.f32.mrb[0].mxu0
  %4147 = vdwg.mxu0
  %v4148 = vadd.f32 %v4003, %v4120
  %v4149 = vadd.f32 %v4008, %v4125
  %v4150 = vadd.f32 %v4013, %v4130
  %v4151 = vadd.f32 %v4018, %v4135
  %v4152 = vadd.f32 %v4023, %v4140
  %v4153 = vadd.f32 %v4028, %v4145
  %v4154 = vld [vmem:[%s9 + $0x2f0] sm:$0x1]
  %v4155 = vlaneseq
  %v4156 = vshrl.u32 %v4155, 7
  %v4157 = vsub.s32 0, %v4156
  %v4158 = vrot.slane %v4154, %v4157
  %v4159 = vadd.f32 %v4148, %v4158
  %v4160 = vadd.f32 %v4149, %v4158
  %v4161 = vadd.f32 %v4150, %v4158
  %v4162 = vadd.f32 %v4151, %v4158
  %v4163 = vadd.f32 %v4152, %v4158
  %v4164 = vadd.f32 %v4153, %v4158
  %v4165 = vmax.f32 %v4159, 0.0
  %v4166 = vmax.f32 %v4160, 0.0
  %v4167 = vmax.f32 %v4161, 0.0
  %v4168 = vmax.f32 %v4162, 0.0
  %v4169 = vmax.f32 %v4163, 0.0
  %v4170 = vmax.f32 %v4164, 0.0
  %v4171 = vld [vmem:[%s9 + $0x2f8] sm:$0xff]
  %v4172 = vld [vmem:[%s9 + $0x300] sm:$0xff]
  %v4173 = vld [vmem:[%s9 + $0x308] sm:$0xff]
  %v4174 = vld [vmem:[%s9 + $0x310] sm:$0xff]
  %v4175 = vld [vmem:[%s9 + $0x318] sm:$0x1]
  %v4176 = vlaneseq
  %v4177 = vshrl.u32 %v4176, 7
  %v4178 = vsub.s32 0, %v4177
  %v4179 = vrot.slane %v4175, %v4178
  %v4181 = vsel %vm216, %v4165, 0
  %v4184 = vsel %vm216, %v4166, 0
  %v4187 = vsel %vm216, %v4167, 0
  %v4190 = vsel %vm216, %v4168, 0
  %v4193 = vsel %vm216, %v4169, 0
  %v4196 = vsel %vm216, %v4170, 0
  %4198 = vmatprep.subr.mxu0 0.0
  %4199 = vmatpush1.msra.mxu0 %v4171
  %4200 = vmatprep.subr.mxu0 0.0
  %4201 = vmatpush1.msra.mxu0 %v4172
  %4202 = vmatprep.subr.mxu0 0.0
  %4203 = vmatpush1.msra.mxu0 %v4173
  %4204 = vmatprep.subr.mxu0 0.0
  %4205 = vmatpush1.msra.mxu0 %v4174
  %4206 = vmatprep.subr.mxu0 0.0
  %4207 = vmatpush1.msra.mxu0 0.0
  %4208 = vmatprep.subr.mxu0 0.0
  %4209 = vmatpush1.msra.mxu0 0.0
  %4210 = vmatprep.subr.mxu0 0.0
  %4211 = vmatpush1.msra.mxu0 0.0
  %4212 = vmatprep.subr.mxu0 0.0
  %4213 = vmatpush1.msra.mxu0 0.0
  %4214 = vmatprep.subr.mxu0 0.0
  %4215 = vmatpush1.msra.mxu0 0.0
  %4216 = vmatprep.subr.mxu0 0.0
  %4217 = vmatpush1.msra.mxu0 0.0
  %4218 = vmatprep.subr.mxu0 0.0
  %4219 = vmatpush1.msra.mxu0 0.0
  %4220 = vmatprep.subr.mxu0 0.0
  %4221 = vmatpush1.msra.mxu0 0.0
  %4222 = vmatprep.subr.mxu0 0.0
  %4223 = vmatpush1.msra.mxu0 0.0
  %4224 = vmatprep.subr.mxu0 0.0
  %4225 = vmatpush1.msra.mxu0 0.0
  %4226 = vmatprep.subr.mxu0 0.0
  %4227 = vmatpush1.msra.mxu0 0.0
  %4228 = vmatprep.subr.mxu0 0.0
  %4229 = vmatpush1.msra.mxu0 0.0
  %4230 = vmatprep.subr.mxu0 0.0
  %4231 = vmatpush1.msra.mxu0 0.0
  %4232 = vmatprep.subr.mxu0 0.0
  %4233 = vmatpush1.msra.mxu0 0.0
  %4234 = vmatprep.subr.mxu0 0.0
  %4235 = vmatpush1.msra.mxu0 0.0
  %4236 = vmatprep.subr.mxu0 0.0
  %4237 = vmatpush1.msra.mxu0 0.0
  %4238 = vmatprep.subr.mxu0 0.0
  %4239 = vmatpush1.msra.mxu0 0.0
  %4240 = vmatprep.subr.mxu0 0.0
  %4241 = vmatpush1.msra.mxu0 0.0
  %4242 = vmatprep.subr.mxu0 0.0
  %4243 = vmatpush1.msra.mxu0 0.0
  %4244 = vmatprep.subr.mxu0 0.0
  %4245 = vmatpush1.msra.mxu0 0.0
  %4246 = vmatprep.subr.mxu0 0.0
  %4247 = vmatpush1.msra.mxu0 0.0
  %4248 = vmatprep.subr.mxu0 0.0
  %4249 = vmatpush1.msra.mxu0 0.0
  %4250 = vmatprep.subr.mxu0 0.0
  %4251 = vmatpush1.msra.mxu0 0.0
  %4252 = vmatprep.subr.mxu0 0.0
  %4253 = vmatpush1.msra.mxu0 0.0
  %4254 = vmatprep.subr.mxu0 0.0
  %4255 = vmatpush1.msra.mxu0 0.0
  %4256 = vmatprep.subr.mxu0 0.0
  %4257 = vmatpush1.msra.mxu0 0.0
  %4258 = vmatprep.subr.mxu0 0.0
  %4259 = vmatpush1.msra.mxu0 0.0
  %4260 = vmatprep.subr.mxu0 0.0
  %4261 = vmatpush1.msra.mxu0 0.0
  %4262 = vmatprep.mubr.f32.mxu0 0.0
  %4263 = vmatmul.mubr.f32.gmra.mrb[0].mxu0 %v4181
  %v4264 = vpop.f32.mrb[0].mxu0
  %v4265 = vadd.f32 %v4179, %v4264
  %v4266 = vpop.f32.mrb[0].mxu0
  %4267 = vmatprep.mubr.f32.mxu0 0.0
  %4268 = vmatmul.mubr.f32.gmra.mrb[0].mxu0 %v4184
  %v4269 = vpop.f32.mrb[0].mxu0
  %v4270 = vadd.f32 %v4179, %v4269
  %v4271 = vpop.f32.mrb[0].mxu0
  %4272 = vmatprep.mubr.f32.mxu0 0.0
  %4273 = vmatmul.mubr.f32.gmra.mrb[0].mxu0 %v4187
  %v4274 = vpop.f32.mrb[0].mxu0
  %v4275 = vadd.f32 %v4179, %v4274
  %v4276 = vpop.f32.mrb[0].mxu0
  %4277 = vmatprep.mubr.f32.mxu0 0.0
  %4278 = vmatmul.mubr.f32.gmra.mrb[0].mxu0 %v4190
  %v4279 = vpop.f32.mrb[0].mxu0
  %v4280 = vadd.f32 %v4179, %v4279
  %v4281 = vpop.f32.mrb[0].mxu0
  %4282 = vmatprep.mubr.f32.mxu0 0.0
  %4283 = vmatmul.mubr.f32.gmra.mrb[0].mxu0 %v4193
  %v4284 = vpop.f32.mrb[0].mxu0
  %v4285 = vadd.f32 %v4179, %v4284
  %v4286 = vpop.f32.mrb[0].mxu0
  %4287 = vmatprep.mubr.f32.mxu0 0.0
  %4288 = vmatmul.mubr.f32.gmra.mrb[0].mxu0 %v4196
  %v4289 = vpop.f32.mrb[0].mxu0
  %v4290 = vadd.f32 %v4179, %v4289
  %v4291 = vpop.f32.mrb[0].mxu0
  %4292 = vdwg.mxu0
  %v4293 = vmax.f32 %v4265, 0.0
  %v4294 = vmax.f32 %v4270, 0.0
  %v4295 = vmax.f32 %v4275, 0.0
  %v4296 = vmax.f32 %v4280, 0.0
  %v4297 = vmax.f32 %v4285, 0.0
  %v4298 = vmax.f32 %v4290, 0.0
  %v4299 = vld [vmem:[%s9 + $0x320] sm:$0xff]
  %v4300 = vld [vmem:[%s9 + $0x328] sm:$0xff]
  %v4301 = vld [vmem:[%s9 + $0x330] sm:$0xff]
  %v4302 = vld [vmem:[%s9 + $0x338] sm:$0xff]
  %v4303 = vld [vmem:[%s9 + $0x340] sm:$0x1]
  %v4304 = vlaneseq
  %v4305 = vshrl.u32 %v4304, 7
  %v4306 = vsub.s32 0, %v4305
  %v4307 = vrot.slane %v4303, %v4306
  %v4309 = vsel %vm216, %v4293, 0
  %v4312 = vsel %vm216, %v4294, 0
  %v4315 = vsel %vm216, %v4295, 0
  %v4318 = vsel %vm216, %v4296, 0
  %v4321 = vsel %vm216, %v4297, 0
  %v4324 = vsel %vm216, %v4298, 0
  %4326 = vmatprep.subr.mxu0 0.0
  %4327 = vmatpush1.msra.mxu0 %v4299
  %4328 = vmatprep.subr.mxu0 0.0
  %4329 = vmatpush1.msra.mxu0 %v4300
  %4330 = vmatprep.subr.mxu0 0.0
  %4331 = vmatpush1.msra.mxu0 %v4301
  %4332 = vmatprep.subr.mxu0 0.0
  %4333 = vmatpush1.msra.mxu0 %v4302
  %4334 = vmatprep.subr.mxu0 0.0
  %4335 = vmatpush1.msra.mxu0 0.0
  %4336 = vmatprep.subr.mxu0 0.0
  %4337 = vmatpush1.msra.mxu0 0.0
  %4338 = vmatprep.subr.mxu0 0.0
  %4339 = vmatpush1.msra.mxu0 0.0
  %4340 = vmatprep.subr.mxu0 0.0
  %4341 = vmatpush1.msra.mxu0 0.0
  %4342 = vmatprep.subr.mxu0 0.0
  %4343 = vmatpush1.msra.mxu0 0.0
  %4344 = vmatprep.subr.mxu0 0.0
  %4345 = vmatpush1.msra.mxu0 0.0
  %4346 = vmatprep.subr.mxu0 0.0
  %4347 = vmatpush1.msra.mxu0 0.0
  %4348 = vmatprep.subr.mxu0 0.0
  %4349 = vmatpush1.msra.mxu0 0.0
  %4350 = vmatprep.subr.mxu0 0.0
  %4351 = vmatpush1.msra.mxu0 0.0
  %4352 = vmatprep.subr.mxu0 0.0
  %4353 = vmatpush1.msra.mxu0 0.0
  %4354 = vmatprep.subr.mxu0 0.0
  %4355 = vmatpush1.msra.mxu0 0.0
  %4356 = vmatprep.subr.mxu0 0.0
  %4357 = vmatpush1.msra.mxu0 0.0
  %4358 = vmatprep.subr.mxu0 0.0
  %4359 = vmatpush1.msra.mxu0 0.0
  %4360 = vmatprep.subr.mxu0 0.0
  %4361 = vmatpush1.msra.mxu0 0.0
  %4362 = vmatprep.subr.mxu0 0.0
  %4363 = vmatpush1.msra.mxu0 0.0
  %4364 = vmatprep.subr.mxu0 0.0
  %4365 = vmatpush1.msra.mxu0 0.0
  %4366 = vmatprep.subr.mxu0 0.0
  %4367 = vmatpush1.msra.mxu0 0.0
  %4368 = vmatprep.subr.mxu0 0.0
  %4369 = vmatpush1.msra.mxu0 0.0
  %4370 = vmatprep.subr.mxu0 0.0
  %4371 = vmatpush1.msra.mxu0 0.0
  %4372 = vmatprep.subr.mxu0 0.0
  %4373 = vmatpush1.msra.mxu0 0.0
  %4374 = vmatprep.subr.mxu0 0.0
  %4375 = vmatpush1.msra.mxu0 0.0
  %4376 = vmatprep.subr.mxu0 0.0
  %4377 = vmatpush1.msra.mxu0 0.0
  %4378 = vmatprep.subr.mxu0 0.0
  %4379 = vmatpush1.msra.mxu0 0.0
  %4380 = vmatprep.subr.mxu0 0.0
  %4381 = vmatpush1.msra.mxu0 0.0
  %4382 = vmatprep.subr.mxu0 0.0
  %4383 = vmatpush1.msra.mxu0 0.0
  %4384 = vmatprep.subr.mxu0 0.0
  %4385 = vmatpush1.msra.mxu0 0.0
  %4386 = vmatprep.subr.mxu0 0.0
  %4387 = vmatpush1.msra.mxu0 0.0
  %4388 = vmatprep.subr.mxu0 0.0
  %4389 = vmatpush1.msra.mxu0 0.0
  %4390 = vmatprep.mubr.f32.mxu0 0.0
  %4391 = vmatmul.mubr.f32.gmra.mrb[0].mxu0 %v4309
  %v4392 = vpop.f32.mrb[0].mxu0
  %v4393 = vadd.f32 %v4307, %v4392
  %v4394 = vpop.f32.mrb[0].mxu0
  %4395 = vmatprep.mubr.f32.mxu0 0.0
  %4396 = vmatmul.mubr.f32.gmra.mrb[0].mxu0 %v4312
  %v4397 = vpop.f32.mrb[0].mxu0
  %v4398 = vadd.f32 %v4307, %v4397
  %v4399 = vpop.f32.mrb[0].mxu0
  %4400 = vmatprep.mubr.f32.mxu0 0.0
  %4401 = vmatmul.mubr.f32.gmra.mrb[0].mxu0 %v4315
  %v4402 = vpop.f32.mrb[0].mxu0
  %v4403 = vadd.f32 %v4307, %v4402
  %v4404 = vpop.f32.mrb[0].mxu0
  %4405 = vmatprep.mubr.f32.mxu0 0.0
  %4406 = vmatmul.mubr.f32.gmra.mrb[0].mxu0 %v4318
  %v4407 = vpop.f32.mrb[0].mxu0
  %v4408 = vadd.f32 %v4307, %v4407
  %v4409 = vpop.f32.mrb[0].mxu0
  %4410 = vmatprep.mubr.f32.mxu0 0.0
  %4411 = vmatmul.mubr.f32.gmra.mrb[0].mxu0 %v4321
  %v4412 = vpop.f32.mrb[0].mxu0
  %v4413 = vadd.f32 %v4307, %v4412
  %v4414 = vpop.f32.mrb[0].mxu0
  %4415 = vmatprep.mubr.f32.mxu0 0.0
  %4416 = vmatmul.mubr.f32.gmra.mrb[0].mxu0 %v4324
  %v4417 = vpop.f32.mrb[0].mxu0
  %v4418 = vadd.f32 %v4307, %v4417
  %v4419 = vpop.f32.mrb[0].mxu0
  %4420 = vdwg.mxu0
  %v4421 = vld [vmem:[%s9 + $0x348] sm:$0x1]
  %v4422 = vld [vmem:[%s9 + $0x350] sm:$0x1]
  %v4423 = vsel %vm216, %v4393, 0.0
  %4424 = vadd.xlane.f32.xlu0 %v4423
  %v4425 = vpop.xlane.xlu0 %4424
  %v4426 = vsel %vm216, %v4398, 0.0
  %4427 = vadd.xlane.f32.xlu0 %v4426
  %v4428 = vpop.xlane.xlu0 %4427
  %v4429 = vsel %vm216, %v4403, 0.0
  %4430 = vadd.xlane.f32.xlu0 %v4429
  %v4431 = vpop.xlane.xlu0 %4430
  %v4432 = vsel %vm216, %v4408, 0.0
  %4433 = vadd.xlane.f32.xlu0 %v4432
  %v4434 = vpop.xlane.xlu0 %4433
  %v4435 = vsel %vm216, %v4413, 0.0
  %4436 = vadd.xlane.f32.xlu0 %v4435
  %v4437 = vpop.xlane.xlu0 %4436
  %v4438 = vsel %vm216, %v4418, 0.0
  %4439 = vadd.xlane.f32.xlu0 %v4438
  %v4440 = vpop.xlane.xlu0 %4439
  %v4441 = vmul.f32 %v4425, %v558
  %v4442 = vmul.f32 %v4428, %v558
  %v4443 = vmul.f32 %v4431, %v558
  %v4444 = vmul.f32 %v4434, %v558
  %v4445 = vmul.f32 %v4437, %v558
  %v4446 = vmul.f32 %v4440, %v558
  %v4447 = vsub.f32 %v4393, %v4441
  %v4448 = vsub.f32 %v4398, %v4442
  %v4449 = vsub.f32 %v4403, %v4443
  %v4450 = vsub.f32 %v4408, %v4444
  %v4451 = vsub.f32 %v4413, %v4445
  %v4452 = vsub.f32 %v4418, %v4446
  %v4453 = vmul.f32 %v4447, %v4447
  %v4454 = vmul.f32 %v4448, %v4448
  %v4455 = vmul.f32 %v4449, %v4449
  %v4456 = vmul.f32 %v4450, %v4450
  %v4457 = vmul.f32 %v4451, %v4451
  %v4458 = vmul.f32 %v4452, %v4452
  %v4459 = vsel %vm216, %v4453, 0.0
  %4460 = vadd.xlane.f32.xlu0 %v4459
  %v4461 = vpop.xlane.xlu0 %4460
  %v4462 = vsel %vm216, %v4454, 0.0
  %4463 = vadd.xlane.f32.xlu0 %v4462
  %v4464 = vpop.xlane.xlu0 %4463
  %v4465 = vsel %vm216, %v4455, 0.0
  %4466 = vadd.xlane.f32.xlu0 %v4465
  %v4467 = vpop.xlane.xlu0 %4466
  %v4468 = vsel %vm216, %v4456, 0.0
  %4469 = vadd.xlane.f32.xlu0 %v4468
  %v4470 = vpop.xlane.xlu0 %4469
  %v4471 = vsel %vm216, %v4457, 0.0
  %4472 = vadd.xlane.f32.xlu0 %v4471
  %v4473 = vpop.xlane.xlu0 %4472
  %v4474 = vsel %vm216, %v4458, 0.0
  %4475 = vadd.xlane.f32.xlu0 %v4474
  %v4476 = vpop.xlane.xlu0 %4475
  %v4477 = vmul.f32 %v4461, %v558
  %v4478 = vmul.f32 %v4464, %v558
  %v4479 = vmul.f32 %v4467, %v558
  %v4480 = vmul.f32 %v4470, %v558
  %v4481 = vmul.f32 %v4473, %v558
  %v4482 = vmul.f32 %v4476, %v558
  %v4483 = vadd.f32 %v4477, 1e-05
  %v4484 = vadd.f32 %v4478, 1e-05
  %v4485 = vadd.f32 %v4479, 1e-05
  %v4486 = vadd.f32 %v4480, 1e-05
  %v4487 = vadd.f32 %v4481, 1e-05
  %v4488 = vadd.f32 %v4482, 1e-05
  %v4489 = vrsqrt.pop %v4483
  %v4490 = vrsqrt.pop %v4484
  %v4491 = vrsqrt.pop %v4485
  %v4492 = vrsqrt.pop %v4486
  %v4493 = vrsqrt.pop %v4487
  %v4494 = vrsqrt.pop %v4488
  %v4495 = vmul.f32 %v4447, %v4489
  %v4496 = vmul.f32 %v4448, %v4490
  %v4497 = vmul.f32 %v4449, %v4491
  %v4498 = vmul.f32 %v4450, %v4492
  %v4499 = vmul.f32 %v4451, %v4493
  %v4500 = vmul.f32 %v4452, %v4494
  %v4501 = vlaneseq
  %v4502 = vshrl.u32 %v4501, 7
  %v4503 = vsub.s32 0, %v4502
  %v4504 = vrot.slane %v4421, %v4503
  %v4505 = vmul.f32 %v4495, %v4504
  %v4506 = vmul.f32 %v4496, %v4504
  %v4507 = vmul.f32 %v4497, %v4504
  %v4508 = vmul.f32 %v4498, %v4504
  %v4509 = vmul.f32 %v4499, %v4504
  %v4510 = vmul.f32 %v4500, %v4504
  %v4511 = vlaneseq
  %v4512 = vshrl.u32 %v4511, 7
  %v4513 = vsub.s32 0, %v4512
  %v4514 = vrot.slane %v4422, %v4513
  %v4515 = vadd.f32 %v4505, %v4514
  %v4516 = vadd.f32 %v4506, %v4514
  %v4517 = vadd.f32 %v4507, %v4514
  %v4518 = vadd.f32 %v4508, %v4514
  %v4519 = vadd.f32 %v4509, %v4514
  %v4520 = vadd.f32 %v4510, %v4514
  %v4521 = vadd.f32 %v1895, %v4515
  %v4522 = vadd.f32 %v1896, %v4516
  %v4523 = vadd.f32 %v1897, %v4517
  %v4524 = vadd.f32 %v1898, %v4518
  %v4525 = vadd.f32 %v1899, %v4519
  %v4526 = vadd.f32 %v1900, %v4520
  %v4527 = vlaneseq
  %v4528 = vshrl.u32 %v4527, 7
  %v4529 = vadd.s32 %v4528, 8
  %v4530 = vadd.s32 %v4528, 16
  %v4531 = vadd.s32 %v4528, 24
  %v4532 = vadd.s32 %v4528, 32
  %v4533 = vadd.s32 %v4528, 40
  %v4534 = vadd.s32 %v4528, 48
  %v4535 = vadd.s32 %v4528, 56
  %v4536 = vlaneseq
  %v4537 = vshrl.u32 %v4536, 7
  %v4538 = vsub.s32 0, %v4537
  %v4539 = vrot.slane %v1925, %v4538
  %vm4540 = vcmp.eq.s32.totalorder %v4528, %v4539
  %vm4541 = vcmp.eq.s32.totalorder %v4529, %v4539
  %vm4542 = vcmp.eq.s32.totalorder %v4530, %v4539
  %vm4543 = vcmp.eq.s32.totalorder %v4531, %v4539
  %vm4544 = vcmp.eq.s32.totalorder %v4532, %v4539
  %vm4545 = vcmp.eq.s32.totalorder %v4533, %v4539
  %vm4546 = vcmp.eq.s32.totalorder %v4534, %v4539
  %vm4547 = vcmp.eq.s32.totalorder %v4535, %v4539
  %v4548 = vsel %vm4540, 1, 0
  %v4549 = vsel %vm4541, 1, 0
  %v4550 = vsel %vm4542, 1, 0
  %v4551 = vsel %vm4543, 1, 0
  %v4552 = vsel %vm4544, 1, 0
  %v4553 = vsel %vm4545, 1, 0
  %v4554 = vsel %vm4546, 1, 0
  %v4555 = vsel %vm4547, 1, 0
  %v4556 = vcvt.s32.f32 %v4548
  %v4557 = vcvt.s32.f32 %v4549
  %v4558 = vcvt.s32.f32 %v4550
  %v4559 = vcvt.s32.f32 %v4551
  %v4560 = vcvt.s32.f32 %v4552
  %v4561 = vcvt.s32.f32 %v4553
  %v4562 = vcvt.s32.f32 %v4554
  %v4563 = vcvt.s32.f32 %v4555
  %vm4564 = vcmask 785408
  %v4566 = vsel %vm4564, %v4556, 0
  %v4569 = vsel %vm4564, %v4557, 0
  %v4572 = vsel %vm4564, %v4558, 0
  %v4575 = vsel %vm4564, %v4559, 0
  %v4578 = vsel %vm4564, %v4560, 0
  %v4581 = vsel %vm4564, %v4561, 0
  %v4584 = vsel %vm4564, %v4562, 0
  %v4587 = vsel %vm4564, %v4563, 0
  %4589 = vmatprep.subr.mxu0 0.0
  %4590 = vmatpush1.msra.mxu0 %v3486
  %4591 = vmatprep.subr.mxu0 0.0
  %4592 = vmatpush1.msra.mxu0 %v3487
  %4593 = vmatprep.subr.mxu0 0.0
  %4594 = vmatpush1.msra.mxu0 %v3488
  %4595 = vmatprep.subr.mxu0 0.0
  %4596 = vmatpush1.msra.mxu0 %v3489
  %4597 = vmatprep.subr.mxu0 0.0
  %4598 = vmatpush1.msra.mxu0 %v3490
  %4599 = vmatprep.subr.mxu0 0.0
  %4600 = vmatpush1.msra.mxu0 %v3491
  %4601 = vmatprep.subr.mxu0 0.0
  %4602 = vmatpush1.msra.mxu0 %v3492
  %4603 = vmatprep.subr.mxu0 0.0
  %4604 = vmatpush1.msra.mxu0 %v3493
  %4605 = vmatprep.subr.mxu0 0.0
  %4606 = vmatpush1.msra.mxu0 %v3494
  %4607 = vmatprep.subr.mxu0 0.0
  %4608 = vmatpush1.msra.mxu0 %v3495
  %4609 = vmatprep.subr.mxu0 0.0
  %4610 = vmatpush1.msra.mxu0 %v3496
  %4611 = vmatprep.subr.mxu0 0.0
  %4612 = vmatpush1.msra.mxu0 %v3497
  %4613 = vmatprep.subr.mxu0 0.0
  %4614 = vmatpush1.msra.mxu0 0.0
  %4615 = vmatprep.subr.mxu0 0.0
  %4616 = vmatpush1.msra.mxu0 0.0
  %4617 = vmatprep.subr.mxu0 0.0
  %4618 = vmatpush1.msra.mxu0 0.0
  %4619 = vmatprep.subr.mxu0 0.0
  %4620 = vmatpush1.msra.mxu0 0.0
  %4621 = vmatprep.subr.mxu0 0.0
  %4622 = vmatpush1.msra.mxu0 0.0
  %4623 = vmatprep.subr.mxu0 0.0
  %4624 = vmatpush1.msra.mxu0 0.0
  %4625 = vmatprep.subr.mxu0 0.0
  %4626 = vmatpush1.msra.mxu0 0.0
  %4627 = vmatprep.subr.mxu0 0.0
  %4628 = vmatpush1.msra.mxu0 0.0
  %4629 = vmatprep.subr.mxu0 0.0
  %4630 = vmatpush1.msra.mxu0 0.0
  %4631 = vmatprep.subr.mxu0 0.0
  %4632 = vmatpush1.msra.mxu0 0.0
  %4633 = vmatprep.subr.mxu0 0.0
  %4634 = vmatpush1.msra.mxu0 0.0
  %4635 = vmatprep.subr.mxu0 0.0
  %4636 = vmatpush1.msra.mxu0 0.0
  %4637 = vmatprep.subr.mxu0 0.0
  %4638 = vmatpush1.msra.mxu0 0.0
  %4639 = vmatprep.subr.mxu0 0.0
  %4640 = vmatpush1.msra.mxu0 0.0
  %4641 = vmatprep.subr.mxu0 0.0
  %4642 = vmatpush1.msra.mxu0 0.0
  %4643 = vmatprep.subr.mxu0 0.0
  %4644 = vmatpush1.msra.mxu0 0.0
  %4645 = vmatprep.subr.mxu0 0.0
  %4646 = vmatpush1.msra.mxu0 0.0
  %4647 = vmatprep.subr.mxu0 0.0
  %4648 = vmatpush1.msra.mxu0 0.0
  %4649 = vmatprep.subr.mxu0 0.0
  %4650 = vmatpush1.msra.mxu0 0.0
  %4651 = vmatprep.subr.mxu0 0.0
  %4652 = vmatpush1.msra.mxu0 0.0
  %4653 = vmatprep.mubr.f32.mxu0 0.0
  %4654 = vmatmul.mubr.f32.gmra.mrb[0].mxu0 %v4566
  %v4655 = vpop.f32.mrb[0].mxu0
  %v4656 = vadd.f32 0.0, %v4655
  %v4657 = vpop.f32.mrb[0].mxu0
  %4658 = vmatprep.mubr.f32.mxu0 0.0
  %4659 = vmatmul.mubr.f32.gmra.mrb[0].mxu0 %v4569
  %v4660 = vpop.f32.mrb[0].mxu0
  %v4661 = vadd.f32 0.0, %v4660
  %v4662 = vpop.f32.mrb[0].mxu0
  %4663 = vmatprep.mubr.f32.mxu0 0.0
  %4664 = vmatmul.mubr.f32.gmra.mrb[0].mxu0 %v4572
  %v4665 = vpop.f32.mrb[0].mxu0
  %v4666 = vadd.f32 0.0, %v4665
  %v4667 = vpop.f32.mrb[0].mxu0
  %4668 = vmatprep.mubr.f32.mxu0 0.0
  %4669 = vmatmul.mubr.f32.gmra.mrb[0].mxu0 %v4575
  %v4670 = vpop.f32.mrb[0].mxu0
  %v4671 = vadd.f32 0.0, %v4670
  %v4672 = vpop.f32.mrb[0].mxu0
  %4673 = vmatprep.mubr.f32.mxu0 0.0
  %4674 = vmatmul.mubr.f32.gmra.mrb[0].mxu0 %v4578
  %v4675 = vpop.f32.mrb[0].mxu0
  %v4676 = vadd.f32 0.0, %v4675
  %v4677 = vpop.f32.mrb[0].mxu0
  %4678 = vmatprep.mubr.f32.mxu0 0.0
  %4679 = vmatmul.mubr.f32.gmra.mrb[0].mxu0 %v4581
  %v4680 = vpop.f32.mrb[0].mxu0
  %v4681 = vadd.f32 0.0, %v4680
  %v4682 = vpop.f32.mrb[0].mxu0
  %4683 = vmatprep.mubr.f32.mxu0 0.0
  %4684 = vmatmul.mubr.f32.gmra.mrb[0].mxu0 %v4584
  %v4685 = vpop.f32.mrb[0].mxu0
  %v4686 = vadd.f32 0.0, %v4685
  %v4687 = vpop.f32.mrb[0].mxu0
  %4688 = vmatprep.mubr.f32.mxu0 0.0
  %4689 = vmatmul.mubr.f32.gmra.mrb[0].mxu0 %v4587
  %v4690 = vpop.f32.mrb[0].mxu0
  %v4691 = vadd.f32 0.0, %v4690
  %v4692 = vpop.f32.mrb[0].mxu0
  %4693 = vdwg.mxu0
  %v4694 = vlaneseq
  %v4695 = vshrl.u32 %v4694, 7
  %v4696 = vsub.s32 0, %v4695
  %v4697 = vrot.slane %v1938, %v4696
  %vm4698 = vcmp.eq.s32.totalorder %v4528, %v4697
  %vm4699 = vcmp.eq.s32.totalorder %v4529, %v4697
  %vm4700 = vcmp.eq.s32.totalorder %v4530, %v4697
  %vm4701 = vcmp.eq.s32.totalorder %v4531, %v4697
  %vm4702 = vcmp.eq.s32.totalorder %v4532, %v4697
  %vm4703 = vcmp.eq.s32.totalorder %v4533, %v4697
  %vm4704 = vcmp.eq.s32.totalorder %v4534, %v4697
  %vm4705 = vcmp.eq.s32.totalorder %v4535, %v4697
  %v4706 = vsel %vm4698, 1, 0
  %v4707 = vsel %vm4699, 1, 0
  %v4708 = vsel %vm4700, 1, 0
  %v4709 = vsel %vm4701, 1, 0
  %v4710 = vsel %vm4702, 1, 0
  %v4711 = vsel %vm4703, 1, 0
  %v4712 = vsel %vm4704, 1, 0
  %v4713 = vsel %vm4705, 1, 0
  %v4714 = vcvt.s32.f32 %v4706
  %v4715 = vcvt.s32.f32 %v4707
  %v4716 = vcvt.s32.f32 %v4708
  %v4717 = vcvt.s32.f32 %v4709
  %v4718 = vcvt.s32.f32 %v4710
  %v4719 = vcvt.s32.f32 %v4711
  %v4720 = vcvt.s32.f32 %v4712
  %v4721 = vcvt.s32.f32 %v4713
  %vm4722 = vcmask 392192
  %v4724 = vsel %vm4722, %v4714, 0
  %v4727 = vsel %vm4722, %v4715, 0
  %v4730 = vsel %vm4722, %v4716, 0
  %v4733 = vsel %vm4722, %v4717, 0
  %v4736 = vsel %vm4722, %v4718, 0
  %v4739 = vsel %vm4722, %v4719, 0
  %v4742 = vsel %vm4722, %v4720, 0
  %v4745 = vsel %vm4722, %v4721, 0
  %4747 = vmatprep.subr.mxu0 0.0
  %4748 = vmatpush1.msra.mxu0 %v4521
  %4749 = vmatprep.subr.mxu0 0.0
  %4750 = vmatpush1.msra.mxu0 %v4522
  %4751 = vmatprep.subr.mxu0 0.0
  %4752 = vmatpush1.msra.mxu0 %v4523
  %4753 = vmatprep.subr.mxu0 0.0
  %4754 = vmatpush1.msra.mxu0 %v4524
  %4755 = vmatprep.subr.mxu0 0.0
  %4756 = vmatpush1.msra.mxu0 %v4525
  %4757 = vmatprep.subr.mxu0 0.0
  %4758 = vmatpush1.msra.mxu0 %v4526
  %4759 = vmatprep.subr.mxu0 0.0
  %4760 = vmatpush1.msra.mxu0 0.0
  %4761 = vmatprep.subr.mxu0 0.0
  %4762 = vmatpush1.msra.mxu0 0.0
  %4763 = vmatprep.subr.mxu0 0.0
  %4764 = vmatpush1.msra.mxu0 0.0
  %4765 = vmatprep.subr.mxu0 0.0
  %4766 = vmatpush1.msra.mxu0 0.0
  %4767 = vmatprep.subr.mxu0 0.0
  %4768 = vmatpush1.msra.mxu0 0.0
  %4769 = vmatprep.subr.mxu0 0.0
  %4770 = vmatpush1.msra.mxu0 0.0
  %4771 = vmatprep.subr.mxu0 0.0
  %4772 = vmatpush1.msra.mxu0 0.0
  %4773 = vmatprep.subr.mxu0 0.0
  %4774 = vmatpush1.msra.mxu0 0.0
  %4775 = vmatprep.subr.mxu0 0.0
  %4776 = vmatpush1.msra.mxu0 0.0
  %4777 = vmatprep.subr.mxu0 0.0
  %4778 = vmatpush1.msra.mxu0 0.0
  %4779 = vmatprep.subr.mxu0 0.0
  %4780 = vmatpush1.msra.mxu0 0.0
  %4781 = vmatprep.subr.mxu0 0.0
  %4782 = vmatpush1.msra.mxu0 0.0
  %4783 = vmatprep.subr.mxu0 0.0
  %4784 = vmatpush1.msra.mxu0 0.0
  %4785 = vmatprep.subr.mxu0 0.0
  %4786 = vmatpush1.msra.mxu0 0.0
  %4787 = vmatprep.subr.mxu0 0.0
  %4788 = vmatpush1.msra.mxu0 0.0
  %4789 = vmatprep.subr.mxu0 0.0
  %4790 = vmatpush1.msra.mxu0 0.0
  %4791 = vmatprep.subr.mxu0 0.0
  %4792 = vmatpush1.msra.mxu0 0.0
  %4793 = vmatprep.subr.mxu0 0.0
  %4794 = vmatpush1.msra.mxu0 0.0
  %4795 = vmatprep.subr.mxu0 0.0
  %4796 = vmatpush1.msra.mxu0 0.0
  %4797 = vmatprep.subr.mxu0 0.0
  %4798 = vmatpush1.msra.mxu0 0.0
  %4799 = vmatprep.subr.mxu0 0.0
  %4800 = vmatpush1.msra.mxu0 0.0
  %4801 = vmatprep.subr.mxu0 0.0
  %4802 = vmatpush1.msra.mxu0 0.0
  %4803 = vmatprep.subr.mxu0 0.0
  %4804 = vmatpush1.msra.mxu0 0.0
  %4805 = vmatprep.subr.mxu0 0.0
  %4806 = vmatpush1.msra.mxu0 0.0
  %4807 = vmatprep.subr.mxu0 0.0
  %4808 = vmatpush1.msra.mxu0 0.0
  %4809 = vmatprep.subr.mxu0 0.0
  %4810 = vmatpush1.msra.mxu0 0.0
  %4811 = vmatprep.mubr.f32.mxu0 0.0
  %4812 = vmatmul.mubr.f32.gmra.mrb[0].mxu0 %v4724
  %v4813 = vpop.f32.mrb[0].mxu0
  %v4814 = vadd.f32 0.0, %v4813
  %v4815 = vpop.f32.mrb[0].mxu0
  %4816 = vmatprep.mubr.f32.mxu0 0.0
  %4817 = vmatmul.mubr.f32.gmra.mrb[0].mxu0 %v4727
  %v4818 = vpop.f32.mrb[0].mxu0
  %v4819 = vadd.f32 0.0, %v4818
  %v4820 = vpop.f32.mrb[0].mxu0
  %4821 = vmatprep.mubr.f32.mxu0 0.0
  %4822 = vmatmul.mubr.f32.gmra.mrb[0].mxu0 %v4730
  %v4823 = vpop.f32.mrb[0].mxu0
  %v4824 = vadd.f32 0.0, %v4823
  %v4825 = vpop.f32.mrb[0].mxu0
  %4826 = vmatprep.mubr.f32.mxu0 0.0
  %4827 = vmatmul.mubr.f32.gmra.mrb[0].mxu0 %v4733
  %v4828 = vpop.f32.mrb[0].mxu0
  %v4829 = vadd.f32 0.0, %v4828
  %v4830 = vpop.f32.mrb[0].mxu0
  %4831 = vmatprep.mubr.f32.mxu0 0.0
  %4832 = vmatmul.mubr.f32.gmra.mrb[0].mxu0 %v4736
  %v4833 = vpop.f32.mrb[0].mxu0
  %v4834 = vadd.f32 0.0, %v4833
  %v4835 = vpop.f32.mrb[0].mxu0
  %4836 = vmatprep.mubr.f32.mxu0 0.0
  %4837 = vmatmul.mubr.f32.gmra.mrb[0].mxu0 %v4739
  %v4838 = vpop.f32.mrb[0].mxu0
  %v4839 = vadd.f32 0.0, %v4838
  %v4840 = vpop.f32.mrb[0].mxu0
  %4841 = vmatprep.mubr.f32.mxu0 0.0
  %4842 = vmatmul.mubr.f32.gmra.mrb[0].mxu0 %v4742
  %v4843 = vpop.f32.mrb[0].mxu0
  %v4844 = vadd.f32 0.0, %v4843
  %v4845 = vpop.f32.mrb[0].mxu0
  %4846 = vmatprep.mubr.f32.mxu0 0.0
  %4847 = vmatmul.mubr.f32.gmra.mrb[0].mxu0 %v4745
  %v4848 = vpop.f32.mrb[0].mxu0
  %v4849 = vadd.f32 0.0, %v4848
  %v4850 = vpop.f32.mrb[0].mxu0
  %4851 = vdwg.mxu0
  %v4852 = vld [vmem:[%s9 + $0x358] sm:$0xff]
  %v4853 = vld [vmem:[%s9 + $0x360] sm:$0xff]
  %v4854 = vld [vmem:[%s9 + $0x368] sm:$0xff]
  %v4855 = vld [vmem:[%s9 + $0x370] sm:$0xff]
  %v4856 = vld [vmem:[%s9 + $0x378] sm:$0xff]
  %v4857 = vld [vmem:[%s9 + $0x380] sm:$0xff]
  %v4858 = vld [vmem:[%s9 + $0x388] sm:$0xff]
  %v4859 = vld [vmem:[%s9 + $0x390] sm:$0xff]
  %v4861 = vsel %vm216, %v4656, 0
  %v4864 = vsel %vm216, %v4661, 0
  %v4867 = vsel %vm216, %v4666, 0
  %v4870 = vsel %vm216, %v4671, 0
  %v4873 = vsel %vm216, %v4676, 0
  %v4876 = vsel %vm216, %v4681, 0
  %v4879 = vsel %vm216, %v4686, 0
  %v4882 = vsel %vm216, %v4691, 0
  %4884 = vmatprep.subr.mxu0 0.0
  %4885 = vmatpush1.msra.mxu0 %v4856
  %4886 = vmatprep.subr.mxu0 0.0
  %4887 = vmatpush1.msra.mxu0 %v4857
  %4888 = vmatprep.subr.mxu0 0.0
  %4889 = vmatpush1.msra.mxu0 %v4858
  %4890 = vmatprep.subr.mxu0 0.0
  %4891 = vmatpush1.msra.mxu0 %v4859
  %4892 = vmatprep.subr.mxu0 0.0
  %4893 = vmatpush1.msra.mxu0 0.0
  %4894 = vmatprep.subr.mxu0 0.0
  %4895 = vmatpush1.msra.mxu0 0.0
  %4896 = vmatprep.subr.mxu0 0.0
  %4897 = vmatpush1.msra.mxu0 0.0
  %4898 = vmatprep.subr.mxu0 0.0
  %4899 = vmatpush1.msra.mxu0 0.0
  %4900 = vmatprep.subr.mxu0 0.0
  %4901 = vmatpush1.msra.mxu0 0.0
  %4902 = vmatprep.subr.mxu0 0.0
  %4903 = vmatpush1.msra.mxu0 0.0
  %4904 = vmatprep.subr.mxu0 0.0
  %4905 = vmatpush1.msra.mxu0 0.0
  %4906 = vmatprep.subr.mxu0 0.0
  %4907 = vmatpush1.msra.mxu0 0.0
  %4908 = vmatprep.subr.mxu0 0.0
  %4909 = vmatpush1.msra.mxu0 0.0
  %4910 = vmatprep.subr.mxu0 0.0
  %4911 = vmatpush1.msra.mxu0 0.0
  %4912 = vmatprep.subr.mxu0 0.0
  %4913 = vmatpush1.msra.mxu0 0.0
  %4914 = vmatprep.subr.mxu0 0.0
  %4915 = vmatpush1.msra.mxu0 0.0
  %4916 = vmatprep.subr.mxu0 0.0
  %4917 = vmatpush1.msra.mxu0 0.0
  %4918 = vmatprep.subr.mxu0 0.0
  %4919 = vmatpush1.msra.mxu0 0.0
  %4920 = vmatprep.subr.mxu0 0.0
  %4921 = vmatpush1.msra.mxu0 0.0
  %4922 = vmatprep.subr.mxu0 0.0
  %4923 = vmatpush1.msra.mxu0 0.0
  %4924 = vmatprep.subr.mxu0 0.0
  %4925 = vmatpush1.msra.mxu0 0.0
  %4926 = vmatprep.subr.mxu0 0.0
  %4927 = vmatpush1.msra.mxu0 0.0
  %4928 = vmatprep.subr.mxu0 0.0
  %4929 = vmatpush1.msra.mxu0 0.0
  %4930 = vmatprep.subr.mxu0 0.0
  %4931 = vmatpush1.msra.mxu0 0.0
  %4932 = vmatprep.subr.mxu0 0.0
  %4933 = vmatpush1.msra.mxu0 0.0
  %4934 = vmatprep.subr.mxu0 0.0
  %4935 = vmatpush1.msra.mxu0 0.0
  %4936 = vmatprep.subr.mxu0 0.0
  %4937 = vmatpush1.msra.mxu0 0.0
  %4938 = vmatprep.subr.mxu0 0.0
  %4939 = vmatpush1.msra.mxu0 0.0
  %4940 = vmatprep.subr.mxu0 0.0
  %4941 = vmatpush1.msra.mxu0 0.0
  %4942 = vmatprep.subr.mxu0 0.0
  %4943 = vmatpush1.msra.mxu0 0.0
  %4944 = vmatprep.subr.mxu0 0.0
  %4945 = vmatpush1.msra.mxu0 0.0
  %4946 = vmatprep.subr.mxu0 0.0
  %4947 = vmatpush1.msra.mxu0 0.0
  %4948 = vmatprep.mubr.f32.mxu0 0.0
  %4949 = vmatmul.mubr.f32.gmra.mrb[0].mxu0 %v4861
  %v4950 = vpop.f32.mrb[0].mxu0
  %v4951 = vadd.f32 0.0, %v4950
  %v4952 = vpop.f32.mrb[0].mxu0
  %4953 = vmatprep.mubr.f32.mxu0 0.0
  %4954 = vmatmul.mubr.f32.gmra.mrb[0].mxu0 %v4864
  %v4955 = vpop.f32.mrb[0].mxu0
  %v4956 = vadd.f32 0.0, %v4955
  %v4957 = vpop.f32.mrb[0].mxu0
  %4958 = vmatprep.mubr.f32.mxu0 0.0
  %4959 = vmatmul.mubr.f32.gmra.mrb[0].mxu0 %v4867
  %v4960 = vpop.f32.mrb[0].mxu0
  %v4961 = vadd.f32 0.0, %v4960
  %v4962 = vpop.f32.mrb[0].mxu0
  %4963 = vmatprep.mubr.f32.mxu0 0.0
  %4964 = vmatmul.mubr.f32.gmra.mrb[0].mxu0 %v4870
  %v4965 = vpop.f32.mrb[0].mxu0
  %v4966 = vadd.f32 0.0, %v4965
  %v4967 = vpop.f32.mrb[0].mxu0
  %4968 = vmatprep.mubr.f32.mxu0 0.0
  %4969 = vmatmul.mubr.f32.gmra.mrb[0].mxu0 %v4873
  %v4970 = vpop.f32.mrb[0].mxu0
  %v4971 = vadd.f32 0.0, %v4970
  %v4972 = vpop.f32.mrb[0].mxu0
  %4973 = vmatprep.mubr.f32.mxu0 0.0
  %4974 = vmatmul.mubr.f32.gmra.mrb[0].mxu0 %v4876
  %v4975 = vpop.f32.mrb[0].mxu0
  %v4976 = vadd.f32 0.0, %v4975
  %v4977 = vpop.f32.mrb[0].mxu0
  %4978 = vmatprep.mubr.f32.mxu0 0.0
  %4979 = vmatmul.mubr.f32.gmra.mrb[0].mxu0 %v4879
  %v4980 = vpop.f32.mrb[0].mxu0
  %v4981 = vadd.f32 0.0, %v4980
  %v4982 = vpop.f32.mrb[0].mxu0
  %4983 = vmatprep.mubr.f32.mxu0 0.0
  %4984 = vmatmul.mubr.f32.gmra.mrb[0].mxu0 %v4882
  %v4985 = vpop.f32.mrb[0].mxu0
  %v4986 = vadd.f32 0.0, %v4985
  %v4987 = vpop.f32.mrb[0].mxu0
  %4988 = vdwg.mxu0
  %v4990 = vsel %vm216, %v677, 0
  %v4993 = vsel %vm216, %v678, 0
  %v4996 = vsel %vm216, %v679, 0
  %v4999 = vsel %vm216, %v680, 0
  %v5002 = vsel %vm216, %v681, 0
  %v5005 = vsel %vm216, %v682, 0
  %v5008 = vsel %vm216, %v683, 0
  %v5011 = vsel %vm216, %v684, 0
  %5013 = vmatprep.subr.mxu0 0.0
  %5014 = vmatpush1.msra.mxu0 %v4852
  %5015 = vmatprep.subr.mxu0 0.0
  %5016 = vmatpush1.msra.mxu0 %v4853
  %5017 = vmatprep.subr.mxu0 0.0
  %5018 = vmatpush1.msra.mxu0 %v4854
  %5019 = vmatprep.subr.mxu0 0.0
  %5020 = vmatpush1.msra.mxu0 %v4855
  %5021 = vmatprep.subr.mxu0 0.0
  %5022 = vmatpush1.msra.mxu0 0.0
  %5023 = vmatprep.subr.mxu0 0.0
  %5024 = vmatpush1.msra.mxu0 0.0
  %5025 = vmatprep.subr.mxu0 0.0
  %5026 = vmatpush1.msra.mxu0 0.0
  %5027 = vmatprep.subr.mxu0 0.0
  %5028 = vmatpush1.msra.mxu0 0.0
  %5029 = vmatprep.subr.mxu0 0.0
  %5030 = vmatpush1.msra.mxu0 0.0
  %5031 = vmatprep.subr.mxu0 0.0
  %5032 = vmatpush1.msra.mxu0 0.0
  %5033 = vmatprep.subr.mxu0 0.0
  %5034 = vmatpush1.msra.mxu0 0.0
  %5035 = vmatprep.subr.mxu0 0.0
  %5036 = vmatpush1.msra.mxu0 0.0
  %5037 = vmatprep.subr.mxu0 0.0
  %5038 = vmatpush1.msra.mxu0 0.0
  %5039 = vmatprep.subr.mxu0 0.0
  %5040 = vmatpush1.msra.mxu0 0.0
  %5041 = vmatprep.subr.mxu0 0.0
  %5042 = vmatpush1.msra.mxu0 0.0
  %5043 = vmatprep.subr.mxu0 0.0
  %5044 = vmatpush1.msra.mxu0 0.0
  %5045 = vmatprep.subr.mxu0 0.0
  %5046 = vmatpush1.msra.mxu0 0.0
  %5047 = vmatprep.subr.mxu0 0.0
  %5048 = vmatpush1.msra.mxu0 0.0
  %5049 = vmatprep.subr.mxu0 0.0
  %5050 = vmatpush1.msra.mxu0 0.0
  %5051 = vmatprep.subr.mxu0 0.0
  %5052 = vmatpush1.msra.mxu0 0.0
  %5053 = vmatprep.subr.mxu0 0.0
  %5054 = vmatpush1.msra.mxu0 0.0
  %5055 = vmatprep.subr.mxu0 0.0
  %5056 = vmatpush1.msra.mxu0 0.0
  %5057 = vmatprep.subr.mxu0 0.0
  %5058 = vmatpush1.msra.mxu0 0.0
  %5059 = vmatprep.subr.mxu0 0.0
  %5060 = vmatpush1.msra.mxu0 0.0
  %5061 = vmatprep.subr.mxu0 0.0
  %5062 = vmatpush1.msra.mxu0 0.0
  %5063 = vmatprep.subr.mxu0 0.0
  %5064 = vmatpush1.msra.mxu0 0.0
  %5065 = vmatprep.subr.mxu0 0.0
  %5066 = vmatpush1.msra.mxu0 0.0
  %5067 = vmatprep.subr.mxu0 0.0
  %5068 = vmatpush1.msra.mxu0 0.0
  %5069 = vmatprep.subr.mxu0 0.0
  %5070 = vmatpush1.msra.mxu0 0.0
  %5071 = vmatprep.subr.mxu0 0.0
  %5072 = vmatpush1.msra.mxu0 0.0
  %5073 = vmatprep.subr.mxu0 0.0
  %5074 = vmatpush1.msra.mxu0 0.0
  %5075 = vmatprep.subr.mxu0 0.0
  %5076 = vmatpush1.msra.mxu0 0.0
  %5077 = vmatprep.mubr.f32.mxu0 0.0
  %5078 = vmatmul.mubr.f32.gmra.mrb[0].mxu0 %v4990
  %v5079 = vpop.f32.mrb[0].mxu0
  %v5080 = vadd.f32 %v4951, %v5079
  %v5081 = vpop.f32.mrb[0].mxu0
  %5082 = vmatprep.mubr.f32.mxu0 0.0
  %5083 = vmatmul.mubr.f32.gmra.mrb[0].mxu0 %v4993
  %v5084 = vpop.f32.mrb[0].mxu0
  %v5085 = vadd.f32 %v4956, %v5084
  %v5086 = vpop.f32.mrb[0].mxu0
  %5087 = vmatprep.mubr.f32.mxu0 0.0
  %5088 = vmatmul.mubr.f32.gmra.mrb[0].mxu0 %v4996
  %v5089 = vpop.f32.mrb[0].mxu0
  %v5090 = vadd.f32 %v4961, %v5089
  %v5091 = vpop.f32.mrb[0].mxu0
  %5092 = vmatprep.mubr.f32.mxu0 0.0
  %5093 = vmatmul.mubr.f32.gmra.mrb[0].mxu0 %v4999
  %v5094 = vpop.f32.mrb[0].mxu0
  %v5095 = vadd.f32 %v4966, %v5094
  %v5096 = vpop.f32.mrb[0].mxu0
  %5097 = vmatprep.mubr.f32.mxu0 0.0
  %5098 = vmatmul.mubr.f32.gmra.mrb[0].mxu0 %v5002
  %v5099 = vpop.f32.mrb[0].mxu0
  %v5100 = vadd.f32 %v4971, %v5099
  %v5101 = vpop.f32.mrb[0].mxu0
  %5102 = vmatprep.mubr.f32.mxu0 0.0
  %5103 = vmatmul.mubr.f32.gmra.mrb[0].mxu0 %v5005
  %v5104 = vpop.f32.mrb[0].mxu0
  %v5105 = vadd.f32 %v4976, %v5104
  %v5106 = vpop.f32.mrb[0].mxu0
  %5107 = vmatprep.mubr.f32.mxu0 0.0
  %5108 = vmatmul.mubr.f32.gmra.mrb[0].mxu0 %v5008
  %v5109 = vpop.f32.mrb[0].mxu0
  %v5110 = vadd.f32 %v4981, %v5109
  %v5111 = vpop.f32.mrb[0].mxu0
  %5112 = vmatprep.mubr.f32.mxu0 0.0
  %5113 = vmatmul.mubr.f32.gmra.mrb[0].mxu0 %v5011
  %v5114 = vpop.f32.mrb[0].mxu0
  %v5115 = vadd.f32 %v4986, %v5114
  %v5116 = vpop.f32.mrb[0].mxu0
  %5117 = vdwg.mxu0
  %v5118 = vld [vmem:[%s9 + $0x398] sm:$0xff]
  %v5119 = vld [vmem:[%s9 + $0x3a0] sm:$0xff]
  %v5120 = vld [vmem:[%s9 + $0x3a8] sm:$0xff]
  %v5121 = vld [vmem:[%s9 + $0x3b0] sm:$0xff]
  %v5123 = vsel %vm216, %v4814, 0
  %v5126 = vsel %vm216, %v4819, 0
  %v5129 = vsel %vm216, %v4824, 0
  %v5132 = vsel %vm216, %v4829, 0
  %v5135 = vsel %vm216, %v4834, 0
  %v5138 = vsel %vm216, %v4839, 0
  %v5141 = vsel %vm216, %v4844, 0
  %v5144 = vsel %vm216, %v4849, 0
  %5146 = vmatprep.subr.mxu0 0.0
  %5147 = vmatpush1.msra.mxu0 %v5118
  %5148 = vmatprep.subr.mxu0 0.0
  %5149 = vmatpush1.msra.mxu0 %v5119
  %5150 = vmatprep.subr.mxu0 0.0
  %5151 = vmatpush1.msra.mxu0 %v5120
  %5152 = vmatprep.subr.mxu0 0.0
  %5153 = vmatpush1.msra.mxu0 %v5121
  %5154 = vmatprep.subr.mxu0 0.0
  %5155 = vmatpush1.msra.mxu0 0.0
  %5156 = vmatprep.subr.mxu0 0.0
  %5157 = vmatpush1.msra.mxu0 0.0
  %5158 = vmatprep.subr.mxu0 0.0
  %5159 = vmatpush1.msra.mxu0 0.0
  %5160 = vmatprep.subr.mxu0 0.0
  %5161 = vmatpush1.msra.mxu0 0.0
  %5162 = vmatprep.subr.mxu0 0.0
  %5163 = vmatpush1.msra.mxu0 0.0
  %5164 = vmatprep.subr.mxu0 0.0
  %5165 = vmatpush1.msra.mxu0 0.0
  %5166 = vmatprep.subr.mxu0 0.0
  %5167 = vmatpush1.msra.mxu0 0.0
  %5168 = vmatprep.subr.mxu0 0.0
  %5169 = vmatpush1.msra.mxu0 0.0
  %5170 = vmatprep.subr.mxu0 0.0
  %5171 = vmatpush1.msra.mxu0 0.0
  %5172 = vmatprep.subr.mxu0 0.0
  %5173 = vmatpush1.msra.mxu0 0.0
  %5174 = vmatprep.subr.mxu0 0.0
  %5175 = vmatpush1.msra.mxu0 0.0
  %5176 = vmatprep.subr.mxu0 0.0
  %5177 = vmatpush1.msra.mxu0 0.0
  %5178 = vmatprep.subr.mxu0 0.0
  %5179 = vmatpush1.msra.mxu0 0.0
  %5180 = vmatprep.subr.mxu0 0.0
  %5181 = vmatpush1.msra.mxu0 0.0
  %5182 = vmatprep.subr.mxu0 0.0
  %5183 = vmatpush1.msra.mxu0 0.0
  %5184 = vmatprep.subr.mxu0 0.0
  %5185 = vmatpush1.msra.mxu0 0.0
  %5186 = vmatprep.subr.mxu0 0.0
  %5187 = vmatpush1.msra.mxu0 0.0
  %5188 = vmatprep.subr.mxu0 0.0
  %5189 = vmatpush1.msra.mxu0 0.0
  %5190 = vmatprep.subr.mxu0 0.0
  %5191 = vmatpush1.msra.mxu0 0.0
  %5192 = vmatprep.subr.mxu0 0.0
  %5193 = vmatpush1.msra.mxu0 0.0
  %5194 = vmatprep.subr.mxu0 0.0
  %5195 = vmatpush1.msra.mxu0 0.0
  %5196 = vmatprep.subr.mxu0 0.0
  %5197 = vmatpush1.msra.mxu0 0.0
  %5198 = vmatprep.subr.mxu0 0.0
  %5199 = vmatpush1.msra.mxu0 0.0
  %5200 = vmatprep.subr.mxu0 0.0
  %5201 = vmatpush1.msra.mxu0 0.0
  %5202 = vmatprep.subr.mxu0 0.0
  %5203 = vmatpush1.msra.mxu0 0.0
  %5204 = vmatprep.subr.mxu0 0.0
  %5205 = vmatpush1.msra.mxu0 0.0
  %5206 = vmatprep.subr.mxu0 0.0
  %5207 = vmatpush1.msra.mxu0 0.0
  %5208 = vmatprep.subr.mxu0 0.0
  %5209 = vmatpush1.msra.mxu0 0.0
  %5210 = vmatprep.mubr.f32.mxu0 0.0
  %5211 = vmatmul.mubr.f32.gmra.mrb[0].mxu0 %v5123
  %v5212 = vpop.f32.mrb[0].mxu0
  %v5213 = vadd.f32 0.0, %v5212
  %v5214 = vpop.f32.mrb[0].mxu0
  %5215 = vmatprep.mubr.f32.mxu0 0.0
  %5216 = vmatmul.mubr.f32.gmra.mrb[0].mxu0 %v5126
  %v5217 = vpop.f32.mrb[0].mxu0
  %v5218 = vadd.f32 0.0, %v5217
  %v5219 = vpop.f32.mrb[0].mxu0
  %5220 = vmatprep.mubr.f32.mxu0 0.0
  %5221 = vmatmul.mubr.f32.gmra.mrb[0].mxu0 %v5129
  %v5222 = vpop.f32.mrb[0].mxu0
  %v5223 = vadd.f32 0.0, %v5222
  %v5224 = vpop.f32.mrb[0].mxu0
  %5225 = vmatprep.mubr.f32.mxu0 0.0
  %5226 = vmatmul.mubr.f32.gmra.mrb[0].mxu0 %v5132
  %v5227 = vpop.f32.mrb[0].mxu0
  %v5228 = vadd.f32 0.0, %v5227
  %v5229 = vpop.f32.mrb[0].mxu0
  %5230 = vmatprep.mubr.f32.mxu0 0.0
  %5231 = vmatmul.mubr.f32.gmra.mrb[0].mxu0 %v5135
  %v5232 = vpop.f32.mrb[0].mxu0
  %v5233 = vadd.f32 0.0, %v5232
  %v5234 = vpop.f32.mrb[0].mxu0
  %5235 = vmatprep.mubr.f32.mxu0 0.0
  %5236 = vmatmul.mubr.f32.gmra.mrb[0].mxu0 %v5138
  %v5237 = vpop.f32.mrb[0].mxu0
  %v5238 = vadd.f32 0.0, %v5237
  %v5239 = vpop.f32.mrb[0].mxu0
  %5240 = vmatprep.mubr.f32.mxu0 0.0
  %5241 = vmatmul.mubr.f32.gmra.mrb[0].mxu0 %v5141
  %v5242 = vpop.f32.mrb[0].mxu0
  %v5243 = vadd.f32 0.0, %v5242
  %v5244 = vpop.f32.mrb[0].mxu0
  %5245 = vmatprep.mubr.f32.mxu0 0.0
  %5246 = vmatmul.mubr.f32.gmra.mrb[0].mxu0 %v5144
  %v5247 = vpop.f32.mrb[0].mxu0
  %v5248 = vadd.f32 0.0, %v5247
  %v5249 = vpop.f32.mrb[0].mxu0
  %5250 = vdwg.mxu0
  %v5251 = vadd.f32 %v5080, %v5213
  %v5252 = vadd.f32 %v5085, %v5218
  %v5253 = vadd.f32 %v5090, %v5223
  %v5254 = vadd.f32 %v5095, %v5228
  %v5255 = vadd.f32 %v5100, %v5233
  %v5256 = vadd.f32 %v5105, %v5238
  %v5257 = vadd.f32 %v5110, %v5243
  %v5258 = vadd.f32 %v5115, %v5248
  %v5259 = vld [vmem:[%s9 + $0x3b8] sm:$0x1]
  %v5260 = vlaneseq
  %v5261 = vshrl.u32 %v5260, 7
  %v5262 = vsub.s32 0, %v5261
  %v5263 = vrot.slane %v5259, %v5262
  %v5264 = vadd.f32 %v5251, %v5263
  %v5265 = vadd.f32 %v5252, %v5263
  %v5266 = vadd.f32 %v5253, %v5263
  %v5267 = vadd.f32 %v5254, %v5263
  %v5268 = vadd.f32 %v5255, %v5263
  %v5269 = vadd.f32 %v5256, %v5263
  %v5270 = vadd.f32 %v5257, %v5263
  %v5271 = vadd.f32 %v5258, %v5263
  %v5272 = vmax.f32 %v5264, 0.0
  %v5273 = vmax.f32 %v5265, 0.0
  %v5274 = vmax.f32 %v5266, 0.0
  %v5275 = vmax.f32 %v5267, 0.0
  %v5276 = vmax.f32 %v5268, 0.0
  %v5277 = vmax.f32 %v5269, 0.0
  %v5278 = vmax.f32 %v5270, 0.0
  %v5279 = vmax.f32 %v5271, 0.0
  %v5280 = vld [vmem:[%s9 + $0x3c0] sm:$0xff]
  %v5281 = vld [vmem:[%s9 + $0x3c8] sm:$0xff]
  %v5282 = vld [vmem:[%s9 + $0x3d0] sm:$0xff]
  %v5283 = vld [vmem:[%s9 + $0x3d8] sm:$0xff]
  %v5284 = vld [vmem:[%s9 + $0x3e0] sm:$0x1]
  %v5285 = vlaneseq
  %v5286 = vshrl.u32 %v5285, 7
  %v5287 = vsub.s32 0, %v5286
  %v5288 = vrot.slane %v5284, %v5287
  %v5290 = vsel %vm216, %v5272, 0
  %v5293 = vsel %vm216, %v5273, 0
  %v5296 = vsel %vm216, %v5274, 0
  %v5299 = vsel %vm216, %v5275, 0
  %v5302 = vsel %vm216, %v5276, 0
  %v5305 = vsel %vm216, %v5277, 0
  %v5308 = vsel %vm216, %v5278, 0
  %v5311 = vsel %vm216, %v5279, 0
  %5313 = vmatprep.subr.mxu0 0.0
  %5314 = vmatpush1.msra.mxu0 %v5280
  %5315 = vmatprep.subr.mxu0 0.0
  %5316 = vmatpush1.msra.mxu0 %v5281
  %5317 = vmatprep.subr.mxu0 0.0
  %5318 = vmatpush1.msra.mxu0 %v5282
  %5319 = vmatprep.subr.mxu0 0.0
  %5320 = vmatpush1.msra.mxu0 %v5283
  %5321 = vmatprep.subr.mxu0 0.0
  %5322 = vmatpush1.msra.mxu0 0.0
  %5323 = vmatprep.subr.mxu0 0.0
  %5324 = vmatpush1.msra.mxu0 0.0
  %5325 = vmatprep.subr.mxu0 0.0
  %5326 = vmatpush1.msra.mxu0 0.0
  %5327 = vmatprep.subr.mxu0 0.0
  %5328 = vmatpush1.msra.mxu0 0.0
  %5329 = vmatprep.subr.mxu0 0.0
  %5330 = vmatpush1.msra.mxu0 0.0
  %5331 = vmatprep.subr.mxu0 0.0
  %5332 = vmatpush1.msra.mxu0 0.0
  %5333 = vmatprep.subr.mxu0 0.0
  %5334 = vmatpush1.msra.mxu0 0.0
  %5335 = vmatprep.subr.mxu0 0.0
  %5336 = vmatpush1.msra.mxu0 0.0
  %5337 = vmatprep.subr.mxu0 0.0
  %5338 = vmatpush1.msra.mxu0 0.0
  %5339 = vmatprep.subr.mxu0 0.0
  %5340 = vmatpush1.msra.mxu0 0.0
  %5341 = vmatprep.subr.mxu0 0.0
  %5342 = vmatpush1.msra.mxu0 0.0
  %5343 = vmatprep.subr.mxu0 0.0
  %5344 = vmatpush1.msra.mxu0 0.0
  %5345 = vmatprep.subr.mxu0 0.0
  %5346 = vmatpush1.msra.mxu0 0.0
  %5347 = vmatprep.subr.mxu0 0.0
  %5348 = vmatpush1.msra.mxu0 0.0
  %5349 = vmatprep.subr.mxu0 0.0
  %5350 = vmatpush1.msra.mxu0 0.0
  %5351 = vmatprep.subr.mxu0 0.0
  %5352 = vmatpush1.msra.mxu0 0.0
  %5353 = vmatprep.subr.mxu0 0.0
  %5354 = vmatpush1.msra.mxu0 0.0
  %5355 = vmatprep.subr.mxu0 0.0
  %5356 = vmatpush1.msra.mxu0 0.0
  %5357 = vmatprep.subr.mxu0 0.0
  %5358 = vmatpush1.msra.mxu0 0.0
  %5359 = vmatprep.subr.mxu0 0.0
  %5360 = vmatpush1.msra.mxu0 0.0
  %5361 = vmatprep.subr.mxu0 0.0
  %5362 = vmatpush1.msra.mxu0 0.0
  %5363 = vmatprep.subr.mxu0 0.0
  %5364 = vmatpush1.msra.mxu0 0.0
  %5365 = vmatprep.subr.mxu0 0.0
  %5366 = vmatpush1.msra.mxu0 0.0
  %5367 = vmatprep.subr.mxu0 0.0
  %5368 = vmatpush1.msra.mxu0 0.0
  %5369 = vmatprep.subr.mxu0 0.0
  %5370 = vmatpush1.msra.mxu0 0.0
  %5371 = vmatprep.subr.mxu0 0.0
  %5372 = vmatpush1.msra.mxu0 0.0
  %5373 = vmatprep.subr.mxu0 0.0
  %5374 = vmatpush1.msra.mxu0 0.0
  %5375 = vmatprep.subr.mxu0 0.0
  %5376 = vmatpush1.msra.mxu0 0.0
  %5377 = vmatprep.mubr.f32.mxu0 0.0
  %5378 = vmatmul.mubr.f32.gmra.mrb[0].mxu0 %v5290
  %v5379 = vpop.f32.mrb[0].mxu0
  %v5380 = vadd.f32 %v5288, %v5379
  %v5381 = vpop.f32.mrb[0].mxu0
  %5382 = vmatprep.mubr.f32.mxu0 0.0
  %5383 = vmatmul.mubr.f32.gmra.mrb[0].mxu0 %v5293
  %v5384 = vpop.f32.mrb[0].mxu0
  %v5385 = vadd.f32 %v5288, %v5384
  %v5386 = vpop.f32.mrb[0].mxu0
  %5387 = vmatprep.mubr.f32.mxu0 0.0
  %5388 = vmatmul.mubr.f32.gmra.mrb[0].mxu0 %v5296
  %v5389 = vpop.f32.mrb[0].mxu0
  %v5390 = vadd.f32 %v5288, %v5389
  %v5391 = vpop.f32.mrb[0].mxu0
  %5392 = vmatprep.mubr.f32.mxu0 0.0
  %5393 = vmatmul.mubr.f32.gmra.mrb[0].mxu0 %v5299
  %v5394 = vpop.f32.mrb[0].mxu0
  %v5395 = vadd.f32 %v5288, %v5394
  %v5396 = vpop.f32.mrb[0].mxu0
  %5397 = vmatprep.mubr.f32.mxu0 0.0
  %5398 = vmatmul.mubr.f32.gmra.mrb[0].mxu0 %v5302
  %v5399 = vpop.f32.mrb[0].mxu0
  %v5400 = vadd.f32 %v5288, %v5399
  %v5401 = vpop.f32.mrb[0].mxu0
  %5402 = vmatprep.mubr.f32.mxu0 0.0
  %5403 = vmatmul.mubr.f32.gmra.mrb[0].mxu0 %v5305
  %v5404 = vpop.f32.mrb[0].mxu0
  %v5405 = vadd.f32 %v5288, %v5404
  %v5406 = vpop.f32.mrb[0].mxu0
  %5407 = vmatprep.mubr.f32.mxu0 0.0
  %5408 = vmatmul.mubr.f32.gmra.mrb[0].mxu0 %v5308
  %v5409 = vpop.f32.mrb[0].mxu0
  %v5410 = vadd.f32 %v5288, %v5409
  %v5411 = vpop.f32.mrb[0].mxu0
  %5412 = vmatprep.mubr.f32.mxu0 0.0
  %5413 = vmatmul.mubr.f32.gmra.mrb[0].mxu0 %v5311
  %v5414 = vpop.f32.mrb[0].mxu0
  %v5415 = vadd.f32 %v5288, %v5414
  %v5416 = vpop.f32.mrb[0].mxu0
  %5417 = vdwg.mxu0
  %v5418 = vmax.f32 %v5380, 0.0
  %v5419 = vmax.f32 %v5385, 0.0
  %v5420 = vmax.f32 %v5390, 0.0
  %v5421 = vmax.f32 %v5395, 0.0
  %v5422 = vmax.f32 %v5400, 0.0
  %v5423 = vmax.f32 %v5405, 0.0
  %v5424 = vmax.f32 %v5410, 0.0
  %v5425 = vmax.f32 %v5415, 0.0
  %v5426 = vld [vmem:[%s9 + $0x3e8] sm:$0xff]
  %v5427 = vld [vmem:[%s9 + $0x3f0] sm:$0xff]
  %v5428 = vld [vmem:[%s9 + $0x3f8] sm:$0xff]
  %v5429 = vld [vmem:[%s9 + $0x400] sm:$0xff]
  %v5430 = vld [vmem:[%s9 + $0x408] sm:$0x1]
  %v5431 = vlaneseq
  %v5432 = vshrl.u32 %v5431, 7
  %v5433 = vsub.s32 0, %v5432
  %v5434 = vrot.slane %v5430, %v5433
  %v5436 = vsel %vm216, %v5418, 0
  %v5439 = vsel %vm216, %v5419, 0
  %v5442 = vsel %vm216, %v5420, 0
  %v5445 = vsel %vm216, %v5421, 0
  %v5448 = vsel %vm216, %v5422, 0
  %v5451 = vsel %vm216, %v5423, 0
  %v5454 = vsel %vm216, %v5424, 0
  %v5457 = vsel %vm216, %v5425, 0
  %5459 = vmatprep.subr.mxu0 0.0
  %5460 = vmatpush1.msra.mxu0 %v5426
  %5461 = vmatprep.subr.mxu0 0.0
  %5462 = vmatpush1.msra.mxu0 %v5427
  %5463 = vmatprep.subr.mxu0 0.0
  %5464 = vmatpush1.msra.mxu0 %v5428
  %5465 = vmatprep.subr.mxu0 0.0
  %5466 = vmatpush1.msra.mxu0 %v5429
  %5467 = vmatprep.subr.mxu0 0.0
  %5468 = vmatpush1.msra.mxu0 0.0
  %5469 = vmatprep.subr.mxu0 0.0
  %5470 = vmatpush1.msra.mxu0 0.0
  %5471 = vmatprep.subr.mxu0 0.0
  %5472 = vmatpush1.msra.mxu0 0.0
  %5473 = vmatprep.subr.mxu0 0.0
  %5474 = vmatpush1.msra.mxu0 0.0
  %5475 = vmatprep.subr.mxu0 0.0
  %5476 = vmatpush1.msra.mxu0 0.0
  %5477 = vmatprep.subr.mxu0 0.0
  %5478 = vmatpush1.msra.mxu0 0.0
  %5479 = vmatprep.subr.mxu0 0.0
  %5480 = vmatpush1.msra.mxu0 0.0
  %5481 = vmatprep.subr.mxu0 0.0
  %5482 = vmatpush1.msra.mxu0 0.0
  %5483 = vmatprep.subr.mxu0 0.0
  %5484 = vmatpush1.msra.mxu0 0.0
  %5485 = vmatprep.subr.mxu0 0.0
  %5486 = vmatpush1.msra.mxu0 0.0
  %5487 = vmatprep.subr.mxu0 0.0
  %5488 = vmatpush1.msra.mxu0 0.0
  %5489 = vmatprep.subr.mxu0 0.0
  %5490 = vmatpush1.msra.mxu0 0.0
  %5491 = vmatprep.subr.mxu0 0.0
  %5492 = vmatpush1.msra.mxu0 0.0
  %5493 = vmatprep.subr.mxu0 0.0
  %5494 = vmatpush1.msra.mxu0 0.0
  %5495 = vmatprep.subr.mxu0 0.0
  %5496 = vmatpush1.msra.mxu0 0.0
  %5497 = vmatprep.subr.mxu0 0.0
  %5498 = vmatpush1.msra.mxu0 0.0
  %5499 = vmatprep.subr.mxu0 0.0
  %5500 = vmatpush1.msra.mxu0 0.0
  %5501 = vmatprep.subr.mxu0 0.0
  %5502 = vmatpush1.msra.mxu0 0.0
  %5503 = vmatprep.subr.mxu0 0.0
  %5504 = vmatpush1.msra.mxu0 0.0
  %5505 = vmatprep.subr.mxu0 0.0
  %5506 = vmatpush1.msra.mxu0 0.0
  %5507 = vmatprep.subr.mxu0 0.0
  %5508 = vmatpush1.msra.mxu0 0.0
  %5509 = vmatprep.subr.mxu0 0.0
  %5510 = vmatpush1.msra.mxu0 0.0
  %5511 = vmatprep.subr.mxu0 0.0
  %5512 = vmatpush1.msra.mxu0 0.0
  %5513 = vmatprep.subr.mxu0 0.0
  %5514 = vmatpush1.msra.mxu0 0.0
  %5515 = vmatprep.subr.mxu0 0.0
  %5516 = vmatpush1.msra.mxu0 0.0
  %5517 = vmatprep.subr.mxu0 0.0
  %5518 = vmatpush1.msra.mxu0 0.0
  %5519 = vmatprep.subr.mxu0 0.0
  %5520 = vmatpush1.msra.mxu0 0.0
  %5521 = vmatprep.subr.mxu0 0.0
  %5522 = vmatpush1.msra.mxu0 0.0
  %5523 = vmatprep.mubr.f32.mxu0 0.0
  %5524 = vmatmul.mubr.f32.gmra.mrb[0].mxu0 %v5436
  %v5525 = vpop.f32.mrb[0].mxu0
  %v5526 = vadd.f32 %v5434, %v5525
  %v5527 = vpop.f32.mrb[0].mxu0
  %5528 = vmatprep.mubr.f32.mxu0 0.0
  %5529 = vmatmul.mubr.f32.gmra.mrb[0].mxu0 %v5439
  %v5530 = vpop.f32.mrb[0].mxu0
  %v5531 = vadd.f32 %v5434, %v5530
  %v5532 = vpop.f32.mrb[0].mxu0
  %5533 = vmatprep.mubr.f32.mxu0 0.0
  %5534 = vmatmul.mubr.f32.gmra.mrb[0].mxu0 %v5442
  %v5535 = vpop.f32.mrb[0].mxu0
  %v5536 = vadd.f32 %v5434, %v5535
  %v5537 = vpop.f32.mrb[0].mxu0
  %5538 = vmatprep.mubr.f32.mxu0 0.0
  %5539 = vmatmul.mubr.f32.gmra.mrb[0].mxu0 %v5445
  %v5540 = vpop.f32.mrb[0].mxu0
  %v5541 = vadd.f32 %v5434, %v5540
  %v5542 = vpop.f32.mrb[0].mxu0
  %5543 = vmatprep.mubr.f32.mxu0 0.0
  %5544 = vmatmul.mubr.f32.gmra.mrb[0].mxu0 %v5448
  %v5545 = vpop.f32.mrb[0].mxu0
  %v5546 = vadd.f32 %v5434, %v5545
  %v5547 = vpop.f32.mrb[0].mxu0
  %5548 = vmatprep.mubr.f32.mxu0 0.0
  %5549 = vmatmul.mubr.f32.gmra.mrb[0].mxu0 %v5451
  %v5550 = vpop.f32.mrb[0].mxu0
  %v5551 = vadd.f32 %v5434, %v5550
  %v5552 = vpop.f32.mrb[0].mxu0
  %5553 = vmatprep.mubr.f32.mxu0 0.0
  %5554 = vmatmul.mubr.f32.gmra.mrb[0].mxu0 %v5454
  %v5555 = vpop.f32.mrb[0].mxu0
  %v5556 = vadd.f32 %v5434, %v5555
  %v5557 = vpop.f32.mrb[0].mxu0
  %5558 = vmatprep.mubr.f32.mxu0 0.0
  %5559 = vmatmul.mubr.f32.gmra.mrb[0].mxu0 %v5457
  %v5560 = vpop.f32.mrb[0].mxu0
  %v5561 = vadd.f32 %v5434, %v5560
  %v5562 = vpop.f32.mrb[0].mxu0
  %5563 = vdwg.mxu0
  %v5564 = vld [vmem:[%s9 + $0x410] sm:$0x1]
  %v5565 = vld [vmem:[%s9 + $0x418] sm:$0x1]
  %v5566 = vsel %vm216, %v5526, 0.0
  %5567 = vadd.xlane.f32.xlu0 %v5566
  %v5568 = vpop.xlane.xlu0 %5567
  %v5569 = vsel %vm216, %v5531, 0.0
  %5570 = vadd.xlane.f32.xlu0 %v5569
  %v5571 = vpop.xlane.xlu0 %5570
  %v5572 = vsel %vm216, %v5536, 0.0
  %5573 = vadd.xlane.f32.xlu0 %v5572
  %v5574 = vpop.xlane.xlu0 %5573
  %v5575 = vsel %vm216, %v5541, 0.0
  %5576 = vadd.xlane.f32.xlu0 %v5575
  %v5577 = vpop.xlane.xlu0 %5576
  %v5578 = vsel %vm216, %v5546, 0.0
  %5579 = vadd.xlane.f32.xlu0 %v5578
  %v5580 = vpop.xlane.xlu0 %5579
  %v5581 = vsel %vm216, %v5551, 0.0
  %5582 = vadd.xlane.f32.xlu0 %v5581
  %v5583 = vpop.xlane.xlu0 %5582
  %v5584 = vsel %vm216, %v5556, 0.0
  %5585 = vadd.xlane.f32.xlu0 %v5584
  %v5586 = vpop.xlane.xlu0 %5585
  %v5587 = vsel %vm216, %v5561, 0.0
  %5588 = vadd.xlane.f32.xlu0 %v5587
  %v5589 = vpop.xlane.xlu0 %5588
  %v5590 = vmul.f32 %v5568, %v558
  %v5591 = vmul.f32 %v5571, %v558
  %v5592 = vmul.f32 %v5574, %v558
  %v5593 = vmul.f32 %v5577, %v558
  %v5594 = vmul.f32 %v5580, %v558
  %v5595 = vmul.f32 %v5583, %v558
  %v5596 = vmul.f32 %v5586, %v558
  %v5597 = vmul.f32 %v5589, %v558
  %v5598 = vsub.f32 %v5526, %v5590
  %v5599 = vsub.f32 %v5531, %v5591
  %v5600 = vsub.f32 %v5536, %v5592
  %v5601 = vsub.f32 %v5541, %v5593
  %v5602 = vsub.f32 %v5546, %v5594
  %v5603 = vsub.f32 %v5551, %v5595
  %v5604 = vsub.f32 %v5556, %v5596
  %v5605 = vsub.f32 %v5561, %v5597
  %v5606 = vmul.f32 %v5598, %v5598
  %v5607 = vmul.f32 %v5599, %v5599
  %v5608 = vmul.f32 %v5600, %v5600
  %v5609 = vmul.f32 %v5601, %v5601
  %v5610 = vmul.f32 %v5602, %v5602
  %v5611 = vmul.f32 %v5603, %v5603
  %v5612 = vmul.f32 %v5604, %v5604
  %v5613 = vmul.f32 %v5605, %v5605
  %v5614 = vsel %vm216, %v5606, 0.0
  %5615 = vadd.xlane.f32.xlu0 %v5614
  %v5616 = vpop.xlane.xlu0 %5615
  %v5617 = vsel %vm216, %v5607, 0.0
  %5618 = vadd.xlane.f32.xlu0 %v5617
  %v5619 = vpop.xlane.xlu0 %5618
  %v5620 = vsel %vm216, %v5608, 0.0
  %5621 = vadd.xlane.f32.xlu0 %v5620
  %v5622 = vpop.xlane.xlu0 %5621
  %v5623 = vsel %vm216, %v5609, 0.0
  %5624 = vadd.xlane.f32.xlu0 %v5623
  %v5625 = vpop.xlane.xlu0 %5624
  %v5626 = vsel %vm216, %v5610, 0.0
  %5627 = vadd.xlane.f32.xlu0 %v5626
  %v5628 = vpop.xlane.xlu0 %5627
  %v5629 = vsel %vm216, %v5611, 0.0
  %5630 = vadd.xlane.f32.xlu0 %v5629
  %v5631 = vpop.xlane.xlu0 %5630
  %v5632 = vsel %vm216, %v5612, 0.0
  %5633 = vadd.xlane.f32.xlu0 %v5632
  %v5634 = vpop.xlane.xlu0 %5633
  %v5635 = vsel %vm216, %v5613, 0.0
  %5636 = vadd.xlane.f32.xlu0 %v5635
  %v5637 = vpop.xlane.xlu0 %5636
  %v5638 = vmul.f32 %v5616, %v558
  %v5639 = vmul.f32 %v5619, %v558
  %v5640 = vmul.f32 %v5622, %v558
  %v5641 = vmul.f32 %v5625, %v558
  %v5642 = vmul.f32 %v5628, %v558
  %v5643 = vmul.f32 %v5631, %v558
  %v5644 = vmul.f32 %v5634, %v558
  %v5645 = vmul.f32 %v5637, %v558
  %v5646 = vadd.f32 %v5638, 1e-05
  %v5647 = vadd.f32 %v5639, 1e-05
  %v5648 = vadd.f32 %v5640, 1e-05
  %v5649 = vadd.f32 %v5641, 1e-05
  %v5650 = vadd.f32 %v5642, 1e-05
  %v5651 = vadd.f32 %v5643, 1e-05
  %v5652 = vadd.f32 %v5644, 1e-05
  %v5653 = vadd.f32 %v5645, 1e-05
  %v5654 = vrsqrt.pop %v5646
  %v5655 = vrsqrt.pop %v5647
  %v5656 = vrsqrt.pop %v5648
  %v5657 = vrsqrt.pop %v5649
  %v5658 = vrsqrt.pop %v5650
  %v5659 = vrsqrt.pop %v5651
  %v5660 = vrsqrt.pop %v5652
  %v5661 = vrsqrt.pop %v5653
  %v5662 = vmul.f32 %v5598, %v5654
  %v5663 = vmul.f32 %v5599, %v5655
  %v5664 = vmul.f32 %v5600, %v5656
  %v5665 = vmul.f32 %v5601, %v5657
  %v5666 = vmul.f32 %v5602, %v5658
  %v5667 = vmul.f32 %v5603, %v5659
  %v5668 = vmul.f32 %v5604, %v5660
  %v5669 = vmul.f32 %v5605, %v5661
  %v5670 = vlaneseq
  %v5671 = vshrl.u32 %v5670, 7
  %v5672 = vsub.s32 0, %v5671
  %v5673 = vrot.slane %v5564, %v5672
  %v5674 = vmul.f32 %v5662, %v5673
  %v5675 = vmul.f32 %v5663, %v5673
  %v5676 = vmul.f32 %v5664, %v5673
  %v5677 = vmul.f32 %v5665, %v5673
  %v5678 = vmul.f32 %v5666, %v5673
  %v5679 = vmul.f32 %v5667, %v5673
  %v5680 = vmul.f32 %v5668, %v5673
  %v5681 = vmul.f32 %v5669, %v5673
  %v5682 = vlaneseq
  %v5683 = vshrl.u32 %v5682, 7
  %v5684 = vsub.s32 0, %v5683
  %v5685 = vrot.slane %v5565, %v5684
  %v5686 = vadd.f32 %v5674, %v5685
  %v5687 = vadd.f32 %v5675, %v5685
  %v5688 = vadd.f32 %v5676, %v5685
  %v5689 = vadd.f32 %v5677, %v5685
  %v5690 = vadd.f32 %v5678, %v5685
  %v5691 = vadd.f32 %v5679, %v5685
  %v5692 = vadd.f32 %v5680, %v5685
  %v5693 = vadd.f32 %v5681, %v5685
  %v5694 = vadd.f32 %v677, %v5686
  %v5695 = vadd.f32 %v678, %v5687
  %v5696 = vadd.f32 %v679, %v5688
  %v5697 = vadd.f32 %v680, %v5689
  %v5698 = vadd.f32 %v681, %v5690
  %v5699 = vadd.f32 %v682, %v5691
  %v5700 = vadd.f32 %v683, %v5692
  %v5701 = vadd.f32 %v684, %v5693
  %5702 = vmatprep.subr.mxu0 0.0
  %5703 = vmatpush1.msra.mxu0 %v5694
  %5704 = vmatprep.subr.mxu0 0.0
  %5705 = vmatpush1.msra.mxu0 %v5695
  %5706 = vmatprep.subr.mxu0 0.0
  %5707 = vmatpush1.msra.mxu0 %v5696
  %5708 = vmatprep.subr.mxu0 0.0
  %5709 = vmatpush1.msra.mxu0 %v5697
  %5710 = vmatprep.subr.mxu0 0.0
  %5711 = vmatpush1.msra.mxu0 %v5698
  %5712 = vmatprep.subr.mxu0 0.0
  %5713 = vmatpush1.msra.mxu0 %v5699
  %5714 = vmatprep.subr.mxu0 0.0
  %5715 = vmatpush1.msra.mxu0 %v5700
  %5716 = vmatprep.subr.mxu0 0.0
  %5717 = vmatpush1.msra.mxu0 %v5701
  %5718 = vmatprep.subr.mxu0 0.0
  %5719 = vmatpush1.msra.mxu0 0.0
  %5720 = vmatprep.subr.mxu0 0.0
  %5721 = vmatpush1.msra.mxu0 0.0
  %5722 = vmatprep.subr.mxu0 0.0
  %5723 = vmatpush1.msra.mxu0 0.0
  %5724 = vmatprep.subr.mxu0 0.0
  %5725 = vmatpush1.msra.mxu0 0.0
  %5726 = vmatprep.subr.mxu0 0.0
  %5727 = vmatpush1.msra.mxu0 0.0
  %5728 = vmatprep.subr.mxu0 0.0
  %5729 = vmatpush1.msra.mxu0 0.0
  %5730 = vmatprep.subr.mxu0 0.0
  %5731 = vmatpush1.msra.mxu0 0.0
  %5732 = vmatprep.subr.mxu0 0.0
  %5733 = vmatpush1.msra.mxu0 0.0
  %5734 = vmatprep.subr.mxu0 0.0
  %5735 = vmatpush1.msra.mxu0 0.0
  %5736 = vmatprep.subr.mxu0 0.0
  %5737 = vmatpush1.msra.mxu0 0.0
  %5738 = vmatprep.subr.mxu0 0.0
  %5739 = vmatpush1.msra.mxu0 0.0
  %5740 = vmatprep.subr.mxu0 0.0
  %5741 = vmatpush1.msra.mxu0 0.0
  %5742 = vmatprep.subr.mxu0 0.0
  %5743 = vmatpush1.msra.mxu0 0.0
  %5744 = vmatprep.subr.mxu0 0.0
  %5745 = vmatpush1.msra.mxu0 0.0
  %5746 = vmatprep.subr.mxu0 0.0
  %5747 = vmatpush1.msra.mxu0 0.0
  %5748 = vmatprep.subr.mxu0 0.0
  %5749 = vmatpush1.msra.mxu0 0.0
  %5750 = vmatprep.subr.mxu0 0.0
  %5751 = vmatpush1.msra.mxu0 0.0
  %5752 = vmatprep.subr.mxu0 0.0
  %5753 = vmatpush1.msra.mxu0 0.0
  %5754 = vmatprep.subr.mxu0 0.0
  %5755 = vmatpush1.msra.mxu0 0.0
  %5756 = vmatprep.subr.mxu0 0.0
  %5757 = vmatpush1.msra.mxu0 0.0
  %5758 = vmatprep.subr.mxu0 0.0
  %5759 = vmatpush1.msra.mxu0 0.0
  %5760 = vmatprep.subr.mxu0 0.0
  %5761 = vmatpush1.msra.mxu0 0.0
  %5762 = vmatprep.subr.mxu0 0.0
  %5763 = vmatpush1.msra.mxu0 0.0
  %5764 = vmatprep.subr.mxu0 0.0
  %5765 = vmatpush1.msra.mxu0 0.0
  %5766 = vmatprep.mubr.f32.mxu0 0.0
  %5767 = vmatmul.mubr.f32.gmra.mrb[0].mxu0 %v2015
  %v5768 = vpop.f32.mrb[0].mxu0
  %v5769 = vadd.f32 0.0, %v5768
  %v5770 = vpop.f32.mrb[0].mxu0
  %5771 = vmatprep.mubr.f32.mxu0 0.0
  %5772 = vmatmul.mubr.f32.gmra.mrb[0].mxu0 %v2018
  %v5773 = vpop.f32.mrb[0].mxu0
  %v5774 = vadd.f32 0.0, %v5773
  %v5775 = vpop.f32.mrb[0].mxu0
  %5776 = vmatprep.mubr.f32.mxu0 0.0
  %5777 = vmatmul.mubr.f32.gmra.mrb[0].mxu0 %v2021
  %v5778 = vpop.f32.mrb[0].mxu0
  %v5779 = vadd.f32 0.0, %v5778
  %v5780 = vpop.f32.mrb[0].mxu0
  %5781 = vmatprep.mubr.f32.mxu0 0.0
  %5782 = vmatmul.mubr.f32.gmra.mrb[0].mxu0 %v2024
  %v5783 = vpop.f32.mrb[0].mxu0
  %v5784 = vadd.f32 0.0, %v5783
  %v5785 = vpop.f32.mrb[0].mxu0
  %5786 = vmatprep.mubr.f32.mxu0 0.0
  %5787 = vmatmul.mubr.f32.gmra.mrb[0].mxu0 %v2027
  %v5788 = vpop.f32.mrb[0].mxu0
  %v5789 = vadd.f32 0.0, %v5788
  %v5790 = vpop.f32.mrb[0].mxu0
  %5791 = vmatprep.mubr.f32.mxu0 0.0
  %5792 = vmatmul.mubr.f32.gmra.mrb[0].mxu0 %v2030
  %v5793 = vpop.f32.mrb[0].mxu0
  %v5794 = vadd.f32 0.0, %v5793
  %v5795 = vpop.f32.mrb[0].mxu0
  %5796 = vmatprep.mubr.f32.mxu0 0.0
  %5797 = vmatmul.mubr.f32.gmra.mrb[0].mxu0 %v2033
  %v5798 = vpop.f32.mrb[0].mxu0
  %v5799 = vadd.f32 0.0, %v5798
  %v5800 = vpop.f32.mrb[0].mxu0
  %5801 = vmatprep.mubr.f32.mxu0 0.0
  %5802 = vmatmul.mubr.f32.gmra.mrb[0].mxu0 %v2036
  %v5803 = vpop.f32.mrb[0].mxu0
  %v5804 = vadd.f32 0.0, %v5803
  %v5805 = vpop.f32.mrb[0].mxu0
  %5806 = vmatprep.mubr.f32.mxu0 0.0
  %5807 = vmatmul.mubr.f32.gmra.mrb[0].mxu0 %v2039
  %v5808 = vpop.f32.mrb[0].mxu0
  %v5809 = vadd.f32 0.0, %v5808
  %v5810 = vpop.f32.mrb[0].mxu0
  %5811 = vmatprep.mubr.f32.mxu0 0.0
  %5812 = vmatmul.mubr.f32.gmra.mrb[0].mxu0 %v2042
  %v5813 = vpop.f32.mrb[0].mxu0
  %v5814 = vadd.f32 0.0, %v5813
  %v5815 = vpop.f32.mrb[0].mxu0
  %5816 = vmatprep.mubr.f32.mxu0 0.0
  %5817 = vmatmul.mubr.f32.gmra.mrb[0].mxu0 %v2045
  %v5818 = vpop.f32.mrb[0].mxu0
  %v5819 = vadd.f32 0.0, %v5818
  %v5820 = vpop.f32.mrb[0].mxu0
  %5821 = vmatprep.mubr.f32.mxu0 0.0
  %5822 = vmatmul.mubr.f32.gmra.mrb[0].mxu0 %v2048
  %v5823 = vpop.f32.mrb[0].mxu0
  %v5824 = vadd.f32 0.0, %v5823
  %v5825 = vpop.f32.mrb[0].mxu0
  %5826 = vdwg.mxu0
  %5827 = vmatprep.subr.mxu0 0.0
  %5828 = vmatpush1.msra.mxu0 %v5694
  %5829 = vmatprep.subr.mxu0 0.0
  %5830 = vmatpush1.msra.mxu0 %v5695
  %5831 = vmatprep.subr.mxu0 0.0
  %5832 = vmatpush1.msra.mxu0 %v5696
  %5833 = vmatprep.subr.mxu0 0.0
  %5834 = vmatpush1.msra.mxu0 %v5697
  %5835 = vmatprep.subr.mxu0 0.0
  %5836 = vmatpush1.msra.mxu0 %v5698
  %5837 = vmatprep.subr.mxu0 0.0
  %5838 = vmatpush1.msra.mxu0 %v5699
  %5839 = vmatprep.subr.mxu0 0.0
  %5840 = vmatpush1.msra.mxu0 %v5700
  %5841 = vmatprep.subr.mxu0 0.0
  %5842 = vmatpush1.msra.mxu0 %v5701
  %5843 = vmatprep.subr.mxu0 0.0
  %5844 = vmatpush1.msra.mxu0 0.0
  %5845 = vmatprep.subr.mxu0 0.0
  %5846 = vmatpush1.msra.mxu0 0.0
  %5847 = vmatprep.subr.mxu0 0.0
  %5848 = vmatpush1.msra.mxu0 0.0
  %5849 = vmatprep.subr.mxu0 0.0
  %5850 = vmatpush1.msra.mxu0 0.0
  %5851 = vmatprep.subr.mxu0 0.0
  %5852 = vmatpush1.msra.mxu0 0.0
  %5853 = vmatprep.subr.mxu0 0.0
  %5854 = vmatpush1.msra.mxu0 0.0
  %5855 = vmatprep.subr.mxu0 0.0
  %5856 = vmatpush1.msra.mxu0 0.0
  %5857 = vmatprep.subr.mxu0 0.0
  %5858 = vmatpush1.msra.mxu0 0.0
  %5859 = vmatprep.subr.mxu0 0.0
  %5860 = vmatpush1.msra.mxu0 0.0
  %5861 = vmatprep.subr.mxu0 0.0
  %5862 = vmatpush1.msra.mxu0 0.0
  %5863 = vmatprep.subr.mxu0 0.0
  %5864 = vmatpush1.msra.mxu0 0.0
  %5865 = vmatprep.subr.mxu0 0.0
  %5866 = vmatpush1.msra.mxu0 0.0
  %5867 = vmatprep.subr.mxu0 0.0
  %5868 = vmatpush1.msra.mxu0 0.0
  %5869 = vmatprep.subr.mxu0 0.0
  %5870 = vmatpush1.msra.mxu0 0.0
  %5871 = vmatprep.subr.mxu0 0.0
  %5872 = vmatpush1.msra.mxu0 0.0
  %5873 = vmatprep.subr.mxu0 0.0
  %5874 = vmatpush1.msra.mxu0 0.0
  %5875 = vmatprep.subr.mxu0 0.0
  %5876 = vmatpush1.msra.mxu0 0.0
  %5877 = vmatprep.subr.mxu0 0.0
  %5878 = vmatpush1.msra.mxu0 0.0
  %5879 = vmatprep.subr.mxu0 0.0
  %5880 = vmatpush1.msra.mxu0 0.0
  %5881 = vmatprep.subr.mxu0 0.0
  %5882 = vmatpush1.msra.mxu0 0.0
  %5883 = vmatprep.subr.mxu0 0.0
  %5884 = vmatpush1.msra.mxu0 0.0
  %5885 = vmatprep.subr.mxu0 0.0
  %5886 = vmatpush1.msra.mxu0 0.0
  %5887 = vmatprep.subr.mxu0 0.0
  %5888 = vmatpush1.msra.mxu0 0.0
  %5889 = vmatprep.subr.mxu0 0.0
  %5890 = vmatpush1.msra.mxu0 0.0
  %5891 = vmatprep.mubr.f32.mxu0 0.0
  %5892 = vmatmul.mubr.f32.gmra.mrb[0].mxu0 %v2248
  %v5893 = vpop.f32.mrb[0].mxu0
  %v5894 = vadd.f32 0.0, %v5893
  %v5895 = vpop.f32.mrb[0].mxu0
  %5896 = vmatprep.mubr.f32.mxu0 0.0
  %5897 = vmatmul.mubr.f32.gmra.mrb[0].mxu0 %v2251
  %v5898 = vpop.f32.mrb[0].mxu0
  %v5899 = vadd.f32 0.0, %v5898
  %v5900 = vpop.f32.mrb[0].mxu0
  %5901 = vmatprep.mubr.f32.mxu0 0.0
  %5902 = vmatmul.mubr.f32.gmra.mrb[0].mxu0 %v2254
  %v5903 = vpop.f32.mrb[0].mxu0
  %v5904 = vadd.f32 0.0, %v5903
  %v5905 = vpop.f32.mrb[0].mxu0
  %5906 = vmatprep.mubr.f32.mxu0 0.0
  %5907 = vmatmul.mubr.f32.gmra.mrb[0].mxu0 %v2257
  %v5908 = vpop.f32.mrb[0].mxu0
  %v5909 = vadd.f32 0.0, %v5908
  %v5910 = vpop.f32.mrb[0].mxu0
  %5911 = vmatprep.mubr.f32.mxu0 0.0
  %5912 = vmatmul.mubr.f32.gmra.mrb[0].mxu0 %v2260
  %v5913 = vpop.f32.mrb[0].mxu0
  %v5914 = vadd.f32 0.0, %v5913
  %v5915 = vpop.f32.mrb[0].mxu0
  %5916 = vmatprep.mubr.f32.mxu0 0.0
  %5917 = vmatmul.mubr.f32.gmra.mrb[0].mxu0 %v2263
  %v5918 = vpop.f32.mrb[0].mxu0
  %v5919 = vadd.f32 0.0, %v5918
  %v5920 = vpop.f32.mrb[0].mxu0
  %5921 = vmatprep.mubr.f32.mxu0 0.0
  %5922 = vmatmul.mubr.f32.gmra.mrb[0].mxu0 %v2266
  %v5923 = vpop.f32.mrb[0].mxu0
  %v5924 = vadd.f32 0.0, %v5923
  %v5925 = vpop.f32.mrb[0].mxu0
  %5926 = vmatprep.mubr.f32.mxu0 0.0
  %5927 = vmatmul.mubr.f32.gmra.mrb[0].mxu0 %v2269
  %v5928 = vpop.f32.mrb[0].mxu0
  %v5929 = vadd.f32 0.0, %v5928
  %v5930 = vpop.f32.mrb[0].mxu0
  %5931 = vmatprep.mubr.f32.mxu0 0.0
  %5932 = vmatmul.mubr.f32.gmra.mrb[0].mxu0 %v2272
  %v5933 = vpop.f32.mrb[0].mxu0
  %v5934 = vadd.f32 0.0, %v5933
  %v5935 = vpop.f32.mrb[0].mxu0
  %5936 = vmatprep.mubr.f32.mxu0 0.0
  %5937 = vmatmul.mubr.f32.gmra.mrb[0].mxu0 %v2275
  %v5938 = vpop.f32.mrb[0].mxu0
  %v5939 = vadd.f32 0.0, %v5938
  %v5940 = vpop.f32.mrb[0].mxu0
  %5941 = vmatprep.mubr.f32.mxu0 0.0
  %5942 = vmatmul.mubr.f32.gmra.mrb[0].mxu0 %v2278
  %v5943 = vpop.f32.mrb[0].mxu0
  %v5944 = vadd.f32 0.0, %v5943
  %v5945 = vpop.f32.mrb[0].mxu0
  %5946 = vmatprep.mubr.f32.mxu0 0.0
  %5947 = vmatmul.mubr.f32.gmra.mrb[0].mxu0 %v2281
  %v5948 = vpop.f32.mrb[0].mxu0
  %v5949 = vadd.f32 0.0, %v5948
  %v5950 = vpop.f32.mrb[0].mxu0
  %5951 = vdwg.mxu0
  %v5952 = vld [vmem:[%s9 + $0x420] sm:$0xff]
  %v5953 = vld [vmem:[%s9 + $0x428] sm:$0xff]
  %v5954 = vld [vmem:[%s9 + $0x430] sm:$0xff]
  %v5955 = vld [vmem:[%s9 + $0x438] sm:$0xff]
  %v5956 = vld [vmem:[%s9 + $0x440] sm:$0xff]
  %v5957 = vld [vmem:[%s9 + $0x448] sm:$0xff]
  %v5958 = vld [vmem:[%s9 + $0x450] sm:$0xff]
  %v5959 = vld [vmem:[%s9 + $0x458] sm:$0xff]
  %v5961 = vsel %vm216, %v5894, 0
  %v5964 = vsel %vm216, %v5899, 0
  %v5967 = vsel %vm216, %v5904, 0
  %v5970 = vsel %vm216, %v5909, 0
  %v5973 = vsel %vm216, %v5914, 0
  %v5976 = vsel %vm216, %v5919, 0
  %v5979 = vsel %vm216, %v5924, 0
  %v5982 = vsel %vm216, %v5929, 0
  %v5985 = vsel %vm216, %v5934, 0
  %v5988 = vsel %vm216, %v5939, 0
  %v5991 = vsel %vm216, %v5944, 0
  %v5994 = vsel %vm216, %v5949, 0
  %5996 = vmatprep.subr.mxu0 0.0
  %5997 = vmatpush1.msra.mxu0 %v5956
  %5998 = vmatprep.subr.mxu0 0.0
  %5999 = vmatpush1.msra.mxu0 %v5957
  %6000 = vmatprep.subr.mxu0 0.0
  %6001 = vmatpush1.msra.mxu0 %v5958
  %6002 = vmatprep.subr.mxu0 0.0
  %6003 = vmatpush1.msra.mxu0 %v5959
  %6004 = vmatprep.subr.mxu0 0.0
  %6005 = vmatpush1.msra.mxu0 0.0
  %6006 = vmatprep.subr.mxu0 0.0
  %6007 = vmatpush1.msra.mxu0 0.0
  %6008 = vmatprep.subr.mxu0 0.0
  %6009 = vmatpush1.msra.mxu0 0.0
  %6010 = vmatprep.subr.mxu0 0.0
  %6011 = vmatpush1.msra.mxu0 0.0
  %6012 = vmatprep.subr.mxu0 0.0
  %6013 = vmatpush1.msra.mxu0 0.0
  %6014 = vmatprep.subr.mxu0 0.0
  %6015 = vmatpush1.msra.mxu0 0.0
  %6016 = vmatprep.subr.mxu0 0.0
  %6017 = vmatpush1.msra.mxu0 0.0
  %6018 = vmatprep.subr.mxu0 0.0
  %6019 = vmatpush1.msra.mxu0 0.0
  %6020 = vmatprep.subr.mxu0 0.0
  %6021 = vmatpush1.msra.mxu0 0.0
  %6022 = vmatprep.subr.mxu0 0.0
  %6023 = vmatpush1.msra.mxu0 0.0
  %6024 = vmatprep.subr.mxu0 0.0
  %6025 = vmatpush1.msra.mxu0 0.0
  %6026 = vmatprep.subr.mxu0 0.0
  %6027 = vmatpush1.msra.mxu0 0.0
  %6028 = vmatprep.subr.mxu0 0.0
  %6029 = vmatpush1.msra.mxu0 0.0
  %6030 = vmatprep.subr.mxu0 0.0
  %6031 = vmatpush1.msra.mxu0 0.0
  %6032 = vmatprep.subr.mxu0 0.0
  %6033 = vmatpush1.msra.mxu0 0.0
  %6034 = vmatprep.subr.mxu0 0.0
  %6035 = vmatpush1.msra.mxu0 0.0
  %6036 = vmatprep.subr.mxu0 0.0
  %6037 = vmatpush1.msra.mxu0 0.0
  %6038 = vmatprep.subr.mxu0 0.0
  %6039 = vmatpush1.msra.mxu0 0.0
  %6040 = vmatprep.subr.mxu0 0.0
  %6041 = vmatpush1.msra.mxu0 0.0
  %6042 = vmatprep.subr.mxu0 0.0
  %6043 = vmatpush1.msra.mxu0 0.0
  %6044 = vmatprep.subr.mxu0 0.0
  %6045 = vmatpush1.msra.mxu0 0.0
  %6046 = vmatprep.subr.mxu0 0.0
  %6047 = vmatpush1.msra.mxu0 0.0
  %6048 = vmatprep.subr.mxu0 0.0
  %6049 = vmatpush1.msra.mxu0 0.0
  %6050 = vmatprep.subr.mxu0 0.0
  %6051 = vmatpush1.msra.mxu0 0.0
  %6052 = vmatprep.subr.mxu0 0.0
  %6053 = vmatpush1.msra.mxu0 0.0
  %6054 = vmatprep.subr.mxu0 0.0
  %6055 = vmatpush1.msra.mxu0 0.0
  %6056 = vmatprep.subr.mxu0 0.0
  %6057 = vmatpush1.msra.mxu0 0.0
  %6058 = vmatprep.subr.mxu0 0.0
  %6059 = vmatpush1.msra.mxu0 0.0
  %6060 = vmatprep.mubr.f32.mxu0 0.0
  %6061 = vmatmul.mubr.f32.gmra.mrb[0].mxu0 %v5961
  %v6062 = vpop.f32.mrb[0].mxu0
  %v6063 = vadd.f32 0.0, %v6062
  %v6064 = vpop.f32.mrb[0].mxu0
  %6065 = vmatprep.mubr.f32.mxu0 0.0
  %6066 = vmatmul.mubr.f32.gmra.mrb[0].mxu0 %v5964
  %v6067 = vpop.f32.mrb[0].mxu0
  %v6068 = vadd.f32 0.0, %v6067
  %v6069 = vpop.f32.mrb[0].mxu0
  %6070 = vmatprep.mubr.f32.mxu0 0.0
  %6071 = vmatmul.mubr.f32.gmra.mrb[0].mxu0 %v5967
  %v6072 = vpop.f32.mrb[0].mxu0
  %v6073 = vadd.f32 0.0, %v6072
  %v6074 = vpop.f32.mrb[0].mxu0
  %6075 = vmatprep.mubr.f32.mxu0 0.0
  %6076 = vmatmul.mubr.f32.gmra.mrb[0].mxu0 %v5970
  %v6077 = vpop.f32.mrb[0].mxu0
  %v6078 = vadd.f32 0.0, %v6077
  %v6079 = vpop.f32.mrb[0].mxu0
  %6080 = vmatprep.mubr.f32.mxu0 0.0
  %6081 = vmatmul.mubr.f32.gmra.mrb[0].mxu0 %v5973
  %v6082 = vpop.f32.mrb[0].mxu0
  %v6083 = vadd.f32 0.0, %v6082
  %v6084 = vpop.f32.mrb[0].mxu0
  %6085 = vmatprep.mubr.f32.mxu0 0.0
  %6086 = vmatmul.mubr.f32.gmra.mrb[0].mxu0 %v5976
  %v6087 = vpop.f32.mrb[0].mxu0
  %v6088 = vadd.f32 0.0, %v6087
  %v6089 = vpop.f32.mrb[0].mxu0
  %6090 = vmatprep.mubr.f32.mxu0 0.0
  %6091 = vmatmul.mubr.f32.gmra.mrb[0].mxu0 %v5979
  %v6092 = vpop.f32.mrb[0].mxu0
  %v6093 = vadd.f32 0.0, %v6092
  %v6094 = vpop.f32.mrb[0].mxu0
  %6095 = vmatprep.mubr.f32.mxu0 0.0
  %6096 = vmatmul.mubr.f32.gmra.mrb[0].mxu0 %v5982
  %v6097 = vpop.f32.mrb[0].mxu0
  %v6098 = vadd.f32 0.0, %v6097
  %v6099 = vpop.f32.mrb[0].mxu0
  %6100 = vmatprep.mubr.f32.mxu0 0.0
  %6101 = vmatmul.mubr.f32.gmra.mrb[0].mxu0 %v5985
  %v6102 = vpop.f32.mrb[0].mxu0
  %v6103 = vadd.f32 0.0, %v6102
  %v6104 = vpop.f32.mrb[0].mxu0
  %6105 = vmatprep.mubr.f32.mxu0 0.0
  %6106 = vmatmul.mubr.f32.gmra.mrb[0].mxu0 %v5988
  %v6107 = vpop.f32.mrb[0].mxu0
  %v6108 = vadd.f32 0.0, %v6107
  %v6109 = vpop.f32.mrb[0].mxu0
  %6110 = vmatprep.mubr.f32.mxu0 0.0
  %6111 = vmatmul.mubr.f32.gmra.mrb[0].mxu0 %v5991
  %v6112 = vpop.f32.mrb[0].mxu0
  %v6113 = vadd.f32 0.0, %v6112
  %v6114 = vpop.f32.mrb[0].mxu0
  %6115 = vmatprep.mubr.f32.mxu0 0.0
  %6116 = vmatmul.mubr.f32.gmra.mrb[0].mxu0 %v5994
  %v6117 = vpop.f32.mrb[0].mxu0
  %v6118 = vadd.f32 0.0, %v6117
  %v6119 = vpop.f32.mrb[0].mxu0
  %6120 = vdwg.mxu0
  %v6122 = vsel %vm216, %v5769, 0
  %v6125 = vsel %vm216, %v5774, 0
  %v6128 = vsel %vm216, %v5779, 0
  %v6131 = vsel %vm216, %v5784, 0
  %v6134 = vsel %vm216, %v5789, 0
  %v6137 = vsel %vm216, %v5794, 0
  %v6140 = vsel %vm216, %v5799, 0
  %v6143 = vsel %vm216, %v5804, 0
  %v6146 = vsel %vm216, %v5809, 0
  %v6149 = vsel %vm216, %v5814, 0
  %v6152 = vsel %vm216, %v5819, 0
  %v6155 = vsel %vm216, %v5824, 0
  %6157 = vmatprep.subr.mxu0 0.0
  %6158 = vmatpush1.msra.mxu0 %v5952
  %6159 = vmatprep.subr.mxu0 0.0
  %6160 = vmatpush1.msra.mxu0 %v5953
  %6161 = vmatprep.subr.mxu0 0.0
  %6162 = vmatpush1.msra.mxu0 %v5954
  %6163 = vmatprep.subr.mxu0 0.0
  %6164 = vmatpush1.msra.mxu0 %v5955
  %6165 = vmatprep.subr.mxu0 0.0
  %6166 = vmatpush1.msra.mxu0 0.0
  %6167 = vmatprep.subr.mxu0 0.0
  %6168 = vmatpush1.msra.mxu0 0.0
  %6169 = vmatprep.subr.mxu0 0.0
  %6170 = vmatpush1.msra.mxu0 0.0
  %6171 = vmatprep.subr.mxu0 0.0
  %6172 = vmatpush1.msra.mxu0 0.0
  %6173 = vmatprep.subr.mxu0 0.0
  %6174 = vmatpush1.msra.mxu0 0.0
  %6175 = vmatprep.subr.mxu0 0.0
  %6176 = vmatpush1.msra.mxu0 0.0
  %6177 = vmatprep.subr.mxu0 0.0
  %6178 = vmatpush1.msra.mxu0 0.0
  %6179 = vmatprep.subr.mxu0 0.0
  %6180 = vmatpush1.msra.mxu0 0.0
  %6181 = vmatprep.subr.mxu0 0.0
  %6182 = vmatpush1.msra.mxu0 0.0
  %6183 = vmatprep.subr.mxu0 0.0
  %6184 = vmatpush1.msra.mxu0 0.0
  %6185 = vmatprep.subr.mxu0 0.0
  %6186 = vmatpush1.msra.mxu0 0.0
  %6187 = vmatprep.subr.mxu0 0.0
  %6188 = vmatpush1.msra.mxu0 0.0
  %6189 = vmatprep.subr.mxu0 0.0
  %6190 = vmatpush1.msra.mxu0 0.0
  %6191 = vmatprep.subr.mxu0 0.0
  %6192 = vmatpush1.msra.mxu0 0.0
  %6193 = vmatprep.subr.mxu0 0.0
  %6194 = vmatpush1.msra.mxu0 0.0
  %6195 = vmatprep.subr.mxu0 0.0
  %6196 = vmatpush1.msra.mxu0 0.0
  %6197 = vmatprep.subr.mxu0 0.0
  %6198 = vmatpush1.msra.mxu0 0.0
  %6199 = vmatprep.subr.mxu0 0.0
  %6200 = vmatpush1.msra.mxu0 0.0
  %6201 = vmatprep.subr.mxu0 0.0
  %6202 = vmatpush1.msra.mxu0 0.0
  %6203 = vmatprep.subr.mxu0 0.0
  %6204 = vmatpush1.msra.mxu0 0.0
  %6205 = vmatprep.subr.mxu0 0.0
  %6206 = vmatpush1.msra.mxu0 0.0
  %6207 = vmatprep.subr.mxu0 0.0
  %6208 = vmatpush1.msra.mxu0 0.0
  %6209 = vmatprep.subr.mxu0 0.0
  %6210 = vmatpush1.msra.mxu0 0.0
  %6211 = vmatprep.subr.mxu0 0.0
  %6212 = vmatpush1.msra.mxu0 0.0
  %6213 = vmatprep.subr.mxu0 0.0
  %6214 = vmatpush1.msra.mxu0 0.0
  %6215 = vmatprep.subr.mxu0 0.0
  %6216 = vmatpush1.msra.mxu0 0.0
  %6217 = vmatprep.subr.mxu0 0.0
  %6218 = vmatpush1.msra.mxu0 0.0
  %6219 = vmatprep.subr.mxu0 0.0
  %6220 = vmatpush1.msra.mxu0 0.0
  %6221 = vmatprep.mubr.f32.mxu0 0.0
  %6222 = vmatmul.mubr.f32.gmra.mrb[0].mxu0 %v6122
  %v6223 = vpop.f32.mrb[0].mxu0
  %v6224 = vadd.f32 %v6063, %v6223
  %v6225 = vpop.f32.mrb[0].mxu0
  %6226 = vmatprep.mubr.f32.mxu0 0.0
  %6227 = vmatmul.mubr.f32.gmra.mrb[0].mxu0 %v6125
  %v6228 = vpop.f32.mrb[0].mxu0
  %v6229 = vadd.f32 %v6068, %v6228
  %v6230 = vpop.f32.mrb[0].mxu0
  %6231 = vmatprep.mubr.f32.mxu0 0.0
  %6232 = vmatmul.mubr.f32.gmra.mrb[0].mxu0 %v6128
  %v6233 = vpop.f32.mrb[0].mxu0
  %v6234 = vadd.f32 %v6073, %v6233
  %v6235 = vpop.f32.mrb[0].mxu0
  %6236 = vmatprep.mubr.f32.mxu0 0.0
  %6237 = vmatmul.mubr.f32.gmra.mrb[0].mxu0 %v6131
  %v6238 = vpop.f32.mrb[0].mxu0
  %v6239 = vadd.f32 %v6078, %v6238
  %v6240 = vpop.f32.mrb[0].mxu0
  %6241 = vmatprep.mubr.f32.mxu0 0.0
  %6242 = vmatmul.mubr.f32.gmra.mrb[0].mxu0 %v6134
  %v6243 = vpop.f32.mrb[0].mxu0
  %v6244 = vadd.f32 %v6083, %v6243
  %v6245 = vpop.f32.mrb[0].mxu0
  %6246 = vmatprep.mubr.f32.mxu0 0.0
  %6247 = vmatmul.mubr.f32.gmra.mrb[0].mxu0 %v6137
  %v6248 = vpop.f32.mrb[0].mxu0
  %v6249 = vadd.f32 %v6088, %v6248
  %v6250 = vpop.f32.mrb[0].mxu0
  %6251 = vmatprep.mubr.f32.mxu0 0.0
  %6252 = vmatmul.mubr.f32.gmra.mrb[0].mxu0 %v6140
  %v6253 = vpop.f32.mrb[0].mxu0
  %v6254 = vadd.f32 %v6093, %v6253
  %v6255 = vpop.f32.mrb[0].mxu0
  %6256 = vmatprep.mubr.f32.mxu0 0.0
  %6257 = vmatmul.mubr.f32.gmra.mrb[0].mxu0 %v6143
  %v6258 = vpop.f32.mrb[0].mxu0
  %v6259 = vadd.f32 %v6098, %v6258
  %v6260 = vpop.f32.mrb[0].mxu0
  %6261 = vmatprep.mubr.f32.mxu0 0.0
  %6262 = vmatmul.mubr.f32.gmra.mrb[0].mxu0 %v6146
  %v6263 = vpop.f32.mrb[0].mxu0
  %v6264 = vadd.f32 %v6103, %v6263
  %v6265 = vpop.f32.mrb[0].mxu0
  %6266 = vmatprep.mubr.f32.mxu0 0.0
  %6267 = vmatmul.mubr.f32.gmra.mrb[0].mxu0 %v6149
  %v6268 = vpop.f32.mrb[0].mxu0
  %v6269 = vadd.f32 %v6108, %v6268
  %v6270 = vpop.f32.mrb[0].mxu0
  %6271 = vmatprep.mubr.f32.mxu0 0.0
  %6272 = vmatmul.mubr.f32.gmra.mrb[0].mxu0 %v6152
  %v6273 = vpop.f32.mrb[0].mxu0
  %v6274 = vadd.f32 %v6113, %v6273
  %v6275 = vpop.f32.mrb[0].mxu0
  %6276 = vmatprep.mubr.f32.mxu0 0.0
  %6277 = vmatmul.mubr.f32.gmra.mrb[0].mxu0 %v6155
  %v6278 = vpop.f32.mrb[0].mxu0
  %v6279 = vadd.f32 %v6118, %v6278
  %v6280 = vpop.f32.mrb[0].mxu0
  %6281 = vdwg.mxu0
  %v6282 = vld [vmem:[%s9 + $0x460] sm:$0xff]
  %v6283 = vld [vmem:[%s9 + $0x468] sm:$0xff]
  %v6284 = vld [vmem:[%s9 + $0x470] sm:$0xff]
  %v6285 = vld [vmem:[%s9 + $0x478] sm:$0xff]
  %v6287 = vsel %vm216, %v3486, 0
  %v6290 = vsel %vm216, %v3487, 0
  %v6293 = vsel %vm216, %v3488, 0
  %v6296 = vsel %vm216, %v3489, 0
  %v6299 = vsel %vm216, %v3490, 0
  %v6302 = vsel %vm216, %v3491, 0
  %v6305 = vsel %vm216, %v3492, 0
  %v6308 = vsel %vm216, %v3493, 0
  %v6311 = vsel %vm216, %v3494, 0
  %v6314 = vsel %vm216, %v3495, 0
  %v6317 = vsel %vm216, %v3496, 0
  %v6320 = vsel %vm216, %v3497, 0
  %6322 = vmatprep.subr.mxu0 0.0
  %6323 = vmatpush1.msra.mxu0 %v6282
  %6324 = vmatprep.subr.mxu0 0.0
  %6325 = vmatpush1.msra.mxu0 %v6283
  %6326 = vmatprep.subr.mxu0 0.0
  %6327 = vmatpush1.msra.mxu0 %v6284
  %6328 = vmatprep.subr.mxu0 0.0
  %6329 = vmatpush1.msra.mxu0 %v6285
  %6330 = vmatprep.subr.mxu0 0.0
  %6331 = vmatpush1.msra.mxu0 0.0
  %6332 = vmatprep.subr.mxu0 0.0
  %6333 = vmatpush1.msra.mxu0 0.0
  %6334 = vmatprep.subr.mxu0 0.0
  %6335 = vmatpush1.msra.mxu0 0.0
  %6336 = vmatprep.subr.mxu0 0.0
  %6337 = vmatpush1.msra.mxu0 0.0
  %6338 = vmatprep.subr.mxu0 0.0
  %6339 = vmatpush1.msra.mxu0 0.0
  %6340 = vmatprep.subr.mxu0 0.0
  %6341 = vmatpush1.msra.mxu0 0.0
  %6342 = vmatprep.subr.mxu0 0.0
  %6343 = vmatpush1.msra.mxu0 0.0
  %6344 = vmatprep.subr.mxu0 0.0
  %6345 = vmatpush1.msra.mxu0 0.0
  %6346 = vmatprep.subr.mxu0 0.0
  %6347 = vmatpush1.msra.mxu0 0.0
  %6348 = vmatprep.subr.mxu0 0.0
  %6349 = vmatpush1.msra.mxu0 0.0
  %6350 = vmatprep.subr.mxu0 0.0
  %6351 = vmatpush1.msra.mxu0 0.0
  %6352 = vmatprep.subr.mxu0 0.0
  %6353 = vmatpush1.msra.mxu0 0.0
  %6354 = vmatprep.subr.mxu0 0.0
  %6355 = vmatpush1.msra.mxu0 0.0
  %6356 = vmatprep.subr.mxu0 0.0
  %6357 = vmatpush1.msra.mxu0 0.0
  %6358 = vmatprep.subr.mxu0 0.0
  %6359 = vmatpush1.msra.mxu0 0.0
  %6360 = vmatprep.subr.mxu0 0.0
  %6361 = vmatpush1.msra.mxu0 0.0
  %6362 = vmatprep.subr.mxu0 0.0
  %6363 = vmatpush1.msra.mxu0 0.0
  %6364 = vmatprep.subr.mxu0 0.0
  %6365 = vmatpush1.msra.mxu0 0.0
  %6366 = vmatprep.subr.mxu0 0.0
  %6367 = vmatpush1.msra.mxu0 0.0
  %6368 = vmatprep.subr.mxu0 0.0
  %6369 = vmatpush1.msra.mxu0 0.0
  %6370 = vmatprep.subr.mxu0 0.0
  %6371 = vmatpush1.msra.mxu0 0.0
  %6372 = vmatprep.subr.mxu0 0.0
  %6373 = vmatpush1.msra.mxu0 0.0
  %6374 = vmatprep.subr.mxu0 0.0
  %6375 = vmatpush1.msra.mxu0 0.0
  %6376 = vmatprep.subr.mxu0 0.0
  %6377 = vmatpush1.msra.mxu0 0.0
  %6378 = vmatprep.subr.mxu0 0.0
  %6379 = vmatpush1.msra.mxu0 0.0
  %6380 = vmatprep.subr.mxu0 0.0
  %6381 = vmatpush1.msra.mxu0 0.0
  %6382 = vmatprep.subr.mxu0 0.0
  %6383 = vmatpush1.msra.mxu0 0.0
  %6384 = vmatprep.subr.mxu0 0.0
  %6385 = vmatpush1.msra.mxu0 0.0
  %6386 = vmatprep.mubr.f32.mxu0 0.0
  %6387 = vmatmul.mubr.f32.gmra.mrb[0].mxu0 %v6287
  %v6388 = vpop.f32.mrb[0].mxu0
  %v6389 = vadd.f32 0.0, %v6388
  %v6390 = vpop.f32.mrb[0].mxu0
  %6391 = vmatprep.mubr.f32.mxu0 0.0
  %6392 = vmatmul.mubr.f32.gmra.mrb[0].mxu0 %v6290
  %v6393 = vpop.f32.mrb[0].mxu0
  %v6394 = vadd.f32 0.0, %v6393
  %v6395 = vpop.f32.mrb[0].mxu0
  %6396 = vmatprep.mubr.f32.mxu0 0.0
  %6397 = vmatmul.mubr.f32.gmra.mrb[0].mxu0 %v6293
  %v6398 = vpop.f32.mrb[0].mxu0
  %v6399 = vadd.f32 0.0, %v6398
  %v6400 = vpop.f32.mrb[0].mxu0
  %6401 = vmatprep.mubr.f32.mxu0 0.0
  %6402 = vmatmul.mubr.f32.gmra.mrb[0].mxu0 %v6296
  %v6403 = vpop.f32.mrb[0].mxu0
  %v6404 = vadd.f32 0.0, %v6403
  %v6405 = vpop.f32.mrb[0].mxu0
  %6406 = vmatprep.mubr.f32.mxu0 0.0
  %6407 = vmatmul.mubr.f32.gmra.mrb[0].mxu0 %v6299
  %v6408 = vpop.f32.mrb[0].mxu0
  %v6409 = vadd.f32 0.0, %v6408
  %v6410 = vpop.f32.mrb[0].mxu0
  %6411 = vmatprep.mubr.f32.mxu0 0.0
  %6412 = vmatmul.mubr.f32.gmra.mrb[0].mxu0 %v6302
  %v6413 = vpop.f32.mrb[0].mxu0
  %v6414 = vadd.f32 0.0, %v6413
  %v6415 = vpop.f32.mrb[0].mxu0
  %6416 = vmatprep.mubr.f32.mxu0 0.0
  %6417 = vmatmul.mubr.f32.gmra.mrb[0].mxu0 %v6305
  %v6418 = vpop.f32.mrb[0].mxu0
  %v6419 = vadd.f32 0.0, %v6418
  %v6420 = vpop.f32.mrb[0].mxu0
  %6421 = vmatprep.mubr.f32.mxu0 0.0
  %6422 = vmatmul.mubr.f32.gmra.mrb[0].mxu0 %v6308
  %v6423 = vpop.f32.mrb[0].mxu0
  %v6424 = vadd.f32 0.0, %v6423
  %v6425 = vpop.f32.mrb[0].mxu0
  %6426 = vmatprep.mubr.f32.mxu0 0.0
  %6427 = vmatmul.mubr.f32.gmra.mrb[0].mxu0 %v6311
  %v6428 = vpop.f32.mrb[0].mxu0
  %v6429 = vadd.f32 0.0, %v6428
  %v6430 = vpop.f32.mrb[0].mxu0
  %6431 = vmatprep.mubr.f32.mxu0 0.0
  %6432 = vmatmul.mubr.f32.gmra.mrb[0].mxu0 %v6314
  %v6433 = vpop.f32.mrb[0].mxu0
  %v6434 = vadd.f32 0.0, %v6433
  %v6435 = vpop.f32.mrb[0].mxu0
  %6436 = vmatprep.mubr.f32.mxu0 0.0
  %6437 = vmatmul.mubr.f32.gmra.mrb[0].mxu0 %v6317
  %v6438 = vpop.f32.mrb[0].mxu0
  %v6439 = vadd.f32 0.0, %v6438
  %v6440 = vpop.f32.mrb[0].mxu0
  %6441 = vmatprep.mubr.f32.mxu0 0.0
  %6442 = vmatmul.mubr.f32.gmra.mrb[0].mxu0 %v6320
  %v6443 = vpop.f32.mrb[0].mxu0
  %v6444 = vadd.f32 0.0, %v6443
  %v6445 = vpop.f32.mrb[0].mxu0
  %6446 = vdwg.mxu0
  %v6447 = vadd.f32 %v6224, %v6389
  %v6448 = vadd.f32 %v6229, %v6394
  %v6449 = vadd.f32 %v6234, %v6399
  %v6450 = vadd.f32 %v6239, %v6404
  %v6451 = vadd.f32 %v6244, %v6409
  %v6452 = vadd.f32 %v6249, %v6414
  %v6453 = vadd.f32 %v6254, %v6419
  %v6454 = vadd.f32 %v6259, %v6424
  %v6455 = vadd.f32 %v6264, %v6429
  %v6456 = vadd.f32 %v6269, %v6434
  %v6457 = vadd.f32 %v6274, %v6439
  %v6458 = vadd.f32 %v6279, %v6444
  %v6459 = vld [vmem:[%s9 + $0x480] sm:$0x1]
  %v6460 = vlaneseq
  %v6461 = vshrl.u32 %v6460, 7
  %v6462 = vsub.s32 0, %v6461
  %v6463 = vrot.slane %v6459, %v6462
  %v6464 = vadd.f32 %v6447, %v6463
  %v6465 = vadd.f32 %v6448, %v6463
  %v6466 = vadd.f32 %v6449, %v6463
  %v6467 = vadd.f32 %v6450, %v6463
  %v6468 = vadd.f32 %v6451, %v6463
  %v6469 = vadd.f32 %v6452, %v6463
  %v6470 = vadd.f32 %v6453, %v6463
  %v6471 = vadd.f32 %v6454, %v6463
  %v6472 = vadd.f32 %v6455, %v6463
  %v6473 = vadd.f32 %v6456, %v6463
  %v6474 = vadd.f32 %v6457, %v6463
  %v6475 = vadd.f32 %v6458, %v6463
  %v6476 = vmax.f32 %v6464, 0.0
  %v6477 = vmax.f32 %v6465, 0.0
  %v6478 = vmax.f32 %v6466, 0.0
  %v6479 = vmax.f32 %v6467, 0.0
  %v6480 = vmax.f32 %v6468, 0.0
  %v6481 = vmax.f32 %v6469, 0.0
  %v6482 = vmax.f32 %v6470, 0.0
  %v6483 = vmax.f32 %v6471, 0.0
  %v6484 = vmax.f32 %v6472, 0.0
  %v6485 = vmax.f32 %v6473, 0.0
  %v6486 = vmax.f32 %v6474, 0.0
  %v6487 = vmax.f32 %v6475, 0.0
  %v6488 = vld [vmem:[%s9 + $0x488] sm:$0xff]
  %v6489 = vld [vmem:[%s9 + $0x490] sm:$0xff]
  %v6490 = vld [vmem:[%s9 + $0x498] sm:$0xff]
  %v6491 = vld [vmem:[%s9 + $0x4a0] sm:$0xff]
  %v6492 = vld [vmem:[%s9 + $0x4a8] sm:$0x1]
  %v6493 = vlaneseq
  %v6494 = vshrl.u32 %v6493, 7
  %v6495 = vsub.s32 0, %v6494
  %v6496 = vrot.slane %v6492, %v6495
  %v6498 = vsel %vm216, %v6476, 0
  %v6501 = vsel %vm216, %v6477, 0
  %v6504 = vsel %vm216, %v6478, 0
  %v6507 = vsel %vm216, %v6479, 0
  %v6510 = vsel %vm216, %v6480, 0
  %v6513 = vsel %vm216, %v6481, 0
  %v6516 = vsel %vm216, %v6482, 0
  %v6519 = vsel %vm216, %v6483, 0
  %v6522 = vsel %vm216, %v6484, 0
  %v6525 = vsel %vm216, %v6485, 0
  %v6528 = vsel %vm216, %v6486, 0
  %v6531 = vsel %vm216, %v6487, 0
  %6533 = vmatprep.subr.mxu0 0.0
  %6534 = vmatpush1.msra.mxu0 %v6488
  %6535 = vmatprep.subr.mxu0 0.0
  %6536 = vmatpush1.msra.mxu0 %v6489
  %6537 = vmatprep.subr.mxu0 0.0
  %6538 = vmatpush1.msra.mxu0 %v6490
  %6539 = vmatprep.subr.mxu0 0.0
  %6540 = vmatpush1.msra.mxu0 %v6491
  %6541 = vmatprep.subr.mxu0 0.0
  %6542 = vmatpush1.msra.mxu0 0.0
  %6543 = vmatprep.subr.mxu0 0.0
  %6544 = vmatpush1.msra.mxu0 0.0
  %6545 = vmatprep.subr.mxu0 0.0
  %6546 = vmatpush1.msra.mxu0 0.0
  %6547 = vmatprep.subr.mxu0 0.0
  %6548 = vmatpush1.msra.mxu0 0.0
  %6549 = vmatprep.subr.mxu0 0.0
  %6550 = vmatpush1.msra.mxu0 0.0
  %6551 = vmatprep.subr.mxu0 0.0
  %6552 = vmatpush1.msra.mxu0 0.0
  %6553 = vmatprep.subr.mxu0 0.0
  %6554 = vmatpush1.msra.mxu0 0.0
  %6555 = vmatprep.subr.mxu0 0.0
  %6556 = vmatpush1.msra.mxu0 0.0
  %6557 = vmatprep.subr.mxu0 0.0
  %6558 = vmatpush1.msra.mxu0 0.0
  %6559 = vmatprep.subr.mxu0 0.0
  %6560 = vmatpush1.msra.mxu0 0.0
  %6561 = vmatprep.subr.mxu0 0.0
  %6562 = vmatpush1.msra.mxu0 0.0
  %6563 = vmatprep.subr.mxu0 0.0
  %6564 = vmatpush1.msra.mxu0 0.0
  %6565 = vmatprep.subr.mxu0 0.0
  %6566 = vmatpush1.msra.mxu0 0.0
  %6567 = vmatprep.subr.mxu0 0.0
  %6568 = vmatpush1.msra.mxu0 0.0
  %6569 = vmatprep.subr.mxu0 0.0
  %6570 = vmatpush1.msra.mxu0 0.0
  %6571 = vmatprep.subr.mxu0 0.0
  %6572 = vmatpush1.msra.mxu0 0.0
  %6573 = vmatprep.subr.mxu0 0.0
  %6574 = vmatpush1.msra.mxu0 0.0
  %6575 = vmatprep.subr.mxu0 0.0
  %6576 = vmatpush1.msra.mxu0 0.0
  %6577 = vmatprep.subr.mxu0 0.0
  %6578 = vmatpush1.msra.mxu0 0.0
  %6579 = vmatprep.subr.mxu0 0.0
  %6580 = vmatpush1.msra.mxu0 0.0
  %6581 = vmatprep.subr.mxu0 0.0
  %6582 = vmatpush1.msra.mxu0 0.0
  %6583 = vmatprep.subr.mxu0 0.0
  %6584 = vmatpush1.msra.mxu0 0.0
  %6585 = vmatprep.subr.mxu0 0.0
  %6586 = vmatpush1.msra.mxu0 0.0
  %6587 = vmatprep.subr.mxu0 0.0
  %6588 = vmatpush1.msra.mxu0 0.0
  %6589 = vmatprep.subr.mxu0 0.0
  %6590 = vmatpush1.msra.mxu0 0.0
  %6591 = vmatprep.subr.mxu0 0.0
  %6592 = vmatpush1.msra.mxu0 0.0
  %6593 = vmatprep.subr.mxu0 0.0
  %6594 = vmatpush1.msra.mxu0 0.0
  %6595 = vmatprep.subr.mxu0 0.0
  %6596 = vmatpush1.msra.mxu0 0.0
  %6597 = vmatprep.mubr.f32.mxu0 0.0
  %6598 = vmatmul.mubr.f32.gmra.mrb[0].mxu0 %v6498
  %v6599 = vpop.f32.mrb[0].mxu0
  %v6600 = vadd.f32 %v6496, %v6599
  %v6601 = vpop.f32.mrb[0].mxu0
  %6602 = vmatprep.mubr.f32.mxu0 0.0
  %6603 = vmatmul.mubr.f32.gmra.mrb[0].mxu0 %v6501
  %v6604 = vpop.f32.mrb[0].mxu0
  %v6605 = vadd.f32 %v6496, %v6604
  %v6606 = vpop.f32.mrb[0].mxu0
  %6607 = vmatprep.mubr.f32.mxu0 0.0
  %6608 = vmatmul.mubr.f32.gmra.mrb[0].mxu0 %v6504
  %v6609 = vpop.f32.mrb[0].mxu0
  %v6610 = vadd.f32 %v6496, %v6609
  %v6611 = vpop.f32.mrb[0].mxu0
  %6612 = vmatprep.mubr.f32.mxu0 0.0
  %6613 = vmatmul.mubr.f32.gmra.mrb[0].mxu0 %v6507
  %v6614 = vpop.f32.mrb[0].mxu0
  %v6615 = vadd.f32 %v6496, %v6614
  %v6616 = vpop.f32.mrb[0].mxu0
  %6617 = vmatprep.mubr.f32.mxu0 0.0
  %6618 = vmatmul.mubr.f32.gmra.mrb[0].mxu0 %v6510
  %v6619 = vpop.f32.mrb[0].mxu0
  %v6620 = vadd.f32 %v6496, %v6619
  %v6621 = vpop.f32.mrb[0].mxu0
  %6622 = vmatprep.mubr.f32.mxu0 0.0
  %6623 = vmatmul.mubr.f32.gmra.mrb[0].mxu0 %v6513
  %v6624 = vpop.f32.mrb[0].mxu0
  %v6625 = vadd.f32 %v6496, %v6624
  %v6626 = vpop.f32.mrb[0].mxu0
  %6627 = vmatprep.mubr.f32.mxu0 0.0
  %6628 = vmatmul.mubr.f32.gmra.mrb[0].mxu0 %v6516
  %v6629 = vpop.f32.mrb[0].mxu0
  %v6630 = vadd.f32 %v6496, %v6629
  %v6631 = vpop.f32.mrb[0].mxu0
  %6632 = vmatprep.mubr.f32.mxu0 0.0
  %6633 = vmatmul.mubr.f32.gmra.mrb[0].mxu0 %v6519
  %v6634 = vpop.f32.mrb[0].mxu0
  %v6635 = vadd.f32 %v6496, %v6634
  %v6636 = vpop.f32.mrb[0].mxu0
  %6637 = vmatprep.mubr.f32.mxu0 0.0
  %6638 = vmatmul.mubr.f32.gmra.mrb[0].mxu0 %v6522
  %v6639 = vpop.f32.mrb[0].mxu0
  %v6640 = vadd.f32 %v6496, %v6639
  %v6641 = vpop.f32.mrb[0].mxu0
  %6642 = vmatprep.mubr.f32.mxu0 0.0
  %6643 = vmatmul.mubr.f32.gmra.mrb[0].mxu0 %v6525
  %v6644 = vpop.f32.mrb[0].mxu0
  %v6645 = vadd.f32 %v6496, %v6644
  %v6646 = vpop.f32.mrb[0].mxu0
  %6647 = vmatprep.mubr.f32.mxu0 0.0
  %6648 = vmatmul.mubr.f32.gmra.mrb[0].mxu0 %v6528
  %v6649 = vpop.f32.mrb[0].mxu0
  %v6650 = vadd.f32 %v6496, %v6649
  %v6651 = vpop.f32.mrb[0].mxu0
  %6652 = vmatprep.mubr.f32.mxu0 0.0
  %6653 = vmatmul.mubr.f32.gmra.mrb[0].mxu0 %v6531
  %v6654 = vpop.f32.mrb[0].mxu0
  %v6655 = vadd.f32 %v6496, %v6654
  %v6656 = vpop.f32.mrb[0].mxu0
  %6657 = vdwg.mxu0
  %v6658 = vmax.f32 %v6600, 0.0
  %v6659 = vmax.f32 %v6605, 0.0
  %v6660 = vmax.f32 %v6610, 0.0
  %v6661 = vmax.f32 %v6615, 0.0
  %v6662 = vmax.f32 %v6620, 0.0
  %v6663 = vmax.f32 %v6625, 0.0
  %v6664 = vmax.f32 %v6630, 0.0
  %v6665 = vmax.f32 %v6635, 0.0
  %v6666 = vmax.f32 %v6640, 0.0
  %v6667 = vmax.f32 %v6645, 0.0
  %v6668 = vmax.f32 %v6650, 0.0
  %v6669 = vmax.f32 %v6655, 0.0
  %v6670 = vld [vmem:[%s9 + $0x4b0] sm:$0xff]
  %v6671 = vld [vmem:[%s9 + $0x4b8] sm:$0xff]
  %v6672 = vld [vmem:[%s9 + $0x4c0] sm:$0xff]
  %v6673 = vld [vmem:[%s9 + $0x4c8] sm:$0xff]
  %v6674 = vld [vmem:[%s9 + $0x4d0] sm:$0x1]
  %v6675 = vlaneseq
  %v6676 = vshrl.u32 %v6675, 7
  %v6677 = vsub.s32 0, %v6676
  %v6678 = vrot.slane %v6674, %v6677
  %v6680 = vsel %vm216, %v6658, 0
  %v6683 = vsel %vm216, %v6659, 0
  %v6686 = vsel %vm216, %v6660, 0
  %v6689 = vsel %vm216, %v6661, 0
  %v6692 = vsel %vm216, %v6662, 0
  %v6695 = vsel %vm216, %v6663, 0
  %v6698 = vsel %vm216, %v6664, 0
  %v6701 = vsel %vm216, %v6665, 0
  %v6704 = vsel %vm216, %v6666, 0
  %v6707 = vsel %vm216, %v6667, 0
  %v6710 = vsel %vm216, %v6668, 0
  %v6713 = vsel %vm216, %v6669, 0
  %6715 = vmatprep.subr.mxu0 0.0
  %6716 = vmatpush1.msra.mxu0 %v6670
  %6717 = vmatprep.subr.mxu0 0.0
  %6718 = vmatpush1.msra.mxu0 %v6671
  %6719 = vmatprep.subr.mxu0 0.0
  %6720 = vmatpush1.msra.mxu0 %v6672
  %6721 = vmatprep.subr.mxu0 0.0
  %6722 = vmatpush1.msra.mxu0 %v6673
  %6723 = vmatprep.subr.mxu0 0.0
  %6724 = vmatpush1.msra.mxu0 0.0
  %6725 = vmatprep.subr.mxu0 0.0
  %6726 = vmatpush1.msra.mxu0 0.0
  %6727 = vmatprep.subr.mxu0 0.0
  %6728 = vmatpush1.msra.mxu0 0.0
  %6729 = vmatprep.subr.mxu0 0.0
  %6730 = vmatpush1.msra.mxu0 0.0
  %6731 = vmatprep.subr.mxu0 0.0
  %6732 = vmatpush1.msra.mxu0 0.0
  %6733 = vmatprep.subr.mxu0 0.0
  %6734 = vmatpush1.msra.mxu0 0.0
  %6735 = vmatprep.subr.mxu0 0.0
  %6736 = vmatpush1.msra.mxu0 0.0
  %6737 = vmatprep.subr.mxu0 0.0
  %6738 = vmatpush1.msra.mxu0 0.0
  %6739 = vmatprep.subr.mxu0 0.0
  %6740 = vmatpush1.msra.mxu0 0.0
  %6741 = vmatprep.subr.mxu0 0.0
  %6742 = vmatpush1.msra.mxu0 0.0
  %6743 = vmatprep.subr.mxu0 0.0
  %6744 = vmatpush1.msra.mxu0 0.0
  %6745 = vmatprep.subr.mxu0 0.0
  %6746 = vmatpush1.msra.mxu0 0.0
  %6747 = vmatprep.subr.mxu0 0.0
  %6748 = vmatpush1.msra.mxu0 0.0
  %6749 = vmatprep.subr.mxu0 0.0
  %6750 = vmatpush1.msra.mxu0 0.0
  %6751 = vmatprep.subr.mxu0 0.0
  %6752 = vmatpush1.msra.mxu0 0.0
  %6753 = vmatprep.subr.mxu0 0.0
  %6754 = vmatpush1.msra.mxu0 0.0
  %6755 = vmatprep.subr.mxu0 0.0
  %6756 = vmatpush1.msra.mxu0 0.0
  %6757 = vmatprep.subr.mxu0 0.0
  %6758 = vmatpush1.msra.mxu0 0.0
  %6759 = vmatprep.subr.mxu0 0.0
  %6760 = vmatpush1.msra.mxu0 0.0
  %6761 = vmatprep.subr.mxu0 0.0
  %6762 = vmatpush1.msra.mxu0 0.0
  %6763 = vmatprep.subr.mxu0 0.0
  %6764 = vmatpush1.msra.mxu0 0.0
  %6765 = vmatprep.subr.mxu0 0.0
  %6766 = vmatpush1.msra.mxu0 0.0
  %6767 = vmatprep.subr.mxu0 0.0
  %6768 = vmatpush1.msra.mxu0 0.0
  %6769 = vmatprep.subr.mxu0 0.0
  %6770 = vmatpush1.msra.mxu0 0.0
  %6771 = vmatprep.subr.mxu0 0.0
  %6772 = vmatpush1.msra.mxu0 0.0
  %6773 = vmatprep.subr.mxu0 0.0
  %6774 = vmatpush1.msra.mxu0 0.0
  %6775 = vmatprep.subr.mxu0 0.0
  %6776 = vmatpush1.msra.mxu0 0.0
  %6777 = vmatprep.subr.mxu0 0.0
  %6778 = vmatpush1.msra.mxu0 0.0
  %6779 = vmatprep.mubr.f32.mxu0 0.0
  %6780 = vmatmul.mubr.f32.gmra.mrb[0].mxu0 %v6680
  %v6781 = vpop.f32.mrb[0].mxu0
  %v6782 = vadd.f32 %v6678, %v6781
  %v6783 = vpop.f32.mrb[0].mxu0
  %6784 = vmatprep.mubr.f32.mxu0 0.0
  %6785 = vmatmul.mubr.f32.gmra.mrb[0].mxu0 %v6683
  %v6786 = vpop.f32.mrb[0].mxu0
  %v6787 = vadd.f32 %v6678, %v6786
  %v6788 = vpop.f32.mrb[0].mxu0
  %6789 = vmatprep.mubr.f32.mxu0 0.0
  %6790 = vmatmul.mubr.f32.gmra.mrb[0].mxu0 %v6686
  %v6791 = vpop.f32.mrb[0].mxu0
  %v6792 = vadd.f32 %v6678, %v6791
  %v6793 = vpop.f32.mrb[0].mxu0
  %6794 = vmatprep.mubr.f32.mxu0 0.0
  %6795 = vmatmul.mubr.f32.gmra.mrb[0].mxu0 %v6689
  %v6796 = vpop.f32.mrb[0].mxu0
  %v6797 = vadd.f32 %v6678, %v6796
  %v6798 = vpop.f32.mrb[0].mxu0
  %6799 = vmatprep.mubr.f32.mxu0 0.0
  %6800 = vmatmul.mubr.f32.gmra.mrb[0].mxu0 %v6692
  %v6801 = vpop.f32.mrb[0].mxu0
  %v6802 = vadd.f32 %v6678, %v6801
  %v6803 = vpop.f32.mrb[0].mxu0
  %6804 = vmatprep.mubr.f32.mxu0 0.0
  %6805 = vmatmul.mubr.f32.gmra.mrb[0].mxu0 %v6695
  %v6806 = vpop.f32.mrb[0].mxu0
  %v6807 = vadd.f32 %v6678, %v6806
  %v6808 = vpop.f32.mrb[0].mxu0
  %6809 = vmatprep.mubr.f32.mxu0 0.0
  %6810 = vmatmul.mubr.f32.gmra.mrb[0].mxu0 %v6698
  %v6811 = vpop.f32.mrb[0].mxu0
  %v6812 = vadd.f32 %v6678, %v6811
  %v6813 = vpop.f32.mrb[0].mxu0
  %6814 = vmatprep.mubr.f32.mxu0 0.0
  %6815 = vmatmul.mubr.f32.gmra.mrb[0].mxu0 %v6701
  %v6816 = vpop.f32.mrb[0].mxu0
  %v6817 = vadd.f32 %v6678, %v6816
  %v6818 = vpop.f32.mrb[0].mxu0
  %6819 = vmatprep.mubr.f32.mxu0 0.0
  %6820 = vmatmul.mubr.f32.gmra.mrb[0].mxu0 %v6704
  %v6821 = vpop.f32.mrb[0].mxu0
  %v6822 = vadd.f32 %v6678, %v6821
  %v6823 = vpop.f32.mrb[0].mxu0
  %6824 = vmatprep.mubr.f32.mxu0 0.0
  %6825 = vmatmul.mubr.f32.gmra.mrb[0].mxu0 %v6707
  %v6826 = vpop.f32.mrb[0].mxu0
  %v6827 = vadd.f32 %v6678, %v6826
  %v6828 = vpop.f32.mrb[0].mxu0
  %6829 = vmatprep.mubr.f32.mxu0 0.0
  %6830 = vmatmul.mubr.f32.gmra.mrb[0].mxu0 %v6710
  %v6831 = vpop.f32.mrb[0].mxu0
  %v6832 = vadd.f32 %v6678, %v6831
  %v6833 = vpop.f32.mrb[0].mxu0
  %6834 = vmatprep.mubr.f32.mxu0 0.0
  %6835 = vmatmul.mubr.f32.gmra.mrb[0].mxu0 %v6713
  %v6836 = vpop.f32.mrb[0].mxu0
  %v6837 = vadd.f32 %v6678, %v6836
  %v6838 = vpop.f32.mrb[0].mxu0
  %6839 = vdwg.mxu0
  %v6840 = vld [vmem:[%s9 + $0x4d8] sm:$0x1]
  %v6841 = vld [vmem:[%s9 + $0x4e0] sm:$0x1]
  %v6842 = vsel %vm216, %v6782, 0.0
  %6843 = vadd.xlane.f32.xlu0 %v6842
  %v6844 = vpop.xlane.xlu0 %6843
  %v6845 = vsel %vm216, %v6787, 0.0
  %6846 = vadd.xlane.f32.xlu0 %v6845
  %v6847 = vpop.xlane.xlu0 %6846
  %v6848 = vsel %vm216, %v6792, 0.0
  %6849 = vadd.xlane.f32.xlu0 %v6848
  %v6850 = vpop.xlane.xlu0 %6849
  %v6851 = vsel %vm216, %v6797, 0.0
  %6852 = vadd.xlane.f32.xlu0 %v6851
  %v6853 = vpop.xlane.xlu0 %6852
  %v6854 = vsel %vm216, %v6802, 0.0
  %6855 = vadd.xlane.f32.xlu0 %v6854
  %v6856 = vpop.xlane.xlu0 %6855
  %v6857 = vsel %vm216, %v6807, 0.0
  %6858 = vadd.xlane.f32.xlu0 %v6857
  %v6859 = vpop.xlane.xlu0 %6858
  %v6860 = vsel %vm216, %v6812, 0.0
  %6861 = vadd.xlane.f32.xlu0 %v6860
  %v6862 = vpop.xlane.xlu0 %6861
  %v6863 = vsel %vm216, %v6817, 0.0
  %6864 = vadd.xlane.f32.xlu0 %v6863
  %v6865 = vpop.xlane.xlu0 %6864
  %v6866 = vsel %vm216, %v6822, 0.0
  %6867 = vadd.xlane.f32.xlu0 %v6866
  %v6868 = vpop.xlane.xlu0 %6867
  %v6869 = vsel %vm216, %v6827, 0.0
  %6870 = vadd.xlane.f32.xlu0 %v6869
  %v6871 = vpop.xlane.xlu0 %6870
  %v6872 = vsel %vm216, %v6832, 0.0
  %6873 = vadd.xlane.f32.xlu0 %v6872
  %v6874 = vpop.xlane.xlu0 %6873
  %v6875 = vsel %vm216, %v6837, 0.0
  %6876 = vadd.xlane.f32.xlu0 %v6875
  %v6877 = vpop.xlane.xlu0 %6876
  %v6878 = vmul.f32 %v6844, %v558
  %v6879 = vmul.f32 %v6847, %v558
  %v6880 = vmul.f32 %v6850, %v558
  %v6881 = vmul.f32 %v6853, %v558
  %v6882 = vmul.f32 %v6856, %v558
  %v6883 = vmul.f32 %v6859, %v558
  %v6884 = vmul.f32 %v6862, %v558
  %v6885 = vmul.f32 %v6865, %v558
  %v6886 = vmul.f32 %v6868, %v558
  %v6887 = vmul.f32 %v6871, %v558
  %v6888 = vmul.f32 %v6874, %v558
  %v6889 = vmul.f32 %v6877, %v558
  %v6890 = vsub.f32 %v6782, %v6878
  %v6891 = vsub.f32 %v6787, %v6879
  %v6892 = vsub.f32 %v6792, %v6880
  %v6893 = vsub.f32 %v6797, %v6881
  %v6894 = vsub.f32 %v6802, %v6882
  %v6895 = vsub.f32 %v6807, %v6883
  %v6896 = vsub.f32 %v6812, %v6884
  %v6897 = vsub.f32 %v6817, %v6885
  %v6898 = vsub.f32 %v6822, %v6886
  %v6899 = vsub.f32 %v6827, %v6887
  %v6900 = vsub.f32 %v6832, %v6888
  %v6901 = vsub.f32 %v6837, %v6889
  %v6902 = vmul.f32 %v6890, %v6890
  %v6903 = vmul.f32 %v6891, %v6891
  %v6904 = vmul.f32 %v6892, %v6892
  %v6905 = vmul.f32 %v6893, %v6893
  %v6906 = vmul.f32 %v6894, %v6894
  %v6907 = vmul.f32 %v6895, %v6895
  %v6908 = vmul.f32 %v6896, %v6896
  %v6909 = vmul.f32 %v6897, %v6897
  %v6910 = vmul.f32 %v6898, %v6898
  %v6911 = vmul.f32 %v6899, %v6899
  %v6912 = vmul.f32 %v6900, %v6900
  %v6913 = vmul.f32 %v6901, %v6901
  %v6914 = vsel %vm216, %v6902, 0.0
  %6915 = vadd.xlane.f32.xlu0 %v6914
  %v6916 = vpop.xlane.xlu0 %6915
  %v6917 = vsel %vm216, %v6903, 0.0
  %6918 = vadd.xlane.f32.xlu0 %v6917
  %v6919 = vpop.xlane.xlu0 %6918
  %v6920 = vsel %vm216, %v6904, 0.0
  %6921 = vadd.xlane.f32.xlu0 %v6920
  %v6922 = vpop.xlane.xlu0 %6921
  %v6923 = vsel %vm216, %v6905, 0.0
  %6924 = vadd.xlane.f32.xlu0 %v6923
  %v6925 = vpop.xlane.xlu0 %6924
  %v6926 = vsel %vm216, %v6906, 0.0
  %6927 = vadd.xlane.f32.xlu0 %v6926
  %v6928 = vpop.xlane.xlu0 %6927
  %v6929 = vsel %vm216, %v6907, 0.0
  %6930 = vadd.xlane.f32.xlu0 %v6929
  %v6931 = vpop.xlane.xlu0 %6930
  %v6932 = vsel %vm216, %v6908, 0.0
  %6933 = vadd.xlane.f32.xlu0 %v6932
  %v6934 = vpop.xlane.xlu0 %6933
  %v6935 = vsel %vm216, %v6909, 0.0
  %6936 = vadd.xlane.f32.xlu0 %v6935
  %v6937 = vpop.xlane.xlu0 %6936
  %v6938 = vsel %vm216, %v6910, 0.0
  %6939 = vadd.xlane.f32.xlu0 %v6938
  %v6940 = vpop.xlane.xlu0 %6939
  %v6941 = vsel %vm216, %v6911, 0.0
  %6942 = vadd.xlane.f32.xlu0 %v6941
  %v6943 = vpop.xlane.xlu0 %6942
  %v6944 = vsel %vm216, %v6912, 0.0
  %6945 = vadd.xlane.f32.xlu0 %v6944
  %v6946 = vpop.xlane.xlu0 %6945
  %v6947 = vsel %vm216, %v6913, 0.0
  %6948 = vadd.xlane.f32.xlu0 %v6947
  %v6949 = vpop.xlane.xlu0 %6948
  %v6950 = vmul.f32 %v6916, %v558
  %v6951 = vmul.f32 %v6919, %v558
  %v6952 = vmul.f32 %v6922, %v558
  %v6953 = vmul.f32 %v6925, %v558
  %v6954 = vmul.f32 %v6928, %v558
  %v6955 = vmul.f32 %v6931, %v558
  %v6956 = vmul.f32 %v6934, %v558
  %v6957 = vmul.f32 %v6937, %v558
  %v6958 = vmul.f32 %v6940, %v558
  %v6959 = vmul.f32 %v6943, %v558
  %v6960 = vmul.f32 %v6946, %v558
  %v6961 = vmul.f32 %v6949, %v558
  %v6962 = vadd.f32 %v6950, 1e-05
  %v6963 = vadd.f32 %v6951, 1e-05
  %v6964 = vadd.f32 %v6952, 1e-05
  %v6965 = vadd.f32 %v6953, 1e-05
  %v6966 = vadd.f32 %v6954, 1e-05
  %v6967 = vadd.f32 %v6955, 1e-05
  %v6968 = vadd.f32 %v6956, 1e-05
  %v6969 = vadd.f32 %v6957, 1e-05
  %v6970 = vadd.f32 %v6958, 1e-05
  %v6971 = vadd.f32 %v6959, 1e-05
  %v6972 = vadd.f32 %v6960, 1e-05
  %v6973 = vadd.f32 %v6961, 1e-05
  %v6974 = vrsqrt.pop %v6962
  %v6975 = vrsqrt.pop %v6963
  %v6976 = vrsqrt.pop %v6964
  %v6977 = vrsqrt.pop %v6965
  %v6978 = vrsqrt.pop %v6966
  %v6979 = vrsqrt.pop %v6967
  %v6980 = vrsqrt.pop %v6968
  %v6981 = vrsqrt.pop %v6969
  %v6982 = vrsqrt.pop %v6970
  %v6983 = vrsqrt.pop %v6971
  %v6984 = vrsqrt.pop %v6972
  %v6985 = vrsqrt.pop %v6973
  %v6986 = vmul.f32 %v6890, %v6974
  %v6987 = vmul.f32 %v6891, %v6975
  %v6988 = vmul.f32 %v6892, %v6976
  %v6989 = vmul.f32 %v6893, %v6977
  %v6990 = vmul.f32 %v6894, %v6978
  %v6991 = vmul.f32 %v6895, %v6979
  %v6992 = vmul.f32 %v6896, %v6980
  %v6993 = vmul.f32 %v6897, %v6981
  %v6994 = vmul.f32 %v6898, %v6982
  %v6995 = vmul.f32 %v6899, %v6983
  %v6996 = vmul.f32 %v6900, %v6984
  %v6997 = vmul.f32 %v6901, %v6985
  %v6998 = vlaneseq
  %v6999 = vshrl.u32 %v6998, 7
  %v7000 = vsub.s32 0, %v6999
  %v7001 = vrot.slane %v6840, %v7000
  %v7002 = vmul.f32 %v6986, %v7001
  %v7003 = vmul.f32 %v6987, %v7001
  %v7004 = vmul.f32 %v6988, %v7001
  %v7005 = vmul.f32 %v6989, %v7001
  %v7006 = vmul.f32 %v6990, %v7001
  %v7007 = vmul.f32 %v6991, %v7001
  %v7008 = vmul.f32 %v6992, %v7001
  %v7009 = vmul.f32 %v6993, %v7001
  %v7010 = vmul.f32 %v6994, %v7001
  %v7011 = vmul.f32 %v6995, %v7001
  %v7012 = vmul.f32 %v6996, %v7001
  %v7013 = vmul.f32 %v6997, %v7001
  %v7014 = vlaneseq
  %v7015 = vshrl.u32 %v7014, 7
  %v7016 = vsub.s32 0, %v7015
  %v7017 = vrot.slane %v6841, %v7016
  %v7018 = vadd.f32 %v7002, %v7017
  %v7019 = vadd.f32 %v7003, %v7017
  %v7020 = vadd.f32 %v7004, %v7017
  %v7021 = vadd.f32 %v7005, %v7017
  %v7022 = vadd.f32 %v7006, %v7017
  %v7023 = vadd.f32 %v7007, %v7017
  %v7024 = vadd.f32 %v7008, %v7017
  %v7025 = vadd.f32 %v7009, %v7017
  %v7026 = vadd.f32 %v7010, %v7017
  %v7027 = vadd.f32 %v7011, %v7017
  %v7028 = vadd.f32 %v7012, %v7017
  %v7029 = vadd.f32 %v7013, %v7017
  %v7030 = vadd.f32 %v3486, %v7018
  %v7031 = vadd.f32 %v3487, %v7019
  %v7032 = vadd.f32 %v3488, %v7020
  %v7033 = vadd.f32 %v3489, %v7021
  %v7034 = vadd.f32 %v3490, %v7022
  %v7035 = vadd.f32 %v3491, %v7023
  %v7036 = vadd.f32 %v3492, %v7024
  %v7037 = vadd.f32 %v3493, %v7025
  %v7038 = vadd.f32 %v3494, %v7026
  %v7039 = vadd.f32 %v3495, %v7027
  %v7040 = vadd.f32 %v3496, %v7028
  %v7041 = vadd.f32 %v3497, %v7029
  %7042 = vmatprep.subr.mxu0 0.0
  %7043 = vmatpush1.msra.mxu0 %v5694
  %7044 = vmatprep.subr.mxu0 0.0
  %7045 = vmatpush1.msra.mxu0 %v5695
  %7046 = vmatprep.subr.mxu0 0.0
  %7047 = vmatpush1.msra.mxu0 %v5696
  %7048 = vmatprep.subr.mxu0 0.0
  %7049 = vmatpush1.msra.mxu0 %v5697
  %7050 = vmatprep.subr.mxu0 0.0
  %7051 = vmatpush1.msra.mxu0 %v5698
  %7052 = vmatprep.subr.mxu0 0.0
  %7053 = vmatpush1.msra.mxu0 %v5699
  %7054 = vmatprep.subr.mxu0 0.0
  %7055 = vmatpush1.msra.mxu0 %v5700
  %7056 = vmatprep.subr.mxu0 0.0
  %7057 = vmatpush1.msra.mxu0 %v5701
  %7058 = vmatprep.subr.mxu0 0.0
  %7059 = vmatpush1.msra.mxu0 0.0
  %7060 = vmatprep.subr.mxu0 0.0
  %7061 = vmatpush1.msra.mxu0 0.0
  %7062 = vmatprep.subr.mxu0 0.0
  %7063 = vmatpush1.msra.mxu0 0.0
  %7064 = vmatprep.subr.mxu0 0.0
  %7065 = vmatpush1.msra.mxu0 0.0
  %7066 = vmatprep.subr.mxu0 0.0
  %7067 = vmatpush1.msra.mxu0 0.0
  %7068 = vmatprep.subr.mxu0 0.0
  %7069 = vmatpush1.msra.mxu0 0.0
  %7070 = vmatprep.subr.mxu0 0.0
  %7071 = vmatpush1.msra.mxu0 0.0
  %7072 = vmatprep.subr.mxu0 0.0
  %7073 = vmatpush1.msra.mxu0 0.0
  %7074 = vmatprep.subr.mxu0 0.0
  %7075 = vmatpush1.msra.mxu0 0.0
  %7076 = vmatprep.subr.mxu0 0.0
  %7077 = vmatpush1.msra.mxu0 0.0
  %7078 = vmatprep.subr.mxu0 0.0
  %7079 = vmatpush1.msra.mxu0 0.0
  %7080 = vmatprep.subr.mxu0 0.0
  %7081 = vmatpush1.msra.mxu0 0.0
  %7082 = vmatprep.subr.mxu0 0.0
  %7083 = vmatpush1.msra.mxu0 0.0
  %7084 = vmatprep.subr.mxu0 0.0
  %7085 = vmatpush1.msra.mxu0 0.0
  %7086 = vmatprep.subr.mxu0 0.0
  %7087 = vmatpush1.msra.mxu0 0.0
  %7088 = vmatprep.subr.mxu0 0.0
  %7089 = vmatpush1.msra.mxu0 0.0
  %7090 = vmatprep.subr.mxu0 0.0
  %7091 = vmatpush1.msra.mxu0 0.0
  %7092 = vmatprep.subr.mxu0 0.0
  %7093 = vmatpush1.msra.mxu0 0.0
  %7094 = vmatprep.subr.mxu0 0.0
  %7095 = vmatpush1.msra.mxu0 0.0
  %7096 = vmatprep.subr.mxu0 0.0
  %7097 = vmatpush1.msra.mxu0 0.0
  %7098 = vmatprep.subr.mxu0 0.0
  %7099 = vmatpush1.msra.mxu0 0.0
  %7100 = vmatprep.subr.mxu0 0.0
  %7101 = vmatpush1.msra.mxu0 0.0
  %7102 = vmatprep.subr.mxu0 0.0
  %7103 = vmatpush1.msra.mxu0 0.0
  %7104 = vmatprep.subr.mxu0 0.0
  %7105 = vmatpush1.msra.mxu0 0.0
  %7106 = vmatprep.mubr.f32.mxu0 0.0
  %7107 = vmatmul.mubr.f32.gmra.mrb[0].mxu0 %v3685
  %v7108 = vpop.f32.mrb[0].mxu0
  %v7109 = vadd.f32 0.0, %v7108
  %v7110 = vpop.f32.mrb[0].mxu0
  %7111 = vmatprep.mubr.f32.mxu0 0.0
  %7112 = vmatmul.mubr.f32.gmra.mrb[0].mxu0 %v3688
  %v7113 = vpop.f32.mrb[0].mxu0
  %v7114 = vadd.f32 0.0, %v7113
  %v7115 = vpop.f32.mrb[0].mxu0
  %7116 = vmatprep.mubr.f32.mxu0 0.0
  %7117 = vmatmul.mubr.f32.gmra.mrb[0].mxu0 %v3691
  %v7118 = vpop.f32.mrb[0].mxu0
  %v7119 = vadd.f32 0.0, %v7118
  %v7120 = vpop.f32.mrb[0].mxu0
  %7121 = vmatprep.mubr.f32.mxu0 0.0
  %7122 = vmatmul.mubr.f32.gmra.mrb[0].mxu0 %v3694
  %v7123 = vpop.f32.mrb[0].mxu0
  %v7124 = vadd.f32 0.0, %v7123
  %v7125 = vpop.f32.mrb[0].mxu0
  %7126 = vmatprep.mubr.f32.mxu0 0.0
  %7127 = vmatmul.mubr.f32.gmra.mrb[0].mxu0 %v3697
  %v7128 = vpop.f32.mrb[0].mxu0
  %v7129 = vadd.f32 0.0, %v7128
  %v7130 = vpop.f32.mrb[0].mxu0
  %7131 = vmatprep.mubr.f32.mxu0 0.0
  %7132 = vmatmul.mubr.f32.gmra.mrb[0].mxu0 %v3700
  %v7133 = vpop.f32.mrb[0].mxu0
  %v7134 = vadd.f32 0.0, %v7133
  %v7135 = vpop.f32.mrb[0].mxu0
  %7136 = vdwg.mxu0
  %v7137 = vld [vmem:[%s9 + $0x4e8] sm:$0xff]
  %v7138 = vld [vmem:[%s9 + $0x4f0] sm:$0xff]
  %v7139 = vld [vmem:[%s9 + $0x4f8] sm:$0xff]
  %v7140 = vld [vmem:[%s9 + $0x500] sm:$0xff]
  %v7141 = vld [vmem:[%s9 + $0x508] sm:$0xff]
  %v7142 = vld [vmem:[%s9 + $0x510] sm:$0xff]
  %v7143 = vld [vmem:[%s9 + $0x518] sm:$0xff]
  %v7144 = vld [vmem:[%s9 + $0x520] sm:$0xff]
  %v7146 = vsel %vm216, %v7109, 0
  %v7149 = vsel %vm216, %v7114, 0
  %v7152 = vsel %vm216, %v7119, 0
  %v7155 = vsel %vm216, %v7124, 0
  %v7158 = vsel %vm216, %v7129, 0
  %v7161 = vsel %vm216, %v7134, 0
  %7163 = vmatprep.subr.mxu0 0.0
  %7164 = vmatpush1.msra.mxu0 %v7141
  %7165 = vmatprep.subr.mxu0 0.0
  %7166 = vmatpush1.msra.mxu0 %v7142
  %7167 = vmatprep.subr.mxu0 0.0
  %7168 = vmatpush1.msra.mxu0 %v7143
  %7169 = vmatprep.subr.mxu0 0.0
  %7170 = vmatpush1.msra.mxu0 %v7144
  %7171 = vmatprep.subr.mxu0 0.0
  %7172 = vmatpush1.msra.mxu0 0.0
  %7173 = vmatprep.subr.mxu0 0.0
  %7174 = vmatpush1.msra.mxu0 0.0
  %7175 = vmatprep.subr.mxu0 0.0
  %7176 = vmatpush1.msra.mxu0 0.0
  %7177 = vmatprep.subr.mxu0 0.0
  %7178 = vmatpush1.msra.mxu0 0.0
  %7179 = vmatprep.subr.mxu0 0.0
  %7180 = vmatpush1.msra.mxu0 0.0
  %7181 = vmatprep.subr.mxu0 0.0
  %7182 = vmatpush1.msra.mxu0 0.0
  %7183 = vmatprep.subr.mxu0 0.0
  %7184 = vmatpush1.msra.mxu0 0.0
  %7185 = vmatprep.subr.mxu0 0.0
  %7186 = vmatpush1.msra.mxu0 0.0
  %7187 = vmatprep.subr.mxu0 0.0
  %7188 = vmatpush1.msra.mxu0 0.0
  %7189 = vmatprep.subr.mxu0 0.0
  %7190 = vmatpush1.msra.mxu0 0.0
  %7191 = vmatprep.subr.mxu0 0.0
  %7192 = vmatpush1.msra.mxu0 0.0
  %7193 = vmatprep.subr.mxu0 0.0
  %7194 = vmatpush1.msra.mxu0 0.0
  %7195 = vmatprep.subr.mxu0 0.0
  %7196 = vmatpush1.msra.mxu0 0.0
  %7197 = vmatprep.subr.mxu0 0.0
  %7198 = vmatpush1.msra.mxu0 0.0
  %7199 = vmatprep.subr.mxu0 0.0
  %7200 = vmatpush1.msra.mxu0 0.0
  %7201 = vmatprep.subr.mxu0 0.0
  %7202 = vmatpush1.msra.mxu0 0.0
  %7203 = vmatprep.subr.mxu0 0.0
  %7204 = vmatpush1.msra.mxu0 0.0
  %7205 = vmatprep.subr.mxu0 0.0
  %7206 = vmatpush1.msra.mxu0 0.0
  %7207 = vmatprep.subr.mxu0 0.0
  %7208 = vmatpush1.msra.mxu0 0.0
  %7209 = vmatprep.subr.mxu0 0.0
  %7210 = vmatpush1.msra.mxu0 0.0
  %7211 = vmatprep.subr.mxu0 0.0
  %7212 = vmatpush1.msra.mxu0 0.0
  %7213 = vmatprep.subr.mxu0 0.0
  %7214 = vmatpush1.msra.mxu0 0.0
  %7215 = vmatprep.subr.mxu0 0.0
  %7216 = vmatpush1.msra.mxu0 0.0
  %7217 = vmatprep.subr.mxu0 0.0
  %7218 = vmatpush1.msra.mxu0 0.0
  %7219 = vmatprep.subr.mxu0 0.0
  %7220 = vmatpush1.msra.mxu0 0.0
  %7221 = vmatprep.subr.mxu0 0.0
  %7222 = vmatpush1.msra.mxu0 0.0
  %7223 = vmatprep.subr.mxu0 0.0
  %7224 = vmatpush1.msra.mxu0 0.0
  %7225 = vmatprep.subr.mxu0 0.0
  %7226 = vmatpush1.msra.mxu0 0.0
  %7227 = vmatprep.mubr.f32.mxu0 0.0
  %7228 = vmatmul.mubr.f32.gmra.mrb[0].mxu0 %v7146
  %v7229 = vpop.f32.mrb[0].mxu0
  %v7230 = vadd.f32 0.0, %v7229
  %v7231 = vpop.f32.mrb[0].mxu0
  %7232 = vmatprep.mubr.f32.mxu0 0.0
  %7233 = vmatmul.mubr.f32.gmra.mrb[0].mxu0 %v7149
  %v7234 = vpop.f32.mrb[0].mxu0
  %v7235 = vadd.f32 0.0, %v7234
  %v7236 = vpop.f32.mrb[0].mxu0
  %7237 = vmatprep.mubr.f32.mxu0 0.0
  %7238 = vmatmul.mubr.f32.gmra.mrb[0].mxu0 %v7152
  %v7239 = vpop.f32.mrb[0].mxu0
  %v7240 = vadd.f32 0.0, %v7239
  %v7241 = vpop.f32.mrb[0].mxu0
  %7242 = vmatprep.mubr.f32.mxu0 0.0
  %7243 = vmatmul.mubr.f32.gmra.mrb[0].mxu0 %v7155
  %v7244 = vpop.f32.mrb[0].mxu0
  %v7245 = vadd.f32 0.0, %v7244
  %v7246 = vpop.f32.mrb[0].mxu0
  %7247 = vmatprep.mubr.f32.mxu0 0.0
  %7248 = vmatmul.mubr.f32.gmra.mrb[0].mxu0 %v7158
  %v7249 = vpop.f32.mrb[0].mxu0
  %v7250 = vadd.f32 0.0, %v7249
  %v7251 = vpop.f32.mrb[0].mxu0
  %7252 = vmatprep.mubr.f32.mxu0 0.0
  %7253 = vmatmul.mubr.f32.gmra.mrb[0].mxu0 %v7161
  %v7254 = vpop.f32.mrb[0].mxu0
  %v7255 = vadd.f32 0.0, %v7254
  %v7256 = vpop.f32.mrb[0].mxu0
  %7257 = vdwg.mxu0
  %7258 = vmatprep.subr.mxu0 0.0
  %7259 = vmatpush1.msra.mxu0 %v7137
  %7260 = vmatprep.subr.mxu0 0.0
  %7261 = vmatpush1.msra.mxu0 %v7138
  %7262 = vmatprep.subr.mxu0 0.0
  %7263 = vmatpush1.msra.mxu0 %v7139
  %7264 = vmatprep.subr.mxu0 0.0
  %7265 = vmatpush1.msra.mxu0 %v7140
  %7266 = vmatprep.subr.mxu0 0.0
  %7267 = vmatpush1.msra.mxu0 0.0
  %7268 = vmatprep.subr.mxu0 0.0
  %7269 = vmatpush1.msra.mxu0 0.0
  %7270 = vmatprep.subr.mxu0 0.0
  %7271 = vmatpush1.msra.mxu0 0.0
  %7272 = vmatprep.subr.mxu0 0.0
  %7273 = vmatpush1.msra.mxu0 0.0
  %7274 = vmatprep.subr.mxu0 0.0
  %7275 = vmatpush1.msra.mxu0 0.0
  %7276 = vmatprep.subr.mxu0 0.0
  %7277 = vmatpush1.msra.mxu0 0.0
  %7278 = vmatprep.subr.mxu0 0.0
  %7279 = vmatpush1.msra.mxu0 0.0
  %7280 = vmatprep.subr.mxu0 0.0
  %7281 = vmatpush1.msra.mxu0 0.0
  %7282 = vmatprep.subr.mxu0 0.0
  %7283 = vmatpush1.msra.mxu0 0.0
  %7284 = vmatprep.subr.mxu0 0.0
  %7285 = vmatpush1.msra.mxu0 0.0
  %7286 = vmatprep.subr.mxu0 0.0
  %7287 = vmatpush1.msra.mxu0 0.0
  %7288 = vmatprep.subr.mxu0 0.0
  %7289 = vmatpush1.msra.mxu0 0.0
  %7290 = vmatprep.subr.mxu0 0.0
  %7291 = vmatpush1.msra.mxu0 0.0
  %7292 = vmatprep.subr.mxu0 0.0
  %7293 = vmatpush1.msra.mxu0 0.0
  %7294 = vmatprep.subr.mxu0 0.0
  %7295 = vmatpush1.msra.mxu0 0.0
  %7296 = vmatprep.subr.mxu0 0.0
  %7297 = vmatpush1.msra.mxu0 0.0
  %7298 = vmatprep.subr.mxu0 0.0
  %7299 = vmatpush1.msra.mxu0 0.0
  %7300 = vmatprep.subr.mxu0 0.0
  %7301 = vmatpush1.msra.mxu0 0.0
  %7302 = vmatprep.subr.mxu0 0.0
  %7303 = vmatpush1.msra.mxu0 0.0
  %7304 = vmatprep.subr.mxu0 0.0
  %7305 = vmatpush1.msra.mxu0 0.0
  %7306 = vmatprep.subr.mxu0 0.0
  %7307 = vmatpush1.msra.mxu0 0.0
  %7308 = vmatprep.subr.mxu0 0.0
  %7309 = vmatpush1.msra.mxu0 0.0
  %7310 = vmatprep.subr.mxu0 0.0
  %7311 = vmatpush1.msra.mxu0 0.0
  %7312 = vmatprep.subr.mxu0 0.0
  %7313 = vmatpush1.msra.mxu0 0.0
  %7314 = vmatprep.subr.mxu0 0.0
  %7315 = vmatpush1.msra.mxu0 0.0
  %7316 = vmatprep.subr.mxu0 0.0
  %7317 = vmatpush1.msra.mxu0 0.0
  %7318 = vmatprep.subr.mxu0 0.0
  %7319 = vmatpush1.msra.mxu0 0.0
  %7320 = vmatprep.subr.mxu0 0.0
  %7321 = vmatpush1.msra.mxu0 0.0
  %7322 = vmatprep.mubr.f32.mxu0 0.0
  %7323 = vmatmul.mubr.f32.gmra.mrb[0].mxu0 %v3919
  %v7324 = vpop.f32.mrb[0].mxu0
  %v7325 = vadd.f32 %v7230, %v7324
  %v7326 = vpop.f32.mrb[0].mxu0
  %7327 = vmatprep.mubr.f32.mxu0 0.0
  %7328 = vmatmul.mubr.f32.gmra.mrb[0].mxu0 %v3922
  %v7329 = vpop.f32.mrb[0].mxu0
  %v7330 = vadd.f32 %v7235, %v7329
  %v7331 = vpop.f32.mrb[0].mxu0
  %7332 = vmatprep.mubr.f32.mxu0 0.0
  %7333 = vmatmul.mubr.f32.gmra.mrb[0].mxu0 %v3925
  %v7334 = vpop.f32.mrb[0].mxu0
  %v7335 = vadd.f32 %v7240, %v7334
  %v7336 = vpop.f32.mrb[0].mxu0
  %7337 = vmatprep.mubr.f32.mxu0 0.0
  %7338 = vmatmul.mubr.f32.gmra.mrb[0].mxu0 %v3928
  %v7339 = vpop.f32.mrb[0].mxu0
  %v7340 = vadd.f32 %v7245, %v7339
  %v7341 = vpop.f32.mrb[0].mxu0
  %7342 = vmatprep.mubr.f32.mxu0 0.0
  %7343 = vmatmul.mubr.f32.gmra.mrb[0].mxu0 %v3931
  %v7344 = vpop.f32.mrb[0].mxu0
  %v7345 = vadd.f32 %v7250, %v7344
  %v7346 = vpop.f32.mrb[0].mxu0
  %7347 = vmatprep.mubr.f32.mxu0 0.0
  %7348 = vmatmul.mubr.f32.gmra.mrb[0].mxu0 %v3934
  %v7349 = vpop.f32.mrb[0].mxu0
  %v7350 = vadd.f32 %v7255, %v7349
  %v7351 = vpop.f32.mrb[0].mxu0
  %7352 = vdwg.mxu0
  %v7353 = vld [vmem:[%s9 + $0x528] sm:$0xff]
  %v7354 = vld [vmem:[%s9 + $0x530] sm:$0xff]
  %v7355 = vld [vmem:[%s9 + $0x538] sm:$0xff]
  %v7356 = vld [vmem:[%s9 + $0x540] sm:$0xff]
  %v7358 = vsel %vm216, %v4521, 0
  %v7361 = vsel %vm216, %v4522, 0
  %v7364 = vsel %vm216, %v4523, 0
  %v7367 = vsel %vm216, %v4524, 0
  %v7370 = vsel %vm216, %v4525, 0
  %v7373 = vsel %vm216, %v4526, 0
  %7375 = vmatprep.subr.mxu0 0.0
  %7376 = vmatpush1.msra.mxu0 %v7353
  %7377 = vmatprep.subr.mxu0 0.0
  %7378 = vmatpush1.msra.mxu0 %v7354
  %7379 = vmatprep.subr.mxu0 0.0
  %7380 = vmatpush1.msra.mxu0 %v7355
  %7381 = vmatprep.subr.mxu0 0.0
  %7382 = vmatpush1.msra.mxu0 %v7356
  %7383 = vmatprep.subr.mxu0 0.0
  %7384 = vmatpush1.msra.mxu0 0.0
  %7385 = vmatprep.subr.mxu0 0.0
  %7386 = vmatpush1.msra.mxu0 0.0
  %7387 = vmatprep.subr.mxu0 0.0
  %7388 = vmatpush1.msra.mxu0 0.0
  %7389 = vmatprep.subr.mxu0 0.0
  %7390 = vmatpush1.msra.mxu0 0.0
  %7391 = vmatprep.subr.mxu0 0.0
  %7392 = vmatpush1.msra.mxu0 0.0
  %7393 = vmatprep.subr.mxu0 0.0
  %7394 = vmatpush1.msra.mxu0 0.0
  %7395 = vmatprep.subr.mxu0 0.0
  %7396 = vmatpush1.msra.mxu0 0.0
  %7397 = vmatprep.subr.mxu0 0.0
  %7398 = vmatpush1.msra.mxu0 0.0
  %7399 = vmatprep.subr.mxu0 0.0
  %7400 = vmatpush1.msra.mxu0 0.0
  %7401 = vmatprep.subr.mxu0 0.0
  %7402 = vmatpush1.msra.mxu0 0.0
  %7403 = vmatprep.subr.mxu0 0.0
  %7404 = vmatpush1.msra.mxu0 0.0
  %7405 = vmatprep.subr.mxu0 0.0
  %7406 = vmatpush1.msra.mxu0 0.0
  %7407 = vmatprep.subr.mxu0 0.0
  %7408 = vmatpush1.msra.mxu0 0.0
  %7409 = vmatprep.subr.mxu0 0.0
  %7410 = vmatpush1.msra.mxu0 0.0
  %7411 = vmatprep.subr.mxu0 0.0
  %7412 = vmatpush1.msra.mxu0 0.0
  %7413 = vmatprep.subr.mxu0 0.0
  %7414 = vmatpush1.msra.mxu0 0.0
  %7415 = vmatprep.subr.mxu0 0.0
  %7416 = vmatpush1.msra.mxu0 0.0
  %7417 = vmatprep.subr.mxu0 0.0
  %7418 = vmatpush1.msra.mxu0 0.0
  %7419 = vmatprep.subr.mxu0 0.0
  %7420 = vmatpush1.msra.mxu0 0.0
  %7421 = vmatprep.subr.mxu0 0.0
  %7422 = vmatpush1.msra.mxu0 0.0
  %7423 = vmatprep.subr.mxu0 0.0
  %7424 = vmatpush1.msra.mxu0 0.0
  %7425 = vmatprep.subr.mxu0 0.0
  %7426 = vmatpush1.msra.mxu0 0.0
  %7427 = vmatprep.subr.mxu0 0.0
  %7428 = vmatpush1.msra.mxu0 0.0
  %7429 = vmatprep.subr.mxu0 0.0
  %7430 = vmatpush1.msra.mxu0 0.0
  %7431 = vmatprep.subr.mxu0 0.0
  %7432 = vmatpush1.msra.mxu0 0.0
  %7433 = vmatprep.subr.mxu0 0.0
  %7434 = vmatpush1.msra.mxu0 0.0
  %7435 = vmatprep.subr.mxu0 0.0
  %7436 = vmatpush1.msra.mxu0 0.0
  %7437 = vmatprep.subr.mxu0 0.0
  %7438 = vmatpush1.msra.mxu0 0.0
  %7439 = vmatprep.mubr.f32.mxu0 0.0
  %7440 = vmatmul.mubr.f32.gmra.mrb[0].mxu0 %v7358
  %v7441 = vpop.f32.mrb[0].mxu0
  %v7442 = vadd.f32 0.0, %v7441
  %v7443 = vpop.f32.mrb[0].mxu0
  %7444 = vmatprep.mubr.f32.mxu0 0.0
  %7445 = vmatmul.mubr.f32.gmra.mrb[0].mxu0 %v7361
  %v7446 = vpop.f32.mrb[0].mxu0
  %v7447 = vadd.f32 0.0, %v7446
  %v7448 = vpop.f32.mrb[0].mxu0
  %7449 = vmatprep.mubr.f32.mxu0 0.0
  %7450 = vmatmul.mubr.f32.gmra.mrb[0].mxu0 %v7364
  %v7451 = vpop.f32.mrb[0].mxu0
  %v7452 = vadd.f32 0.0, %v7451
  %v7453 = vpop.f32.mrb[0].mxu0
  %7454 = vmatprep.mubr.f32.mxu0 0.0
  %7455 = vmatmul.mubr.f32.gmra.mrb[0].mxu0 %v7367
  %v7456 = vpop.f32.mrb[0].mxu0
  %v7457 = vadd.f32 0.0, %v7456
  %v7458 = vpop.f32.mrb[0].mxu0
  %7459 = vmatprep.mubr.f32.mxu0 0.0
  %7460 = vmatmul.mubr.f32.gmra.mrb[0].mxu0 %v7370
  %v7461 = vpop.f32.mrb[0].mxu0
  %v7462 = vadd.f32 0.0, %v7461
  %v7463 = vpop.f32.mrb[0].mxu0
  %7464 = vmatprep.mubr.f32.mxu0 0.0
  %7465 = vmatmul.mubr.f32.gmra.mrb[0].mxu0 %v7373
  %v7466 = vpop.f32.mrb[0].mxu0
  %v7467 = vadd.f32 0.0, %v7466
  %v7468 = vpop.f32.mrb[0].mxu0
  %7469 = vdwg.mxu0
  %v7470 = vadd.f32 %v7325, %v7442
  %v7471 = vadd.f32 %v7330, %v7447
  %v7472 = vadd.f32 %v7335, %v7452
  %v7473 = vadd.f32 %v7340, %v7457
  %v7474 = vadd.f32 %v7345, %v7462
  %v7475 = vadd.f32 %v7350, %v7467
  %v7476 = vld [vmem:[%s9 + $0x548] sm:$0x1]
  %v7477 = vlaneseq
  %v7478 = vshrl.u32 %v7477, 7
  %v7479 = vsub.s32 0, %v7478
  %v7480 = vrot.slane %v7476, %v7479
  %v7481 = vadd.f32 %v7470, %v7480
  %v7482 = vadd.f32 %v7471, %v7480
  %v7483 = vadd.f32 %v7472, %v7480
  %v7484 = vadd.f32 %v7473, %v7480
  %v7485 = vadd.f32 %v7474, %v7480
  %v7486 = vadd.f32 %v7475, %v7480
  %v7487 = vmax.f32 %v7481, 0.0
  %v7488 = vmax.f32 %v7482, 0.0
  %v7489 = vmax.f32 %v7483, 0.0
  %v7490 = vmax.f32 %v7484, 0.0
  %v7491 = vmax.f32 %v7485, 0.0
  %v7492 = vmax.f32 %v7486, 0.0
  %v7493 = vld [vmem:[%s9 + $0x550] sm:$0xff]
  %v7494 = vld [vmem:[%s9 + $0x558] sm:$0xff]
  %v7495 = vld [vmem:[%s9 + $0x560] sm:$0xff]
  %v7496 = vld [vmem:[%s9 + $0x568] sm:$0xff]
  %v7497 = vld [vmem:[%s9 + $0x570] sm:$0x1]
  %v7498 = vlaneseq
  %v7499 = vshrl.u32 %v7498, 7
  %v7500 = vsub.s32 0, %v7499
  %v7501 = vrot.slane %v7497, %v7500
  %v7503 = vsel %vm216, %v7487, 0
  %v7506 = vsel %vm216, %v7488, 0
  %v7509 = vsel %vm216, %v7489, 0
  %v7512 = vsel %vm216, %v7490, 0
  %v7515 = vsel %vm216, %v7491, 0
  %v7518 = vsel %vm216, %v7492, 0
  %7520 = vmatprep.subr.mxu0 0.0
  %7521 = vmatpush1.msra.mxu0 %v7493
  %7522 = vmatprep.subr.mxu0 0.0
  %7523 = vmatpush1.msra.mxu0 %v7494
  %7524 = vmatprep.subr.mxu0 0.0
  %7525 = vmatpush1.msra.mxu0 %v7495
  %7526 = vmatprep.subr.mxu0 0.0
  %7527 = vmatpush1.msra.mxu0 %v7496
  %7528 = vmatprep.subr.mxu0 0.0
  %7529 = vmatpush1.msra.mxu0 0.0
  %7530 = vmatprep.subr.mxu0 0.0
  %7531 = vmatpush1.msra.mxu0 0.0
  %7532 = vmatprep.subr.mxu0 0.0
  %7533 = vmatpush1.msra.mxu0 0.0
  %7534 = vmatprep.subr.mxu0 0.0
  %7535 = vmatpush1.msra.mxu0 0.0
  %7536 = vmatprep.subr.mxu0 0.0
  %7537 = vmatpush1.msra.mxu0 0.0
  %7538 = vmatprep.subr.mxu0 0.0
  %7539 = vmatpush1.msra.mxu0 0.0
  %7540 = vmatprep.subr.mxu0 0.0
  %7541 = vmatpush1.msra.mxu0 0.0
  %7542 = vmatprep.subr.mxu0 0.0
  %7543 = vmatpush1.msra.mxu0 0.0
  %7544 = vmatprep.subr.mxu0 0.0
  %7545 = vmatpush1.msra.mxu0 0.0
  %7546 = vmatprep.subr.mxu0 0.0
  %7547 = vmatpush1.msra.mxu0 0.0
  %7548 = vmatprep.subr.mxu0 0.0
  %7549 = vmatpush1.msra.mxu0 0.0
  %7550 = vmatprep.subr.mxu0 0.0
  %7551 = vmatpush1.msra.mxu0 0.0
  %7552 = vmatprep.subr.mxu0 0.0
  %7553 = vmatpush1.msra.mxu0 0.0
  %7554 = vmatprep.subr.mxu0 0.0
  %7555 = vmatpush1.msra.mxu0 0.0
  %7556 = vmatprep.subr.mxu0 0.0
  %7557 = vmatpush1.msra.mxu0 0.0
  %7558 = vmatprep.subr.mxu0 0.0
  %7559 = vmatpush1.msra.mxu0 0.0
  %7560 = vmatprep.subr.mxu0 0.0
  %7561 = vmatpush1.msra.mxu0 0.0
  %7562 = vmatprep.subr.mxu0 0.0
  %7563 = vmatpush1.msra.mxu0 0.0
  %7564 = vmatprep.subr.mxu0 0.0
  %7565 = vmatpush1.msra.mxu0 0.0
  %7566 = vmatprep.subr.mxu0 0.0
  %7567 = vmatpush1.msra.mxu0 0.0
  %7568 = vmatprep.subr.mxu0 0.0
  %7569 = vmatpush1.msra.mxu0 0.0
  %7570 = vmatprep.subr.mxu0 0.0
  %7571 = vmatpush1.msra.mxu0 0.0
  %7572 = vmatprep.subr.mxu0 0.0
  %7573 = vmatpush1.msra.mxu0 0.0
  %7574 = vmatprep.subr.mxu0 0.0
  %7575 = vmatpush1.msra.mxu0 0.0
  %7576 = vmatprep.subr.mxu0 0.0
  %7577 = vmatpush1.msra.mxu0 0.0
  %7578 = vmatprep.subr.mxu0 0.0
  %7579 = vmatpush1.msra.mxu0 0.0
  %7580 = vmatprep.subr.mxu0 0.0
  %7581 = vmatpush1.msra.mxu0 0.0
  %7582 = vmatprep.subr.mxu0 0.0
  %7583 = vmatpush1.msra.mxu0 0.0
  %7584 = vmatprep.mubr.f32.mxu0 0.0
  %7585 = vmatmul.mubr.f32.gmra.mrb[0].mxu0 %v7503
  %v7586 = vpop.f32.mrb[0].mxu0
  %v7587 = vadd.f32 %v7501, %v7586
  %v7588 = vpop.f32.mrb[0].mxu0
  %7589 = vmatprep.mubr.f32.mxu0 0.0
  %7590 = vmatmul.mubr.f32.gmra.mrb[0].mxu0 %v7506
  %v7591 = vpop.f32.mrb[0].mxu0
  %v7592 = vadd.f32 %v7501, %v7591
  %v7593 = vpop.f32.mrb[0].mxu0
  %7594 = vmatprep.mubr.f32.mxu0 0.0
  %7595 = vmatmul.mubr.f32.gmra.mrb[0].mxu0 %v7509
  %v7596 = vpop.f32.mrb[0].mxu0
  %v7597 = vadd.f32 %v7501, %v7596
  %v7598 = vpop.f32.mrb[0].mxu0
  %7599 = vmatprep.mubr.f32.mxu0 0.0
  %7600 = vmatmul.mubr.f32.gmra.mrb[0].mxu0 %v7512
  %v7601 = vpop.f32.mrb[0].mxu0
  %v7602 = vadd.f32 %v7501, %v7601
  %v7603 = vpop.f32.mrb[0].mxu0
  %7604 = vmatprep.mubr.f32.mxu0 0.0
  %7605 = vmatmul.mubr.f32.gmra.mrb[0].mxu0 %v7515
  %v7606 = vpop.f32.mrb[0].mxu0
  %v7607 = vadd.f32 %v7501, %v7606
  %v7608 = vpop.f32.mrb[0].mxu0
  %7609 = vmatprep.mubr.f32.mxu0 0.0
  %7610 = vmatmul.mubr.f32.gmra.mrb[0].mxu0 %v7518
  %v7611 = vpop.f32.mrb[0].mxu0
  %v7612 = vadd.f32 %v7501, %v7611
  %v7613 = vpop.f32.mrb[0].mxu0
  %7614 = vdwg.mxu0
  %v7615 = vmax.f32 %v7587, 0.0
  %v7616 = vmax.f32 %v7592, 0.0
  %v7617 = vmax.f32 %v7597, 0.0
  %v7618 = vmax.f32 %v7602, 0.0
  %v7619 = vmax.f32 %v7607, 0.0
  %v7620 = vmax.f32 %v7612, 0.0
  %v7621 = vld [vmem:[%s9 + $0x578] sm:$0xff]
  %v7622 = vld [vmem:[%s9 + $0x580] sm:$0xff]
  %v7623 = vld [vmem:[%s9 + $0x588] sm:$0xff]
  %v7624 = vld [vmem:[%s9 + $0x590] sm:$0xff]
  %v7625 = vld [vmem:[%s9 + $0x598] sm:$0x1]
  %v7626 = vlaneseq
  %v7627 = vshrl.u32 %v7626, 7
  %v7628 = vsub.s32 0, %v7627
  %v7629 = vrot.slane %v7625, %v7628
  %v7631 = vsel %vm216, %v7615, 0
  %v7634 = vsel %vm216, %v7616, 0
  %v7637 = vsel %vm216, %v7617, 0
  %v7640 = vsel %vm216, %v7618, 0
  %v7643 = vsel %vm216, %v7619, 0
  %v7646 = vsel %vm216, %v7620, 0
  %7648 = vmatprep.subr.mxu0 0.0
  %7649 = vmatpush1.msra.mxu0 %v7621
  %7650 = vmatprep.subr.mxu0 0.0
  %7651 = vmatpush1.msra.mxu0 %v7622
  %7652 = vmatprep.subr.mxu0 0.0
  %7653 = vmatpush1.msra.mxu0 %v7623
  %7654 = vmatprep.subr.mxu0 0.0
  %7655 = vmatpush1.msra.mxu0 %v7624
  %7656 = vmatprep.subr.mxu0 0.0
  %7657 = vmatpush1.msra.mxu0 0.0
  %7658 = vmatprep.subr.mxu0 0.0
  %7659 = vmatpush1.msra.mxu0 0.0
  %7660 = vmatprep.subr.mxu0 0.0
  %7661 = vmatpush1.msra.mxu0 0.0
  %7662 = vmatprep.subr.mxu0 0.0
  %7663 = vmatpush1.msra.mxu0 0.0
  %7664 = vmatprep.subr.mxu0 0.0
  %7665 = vmatpush1.msra.mxu0 0.0
  %7666 = vmatprep.subr.mxu0 0.0
  %7667 = vmatpush1.msra.mxu0 0.0
  %7668 = vmatprep.subr.mxu0 0.0
  %7669 = vmatpush1.msra.mxu0 0.0
  %7670 = vmatprep.subr.mxu0 0.0
  %7671 = vmatpush1.msra.mxu0 0.0
  %7672 = vmatprep.subr.mxu0 0.0
  %7673 = vmatpush1.msra.mxu0 0.0
  %7674 = vmatprep.subr.mxu0 0.0
  %7675 = vmatpush1.msra.mxu0 0.0
  %7676 = vmatprep.subr.mxu0 0.0
  %7677 = vmatpush1.msra.mxu0 0.0
  %7678 = vmatprep.subr.mxu0 0.0
  %7679 = vmatpush1.msra.mxu0 0.0
  %7680 = vmatprep.subr.mxu0 0.0
  %7681 = vmatpush1.msra.mxu0 0.0
  %7682 = vmatprep.subr.mxu0 0.0
  %7683 = vmatpush1.msra.mxu0 0.0
  %7684 = vmatprep.subr.mxu0 0.0
  %7685 = vmatpush1.msra.mxu0 0.0
  %7686 = vmatprep.subr.mxu0 0.0
  %7687 = vmatpush1.msra.mxu0 0.0
  %7688 = vmatprep.subr.mxu0 0.0
  %7689 = vmatpush1.msra.mxu0 0.0
  %7690 = vmatprep.subr.mxu0 0.0
  %7691 = vmatpush1.msra.mxu0 0.0
  %7692 = vmatprep.subr.mxu0 0.0
  %7693 = vmatpush1.msra.mxu0 0.0
  %7694 = vmatprep.subr.mxu0 0.0
  %7695 = vmatpush1.msra.mxu0 0.0
  %7696 = vmatprep.subr.mxu0 0.0
  %7697 = vmatpush1.msra.mxu0 0.0
  %7698 = vmatprep.subr.mxu0 0.0
  %7699 = vmatpush1.msra.mxu0 0.0
  %7700 = vmatprep.subr.mxu0 0.0
  %7701 = vmatpush1.msra.mxu0 0.0
  %7702 = vmatprep.subr.mxu0 0.0
  %7703 = vmatpush1.msra.mxu0 0.0
  %7704 = vmatprep.subr.mxu0 0.0
  %7705 = vmatpush1.msra.mxu0 0.0
  %7706 = vmatprep.subr.mxu0 0.0
  %7707 = vmatpush1.msra.mxu0 0.0
  %7708 = vmatprep.subr.mxu0 0.0
  %7709 = vmatpush1.msra.mxu0 0.0
  %7710 = vmatprep.subr.mxu0 0.0
  %7711 = vmatpush1.msra.mxu0 0.0
  %7712 = vmatprep.mubr.f32.mxu0 0.0
  %7713 = vmatmul.mubr.f32.gmra.mrb[0].mxu0 %v7631
  %v7714 = vpop.f32.mrb[0].mxu0
  %v7715 = vadd.f32 %v7629, %v7714
  %v7716 = vpop.f32.mrb[0].mxu0
  %7717 = vmatprep.mubr.f32.mxu0 0.0
  %7718 = vmatmul.mubr.f32.gmra.mrb[0].mxu0 %v7634
  %v7719 = vpop.f32.mrb[0].mxu0
  %v7720 = vadd.f32 %v7629, %v7719
  %v7721 = vpop.f32.mrb[0].mxu0
  %7722 = vmatprep.mubr.f32.mxu0 0.0
  %7723 = vmatmul.mubr.f32.gmra.mrb[0].mxu0 %v7637
  %v7724 = vpop.f32.mrb[0].mxu0
  %v7725 = vadd.f32 %v7629, %v7724
  %v7726 = vpop.f32.mrb[0].mxu0
  %7727 = vmatprep.mubr.f32.mxu0 0.0
  %7728 = vmatmul.mubr.f32.gmra.mrb[0].mxu0 %v7640
  %v7729 = vpop.f32.mrb[0].mxu0
  %v7730 = vadd.f32 %v7629, %v7729
  %v7731 = vpop.f32.mrb[0].mxu0
  %7732 = vmatprep.mubr.f32.mxu0 0.0
  %7733 = vmatmul.mubr.f32.gmra.mrb[0].mxu0 %v7643
  %v7734 = vpop.f32.mrb[0].mxu0
  %v7735 = vadd.f32 %v7629, %v7734
  %v7736 = vpop.f32.mrb[0].mxu0
  %7737 = vmatprep.mubr.f32.mxu0 0.0
  %7738 = vmatmul.mubr.f32.gmra.mrb[0].mxu0 %v7646
  %v7739 = vpop.f32.mrb[0].mxu0
  %v7740 = vadd.f32 %v7629, %v7739
  %v7741 = vpop.f32.mrb[0].mxu0
  %7742 = vdwg.mxu0
  %v7743 = vld [vmem:[%s9 + $0x5a0] sm:$0x1]
  %v7744 = vld [vmem:[%s9 + $0x5a8] sm:$0x1]
  %v7745 = vsel %vm216, %v7715, 0.0
  %7746 = vadd.xlane.f32.xlu0 %v7745
  %v7747 = vpop.xlane.xlu0 %7746
  %v7748 = vsel %vm216, %v7720, 0.0
  %7749 = vadd.xlane.f32.xlu0 %v7748
  %v7750 = vpop.xlane.xlu0 %7749
  %v7751 = vsel %vm216, %v7725, 0.0
  %7752 = vadd.xlane.f32.xlu0 %v7751
  %v7753 = vpop.xlane.xlu0 %7752
  %v7754 = vsel %vm216, %v7730, 0.0
  %7755 = vadd.xlane.f32.xlu0 %v7754
  %v7756 = vpop.xlane.xlu0 %7755
  %v7757 = vsel %vm216, %v7735, 0.0
  %7758 = vadd.xlane.f32.xlu0 %v7757
  %v7759 = vpop.xlane.xlu0 %7758
  %v7760 = vsel %vm216, %v7740, 0.0
  %7761 = vadd.xlane.f32.xlu0 %v7760
  %v7762 = vpop.xlane.xlu0 %7761
  %v7763 = vmul.f32 %v7747, %v558
  %v7764 = vmul.f32 %v7750, %v558
  %v7765 = vmul.f32 %v7753, %v558
  %v7766 = vmul.f32 %v7756, %v558
  %v7767 = vmul.f32 %v7759, %v558
  %v7768 = vmul.f32 %v7762, %v558
  %v7769 = vsub.f32 %v7715, %v7763
  %v7770 = vsub.f32 %v7720, %v7764
  %v7771 = vsub.f32 %v7725, %v7765
  %v7772 = vsub.f32 %v7730, %v7766
  %v7773 = vsub.f32 %v7735, %v7767
  %v7774 = vsub.f32 %v7740, %v7768
  %v7775 = vmul.f32 %v7769, %v7769
  %v7776 = vmul.f32 %v7770, %v7770
  %v7777 = vmul.f32 %v7771, %v7771
  %v7778 = vmul.f32 %v7772, %v7772
  %v7779 = vmul.f32 %v7773, %v7773
  %v7780 = vmul.f32 %v7774, %v7774
  %v7781 = vsel %vm216, %v7775, 0.0
  %7782 = vadd.xlane.f32.xlu0 %v7781
  %v7783 = vpop.xlane.xlu0 %7782
  %v7784 = vsel %vm216, %v7776, 0.0
  %7785 = vadd.xlane.f32.xlu0 %v7784
  %v7786 = vpop.xlane.xlu0 %7785
  %v7787 = vsel %vm216, %v7777, 0.0
  %7788 = vadd.xlane.f32.xlu0 %v7787
  %v7789 = vpop.xlane.xlu0 %7788
  %v7790 = vsel %vm216, %v7778, 0.0
  %7791 = vadd.xlane.f32.xlu0 %v7790
  %v7792 = vpop.xlane.xlu0 %7791
  %v7793 = vsel %vm216, %v7779, 0.0
  %7794 = vadd.xlane.f32.xlu0 %v7793
  %v7795 = vpop.xlane.xlu0 %7794
  %v7796 = vsel %vm216, %v7780, 0.0
  %7797 = vadd.xlane.f32.xlu0 %v7796
  %v7798 = vpop.xlane.xlu0 %7797
  %v7799 = vmul.f32 %v7783, %v558
  %v7800 = vmul.f32 %v7786, %v558
  %v7801 = vmul.f32 %v7789, %v558
  %v7802 = vmul.f32 %v7792, %v558
  %v7803 = vmul.f32 %v7795, %v558
  %v7804 = vmul.f32 %v7798, %v558
  %v7805 = vadd.f32 %v7799, 1e-05
  %v7806 = vadd.f32 %v7800, 1e-05
  %v7807 = vadd.f32 %v7801, 1e-05
  %v7808 = vadd.f32 %v7802, 1e-05
  %v7809 = vadd.f32 %v7803, 1e-05
  %v7810 = vadd.f32 %v7804, 1e-05
  %v7811 = vrsqrt.pop %v7805
  %v7812 = vrsqrt.pop %v7806
  %v7813 = vrsqrt.pop %v7807
  %v7814 = vrsqrt.pop %v7808
  %v7815 = vrsqrt.pop %v7809
  %v7816 = vrsqrt.pop %v7810
  %v7817 = vmul.f32 %v7769, %v7811
  %v7818 = vmul.f32 %v7770, %v7812
  %v7819 = vmul.f32 %v7771, %v7813
  %v7820 = vmul.f32 %v7772, %v7814
  %v7821 = vmul.f32 %v7773, %v7815
  %v7822 = vmul.f32 %v7774, %v7816
  %v7823 = vlaneseq
  %v7824 = vshrl.u32 %v7823, 7
  %v7825 = vsub.s32 0, %v7824
  %v7826 = vrot.slane %v7743, %v7825
  %v7827 = vmul.f32 %v7817, %v7826
  %v7828 = vmul.f32 %v7818, %v7826
  %v7829 = vmul.f32 %v7819, %v7826
  %v7830 = vmul.f32 %v7820, %v7826
  %v7831 = vmul.f32 %v7821, %v7826
  %v7832 = vmul.f32 %v7822, %v7826
  %v7833 = vlaneseq
  %v7834 = vshrl.u32 %v7833, 7
  %v7835 = vsub.s32 0, %v7834
  %v7836 = vrot.slane %v7744, %v7835
  %v7837 = vadd.f32 %v7827, %v7836
  %v7838 = vadd.f32 %v7828, %v7836
  %v7839 = vadd.f32 %v7829, %v7836
  %v7840 = vadd.f32 %v7830, %v7836
  %v7841 = vadd.f32 %v7831, %v7836
  %v7842 = vadd.f32 %v7832, %v7836
  %v7843 = vadd.f32 %v4521, %v7837
  %v7844 = vadd.f32 %v4522, %v7838
  %v7845 = vadd.f32 %v4523, %v7839
  %v7846 = vadd.f32 %v4524, %v7840
  %v7847 = vadd.f32 %v4525, %v7841
  %v7848 = vadd.f32 %v4526, %v7842
  %7849 = vmatprep.subr.mxu0 0.0
  %7850 = vmatpush1.msra.mxu0 %v7030
  %7851 = vmatprep.subr.mxu0 0.0
  %7852 = vmatpush1.msra.mxu0 %v7031
  %7853 = vmatprep.subr.mxu0 0.0
  %7854 = vmatpush1.msra.mxu0 %v7032
  %7855 = vmatprep.subr.mxu0 0.0
  %7856 = vmatpush1.msra.mxu0 %v7033
  %7857 = vmatprep.subr.mxu0 0.0
  %7858 = vmatpush1.msra.mxu0 %v7034
  %7859 = vmatprep.subr.mxu0 0.0
  %7860 = vmatpush1.msra.mxu0 %v7035
  %7861 = vmatprep.subr.mxu0 0.0
  %7862 = vmatpush1.msra.mxu0 %v7036
  %7863 = vmatprep.subr.mxu0 0.0
  %7864 = vmatpush1.msra.mxu0 %v7037
  %7865 = vmatprep.subr.mxu0 0.0
  %7866 = vmatpush1.msra.mxu0 %v7038
  %7867 = vmatprep.subr.mxu0 0.0
  %7868 = vmatpush1.msra.mxu0 %v7039
  %7869 = vmatprep.subr.mxu0 0.0
  %7870 = vmatpush1.msra.mxu0 %v7040
  %7871 = vmatprep.subr.mxu0 0.0
  %7872 = vmatpush1.msra.mxu0 %v7041
  %7873 = vmatprep.subr.mxu0 0.0
  %7874 = vmatpush1.msra.mxu0 0.0
  %7875 = vmatprep.subr.mxu0 0.0
  %7876 = vmatpush1.msra.mxu0 0.0
  %7877 = vmatprep.subr.mxu0 0.0
  %7878 = vmatpush1.msra.mxu0 0.0
  %7879 = vmatprep.subr.mxu0 0.0
  %7880 = vmatpush1.msra.mxu0 0.0
  %7881 = vmatprep.subr.mxu0 0.0
  %7882 = vmatpush1.msra.mxu0 0.0
  %7883 = vmatprep.subr.mxu0 0.0
  %7884 = vmatpush1.msra.mxu0 0.0
  %7885 = vmatprep.subr.mxu0 0.0
  %7886 = vmatpush1.msra.mxu0 0.0
  %7887 = vmatprep.subr.mxu0 0.0
  %7888 = vmatpush1.msra.mxu0 0.0
  %7889 = vmatprep.subr.mxu0 0.0
  %7890 = vmatpush1.msra.mxu0 0.0
  %7891 = vmatprep.subr.mxu0 0.0
  %7892 = vmatpush1.msra.mxu0 0.0
  %7893 = vmatprep.subr.mxu0 0.0
  %7894 = vmatpush1.msra.mxu0 0.0
  %7895 = vmatprep.subr.mxu0 0.0
  %7896 = vmatpush1.msra.mxu0 0.0
  %7897 = vmatprep.subr.mxu0 0.0
  %7898 = vmatpush1.msra.mxu0 0.0
  %7899 = vmatprep.subr.mxu0 0.0
  %7900 = vmatpush1.msra.mxu0 0.0
  %7901 = vmatprep.subr.mxu0 0.0
  %7902 = vmatpush1.msra.mxu0 0.0
  %7903 = vmatprep.subr.mxu0 0.0
  %7904 = vmatpush1.msra.mxu0 0.0
  %7905 = vmatprep.subr.mxu0 0.0
  %7906 = vmatpush1.msra.mxu0 0.0
  %7907 = vmatprep.subr.mxu0 0.0
  %7908 = vmatpush1.msra.mxu0 0.0
  %7909 = vmatprep.subr.mxu0 0.0
  %7910 = vmatpush1.msra.mxu0 0.0
  %7911 = vmatprep.subr.mxu0 0.0
  %7912 = vmatpush1.msra.mxu0 0.0
  %7913 = vmatprep.mubr.f32.mxu0 0.0
  %7914 = vmatmul.mubr.f32.gmra.mrb[0].mxu0 %v4566
  %v7915 = vpop.f32.mrb[0].mxu0
  %v7916 = vadd.f32 0.0, %v7915
  %v7917 = vpop.f32.mrb[0].mxu0
  %7918 = vmatprep.mubr.f32.mxu0 0.0
  %7919 = vmatmul.mubr.f32.gmra.mrb[0].mxu0 %v4569
  %v7920 = vpop.f32.mrb[0].mxu0
  %v7921 = vadd.f32 0.0, %v7920
  %v7922 = vpop.f32.mrb[0].mxu0
  %7923 = vmatprep.mubr.f32.mxu0 0.0
  %7924 = vmatmul.mubr.f32.gmra.mrb[0].mxu0 %v4572
  %v7925 = vpop.f32.mrb[0].mxu0
  %v7926 = vadd.f32 0.0, %v7925
  %v7927 = vpop.f32.mrb[0].mxu0
  %7928 = vmatprep.mubr.f32.mxu0 0.0
  %7929 = vmatmul.mubr.f32.gmra.mrb[0].mxu0 %v4575
  %v7930 = vpop.f32.mrb[0].mxu0
  %v7931 = vadd.f32 0.0, %v7930
  %v7932 = vpop.f32.mrb[0].mxu0
  %7933 = vmatprep.mubr.f32.mxu0 0.0
  %7934 = vmatmul.mubr.f32.gmra.mrb[0].mxu0 %v4578
  %v7935 = vpop.f32.mrb[0].mxu0
  %v7936 = vadd.f32 0.0, %v7935
  %v7937 = vpop.f32.mrb[0].mxu0
  %7938 = vmatprep.mubr.f32.mxu0 0.0
  %7939 = vmatmul.mubr.f32.gmra.mrb[0].mxu0 %v4581
  %v7940 = vpop.f32.mrb[0].mxu0
  %v7941 = vadd.f32 0.0, %v7940
  %v7942 = vpop.f32.mrb[0].mxu0
  %7943 = vmatprep.mubr.f32.mxu0 0.0
  %7944 = vmatmul.mubr.f32.gmra.mrb[0].mxu0 %v4584
  %v7945 = vpop.f32.mrb[0].mxu0
  %v7946 = vadd.f32 0.0, %v7945
  %v7947 = vpop.f32.mrb[0].mxu0
  %7948 = vmatprep.mubr.f32.mxu0 0.0
  %7949 = vmatmul.mubr.f32.gmra.mrb[0].mxu0 %v4587
  %v7950 = vpop.f32.mrb[0].mxu0
  %v7951 = vadd.f32 0.0, %v7950
  %v7952 = vpop.f32.mrb[0].mxu0
  %7953 = vdwg.mxu0
  %7954 = vmatprep.subr.mxu0 0.0
  %7955 = vmatpush1.msra.mxu0 %v7843
  %7956 = vmatprep.subr.mxu0 0.0
  %7957 = vmatpush1.msra.mxu0 %v7844
  %7958 = vmatprep.subr.mxu0 0.0
  %7959 = vmatpush1.msra.mxu0 %v7845
  %7960 = vmatprep.subr.mxu0 0.0
  %7961 = vmatpush1.msra.mxu0 %v7846
  %7962 = vmatprep.subr.mxu0 0.0
  %7963 = vmatpush1.msra.mxu0 %v7847
  %7964 = vmatprep.subr.mxu0 0.0
  %7965 = vmatpush1.msra.mxu0 %v7848
  %7966 = vmatprep.subr.mxu0 0.0
  %7967 = vmatpush1.msra.mxu0 0.0
  %7968 = vmatprep.subr.mxu0 0.0
  %7969 = vmatpush1.msra.mxu0 0.0
  %7970 = vmatprep.subr.mxu0 0.0
  %7971 = vmatpush1.msra.mxu0 0.0
  %7972 = vmatprep.subr.mxu0 0.0
  %7973 = vmatpush1.msra.mxu0 0.0
  %7974 = vmatprep.subr.mxu0 0.0
  %7975 = vmatpush1.msra.mxu0 0.0
  %7976 = vmatprep.subr.mxu0 0.0
  %7977 = vmatpush1.msra.mxu0 0.0
  %7978 = vmatprep.subr.mxu0 0.0
  %7979 = vmatpush1.msra.mxu0 0.0
  %7980 = vmatprep.subr.mxu0 0.0
  %7981 = vmatpush1.msra.mxu0 0.0
  %7982 = vmatprep.subr.mxu0 0.0
  %7983 = vmatpush1.msra.mxu0 0.0
  %7984 = vmatprep.subr.mxu0 0.0
  %7985 = vmatpush1.msra.mxu0 0.0
  %7986 = vmatprep.subr.mxu0 0.0
  %7987 = vmatpush1.msra.mxu0 0.0
  %7988 = vmatprep.subr.mxu0 0.0
  %7989 = vmatpush1.msra.mxu0 0.0
  %7990 = vmatprep.subr.mxu0 0.0
  %7991 = vmatpush1.msra.mxu0 0.0
  %7992 = vmatprep.subr.mxu0 0.0
  %7993 = vmatpush1.msra.mxu0 0.0
  %7994 = vmatprep.subr.mxu0 0.0
  %7995 = vmatpush1.msra.mxu0 0.0
  %7996 = vmatprep.subr.mxu0 0.0
  %7997 = vmatpush1.msra.mxu0 0.0
  %7998 = vmatprep.subr.mxu0 0.0
  %7999 = vmatpush1.msra.mxu0 0.0
  %8000 = vmatprep.subr.mxu0 0.0
  %8001 = vmatpush1.msra.mxu0 0.0
  %8002 = vmatprep.subr.mxu0 0.0
  %8003 = vmatpush1.msra.mxu0 0.0
  %8004 = vmatprep.subr.mxu0 0.0
  %8005 = vmatpush1.msra.mxu0 0.0
  %8006 = vmatprep.subr.mxu0 0.0
  %8007 = vmatpush1.msra.mxu0 0.0
  %8008 = vmatprep.subr.mxu0 0.0
  %8009 = vmatpush1.msra.mxu0 0.0
  %8010 = vmatprep.subr.mxu0 0.0
  %8011 = vmatpush1.msra.mxu0 0.0
  %8012 = vmatprep.subr.mxu0 0.0
  %8013 = vmatpush1.msra.mxu0 0.0
  %8014 = vmatprep.subr.mxu0 0.0
  %8015 = vmatpush1.msra.mxu0 0.0
  %8016 = vmatprep.subr.mxu0 0.0
  %8017 = vmatpush1.msra.mxu0 0.0
  %8018 = vmatprep.mubr.f32.mxu0 0.0
  %8019 = vmatmul.mubr.f32.gmra.mrb[0].mxu0 %v4724
  %v8020 = vpop.f32.mrb[0].mxu0
  %v8021 = vadd.f32 0.0, %v8020
  %v8022 = vpop.f32.mrb[0].mxu0
  %8023 = vmatprep.mubr.f32.mxu0 0.0
  %8024 = vmatmul.mubr.f32.gmra.mrb[0].mxu0 %v4727
  %v8025 = vpop.f32.mrb[0].mxu0
  %v8026 = vadd.f32 0.0, %v8025
  %v8027 = vpop.f32.mrb[0].mxu0
  %8028 = vmatprep.mubr.f32.mxu0 0.0
  %8029 = vmatmul.mubr.f32.gmra.mrb[0].mxu0 %v4730
  %v8030 = vpop.f32.mrb[0].mxu0
  %v8031 = vadd.f32 0.0, %v8030
  %v8032 = vpop.f32.mrb[0].mxu0
  %8033 = vmatprep.mubr.f32.mxu0 0.0
  %8034 = vmatmul.mubr.f32.gmra.mrb[0].mxu0 %v4733
  %v8035 = vpop.f32.mrb[0].mxu0
  %v8036 = vadd.f32 0.0, %v8035
  %v8037 = vpop.f32.mrb[0].mxu0
  %8038 = vmatprep.mubr.f32.mxu0 0.0
  %8039 = vmatmul.mubr.f32.gmra.mrb[0].mxu0 %v4736
  %v8040 = vpop.f32.mrb[0].mxu0
  %v8041 = vadd.f32 0.0, %v8040
  %v8042 = vpop.f32.mrb[0].mxu0
  %8043 = vmatprep.mubr.f32.mxu0 0.0
  %8044 = vmatmul.mubr.f32.gmra.mrb[0].mxu0 %v4739
  %v8045 = vpop.f32.mrb[0].mxu0
  %v8046 = vadd.f32 0.0, %v8045
  %v8047 = vpop.f32.mrb[0].mxu0
  %8048 = vmatprep.mubr.f32.mxu0 0.0
  %8049 = vmatmul.mubr.f32.gmra.mrb[0].mxu0 %v4742
  %v8050 = vpop.f32.mrb[0].mxu0
  %v8051 = vadd.f32 0.0, %v8050
  %v8052 = vpop.f32.mrb[0].mxu0
  %8053 = vmatprep.mubr.f32.mxu0 0.0
  %8054 = vmatmul.mubr.f32.gmra.mrb[0].mxu0 %v4745
  %v8055 = vpop.f32.mrb[0].mxu0
  %v8056 = vadd.f32 0.0, %v8055
  %v8057 = vpop.f32.mrb[0].mxu0
  %8058 = vdwg.mxu0
  %v8059 = vld [vmem:[%s9 + $0x5b0] sm:$0xff]
  %v8060 = vld [vmem:[%s9 + $0x5b8] sm:$0xff]
  %v8061 = vld [vmem:[%s9 + $0x5c0] sm:$0xff]
  %v8062 = vld [vmem:[%s9 + $0x5c8] sm:$0xff]
  %v8063 = vld [vmem:[%s9 + $0x5d0] sm:$0xff]
  %v8064 = vld [vmem:[%s9 + $0x5d8] sm:$0xff]
  %v8065 = vld [vmem:[%s9 + $0x5e0] sm:$0xff]
  %v8066 = vld [vmem:[%s9 + $0x5e8] sm:$0xff]
  %v8068 = vsel %vm216, %v7916, 0
  %v8071 = vsel %vm216, %v7921, 0
  %v8074 = vsel %vm216, %v7926, 0
  %v8077 = vsel %vm216, %v7931, 0
  %v8080 = vsel %vm216, %v7936, 0
  %v8083 = vsel %vm216, %v7941, 0
  %v8086 = vsel %vm216, %v7946, 0
  %v8089 = vsel %vm216, %v7951, 0
  %8091 = vmatprep.subr.mxu0 0.0
  %8092 = vmatpush1.msra.mxu0 %v8063
  %8093 = vmatprep.subr.mxu0 0.0
  %8094 = vmatpush1.msra.mxu0 %v8064
  %8095 = vmatprep.subr.mxu0 0.0
  %8096 = vmatpush1.msra.mxu0 %v8065
  %8097 = vmatprep.subr.mxu0 0.0
  %8098 = vmatpush1.msra.mxu0 %v8066
  %8099 = vmatprep.subr.mxu0 0.0
  %8100 = vmatpush1.msra.mxu0 0.0
  %8101 = vmatprep.subr.mxu0 0.0
  %8102 = vmatpush1.msra.mxu0 0.0
  %8103 = vmatprep.subr.mxu0 0.0
  %8104 = vmatpush1.msra.mxu0 0.0
  %8105 = vmatprep.subr.mxu0 0.0
  %8106 = vmatpush1.msra.mxu0 0.0
  %8107 = vmatprep.subr.mxu0 0.0
  %8108 = vmatpush1.msra.mxu0 0.0
  %8109 = vmatprep.subr.mxu0 0.0
  %8110 = vmatpush1.msra.mxu0 0.0
  %8111 = vmatprep.subr.mxu0 0.0
  %8112 = vmatpush1.msra.mxu0 0.0
  %8113 = vmatprep.subr.mxu0 0.0
  %8114 = vmatpush1.msra.mxu0 0.0
  %8115 = vmatprep.subr.mxu0 0.0
  %8116 = vmatpush1.msra.mxu0 0.0
  %8117 = vmatprep.subr.mxu0 0.0
  %8118 = vmatpush1.msra.mxu0 0.0
  %8119 = vmatprep.subr.mxu0 0.0
  %8120 = vmatpush1.msra.mxu0 0.0
  %8121 = vmatprep.subr.mxu0 0.0
  %8122 = vmatpush1.msra.mxu0 0.0
  %8123 = vmatprep.subr.mxu0 0.0
  %8124 = vmatpush1.msra.mxu0 0.0
  %8125 = vmatprep.subr.mxu0 0.0
  %8126 = vmatpush1.msra.mxu0 0.0
  %8127 = vmatprep.subr.mxu0 0.0
  %8128 = vmatpush1.msra.mxu0 0.0
  %8129 = vmatprep.subr.mxu0 0.0
  %8130 = vmatpush1.msra.mxu0 0.0
  %8131 = vmatprep.subr.mxu0 0.0
  %8132 = vmatpush1.msra.mxu0 0.0
  %8133 = vmatprep.subr.mxu0 0.0
  %8134 = vmatpush1.msra.mxu0 0.0
  %8135 = vmatprep.subr.mxu0 0.0
  %8136 = vmatpush1.msra.mxu0 0.0
  %8137 = vmatprep.subr.mxu0 0.0
  %8138 = vmatpush1.msra.mxu0 0.0
  %8139 = vmatprep.subr.mxu0 0.0
  %8140 = vmatpush1.msra.mxu0 0.0
  %8141 = vmatprep.subr.mxu0 0.0
  %8142 = vmatpush1.msra.mxu0 0.0
  %8143 = vmatprep.subr.mxu0 0.0
  %8144 = vmatpush1.msra.mxu0 0.0
  %8145 = vmatprep.subr.mxu0 0.0
  %8146 = vmatpush1.msra.mxu0 0.0
  %8147 = vmatprep.subr.mxu0 0.0
  %8148 = vmatpush1.msra.mxu0 0.0
  %8149 = vmatprep.subr.mxu0 0.0
  %8150 = vmatpush1.msra.mxu0 0.0
  %8151 = vmatprep.subr.mxu0 0.0
  %8152 = vmatpush1.msra.mxu0 0.0
  %8153 = vmatprep.subr.mxu0 0.0
  %8154 = vmatpush1.msra.mxu0 0.0
  %8155 = vmatprep.mubr.f32.mxu0 0.0
  %8156 = vmatmul.mubr.f32.gmra.mrb[0].mxu0 %v8068
  %v8157 = vpop.f32.mrb[0].mxu0
  %v8158 = vadd.f32 0.0, %v8157
  %v8159 = vpop.f32.mrb[0].mxu0
  %8160 = vmatprep.mubr.f32.mxu0 0.0
  %8161 = vmatmul.mubr.f32.gmra.mrb[0].mxu0 %v8071
  %v8162 = vpop.f32.mrb[0].mxu0
  %v8163 = vadd.f32 0.0, %v8162
  %v8164 = vpop.f32.mrb[0].mxu0
  %8165 = vmatprep.mubr.f32.mxu0 0.0
  %8166 = vmatmul.mubr.f32.gmra.mrb[0].mxu0 %v8074
  %v8167 = vpop.f32.mrb[0].mxu0
  %v8168 = vadd.f32 0.0, %v8167
  %v8169 = vpop.f32.mrb[0].mxu0
  %8170 = vmatprep.mubr.f32.mxu0 0.0
  %8171 = vmatmul.mubr.f32.gmra.mrb[0].mxu0 %v8077
  %v8172 = vpop.f32.mrb[0].mxu0
  %v8173 = vadd.f32 0.0, %v8172
  %v8174 = vpop.f32.mrb[0].mxu0
  %8175 = vmatprep.mubr.f32.mxu0 0.0
  %8176 = vmatmul.mubr.f32.gmra.mrb[0].mxu0 %v8080
  %v8177 = vpop.f32.mrb[0].mxu0
  %v8178 = vadd.f32 0.0, %v8177
  %v8179 = vpop.f32.mrb[0].mxu0
  %8180 = vmatprep.mubr.f32.mxu0 0.0
  %8181 = vmatmul.mubr.f32.gmra.mrb[0].mxu0 %v8083
  %v8182 = vpop.f32.mrb[0].mxu0
  %v8183 = vadd.f32 0.0, %v8182
  %v8184 = vpop.f32.mrb[0].mxu0
  %8185 = vmatprep.mubr.f32.mxu0 0.0
  %8186 = vmatmul.mubr.f32.gmra.mrb[0].mxu0 %v8086
  %v8187 = vpop.f32.mrb[0].mxu0
  %v8188 = vadd.f32 0.0, %v8187
  %v8189 = vpop.f32.mrb[0].mxu0
  %8190 = vmatprep.mubr.f32.mxu0 0.0
  %8191 = vmatmul.mubr.f32.gmra.mrb[0].mxu0 %v8089
  %v8192 = vpop.f32.mrb[0].mxu0
  %v8193 = vadd.f32 0.0, %v8192
  %v8194 = vpop.f32.mrb[0].mxu0
  %8195 = vdwg.mxu0
  %v8197 = vsel %vm216, %v5694, 0
  %v8200 = vsel %vm216, %v5695, 0
  %v8203 = vsel %vm216, %v5696, 0
  %v8206 = vsel %vm216, %v5697, 0
  %v8209 = vsel %vm216, %v5698, 0
  %v8212 = vsel %vm216, %v5699, 0
  %v8215 = vsel %vm216, %v5700, 0
  %v8218 = vsel %vm216, %v5701, 0
  %8220 = vmatprep.subr.mxu0 0.0
  %8221 = vmatpush1.msra.mxu0 %v8059
  %8222 = vmatprep.subr.mxu0 0.0
  %8223 = vmatpush1.msra.mxu0 %v8060
  %8224 = vmatprep.subr.mxu0 0.0
  %8225 = vmatpush1.msra.mxu0 %v8061
  %8226 = vmatprep.subr.mxu0 0.0
  %8227 = vmatpush1.msra.mxu0 %v8062
  %8228 = vmatprep.subr.mxu0 0.0
  %8229 = vmatpush1.msra.mxu0 0.0
  %8230 = vmatprep.subr.mxu0 0.0
  %8231 = vmatpush1.msra.mxu0 0.0
  %8232 = vmatprep.subr.mxu0 0.0
  %8233 = vmatpush1.msra.mxu0 0.0
  %8234 = vmatprep.subr.mxu0 0.0
  %8235 = vmatpush1.msra.mxu0 0.0
  %8236 = vmatprep.subr.mxu0 0.0
  %8237 = vmatpush1.msra.mxu0 0.0
  %8238 = vmatprep.subr.mxu0 0.0
  %8239 = vmatpush1.msra.mxu0 0.0
  %8240 = vmatprep.subr.mxu0 0.0
  %8241 = vmatpush1.msra.mxu0 0.0
  %8242 = vmatprep.subr.mxu0 0.0
  %8243 = vmatpush1.msra.mxu0 0.0
  %8244 = vmatprep.subr.mxu0 0.0
  %8245 = vmatpush1.msra.mxu0 0.0
  %8246 = vmatprep.subr.mxu0 0.0
  %8247 = vmatpush1.msra.mxu0 0.0
  %8248 = vmatprep.subr.mxu0 0.0
  %8249 = vmatpush1.msra.mxu0 0.0
  %8250 = vmatprep.subr.mxu0 0.0
  %8251 = vmatpush1.msra.mxu0 0.0
  %8252 = vmatprep.subr.mxu0 0.0
  %8253 = vmatpush1.msra.mxu0 0.0
  %8254 = vmatprep.subr.mxu0 0.0
  %8255 = vmatpush1.msra.mxu0 0.0
  %8256 = vmatprep.subr.mxu0 0.0
  %8257 = vmatpush1.msra.mxu0 0.0
  %8258 = vmatprep.subr.mxu0 0.0
  %8259 = vmatpush1.msra.mxu0 0.0
  %8260 = vmatprep.subr.mxu0 0.0
  %8261 = vmatpush1.msra.mxu0 0.0
  %8262 = vmatprep.subr.mxu0 0.0
  %8263 = vmatpush1.msra.mxu0 0.0
  %8264 = vmatprep.subr.mxu0 0.0
  %8265 = vmatpush1.msra.mxu0 0.0
  %8266 = vmatprep.subr.mxu0 0.0
  %8267 = vmatpush1.msra.mxu0 0.0
  %8268 = vmatprep.subr.mxu0 0.0
  %8269 = vmatpush1.msra.mxu0 0.0
  %8270 = vmatprep.subr.mxu0 0.0
  %8271 = vmatpush1.msra.mxu0 0.0
  %8272 = vmatprep.subr.mxu0 0.0
  %8273 = vmatpush1.msra.mxu0 0.0
  %8274 = vmatprep.subr.mxu0 0.0
  %8275 = vmatpush1.msra.mxu0 0.0
  %8276 = vmatprep.subr.mxu0 0.0
  %8277 = vmatpush1.msra.mxu0 0.0
  %8278 = vmatprep.subr.mxu0 0.0
  %8279 = vmatpush1.msra.mxu0 0.0
  %8280 = vmatprep.subr.mxu0 0.0
  %8281 = vmatpush1.msra.mxu0 0.0
  %8282 = vmatprep.subr.mxu0 0.0
  %8283 = vmatpush1.msra.mxu0 0.0
  %8284 = vmatprep.mubr.f32.mxu0 0.0
  %8285 = vmatmul.mubr.f32.gmra.mrb[0].mxu0 %v8197
  %v8286 = vpop.f32.mrb[0].mxu0
  %v8287 = vadd.f32 %v8158, %v8286
  %v8288 = vpop.f32.mrb[0].mxu0
  %8289 = vmatprep.mubr.f32.mxu0 0.0
  %8290 = vmatmul.mubr.f32.gmra.mrb[0].mxu0 %v8200
  %v8291 = vpop.f32.mrb[0].mxu0
  %v8292 = vadd.f32 %v8163, %v8291
  %v8293 = vpop.f32.mrb[0].mxu0
  %8294 = vmatprep.mubr.f32.mxu0 0.0
  %8295 = vmatmul.mubr.f32.gmra.mrb[0].mxu0 %v8203
  %v8296 = vpop.f32.mrb[0].mxu0
  %v8297 = vadd.f32 %v8168, %v8296
  %v8298 = vpop.f32.mrb[0].mxu0
  %8299 = vmatprep.mubr.f32.mxu0 0.0
  %8300 = vmatmul.mubr.f32.gmra.mrb[0].mxu0 %v8206
  %v8301 = vpop.f32.mrb[0].mxu0
  %v8302 = vadd.f32 %v8173, %v8301
  %v8303 = vpop.f32.mrb[0].mxu0
  %8304 = vmatprep.mubr.f32.mxu0 0.0
  %8305 = vmatmul.mubr.f32.gmra.mrb[0].mxu0 %v8209
  %v8306 = vpop.f32.mrb[0].mxu0
  %v8307 = vadd.f32 %v8178, %v8306
  %v8308 = vpop.f32.mrb[0].mxu0
  %8309 = vmatprep.mubr.f32.mxu0 0.0
  %8310 = vmatmul.mubr.f32.gmra.mrb[0].mxu0 %v8212
  %v8311 = vpop.f32.mrb[0].mxu0
  %v8312 = vadd.f32 %v8183, %v8311
  %v8313 = vpop.f32.mrb[0].mxu0
  %8314 = vmatprep.mubr.f32.mxu0 0.0
  %8315 = vmatmul.mubr.f32.gmra.mrb[0].mxu0 %v8215
  %v8316 = vpop.f32.mrb[0].mxu0
  %v8317 = vadd.f32 %v8188, %v8316
  %v8318 = vpop.f32.mrb[0].mxu0
  %8319 = vmatprep.mubr.f32.mxu0 0.0
  %8320 = vmatmul.mubr.f32.gmra.mrb[0].mxu0 %v8218
  %v8321 = vpop.f32.mrb[0].mxu0
  %v8322 = vadd.f32 %v8193, %v8321
  %v8323 = vpop.f32.mrb[0].mxu0
  %8324 = vdwg.mxu0
  %v8325 = vld [vmem:[%s9 + $0x5f0] sm:$0xff]
  %v8326 = vld [vmem:[%s9 + $0x5f8] sm:$0xff]
  %v8327 = vld [vmem:[%s9 + $0x600] sm:$0xff]
  %v8328 = vld [vmem:[%s9 + $0x608] sm:$0xff]
  %v8330 = vsel %vm216, %v8021, 0
  %v8333 = vsel %vm216, %v8026, 0
  %v8336 = vsel %vm216, %v8031, 0
  %v8339 = vsel %vm216, %v8036, 0
  %v8342 = vsel %vm216, %v8041, 0
  %v8345 = vsel %vm216, %v8046, 0
  %v8348 = vsel %vm216, %v8051, 0
  %v8351 = vsel %vm216, %v8056, 0
  %8353 = vmatprep.subr.mxu0 0.0
  %8354 = vmatpush1.msra.mxu0 %v8325
  %8355 = vmatprep.subr.mxu0 0.0
  %8356 = vmatpush1.msra.mxu0 %v8326
  %8357 = vmatprep.subr.mxu0 0.0
  %8358 = vmatpush1.msra.mxu0 %v8327
  %8359 = vmatprep.subr.mxu0 0.0
  %8360 = vmatpush1.msra.mxu0 %v8328
  %8361 = vmatprep.subr.mxu0 0.0
  %8362 = vmatpush1.msra.mxu0 0.0
  %8363 = vmatprep.subr.mxu0 0.0
  %8364 = vmatpush1.msra.mxu0 0.0
  %8365 = vmatprep.subr.mxu0 0.0
  %8366 = vmatpush1.msra.mxu0 0.0
  %8367 = vmatprep.subr.mxu0 0.0
  %8368 = vmatpush1.msra.mxu0 0.0
  %8369 = vmatprep.subr.mxu0 0.0
  %8370 = vmatpush1.msra.mxu0 0.0
  %8371 = vmatprep.subr.mxu0 0.0
  %8372 = vmatpush1.msra.mxu0 0.0
  %8373 = vmatprep.subr.mxu0 0.0
  %8374 = vmatpush1.msra.mxu0 0.0
  %8375 = vmatprep.subr.mxu0 0.0
  %8376 = vmatpush1.msra.mxu0 0.0
  %8377 = vmatprep.subr.mxu0 0.0
  %8378 = vmatpush1.msra.mxu0 0.0
  %8379 = vmatprep.subr.mxu0 0.0
  %8380 = vmatpush1.msra.mxu0 0.0
  %8381 = vmatprep.subr.mxu0 0.0
  %8382 = vmatpush1.msra.mxu0 0.0
  %8383 = vmatprep.subr.mxu0 0.0
  %8384 = vmatpush1.msra.mxu0 0.0
  %8385 = vmatprep.subr.mxu0 0.0
  %8386 = vmatpush1.msra.mxu0 0.0
  %8387 = vmatprep.subr.mxu0 0.0
  %8388 = vmatpush1.msra.mxu0 0.0
  %8389 = vmatprep.subr.mxu0 0.0
  %8390 = vmatpush1.msra.mxu0 0.0
  %8391 = vmatprep.subr.mxu0 0.0
  %8392 = vmatpush1.msra.mxu0 0.0
  %8393 = vmatprep.subr.mxu0 0.0
  %8394 = vmatpush1.msra.mxu0 0.0
  %8395 = vmatprep.subr.mxu0 0.0
  %8396 = vmatpush1.msra.mxu0 0.0
  %8397 = vmatprep.subr.mxu0 0.0
  %8398 = vmatpush1.msra.mxu0 0.0
  %8399 = vmatprep.subr.mxu0 0.0
  %8400 = vmatpush1.msra.mxu0 0.0
  %8401 = vmatprep.subr.mxu0 0.0
  %8402 = vmatpush1.msra.mxu0 0.0
  %8403 = vmatprep.subr.mxu0 0.0
  %8404 = vmatpush1.msra.mxu0 0.0
  %8405 = vmatprep.subr.mxu0 0.0
  %8406 = vmatpush1.msra.mxu0 0.0
  %8407 = vmatprep.subr.mxu0 0.0
  %8408 = vmatpush1.msra.mxu0 0.0
  %8409 = vmatprep.subr.mxu0 0.0
  %8410 = vmatpush1.msra.mxu0 0.0
  %8411 = vmatprep.subr.mxu0 0.0
  %8412 = vmatpush1.msra.mxu0 0.0
  %8413 = vmatprep.subr.mxu0 0.0
  %8414 = vmatpush1.msra.mxu0 0.0
  %8415 = vmatprep.subr.mxu0 0.0
  %8416 = vmatpush1.msra.mxu0 0.0
  %8417 = vmatprep.mubr.f32.mxu0 0.0
  %8418 = vmatmul.mubr.f32.gmra.mrb[0].mxu0 %v8330
  %v8419 = vpop.f32.mrb[0].mxu0
  %v8420 = vadd.f32 0.0, %v8419
  %v8421 = vpop.f32.mrb[0].mxu0
  %8422 = vmatprep.mubr.f32.mxu0 0.0
  %8423 = vmatmul.mubr.f32.gmra.mrb[0].mxu0 %v8333
  %v8424 = vpop.f32.mrb[0].mxu0
  %v8425 = vadd.f32 0.0, %v8424
  %v8426 = vpop.f32.mrb[0].mxu0
  %8427 = vmatprep.mubr.f32.mxu0 0.0
  %8428 = vmatmul.mubr.f32.gmra.mrb[0].mxu0 %v8336
  %v8429 = vpop.f32.mrb[0].mxu0
  %v8430 = vadd.f32 0.0, %v8429
  %v8431 = vpop.f32.mrb[0].mxu0
  %8432 = vmatprep.mubr.f32.mxu0 0.0
  %8433 = vmatmul.mubr.f32.gmra.mrb[0].mxu0 %v8339
  %v8434 = vpop.f32.mrb[0].mxu0
  %v8435 = vadd.f32 0.0, %v8434
  %v8436 = vpop.f32.mrb[0].mxu0
  %8437 = vmatprep.mubr.f32.mxu0 0.0
  %8438 = vmatmul.mubr.f32.gmra.mrb[0].mxu0 %v8342
  %v8439 = vpop.f32.mrb[0].mxu0
  %v8440 = vadd.f32 0.0, %v8439
  %v8441 = vpop.f32.mrb[0].mxu0
  %8442 = vmatprep.mubr.f32.mxu0 0.0
  %8443 = vmatmul.mubr.f32.gmra.mrb[0].mxu0 %v8345
  %v8444 = vpop.f32.mrb[0].mxu0
  %v8445 = vadd.f32 0.0, %v8444
  %v8446 = vpop.f32.mrb[0].mxu0
  %8447 = vmatprep.mubr.f32.mxu0 0.0
  %8448 = vmatmul.mubr.f32.gmra.mrb[0].mxu0 %v8348
  %v8449 = vpop.f32.mrb[0].mxu0
  %v8450 = vadd.f32 0.0, %v8449
  %v8451 = vpop.f32.mrb[0].mxu0
  %8452 = vmatprep.mubr.f32.mxu0 0.0
  %8453 = vmatmul.mubr.f32.gmra.mrb[0].mxu0 %v8351
  %v8454 = vpop.f32.mrb[0].mxu0
  %v8455 = vadd.f32 0.0, %v8454
  %v8456 = vpop.f32.mrb[0].mxu0
  %8457 = vdwg.mxu0
  %v8458 = vadd.f32 %v8287, %v8420
  %v8459 = vadd.f32 %v8292, %v8425
  %v8460 = vadd.f32 %v8297, %v8430
  %v8461 = vadd.f32 %v8302, %v8435
  %v8462 = vadd.f32 %v8307, %v8440
  %v8463 = vadd.f32 %v8312, %v8445
  %v8464 = vadd.f32 %v8317, %v8450
  %v8465 = vadd.f32 %v8322, %v8455
  %v8466 = vld [vmem:[%s9 + $0x610] sm:$0x1]
  %v8467 = vlaneseq
  %v8468 = vshrl.u32 %v8467, 7
  %v8469 = vsub.s32 0, %v8468
  %v8470 = vrot.slane %v8466, %v8469
  %v8471 = vadd.f32 %v8458, %v8470
  %v8472 = vadd.f32 %v8459, %v8470
  %v8473 = vadd.f32 %v8460, %v8470
  %v8474 = vadd.f32 %v8461, %v8470
  %v8475 = vadd.f32 %v8462, %v8470
  %v8476 = vadd.f32 %v8463, %v8470
  %v8477 = vadd.f32 %v8464, %v8470
  %v8478 = vadd.f32 %v8465, %v8470
  %v8479 = vmax.f32 %v8471, 0.0
  %v8480 = vmax.f32 %v8472, 0.0
  %v8481 = vmax.f32 %v8473, 0.0
  %v8482 = vmax.f32 %v8474, 0.0
  %v8483 = vmax.f32 %v8475, 0.0
  %v8484 = vmax.f32 %v8476, 0.0
  %v8485 = vmax.f32 %v8477, 0.0
  %v8486 = vmax.f32 %v8478, 0.0
  %v8487 = vld [vmem:[%s9 + $0x618] sm:$0xff]
  %v8488 = vld [vmem:[%s9 + $0x620] sm:$0xff]
  %v8489 = vld [vmem:[%s9 + $0x628] sm:$0xff]
  %v8490 = vld [vmem:[%s9 + $0x630] sm:$0xff]
  %v8491 = vld [vmem:[%s9 + $0x638] sm:$0x1]
  %v8492 = vlaneseq
  %v8493 = vshrl.u32 %v8492, 7
  %v8494 = vsub.s32 0, %v8493
  %v8495 = vrot.slane %v8491, %v8494
  %v8497 = vsel %vm216, %v8479, 0
  %v8500 = vsel %vm216, %v8480, 0
  %v8503 = vsel %vm216, %v8481, 0
  %v8506 = vsel %vm216, %v8482, 0
  %v8509 = vsel %vm216, %v8483, 0
  %v8512 = vsel %vm216, %v8484, 0
  %v8515 = vsel %vm216, %v8485, 0
  %v8518 = vsel %vm216, %v8486, 0
  %8520 = vmatprep.subr.mxu0 0.0
  %8521 = vmatpush1.msra.mxu0 %v8487
  %8522 = vmatprep.subr.mxu0 0.0
  %8523 = vmatpush1.msra.mxu0 %v8488
  %8524 = vmatprep.subr.mxu0 0.0
  %8525 = vmatpush1.msra.mxu0 %v8489
  %8526 = vmatprep.subr.mxu0 0.0
  %8527 = vmatpush1.msra.mxu0 %v8490
  %8528 = vmatprep.subr.mxu0 0.0
  %8529 = vmatpush1.msra.mxu0 0.0
  %8530 = vmatprep.subr.mxu0 0.0
  %8531 = vmatpush1.msra.mxu0 0.0
  %8532 = vmatprep.subr.mxu0 0.0
  %8533 = vmatpush1.msra.mxu0 0.0
  %8534 = vmatprep.subr.mxu0 0.0
  %8535 = vmatpush1.msra.mxu0 0.0
  %8536 = vmatprep.subr.mxu0 0.0
  %8537 = vmatpush1.msra.mxu0 0.0
  %8538 = vmatprep.subr.mxu0 0.0
  %8539 = vmatpush1.msra.mxu0 0.0
  %8540 = vmatprep.subr.mxu0 0.0
  %8541 = vmatpush1.msra.mxu0 0.0
  %8542 = vmatprep.subr.mxu0 0.0
  %8543 = vmatpush1.msra.mxu0 0.0
  %8544 = vmatprep.subr.mxu0 0.0
  %8545 = vmatpush1.msra.mxu0 0.0
  %8546 = vmatprep.subr.mxu0 0.0
  %8547 = vmatpush1.msra.mxu0 0.0
  %8548 = vmatprep.subr.mxu0 0.0
  %8549 = vmatpush1.msra.mxu0 0.0
  %8550 = vmatprep.subr.mxu0 0.0
  %8551 = vmatpush1.msra.mxu0 0.0
  %8552 = vmatprep.subr.mxu0 0.0
  %8553 = vmatpush1.msra.mxu0 0.0
  %8554 = vmatprep.subr.mxu0 0.0
  %8555 = vmatpush1.msra.mxu0 0.0
  %8556 = vmatprep.subr.mxu0 0.0
  %8557 = vmatpush1.msra.mxu0 0.0
  %8558 = vmatprep.subr.mxu0 0.0
  %8559 = vmatpush1.msra.mxu0 0.0
  %8560 = vmatprep.subr.mxu0 0.0
  %8561 = vmatpush1.msra.mxu0 0.0
  %8562 = vmatprep.subr.mxu0 0.0
  %8563 = vmatpush1.msra.mxu0 0.0
  %8564 = vmatprep.subr.mxu0 0.0
  %8565 = vmatpush1.msra.mxu0 0.0
  %8566 = vmatprep.subr.mxu0 0.0
  %8567 = vmatpush1.msra.mxu0 0.0
  %8568 = vmatprep.subr.mxu0 0.0
  %8569 = vmatpush1.msra.mxu0 0.0
  %8570 = vmatprep.subr.mxu0 0.0
  %8571 = vmatpush1.msra.mxu0 0.0
  %8572 = vmatprep.subr.mxu0 0.0
  %8573 = vmatpush1.msra.mxu0 0.0
  %8574 = vmatprep.subr.mxu0 0.0
  %8575 = vmatpush1.msra.mxu0 0.0
  %8576 = vmatprep.subr.mxu0 0.0
  %8577 = vmatpush1.msra.mxu0 0.0
  %8578 = vmatprep.subr.mxu0 0.0
  %8579 = vmatpush1.msra.mxu0 0.0
  %8580 = vmatprep.subr.mxu0 0.0
  %8581 = vmatpush1.msra.mxu0 0.0
  %8582 = vmatprep.subr.mxu0 0.0
  %8583 = vmatpush1.msra.mxu0 0.0
  %8584 = vmatprep.mubr.f32.mxu0 0.0
  %8585 = vmatmul.mubr.f32.gmra.mrb[0].mxu0 %v8497
  %v8586 = vpop.f32.mrb[0].mxu0
  %v8587 = vadd.f32 %v8495, %v8586
  %v8588 = vpop.f32.mrb[0].mxu0
  %8589 = vmatprep.mubr.f32.mxu0 0.0
  %8590 = vmatmul.mubr.f32.gmra.mrb[0].mxu0 %v8500
  %v8591 = vpop.f32.mrb[0].mxu0
  %v8592 = vadd.f32 %v8495, %v8591
  %v8593 = vpop.f32.mrb[0].mxu0
  %8594 = vmatprep.mubr.f32.mxu0 0.0
  %8595 = vmatmul.mubr.f32.gmra.mrb[0].mxu0 %v8503
  %v8596 = vpop.f32.mrb[0].mxu0
  %v8597 = vadd.f32 %v8495, %v8596
  %v8598 = vpop.f32.mrb[0].mxu0
  %8599 = vmatprep.mubr.f32.mxu0 0.0
  %8600 = vmatmul.mubr.f32.gmra.mrb[0].mxu0 %v8506
  %v8601 = vpop.f32.mrb[0].mxu0
  %v8602 = vadd.f32 %v8495, %v8601
  %v8603 = vpop.f32.mrb[0].mxu0
  %8604 = vmatprep.mubr.f32.mxu0 0.0
  %8605 = vmatmul.mubr.f32.gmra.mrb[0].mxu0 %v8509
  %v8606 = vpop.f32.mrb[0].mxu0
  %v8607 = vadd.f32 %v8495, %v8606
  %v8608 = vpop.f32.mrb[0].mxu0
  %8609 = vmatprep.mubr.f32.mxu0 0.0
  %8610 = vmatmul.mubr.f32.gmra.mrb[0].mxu0 %v8512
  %v8611 = vpop.f32.mrb[0].mxu0
  %v8612 = vadd.f32 %v8495, %v8611
  %v8613 = vpop.f32.mrb[0].mxu0
  %8614 = vmatprep.mubr.f32.mxu0 0.0
  %8615 = vmatmul.mubr.f32.gmra.mrb[0].mxu0 %v8515
  %v8616 = vpop.f32.mrb[0].mxu0
  %v8617 = vadd.f32 %v8495, %v8616
  %v8618 = vpop.f32.mrb[0].mxu0
  %8619 = vmatprep.mubr.f32.mxu0 0.0
  %8620 = vmatmul.mubr.f32.gmra.mrb[0].mxu0 %v8518
  %v8621 = vpop.f32.mrb[0].mxu0
  %v8622 = vadd.f32 %v8495, %v8621
  %v8623 = vpop.f32.mrb[0].mxu0
  %8624 = vdwg.mxu0
  %v8625 = vmax.f32 %v8587, 0.0
  %v8626 = vmax.f32 %v8592, 0.0
  %v8627 = vmax.f32 %v8597, 0.0
  %v8628 = vmax.f32 %v8602, 0.0
  %v8629 = vmax.f32 %v8607, 0.0
  %v8630 = vmax.f32 %v8612, 0.0
  %v8631 = vmax.f32 %v8617, 0.0
  %v8632 = vmax.f32 %v8622, 0.0
  %v8633 = vld [vmem:[%s9 + $0x640] sm:$0xff]
  %v8634 = vld [vmem:[%s9 + $0x648] sm:$0xff]
  %v8635 = vld [vmem:[%s9 + $0x650] sm:$0xff]
  %v8636 = vld [vmem:[%s9 + $0x658] sm:$0xff]
  %v8637 = vld [vmem:[%s9 + $0x660] sm:$0x1]
  %v8638 = vlaneseq
  %v8639 = vshrl.u32 %v8638, 7
  %v8640 = vsub.s32 0, %v8639
  %v8641 = vrot.slane %v8637, %v8640
  %v8643 = vsel %vm216, %v8625, 0
  %v8646 = vsel %vm216, %v8626, 0
  %v8649 = vsel %vm216, %v8627, 0
  %v8652 = vsel %vm216, %v8628, 0
  %v8655 = vsel %vm216, %v8629, 0
  %v8658 = vsel %vm216, %v8630, 0
  %v8661 = vsel %vm216, %v8631, 0
  %v8664 = vsel %vm216, %v8632, 0
  %8666 = vmatprep.subr.mxu0 0.0
  %8667 = vmatpush1.msra.mxu0 %v8633
  %8668 = vmatprep.subr.mxu0 0.0
  %8669 = vmatpush1.msra.mxu0 %v8634
  %8670 = vmatprep.subr.mxu0 0.0
  %8671 = vmatpush1.msra.mxu0 %v8635
  %8672 = vmatprep.subr.mxu0 0.0
  %8673 = vmatpush1.msra.mxu0 %v8636
  %8674 = vmatprep.subr.mxu0 0.0
  %8675 = vmatpush1.msra.mxu0 0.0
  %8676 = vmatprep.subr.mxu0 0.0
  %8677 = vmatpush1.msra.mxu0 0.0
  %8678 = vmatprep.subr.mxu0 0.0
  %8679 = vmatpush1.msra.mxu0 0.0
  %8680 = vmatprep.subr.mxu0 0.0
  %8681 = vmatpush1.msra.mxu0 0.0
  %8682 = vmatprep.subr.mxu0 0.0
  %8683 = vmatpush1.msra.mxu0 0.0
  %8684 = vmatprep.subr.mxu0 0.0
  %8685 = vmatpush1.msra.mxu0 0.0
  %8686 = vmatprep.subr.mxu0 0.0
  %8687 = vmatpush1.msra.mxu0 0.0
  %8688 = vmatprep.subr.mxu0 0.0
  %8689 = vmatpush1.msra.mxu0 0.0
  %8690 = vmatprep.subr.mxu0 0.0
  %8691 = vmatpush1.msra.mxu0 0.0
  %8692 = vmatprep.subr.mxu0 0.0
  %8693 = vmatpush1.msra.mxu0 0.0
  %8694 = vmatprep.subr.mxu0 0.0
  %8695 = vmatpush1.msra.mxu0 0.0
  %8696 = vmatprep.subr.mxu0 0.0
  %8697 = vmatpush1.msra.mxu0 0.0
  %8698 = vmatprep.subr.mxu0 0.0
  %8699 = vmatpush1.msra.mxu0 0.0
  %8700 = vmatprep.subr.mxu0 0.0
  %8701 = vmatpush1.msra.mxu0 0.0
  %8702 = vmatprep.subr.mxu0 0.0
  %8703 = vmatpush1.msra.mxu0 0.0
  %8704 = vmatprep.subr.mxu0 0.0
  %8705 = vmatpush1.msra.mxu0 0.0
  %8706 = vmatprep.subr.mxu0 0.0
  %8707 = vmatpush1.msra.mxu0 0.0
  %8708 = vmatprep.subr.mxu0 0.0
  %8709 = vmatpush1.msra.mxu0 0.0
  %8710 = vmatprep.subr.mxu0 0.0
  %8711 = vmatpush1.msra.mxu0 0.0
  %8712 = vmatprep.subr.mxu0 0.0
  %8713 = vmatpush1.msra.mxu0 0.0
  %8714 = vmatprep.subr.mxu0 0.0
  %8715 = vmatpush1.msra.mxu0 0.0
  %8716 = vmatprep.subr.mxu0 0.0
  %8717 = vmatpush1.msra.mxu0 0.0
  %8718 = vmatprep.subr.mxu0 0.0
  %8719 = vmatpush1.msra.mxu0 0.0
  %8720 = vmatprep.subr.mxu0 0.0
  %8721 = vmatpush1.msra.mxu0 0.0
  %8722 = vmatprep.subr.mxu0 0.0
  %8723 = vmatpush1.msra.mxu0 0.0
  %8724 = vmatprep.subr.mxu0 0.0
  %8725 = vmatpush1.msra.mxu0 0.0
  %8726 = vmatprep.subr.mxu0 0.0
  %8727 = vmatpush1.msra.mxu0 0.0
  %8728 = vmatprep.subr.mxu0 0.0
  %8729 = vmatpush1.msra.mxu0 0.0
  %8730 = vmatprep.mubr.f32.mxu0 0.0
  %8731 = vmatmul.mubr.f32.gmra.mrb[0].mxu0 %v8643
  %v8732 = vpop.f32.mrb[0].mxu0
  %v8733 = vadd.f32 %v8641, %v8732
  %v8734 = vpop.f32.mrb[0].mxu0
  %8735 = vmatprep.mubr.f32.mxu0 0.0
  %8736 = vmatmul.mubr.f32.gmra.mrb[0].mxu0 %v8646
  %v8737 = vpop.f32.mrb[0].mxu0
  %v8738 = vadd.f32 %v8641, %v8737
  %v8739 = vpop.f32.mrb[0].mxu0
  %8740 = vmatprep.mubr.f32.mxu0 0.0
  %8741 = vmatmul.mubr.f32.gmra.mrb[0].mxu0 %v8649
  %v8742 = vpop.f32.mrb[0].mxu0
  %v8743 = vadd.f32 %v8641, %v8742
  %v8744 = vpop.f32.mrb[0].mxu0
  %8745 = vmatprep.mubr.f32.mxu0 0.0
  %8746 = vmatmul.mubr.f32.gmra.mrb[0].mxu0 %v8652
  %v8747 = vpop.f32.mrb[0].mxu0
  %v8748 = vadd.f32 %v8641, %v8747
  %v8749 = vpop.f32.mrb[0].mxu0
  %8750 = vmatprep.mubr.f32.mxu0 0.0
  %8751 = vmatmul.mubr.f32.gmra.mrb[0].mxu0 %v8655
  %v8752 = vpop.f32.mrb[0].mxu0
  %v8753 = vadd.f32 %v8641, %v8752
  %v8754 = vpop.f32.mrb[0].mxu0
  %8755 = vmatprep.mubr.f32.mxu0 0.0
  %8756 = vmatmul.mubr.f32.gmra.mrb[0].mxu0 %v8658
  %v8757 = vpop.f32.mrb[0].mxu0
  %v8758 = vadd.f32 %v8641, %v8757
  %v8759 = vpop.f32.mrb[0].mxu0
  %8760 = vmatprep.mubr.f32.mxu0 0.0
  %8761 = vmatmul.mubr.f32.gmra.mrb[0].mxu0 %v8661
  %v8762 = vpop.f32.mrb[0].mxu0
  %v8763 = vadd.f32 %v8641, %v8762
  %v8764 = vpop.f32.mrb[0].mxu0
  %8765 = vmatprep.mubr.f32.mxu0 0.0
  %8766 = vmatmul.mubr.f32.gmra.mrb[0].mxu0 %v8664
  %v8767 = vpop.f32.mrb[0].mxu0
  %v8768 = vadd.f32 %v8641, %v8767
  %v8769 = vpop.f32.mrb[0].mxu0
  %8770 = vdwg.mxu0
  %v8771 = vld [vmem:[%s9 + $0x668] sm:$0x1]
  %v8772 = vld [vmem:[%s9 + $0x670] sm:$0x1]
  %v8773 = vsel %vm216, %v8733, 0.0
  %8774 = vadd.xlane.f32.xlu0 %v8773
  %v8775 = vpop.xlane.xlu0 %8774
  %v8776 = vsel %vm216, %v8738, 0.0
  %8777 = vadd.xlane.f32.xlu0 %v8776
  %v8778 = vpop.xlane.xlu0 %8777
  %v8779 = vsel %vm216, %v8743, 0.0
  %8780 = vadd.xlane.f32.xlu0 %v8779
  %v8781 = vpop.xlane.xlu0 %8780
  %v8782 = vsel %vm216, %v8748, 0.0
  %8783 = vadd.xlane.f32.xlu0 %v8782
  %v8784 = vpop.xlane.xlu0 %8783
  %v8785 = vsel %vm216, %v8753, 0.0
  %8786 = vadd.xlane.f32.xlu0 %v8785
  %v8787 = vpop.xlane.xlu0 %8786
  %v8788 = vsel %vm216, %v8758, 0.0
  %8789 = vadd.xlane.f32.xlu0 %v8788
  %v8790 = vpop.xlane.xlu0 %8789
  %v8791 = vsel %vm216, %v8763, 0.0
  %8792 = vadd.xlane.f32.xlu0 %v8791
  %v8793 = vpop.xlane.xlu0 %8792
  %v8794 = vsel %vm216, %v8768, 0.0
  %8795 = vadd.xlane.f32.xlu0 %v8794
  %v8796 = vpop.xlane.xlu0 %8795
  %v8797 = vmul.f32 %v8775, %v558
  %v8798 = vmul.f32 %v8778, %v558
  %v8799 = vmul.f32 %v8781, %v558
  %v8800 = vmul.f32 %v8784, %v558
  %v8801 = vmul.f32 %v8787, %v558
  %v8802 = vmul.f32 %v8790, %v558
  %v8803 = vmul.f32 %v8793, %v558
  %v8804 = vmul.f32 %v8796, %v558
  %v8805 = vsub.f32 %v8733, %v8797
  %v8806 = vsub.f32 %v8738, %v8798
  %v8807 = vsub.f32 %v8743, %v8799
  %v8808 = vsub.f32 %v8748, %v8800
  %v8809 = vsub.f32 %v8753, %v8801
  %v8810 = vsub.f32 %v8758, %v8802
  %v8811 = vsub.f32 %v8763, %v8803
  %v8812 = vsub.f32 %v8768, %v8804
  %v8813 = vmul.f32 %v8805, %v8805
  %v8814 = vmul.f32 %v8806, %v8806
  %v8815 = vmul.f32 %v8807, %v8807
  %v8816 = vmul.f32 %v8808, %v8808
  %v8817 = vmul.f32 %v8809, %v8809
  %v8818 = vmul.f32 %v8810, %v8810
  %v8819 = vmul.f32 %v8811, %v8811
  %v8820 = vmul.f32 %v8812, %v8812
  %v8821 = vsel %vm216, %v8813, 0.0
  %8822 = vadd.xlane.f32.xlu0 %v8821
  %v8823 = vpop.xlane.xlu0 %8822
  %v8824 = vsel %vm216, %v8814, 0.0
  %8825 = vadd.xlane.f32.xlu0 %v8824
  %v8826 = vpop.xlane.xlu0 %8825
  %v8827 = vsel %vm216, %v8815, 0.0
  %8828 = vadd.xlane.f32.xlu0 %v8827
  %v8829 = vpop.xlane.xlu0 %8828
  %v8830 = vsel %vm216, %v8816, 0.0
  %8831 = vadd.xlane.f32.xlu0 %v8830
  %v8832 = vpop.xlane.xlu0 %8831
  %v8833 = vsel %vm216, %v8817, 0.0
  %8834 = vadd.xlane.f32.xlu0 %v8833
  %v8835 = vpop.xlane.xlu0 %8834
  %v8836 = vsel %vm216, %v8818, 0.0
  %8837 = vadd.xlane.f32.xlu0 %v8836
  %v8838 = vpop.xlane.xlu0 %8837
  %v8839 = vsel %vm216, %v8819, 0.0
  %8840 = vadd.xlane.f32.xlu0 %v8839
  %v8841 = vpop.xlane.xlu0 %8840
  %v8842 = vsel %vm216, %v8820, 0.0
  %8843 = vadd.xlane.f32.xlu0 %v8842
  %v8844 = vpop.xlane.xlu0 %8843
  %v8845 = vmul.f32 %v8823, %v558
  %v8846 = vmul.f32 %v8826, %v558
  %v8847 = vmul.f32 %v8829, %v558
  %v8848 = vmul.f32 %v8832, %v558
  %v8849 = vmul.f32 %v8835, %v558
  %v8850 = vmul.f32 %v8838, %v558
  %v8851 = vmul.f32 %v8841, %v558
  %v8852 = vmul.f32 %v8844, %v558
  %v8853 = vadd.f32 %v8845, 1e-05
  %v8854 = vadd.f32 %v8846, 1e-05
  %v8855 = vadd.f32 %v8847, 1e-05
  %v8856 = vadd.f32 %v8848, 1e-05
  %v8857 = vadd.f32 %v8849, 1e-05
  %v8858 = vadd.f32 %v8850, 1e-05
  %v8859 = vadd.f32 %v8851, 1e-05
  %v8860 = vadd.f32 %v8852, 1e-05
  %v8861 = vrsqrt.pop %v8853
  %v8862 = vrsqrt.pop %v8854
  %v8863 = vrsqrt.pop %v8855
  %v8864 = vrsqrt.pop %v8856
  %v8865 = vrsqrt.pop %v8857
  %v8866 = vrsqrt.pop %v8858
  %v8867 = vrsqrt.pop %v8859
  %v8868 = vrsqrt.pop %v8860
  %v8869 = vmul.f32 %v8805, %v8861
  %v8870 = vmul.f32 %v8806, %v8862
  %v8871 = vmul.f32 %v8807, %v8863
  %v8872 = vmul.f32 %v8808, %v8864
  %v8873 = vmul.f32 %v8809, %v8865
  %v8874 = vmul.f32 %v8810, %v8866
  %v8875 = vmul.f32 %v8811, %v8867
  %v8876 = vmul.f32 %v8812, %v8868
  %v8877 = vlaneseq
  %v8878 = vshrl.u32 %v8877, 7
  %v8879 = vsub.s32 0, %v8878
  %v8880 = vrot.slane %v8771, %v8879
  %v8881 = vmul.f32 %v8869, %v8880
  %v8882 = vmul.f32 %v8870, %v8880
  %v8883 = vmul.f32 %v8871, %v8880
  %v8884 = vmul.f32 %v8872, %v8880
  %v8885 = vmul.f32 %v8873, %v8880
  %v8886 = vmul.f32 %v8874, %v8880
  %v8887 = vmul.f32 %v8875, %v8880
  %v8888 = vmul.f32 %v8876, %v8880
  %v8889 = vlaneseq
  %v8890 = vshrl.u32 %v8889, 7
  %v8891 = vsub.s32 0, %v8890
  %v8892 = vrot.slane %v8772, %v8891
  %v8893 = vadd.f32 %v8881, %v8892
  %v8894 = vadd.f32 %v8882, %v8892
  %v8895 = vadd.f32 %v8883, %v8892
  %v8896 = vadd.f32 %v8884, %v8892
  %v8897 = vadd.f32 %v8885, %v8892
  %v8898 = vadd.f32 %v8886, %v8892
  %v8899 = vadd.f32 %v8887, %v8892
  %v8900 = vadd.f32 %v8888, %v8892
  %v8901 = vadd.f32 %v5694, %v8893
  %v8902 = vadd.f32 %v5695, %v8894
  %v8903 = vadd.f32 %v5696, %v8895
  %v8904 = vadd.f32 %v5697, %v8896
  %v8905 = vadd.f32 %v5698, %v8897
  %v8906 = vadd.f32 %v5699, %v8898
  %v8907 = vadd.f32 %v5700, %v8899
  %v8908 = vadd.f32 %v5701, %v8900
  %v8909 = vld [vmem:[%s9 + $0x150] sm:$0xff]
  %v8910 = vld [vmem:[%s9 + $0x158] sm:$0xff]
  %v8911 = vld [vmem:[%s9 + $0x160] sm:$0xff]
  %v8912 = vld [vmem:[%s9 + $0x168] sm:$0xff]
  %v8913 = vld [vmem:[%s9 + $0x170] sm:$0x1]
  %v8914 = vlaneseq
  %v8915 = vshrl.u32 %v8914, 7
  %v8916 = vsub.s32 0, %v8915
  %v8917 = vrot.slane %v8913, %v8916
  %v8919 = vsel %vm216, %v8901, 0
  %v8922 = vsel %vm216, %v8902, 0
  %v8925 = vsel %vm216, %v8903, 0
  %v8928 = vsel %vm216, %v8904, 0
  %v8931 = vsel %vm216, %v8905, 0
  %v8934 = vsel %vm216, %v8906, 0
  %v8937 = vsel %vm216, %v8907, 0
  %v8940 = vsel %vm216, %v8908, 0
  %8942 = vmatprep.subr.mxu0 0.0
  %8943 = vmatpush1.msra.mxu0 %v8909
  %8944 = vmatprep.subr.mxu0 0.0
  %8945 = vmatpush1.msra.mxu0 %v8910
  %8946 = vmatprep.subr.mxu0 0.0
  %8947 = vmatpush1.msra.mxu0 %v8911
  %8948 = vmatprep.subr.mxu0 0.0
  %8949 = vmatpush1.msra.mxu0 %v8912
  %8950 = vmatprep.subr.mxu0 0.0
  %8951 = vmatpush1.msra.mxu0 0.0
  %8952 = vmatprep.subr.mxu0 0.0
  %8953 = vmatpush1.msra.mxu0 0.0
  %8954 = vmatprep.subr.mxu0 0.0
  %8955 = vmatpush1.msra.mxu0 0.0
  %8956 = vmatprep.subr.mxu0 0.0
  %8957 = vmatpush1.msra.mxu0 0.0
  %8958 = vmatprep.subr.mxu0 0.0
  %8959 = vmatpush1.msra.mxu0 0.0
  %8960 = vmatprep.subr.mxu0 0.0
  %8961 = vmatpush1.msra.mxu0 0.0
  %8962 = vmatprep.subr.mxu0 0.0
  %8963 = vmatpush1.msra.mxu0 0.0
  %8964 = vmatprep.subr.mxu0 0.0
  %8965 = vmatpush1.msra.mxu0 0.0
  %8966 = vmatprep.subr.mxu0 0.0
  %8967 = vmatpush1.msra.mxu0 0.0
  %8968 = vmatprep.subr.mxu0 0.0
  %8969 = vmatpush1.msra.mxu0 0.0
  %8970 = vmatprep.subr.mxu0 0.0
  %8971 = vmatpush1.msra.mxu0 0.0
  %8972 = vmatprep.subr.mxu0 0.0
  %8973 = vmatpush1.msra.mxu0 0.0
  %8974 = vmatprep.subr.mxu0 0.0
  %8975 = vmatpush1.msra.mxu0 0.0
  %8976 = vmatprep.subr.mxu0 0.0
  %8977 = vmatpush1.msra.mxu0 0.0
  %8978 = vmatprep.subr.mxu0 0.0
  %8979 = vmatpush1.msra.mxu0 0.0
  %8980 = vmatprep.subr.mxu0 0.0
  %8981 = vmatpush1.msra.mxu0 0.0
  %8982 = vmatprep.subr.mxu0 0.0
  %8983 = vmatpush1.msra.mxu0 0.0
  %8984 = vmatprep.subr.mxu0 0.0
  %8985 = vmatpush1.msra.mxu0 0.0
  %8986 = vmatprep.subr.mxu0 0.0
  %8987 = vmatpush1.msra.mxu0 0.0
  %8988 = vmatprep.subr.mxu0 0.0
  %8989 = vmatpush1.msra.mxu0 0.0
  %8990 = vmatprep.subr.mxu0 0.0
  %8991 = vmatpush1.msra.mxu0 0.0
  %8992 = vmatprep.subr.mxu0 0.0
  %8993 = vmatpush1.msra.mxu0 0.0
  %8994 = vmatprep.subr.mxu0 0.0
  %8995 = vmatpush1.msra.mxu0 0.0
  %8996 = vmatprep.subr.mxu0 0.0
  %8997 = vmatpush1.msra.mxu0 0.0
  %8998 = vmatprep.subr.mxu0 0.0
  %8999 = vmatpush1.msra.mxu0 0.0
  %9000 = vmatprep.subr.mxu0 0.0
  %9001 = vmatpush1.msra.mxu0 0.0
  %9002 = vmatprep.subr.mxu0 0.0
  %9003 = vmatpush1.msra.mxu0 0.0
  %9004 = vmatprep.subr.mxu0 0.0
  %9005 = vmatpush1.msra.mxu0 0.0
  %9006 = vmatprep.mubr.f32.mxu0 0.0
  %9007 = vmatmul.mubr.f32.gmra.mrb[0].mxu0 %v8919
  %v9008 = vpop.f32.mrb[0].mxu0
  %v9009 = vadd.f32 %v8917, %v9008
  %v9010 = vpop.f32.mrb[0].mxu0
  %9011 = vmatprep.mubr.f32.mxu0 0.0
  %9012 = vmatmul.mubr.f32.gmra.mrb[0].mxu0 %v8922
  %v9013 = vpop.f32.mrb[0].mxu0
  %v9014 = vadd.f32 %v8917, %v9013
  %v9015 = vpop.f32.mrb[0].mxu0
  %9016 = vmatprep.mubr.f32.mxu0 0.0
  %9017 = vmatmul.mubr.f32.gmra.mrb[0].mxu0 %v8925
  %v9018 = vpop.f32.mrb[0].mxu0
  %v9019 = vadd.f32 %v8917, %v9018
  %v9020 = vpop.f32.mrb[0].mxu0
  %9021 = vmatprep.mubr.f32.mxu0 0.0
  %9022 = vmatmul.mubr.f32.gmra.mrb[0].mxu0 %v8928
  %v9023 = vpop.f32.mrb[0].mxu0
  %v9024 = vadd.f32 %v8917, %v9023
  %v9025 = vpop.f32.mrb[0].mxu0
  %9026 = vmatprep.mubr.f32.mxu0 0.0
  %9027 = vmatmul.mubr.f32.gmra.mrb[0].mxu0 %v8931
  %v9028 = vpop.f32.mrb[0].mxu0
  %v9029 = vadd.f32 %v8917, %v9028
  %v9030 = vpop.f32.mrb[0].mxu0
  %9031 = vmatprep.mubr.f32.mxu0 0.0
  %9032 = vmatmul.mubr.f32.gmra.mrb[0].mxu0 %v8934
  %v9033 = vpop.f32.mrb[0].mxu0
  %v9034 = vadd.f32 %v8917, %v9033
  %v9035 = vpop.f32.mrb[0].mxu0
  %9036 = vmatprep.mubr.f32.mxu0 0.0
  %9037 = vmatmul.mubr.f32.gmra.mrb[0].mxu0 %v8937
  %v9038 = vpop.f32.mrb[0].mxu0
  %v9039 = vadd.f32 %v8917, %v9038
  %v9040 = vpop.f32.mrb[0].mxu0
  %9041 = vmatprep.mubr.f32.mxu0 0.0
  %9042 = vmatmul.mubr.f32.gmra.mrb[0].mxu0 %v8940
  %v9043 = vpop.f32.mrb[0].mxu0
  %v9044 = vadd.f32 %v8917, %v9043
  %v9045 = vpop.f32.mrb[0].mxu0
  %9046 = vdwg.mxu0
  %v9047 = vmax.f32 %v9009, 0.0
  %v9048 = vmax.f32 %v9014, 0.0
  %v9049 = vmax.f32 %v9019, 0.0
  %v9050 = vmax.f32 %v9024, 0.0
  %v9051 = vmax.f32 %v9029, 0.0
  %v9052 = vmax.f32 %v9034, 0.0
  %v9053 = vmax.f32 %v9039, 0.0
  %v9054 = vmax.f32 %v9044, 0.0
  %v9055 = vld [vmem:[%s9 + $0x178] sm:$0xff]
  %v9056 = vld [vmem:[%s9 + $0x180] sm:$0xff]
  %v9057 = vld [vmem:[%s9 + $0x188] sm:$0xff]
  %v9058 = vld [vmem:[%s9 + $0x190] sm:$0xff]
  %v9059 = vld [vmem:[%s9 + $0x198] sm:$0x1]
  %v9060 = vlaneseq
  %v9061 = vshrl.u32 %v9060, 7
  %v9062 = vsub.s32 0, %v9061
  %v9063 = vrot.slane %v9059, %v9062
  %v9065 = vsel %vm216, %v9047, 0
  %v9068 = vsel %vm216, %v9048, 0
  %v9071 = vsel %vm216, %v9049, 0
  %v9074 = vsel %vm216, %v9050, 0
  %v9077 = vsel %vm216, %v9051, 0
  %v9080 = vsel %vm216, %v9052, 0
  %v9083 = vsel %vm216, %v9053, 0
  %v9086 = vsel %vm216, %v9054, 0
  %9088 = vmatprep.subr.mxu0 0.0
  %9089 = vmatpush1.msra.mxu0 %v9055
  %9090 = vmatprep.subr.mxu0 0.0
  %9091 = vmatpush1.msra.mxu0 %v9056
  %9092 = vmatprep.subr.mxu0 0.0
  %9093 = vmatpush1.msra.mxu0 %v9057
  %9094 = vmatprep.subr.mxu0 0.0
  %9095 = vmatpush1.msra.mxu0 %v9058
  %9096 = vmatprep.subr.mxu0 0.0
  %9097 = vmatpush1.msra.mxu0 0.0
  %9098 = vmatprep.subr.mxu0 0.0
  %9099 = vmatpush1.msra.mxu0 0.0
  %9100 = vmatprep.subr.mxu0 0.0
  %9101 = vmatpush1.msra.mxu0 0.0
  %9102 = vmatprep.subr.mxu0 0.0
  %9103 = vmatpush1.msra.mxu0 0.0
  %9104 = vmatprep.subr.mxu0 0.0
  %9105 = vmatpush1.msra.mxu0 0.0
  %9106 = vmatprep.subr.mxu0 0.0
  %9107 = vmatpush1.msra.mxu0 0.0
  %9108 = vmatprep.subr.mxu0 0.0
  %9109 = vmatpush1.msra.mxu0 0.0
  %9110 = vmatprep.subr.mxu0 0.0
  %9111 = vmatpush1.msra.mxu0 0.0
  %9112 = vmatprep.subr.mxu0 0.0
  %9113 = vmatpush1.msra.mxu0 0.0
  %9114 = vmatprep.subr.mxu0 0.0
  %9115 = vmatpush1.msra.mxu0 0.0
  %9116 = vmatprep.subr.mxu0 0.0
  %9117 = vmatpush1.msra.mxu0 0.0
  %9118 = vmatprep.subr.mxu0 0.0
  %9119 = vmatpush1.msra.mxu0 0.0
  %9120 = vmatprep.subr.mxu0 0.0
  %9121 = vmatpush1.msra.mxu0 0.0
  %9122 = vmatprep.subr.mxu0 0.0
  %9123 = vmatpush1.msra.mxu0 0.0
  %9124 = vmatprep.subr.mxu0 0.0
  %9125 = vmatpush1.msra.mxu0 0.0
  %9126 = vmatprep.subr.mxu0 0.0
  %9127 = vmatpush1.msra.mxu0 0.0
  %9128 = vmatprep.subr.mxu0 0.0
  %9129 = vmatpush1.msra.mxu0 0.0
  %9130 = vmatprep.subr.mxu0 0.0
  %9131 = vmatpush1.msra.mxu0 0.0
  %9132 = vmatprep.subr.mxu0 0.0
  %9133 = vmatpush1.msra.mxu0 0.0
  %9134 = vmatprep.subr.mxu0 0.0
  %9135 = vmatpush1.msra.mxu0 0.0
  %9136 = vmatprep.subr.mxu0 0.0
  %9137 = vmatpush1.msra.mxu0 0.0
  %9138 = vmatprep.subr.mxu0 0.0
  %9139 = vmatpush1.msra.mxu0 0.0
  %9140 = vmatprep.subr.mxu0 0.0
  %9141 = vmatpush1.msra.mxu0 0.0
  %9142 = vmatprep.subr.mxu0 0.0
  %9143 = vmatpush1.msra.mxu0 0.0
  %9144 = vmatprep.subr.mxu0 0.0
  %9145 = vmatpush1.msra.mxu0 0.0
  %9146 = vmatprep.subr.mxu0 0.0
  %9147 = vmatpush1.msra.mxu0 0.0
  %9148 = vmatprep.subr.mxu0 0.0
  %9149 = vmatpush1.msra.mxu0 0.0
  %9150 = vmatprep.subr.mxu0 0.0
  %9151 = vmatpush1.msra.mxu0 0.0
  %9152 = vmatprep.mubr.f32.mxu0 0.0
  %9153 = vmatmul.mubr.f32.gmra.mrb[0].mxu0 %v9065
  %v9154 = vpop.f32.mrb[0].mxu0
  %v9155 = vadd.f32 %v9063, %v9154
  %v9156 = vpop.f32.mrb[0].mxu0
  %9157 = vmatprep.mubr.f32.mxu0 0.0
  %9158 = vmatmul.mubr.f32.gmra.mrb[0].mxu0 %v9068
  %v9159 = vpop.f32.mrb[0].mxu0
  %v9160 = vadd.f32 %v9063, %v9159
  %v9161 = vpop.f32.mrb[0].mxu0
  %9162 = vmatprep.mubr.f32.mxu0 0.0
  %9163 = vmatmul.mubr.f32.gmra.mrb[0].mxu0 %v9071
  %v9164 = vpop.f32.mrb[0].mxu0
  %v9165 = vadd.f32 %v9063, %v9164
  %v9166 = vpop.f32.mrb[0].mxu0
  %9167 = vmatprep.mubr.f32.mxu0 0.0
  %9168 = vmatmul.mubr.f32.gmra.mrb[0].mxu0 %v9074
  %v9169 = vpop.f32.mrb[0].mxu0
  %v9170 = vadd.f32 %v9063, %v9169
  %v9171 = vpop.f32.mrb[0].mxu0
  %9172 = vmatprep.mubr.f32.mxu0 0.0
  %9173 = vmatmul.mubr.f32.gmra.mrb[0].mxu0 %v9077
  %v9174 = vpop.f32.mrb[0].mxu0
  %v9175 = vadd.f32 %v9063, %v9174
  %v9176 = vpop.f32.mrb[0].mxu0
  %9177 = vmatprep.mubr.f32.mxu0 0.0
  %9178 = vmatmul.mubr.f32.gmra.mrb[0].mxu0 %v9080
  %v9179 = vpop.f32.mrb[0].mxu0
  %v9180 = vadd.f32 %v9063, %v9179
  %v9181 = vpop.f32.mrb[0].mxu0
  %9182 = vmatprep.mubr.f32.mxu0 0.0
  %9183 = vmatmul.mubr.f32.gmra.mrb[0].mxu0 %v9083
  %v9184 = vpop.f32.mrb[0].mxu0
  %v9185 = vadd.f32 %v9063, %v9184
  %v9186 = vpop.f32.mrb[0].mxu0
  %9187 = vmatprep.mubr.f32.mxu0 0.0
  %9188 = vmatmul.mubr.f32.gmra.mrb[0].mxu0 %v9086
  %v9189 = vpop.f32.mrb[0].mxu0
  %v9190 = vadd.f32 %v9063, %v9189
  %v9191 = vpop.f32.mrb[0].mxu0
  %9192 = vdwg.mxu0
  %v9193 = vmax.f32 %v9155, 0.0
  %v9194 = vmax.f32 %v9160, 0.0
  %v9195 = vmax.f32 %v9165, 0.0
  %v9196 = vmax.f32 %v9170, 0.0
  %v9197 = vmax.f32 %v9175, 0.0
  %v9198 = vmax.f32 %v9180, 0.0
  %v9199 = vmax.f32 %v9185, 0.0
  %v9200 = vmax.f32 %v9190, 0.0
  %v9201 = vld [vmem:[%s9 + $0x1a0] sm:$0xff]
  %v9202 = vld [vmem:[%s9 + $0x1a8] sm:$0xff]
  %v9203 = vld [vmem:[%s9 + $0x1b0] sm:$0xff]
  %v9204 = vld [vmem:[%s9 + $0x1b8] sm:$0xff]
  %v9205 = vld [vmem:[%s9 + $0x1c0] sm:$0x1]
  %v9206 = vlaneseq
  %v9207 = vshrl.u32 %v9206, 7
  %v9208 = vsub.s32 0, %v9207
  %v9209 = vrot.slane %v9205, %v9208
  %v9211 = vsel %vm216, %v9193, 0
  %v9214 = vsel %vm216, %v9194, 0
  %v9217 = vsel %vm216, %v9195, 0
  %v9220 = vsel %vm216, %v9196, 0
  %v9223 = vsel %vm216, %v9197, 0
  %v9226 = vsel %vm216, %v9198, 0
  %v9229 = vsel %vm216, %v9199, 0
  %v9232 = vsel %vm216, %v9200, 0
  %9234 = vmatprep.subr.mxu0 0.0
  %9235 = vmatpush1.msra.mxu0 %v9201
  %9236 = vmatprep.subr.mxu0 0.0
  %9237 = vmatpush1.msra.mxu0 %v9202
  %9238 = vmatprep.subr.mxu0 0.0
  %9239 = vmatpush1.msra.mxu0 %v9203
  %9240 = vmatprep.subr.mxu0 0.0
  %9241 = vmatpush1.msra.mxu0 %v9204
  %9242 = vmatprep.subr.mxu0 0.0
  %9243 = vmatpush1.msra.mxu0 0.0
  %9244 = vmatprep.subr.mxu0 0.0
  %9245 = vmatpush1.msra.mxu0 0.0
  %9246 = vmatprep.subr.mxu0 0.0
  %9247 = vmatpush1.msra.mxu0 0.0
  %9248 = vmatprep.subr.mxu0 0.0
  %9249 = vmatpush1.msra.mxu0 0.0
  %9250 = vmatprep.subr.mxu0 0.0
  %9251 = vmatpush1.msra.mxu0 0.0
  %9252 = vmatprep.subr.mxu0 0.0
  %9253 = vmatpush1.msra.mxu0 0.0
  %9254 = vmatprep.subr.mxu0 0.0
  %9255 = vmatpush1.msra.mxu0 0.0
  %9256 = vmatprep.subr.mxu0 0.0
  %9257 = vmatpush1.msra.mxu0 0.0
  %9258 = vmatprep.subr.mxu0 0.0
  %9259 = vmatpush1.msra.mxu0 0.0
  %9260 = vmatprep.subr.mxu0 0.0
  %9261 = vmatpush1.msra.mxu0 0.0
  %9262 = vmatprep.subr.mxu0 0.0
  %9263 = vmatpush1.msra.mxu0 0.0
  %9264 = vmatprep.subr.mxu0 0.0
  %9265 = vmatpush1.msra.mxu0 0.0
  %9266 = vmatprep.subr.mxu0 0.0
  %9267 = vmatpush1.msra.mxu0 0.0
  %9268 = vmatprep.subr.mxu0 0.0
  %9269 = vmatpush1.msra.mxu0 0.0
  %9270 = vmatprep.subr.mxu0 0.0
  %9271 = vmatpush1.msra.mxu0 0.0
  %9272 = vmatprep.subr.mxu0 0.0
  %9273 = vmatpush1.msra.mxu0 0.0
  %9274 = vmatprep.subr.mxu0 0.0
  %9275 = vmatpush1.msra.mxu0 0.0
  %9276 = vmatprep.subr.mxu0 0.0
  %9277 = vmatpush1.msra.mxu0 0.0
  %9278 = vmatprep.subr.mxu0 0.0
  %9279 = vmatpush1.msra.mxu0 0.0
  %9280 = vmatprep.subr.mxu0 0.0
  %9281 = vmatpush1.msra.mxu0 0.0
  %9282 = vmatprep.subr.mxu0 0.0
  %9283 = vmatpush1.msra.mxu0 0.0
  %9284 = vmatprep.subr.mxu0 0.0
  %9285 = vmatpush1.msra.mxu0 0.0
  %9286 = vmatprep.subr.mxu0 0.0
  %9287 = vmatpush1.msra.mxu0 0.0
  %9288 = vmatprep.subr.mxu0 0.0
  %9289 = vmatpush1.msra.mxu0 0.0
  %9290 = vmatprep.subr.mxu0 0.0
  %9291 = vmatpush1.msra.mxu0 0.0
  %9292 = vmatprep.subr.mxu0 0.0
  %9293 = vmatpush1.msra.mxu0 0.0
  %9294 = vmatprep.subr.mxu0 0.0
  %9295 = vmatpush1.msra.mxu0 0.0
  %9296 = vmatprep.subr.mxu0 0.0
  %9297 = vmatpush1.msra.mxu0 0.0
  %9298 = vmatprep.mubr.f32.mxu0 0.0
  %9299 = vmatmul.mubr.f32.gmra.mrb[0].mxu0 %v9211
  %v9300 = vpop.f32.mrb[0].mxu0
  %v9301 = vadd.f32 %v9209, %v9300
  %v9302 = vpop.f32.mrb[0].mxu0
  %9303 = vmatprep.mubr.f32.mxu0 0.0
  %9304 = vmatmul.mubr.f32.gmra.mrb[0].mxu0 %v9214
  %v9305 = vpop.f32.mrb[0].mxu0
  %v9306 = vadd.f32 %v9209, %v9305
  %v9307 = vpop.f32.mrb[0].mxu0
  %9308 = vmatprep.mubr.f32.mxu0 0.0
  %9309 = vmatmul.mubr.f32.gmra.mrb[0].mxu0 %v9217
  %v9310 = vpop.f32.mrb[0].mxu0
  %v9311 = vadd.f32 %v9209, %v9310
  %v9312 = vpop.f32.mrb[0].mxu0
  %9313 = vmatprep.mubr.f32.mxu0 0.0
  %9314 = vmatmul.mubr.f32.gmra.mrb[0].mxu0 %v9220
  %v9315 = vpop.f32.mrb[0].mxu0
  %v9316 = vadd.f32 %v9209, %v9315
  %v9317 = vpop.f32.mrb[0].mxu0
  %9318 = vmatprep.mubr.f32.mxu0 0.0
  %9319 = vmatmul.mubr.f32.gmra.mrb[0].mxu0 %v9223
  %v9320 = vpop.f32.mrb[0].mxu0
  %v9321 = vadd.f32 %v9209, %v9320
  %v9322 = vpop.f32.mrb[0].mxu0
  %9323 = vmatprep.mubr.f32.mxu0 0.0
  %9324 = vmatmul.mubr.f32.gmra.mrb[0].mxu0 %v9226
  %v9325 = vpop.f32.mrb[0].mxu0
  %v9326 = vadd.f32 %v9209, %v9325
  %v9327 = vpop.f32.mrb[0].mxu0
  %9328 = vmatprep.mubr.f32.mxu0 0.0
  %9329 = vmatmul.mubr.f32.gmra.mrb[0].mxu0 %v9229
  %v9330 = vpop.f32.mrb[0].mxu0
  %v9331 = vadd.f32 %v9209, %v9330
  %v9332 = vpop.f32.mrb[0].mxu0
  %9333 = vmatprep.mubr.f32.mxu0 0.0
  %9334 = vmatmul.mubr.f32.gmra.mrb[0].mxu0 %v9232
  %v9335 = vpop.f32.mrb[0].mxu0
  %v9336 = vadd.f32 %v9209, %v9335
  %v9337 = vpop.f32.mrb[0].mxu0
  %9338 = vdwg.mxu0
  %9339 = vst.msk [vmem:[%s10] sm:$0xff] %vm216, %v9301
  %9340 = vst.msk [vmem:[%s10 + $0x8] sm:$0xff] %vm216, %v9306
  %9341 = vst.msk [vmem:[%s10 + $0x10] sm:$0xff] %vm216, %v9311
  %9342 = vst.msk [vmem:[%s10 + $0x18] sm:$0xff] %vm216, %v9316
  %9343 = vst.msk [vmem:[%s10 + $0x20] sm:$0xff] %vm216, %v9321
  %9344 = vst.msk [vmem:[%s10 + $0x28] sm:$0xff] %vm216, %v9326
  %9345 = vst.msk [vmem:[%s10 + $0x30] sm:$0xff] %vm216, %v9331
  %9346 = vst.msk [vmem:[%s10 + $0x38] sm:$0xff] %vm216, %v9336
  // Predicated region
  $region42: #{tpu_custom_call.1} parent=0 // pred_check
    _
  $region43: #{tpu_custom_call.1} parent=0 // pred_check_branch
    %9348 = sbr.rel (0) target = $region45
  $region44: #{tpu_custom_call.1} parent=0 // pred_region
    _
  $region45: #{tpu_custom_call.1} parent=0 // pred_fallthru
    _
  // Predicated region
  $region46: #{tpu_custom_call.1} parent=0 // pred_check
    _
  $region47: #{tpu_custom_call.1} parent=0 // pred_check_branch
    %9350 = sbr.rel (0) target = $region49
  $region48: #{tpu_custom_call.1} parent=0 // pred_region
    _
  $region49: #{tpu_custom_call.1} parent=0 // pred_fallthru
    _

</llo_original>
